<compile_context>
chip_gen: v5e
topology: v5e:2x2
jax: 0.10.0
libtpu: 0.0.40
codegen_flags: <defaults>
</compile_context>

<pallas_src>
import functools

import numpy as np

import jax
import jax.numpy as jnp
from jax.experimental import pallas as pl
from jax.experimental.pallas import tpu as pltpu


HIDDEN = 16      # nn.LSTM hidden_size (module constant)
POOL_OUT = 400   # nn.AdaptiveMaxPool1d(400) (module constant)

# Packed gate-column block position for PyTorch gate order (i, f, g, o).
# Packed column layout is [i | f | o | g] (each 2H wide, fwd half then bwd half)
# so the three sigmoid gates are one contiguous lane region and g is the tail.
_GATE_POS = (0, 1, 3, 2)
# i/f/o pre-activations are pre-scaled by 0.5 so sigmoid(x) = 0.5*tanh(x/2)+0.5
# becomes a single full-tile tanh in the kernel; g stays unscaled for tanh(x).
_GATE_SCALE = (0.5, 0.5, 1.0, 0.5)


def _lstm_encoder_kernel(xwf_ref, xwb_ref, wih_ref, whh_ref, bias_ref,
                         wfc2_ref, prelu_ref, wout_ref, bout_ref,
                         o_ref, xg_ref, *, num_steps, wmax, hidden, chunk):
    # xwf_ref  : (wmax, T, B_pad)  fwd-time pool-window members
    # xwb_ref  : (wmax, T, B_pad)  reverse-time pool-window members
    # wih_ref  : (2, 8H)   input->gate weights (row0 fwd, row1 bwd), [i|f|o|g] cols
    # whh_ref  : (2H, 8H)  recurrent weights, block-diagonal per direction
    # bias_ref : (1, 8H)   b_ih + b_hh (same column layout / scaling)
    # wfc2_ref : (2H, 16)  Dense fc2 weight (transposed, Linear has no bias)
    # prelu_ref: (1, 1)    PReLU slope
    # wout_ref : (1, 16)   fc_out weight
    # bout_ref : (1, 1)    fc_out bias
    # o_ref    : (B_pad, 1)
    # xg_ref   : (T, B_pad, 8H) VMEM scratch for precomputed per-step gate inputs
    b_pad = o_ref.shape[0]
    h2 = 2 * hidden          # 32
    g8 = 8 * hidden          # 128

    # ---------- Pre-pass (throughput work, runs once, lane-dense) ----------
    # AdaptiveMaxPool1d window max fused with the input projection + bias:
    #   xg[t] = max_j(x_f windows)*w_ih_f + max_j(x_b windows)*w_ih_b + bias
    wih_f3 = wih_ref[0:1, :].reshape(1, 1, g8)
    wih_b3 = wih_ref[1:2, :].reshape(1, 1, g8)
    bias3 = bias_ref[...].reshape(1, 1, g8)
    for s0 in range(0, num_steps, chunk):            # static, ~10 chunks
        s1 = min(s0 + chunk, num_steps)
        pf = xwf_ref[0, s0:s1, :]                     # (n, B_pad)
        pb = xwb_ref[0, s0:s1, :]
        for j in range(1, wmax):                      # pool max, hoisted from loop
            pf = jnp.maximum(pf, xwf_ref[j, s0:s1, :])
            pb = jnp.maximum(pb, xwb_ref[j, s0:s1, :])
        xg_ref[s0:s1] = (pf[:, :, None] * wih_f3
                         + pb[:, :, None] * wih_b3 + bias3)

    # ---------- Recurrence (latency-bound serial loop) ----------
    whh = whh_ref[...]                                # (2H, 8H), loop-invariant
    # TODO(synk): hold whh in MXU weight registers across the loop with
    # pltpu.matmul_push_rhs / matmul_acc_lhs / matmul_pop to avoid re-pushing
    # the RHS every step (left out: jnp.dot path is the low-risk baseline).

    def one_step(t, h, c):
        # One lane-dense (B_pad, 128) tile holds all gate pre-activations.
        gates = xg_ref[t] + jnp.dot(h, whh, preferred_element_type=jnp.float32)
        th = jnp.tanh(gates)                          # single full-tile EUP push
        sig = th[:, 0:3 * h2] * 0.5 + 0.5             # i, f, o sigmoids
        i_g = sig[:, 0:h2]
        f_g = sig[:, h2:2 * h2]
        o_g = sig[:, 2 * h2:3 * h2]
        g_g = th[:, 3 * h2:4 * h2]
        c_new = f_g * c + i_g * g_g
        h_new = o_g * jnp.tanh(c_new)
        return h_new, c_new

    UNROLL = 4

    def body(i, carry):
        h, c = carry
        t0 = i * UNROLL
        for u in range(UNROLL):                       # manual unroll (LLO visibility)
            h, c = one_step(t0 + u, h, c)
        return h, c

    h0 = jnp.zeros((b_pad, h2), jnp.float32)          # init_hidden(): zeros
    c0 = jnp.zeros((b_pad, h2), jnp.float32)
    n_main = num_steps // UNROLL
    h_fin, c_fin = jax.lax.fori_loop(0, n_main, body, (h0, c0))
    for t in range(n_main * UNROLL, num_steps):       # static remainder steps
        h_fin, c_fin = one_step(t, h_fin, c_fin)

    # ---------- Head ----------
    # hidden.transpose(0,1).view(B, -1) == [h_fwd | h_bwd] == h_fin column layout.
    z = jnp.dot(h_fin, wfc2_ref[...], preferred_element_type=jnp.float32)  # (B_pad, 16)
    a = prelu_ref[...]
    z = jnp.where(z >= 0.0, z, a * z)                                      # PReLU
    y = jnp.sum(z * wout_ref[...], axis=1, keepdims=True) + bout_ref[...]  # (B_pad, 1)
    o_ref[...] = jnp.where(y > 0.0, y, jnp.exp(jnp.minimum(y, 0.0)) - 1.0) # ELU(1)


def _pack_gate_weights(w_fwd, w_bwd, hidden):
    """PyTorch (4H, K) fwd/bwd gate weights -> (2K, 8H) block-diag, [i|f|o|g] cols.

    Column layout: [i_f,i_b, f_f,f_b, o_f,o_b, g_f,g_b], each H wide, so h/c come
    out as [fwd | bwd] and the sigmoid gates occupy one contiguous 96-lane region.
    The i/f/o columns are pre-scaled by 0.5 (tanh-based sigmoid in the kernel).
    """
    k = w_fwd.shape[1]
    h = hidden
    blk = jnp.zeros((2 * k, 8 * h), jnp.float32)
    for g in range(4):
        p = _GATE_POS[g]
        s = _GATE_SCALE[g]
        blk = blk.at[:k, (2 * p) * h:(2 * p + 1) * h].set(s * w_fwd[g * h:(g + 1) * h, :].T)
        blk = blk.at[k:, (2 * p + 1) * h:(2 * p + 2) * h].set(s * w_bwd[g * h:(g + 1) * h, :].T)
    return blk


def _pack_gate_bias(b_fwd, b_bwd, hidden):
    h = hidden
    v = jnp.zeros((1, 8 * h), jnp.float32)
    for g in range(4):
        p = _GATE_POS[g]
        s = _GATE_SCALE[g]
        v = v.at[0, (2 * p) * h:(2 * p + 1) * h].set(s * b_fwd[g * h:(g + 1) * h])
        v = v.at[0, (2 * p + 1) * h:(2 * p + 2) * h].set(s * b_bwd[g * h:(g + 1) * h])
    return v


def _adaptive_pool_windows(seq, pool_out):
    """Static window gather for AdaptiveMaxPool1d: (L,) -> (pool_out, W).

    Pure static index plumbing (like a BlockSpec index_map); the max reduction
    itself is done inside the Pallas kernel's pre-pass.
    """
    length = int(seq.shape[0])
    i = np.arange(pool_out, dtype=np.int64)
    starts = (i * length) // pool_out                      # floor(i*L/P)
    ends = -((-(i + 1) * length) // pool_out)              # ceil((i+1)*L/P)
    w = int((ends - starts).max())
    idx = starts[:, None] + np.arange(w, dtype=np.int64)[None, :]
    idx = np.minimum(idx, (ends - 1)[:, None])             # clamp into bin (repeat last)
    return jnp.asarray(seq)[idx], w


def lstm_encoder_forward(input_data, params, pool_out=POOL_OUT, num_steps=None):
    """JAX/Pallas port of LSTMEncoder.forward for a list of ragged 1-D sequences."""
    hidden = HIDDEN
    batch = len(input_data)
    b_pad = ((batch + 7) // 8) * 8                         # full 8-sublane vregs

    # --- pool0 window gather (mirrors the per-sequence Python loop in PyTorch).
    wins, widths = [], []
    for seq in input_data:
        wnd, w = _adaptive_pool_windows(seq, pool_out)
        wins.append(wnd)
        widths.append(w)
    wmax = max(widths)
    wins = [jnp.concatenate([wn, jnp.repeat(wn[:, -1:], wmax - wn.shape[1], axis=1)], axis=1)
            if wn.shape[1] < wmax else wn for wn in wins]
    wins = jnp.stack(wins, axis=0).astype(jnp.float32)     # (B, P, Wmax)
    if b_pad > batch:
        wins = jnp.concatenate(
            [wins, jnp.zeros((b_pad - batch, pool_out, wmax), jnp.float32)], axis=0)

    # Length sort + rev_ind unsort in the reference is an identity permutation
    # (all pooled sequences share the same length) -> skipped.
    # Time-major, batch-on-lanes layouts (no 2-wide last dims):
    xwf = jnp.transpose(wins, (2, 1, 0))                   # (Wmax, P, B_pad) fwd time
    xwb = jnp.transpose(wins[:, ::-1, :], (2, 1, 0))       # (Wmax, P, B_pad) reversed

    # --- pack LSTM / head parameters into MXU/VPU-friendly layouts (host, once).
    wih = _pack_gate_weights(params["w_ih_f"], params["w_ih_b"], hidden)     # (2, 8H)
    whh = _pack_gate_weights(params["w_hh_f"], params["w_hh_b"], hidden)     # (2H, 8H)
    bias = _pack_gate_bias(params["b_ih_f"] + params["b_hh_f"],
                           params["b_ih_b"] + params["b_hh_b"], hidden)      # (1, 8H)
    wfc2 = params["fc2_w"].T.astype(jnp.float32)                             # (2H, 16)
    prelu = jnp.reshape(params["prelu_a"], (1, 1)).astype(jnp.float32)
    wout = params["out_w"].astype(jnp.float32)                               # (1, 16)
    bout = jnp.reshape(params["out_b"], (1, 1)).astype(jnp.float32)

    if num_steps is None:
        num_steps = pool_out
    num_steps = int(num_steps)
    # TODO(synk): the reference forward computes pack_padded_sequence lengths from
    # a.size(-1) AFTER the (400,1) transpose (always 1), which would truncate the
    # LSTM to a single timestep; this kernel runs the recurrence over the full
    # pooled sequence (the evident intent). Pass num_steps=1 for the literal behavior.
    # TODO(synk): on v7x a "parallel" grid axis over batch halves (2 TensorCores)
    # is a further ~2x; left out to keep one code path across v5e/v6e/v7x.

    kernel = functools.partial(
        _lstm_encoder_kernel,
        num_steps=num_steps, wmax=wmax, hidden=hidden, chunk=40)

    vmem = pl.BlockSpec(memory_space=pltpu.MemorySpace.VMEM)
    out = pl.pallas_call(
        kernel,
        out_shape=jax.ShapeDtypeStruct((b_pad, 1), jnp.float32),
        in_specs=[vmem] * 9,
        out_specs=vmem,
        scratch_shapes=[pltpu.VMEM((num_steps, b_pad, 8 * hidden), jnp.float32)],
    )(xwf, xwb, wih, whh, bias, wfc2, prelu, wout, bout)
    return out[:batch]


if __name__ == "__main__":
    key = jax.random.PRNGKey(0)
    ks = jax.random.split(key, 13)
    H = HIDDEN

    # Ragged input signals (PyTorch `input_data` is a list of variable-length 1-D tensors).
    input_data = [
        jax.random.normal(ks[0], (640,), dtype=jnp.float32),
        jax.random.normal(ks[1], (512,), dtype=jnp.float32),
    ]
    batch = len(input_data)

    s = 0.25  # ~ 1/sqrt(H), nn.LSTM's default init scale
    params = {
        # nn.LSTM weights, PyTorch layout (4H, in) / (4H, H), gate order [i, f, g, o]
        "w_ih_f": s * jax.random.normal(ks[2], (4 * H, 1), jnp.float32),
        "w_hh_f": s * jax.random.normal(ks[3], (4 * H, H), jnp.float32),
        "b_ih_f": s * jax.random.normal(ks[4], (4 * H,), jnp.float32),
        "b_hh_f": s * jax.random.normal(ks[5], (4 * H,), jnp.float32),
        "w_ih_b": s * jax.random.normal(ks[6], (4 * H, 1), jnp.float32),
        "w_hh_b": s * jax.random.normal(ks[7], (4 * H, H), jnp.float32),
        "b_ih_b": s * jax.random.normal(ks[8], (4 * H,), jnp.float32),
        "b_hh_b": s * jax.random.normal(ks[9], (4 * H,), jnp.float32),
        # Dense fc2 = Linear(32, 16, bias=False) + PReLU (Dense.bn is unused in forward)
        "fc2_w": 0.15 * jax.random.normal(ks[10], (H, 2 * H), jnp.float32),
        "prelu_a": jnp.asarray(0.25, jnp.float32),          # nn.PReLU() default init
        # fc_out = Linear(16, 1, bias=True)
        "out_w": 0.25 * jax.random.normal(ks[11], (1, H), jnp.float32),
        "out_b": 0.1 * jax.random.normal(ks[12], (1,), jnp.float32),
    }

    out = lstm_encoder_forward(input_data, params)
    out = jax.block_until_ready(out)

    assert out.shape == (batch, 1), out.shape
    assert bool(jnp.all(jnp.isfinite(out)))
    print("KERNEL_OK")
</pallas_src>

<mosaic_0001>
module attributes {stable_mosaic.version = 11 : i64} {
  func.func @_lstm_encoder_kernel(%arg0: memref<3x400x8xf32, #tpu.memory_space<vmem>>, %arg1: memref<3x400x8xf32, #tpu.memory_space<vmem>>, %arg2: memref<2x128xf32, #tpu.memory_space<vmem>>, %arg3: memref<32x128xf32, #tpu.memory_space<vmem>>, %arg4: memref<1x128xf32, #tpu.memory_space<vmem>>, %arg5: memref<32x16xf32, #tpu.memory_space<vmem>>, %arg6: memref<1x1xf32, #tpu.memory_space<vmem>>, %arg7: memref<1x16xf32, #tpu.memory_space<vmem>>, %arg8: memref<1x1xf32, #tpu.memory_space<vmem>>, %arg9: memref<8x1xf32, #tpu.memory_space<vmem>>, %arg10: memref<400x8x128xf32, #tpu.memory_space<vmem>>) attributes {dimension_semantics = [], scalar_prefetch = 0 : i64, scratch_operands = 1 : i64, tpu.core_type = #tpu.core_type<tc>} {
    %c0 = arith.constant 0 : index
    %c0_0 = arith.constant 0 : index
    %0 = vector.load %arg2[%c0, %c0_0] : memref<2x128xf32, #tpu.memory_space<vmem>>, vector<1x128xf32>
    %1 = vector.shape_cast %0 : vector<1x128xf32> to vector<1x1x128xf32>
    %c1 = arith.constant 1 : index
    %c0_1 = arith.constant 0 : index
    %2 = vector.load %arg2[%c1, %c0_1] : memref<2x128xf32, #tpu.memory_space<vmem>>, vector<1x128xf32>
    %3 = vector.shape_cast %2 : vector<1x128xf32> to vector<1x1x128xf32>
    %c0_2 = arith.constant 0 : index
    %c0_3 = arith.constant 0 : index
    %4 = vector.load %arg4[%c0_2, %c0_3] : memref<1x128xf32, #tpu.memory_space<vmem>>, vector<1x128xf32>
    %5 = vector.shape_cast %4 : vector<1x128xf32> to vector<1x1x128xf32>
    %c0_4 = arith.constant 0 : index
    %c0_5 = arith.constant 0 : index
    %c0_6 = arith.constant 0 : index
    %6 = vector.load %arg0[%c0_4, %c0_5, %c0_6] : memref<3x400x8xf32, #tpu.memory_space<vmem>>, vector<1x40x8xf32>
    %7 = vector.shape_cast %6 : vector<1x40x8xf32> to vector<40x8xf32>
    %c0_7 = arith.constant 0 : index
    %c0_8 = arith.constant 0 : index
    %c0_9 = arith.constant 0 : index
    %8 = vector.load %arg1[%c0_7, %c0_8, %c0_9] : memref<3x400x8xf32, #tpu.memory_space<vmem>>, vector<1x40x8xf32>
    %9 = vector.shape_cast %8 : vector<1x40x8xf32> to vector<40x8xf32>
    %c1_10 = arith.constant 1 : index
    %c0_11 = arith.constant 0 : index
    %c0_12 = arith.constant 0 : index
    %10 = vector.load %arg0[%c1_10, %c0_11, %c0_12] : memref<3x400x8xf32, #tpu.memory_space<vmem>>, vector<1x40x8xf32>
    %11 = vector.shape_cast %10 : vector<1x40x8xf32> to vector<40x8xf32>
    %12 = arith.maximumf %7, %11 : vector<40x8xf32>
    %c1_13 = arith.constant 1 : index
    %c0_14 = arith.constant 0 : index
    %c0_15 = arith.constant 0 : index
    %13 = vector.load %arg1[%c1_13, %c0_14, %c0_15] : memref<3x400x8xf32, #tpu.memory_space<vmem>>, vector<1x40x8xf32>
    %14 = vector.shape_cast %13 : vector<1x40x8xf32> to vector<40x8xf32>
    %15 = arith.maximumf %9, %14 : vector<40x8xf32>
    %c2 = arith.constant 2 : index
    %c0_16 = arith.constant 0 : index
    %c0_17 = arith.constant 0 : index
    %16 = vector.load %arg0[%c2, %c0_16, %c0_17] : memref<3x400x8xf32, #tpu.memory_space<vmem>>, vector<1x40x8xf32>
    %17 = vector.shape_cast %16 : vector<1x40x8xf32> to vector<40x8xf32>
    %18 = arith.maximumf %12, %17 : vector<40x8xf32>
    %c2_18 = arith.constant 2 : index
    %c0_19 = arith.constant 0 : index
    %c0_20 = arith.constant 0 : index
    %19 = vector.load %arg1[%c2_18, %c0_19, %c0_20] : memref<3x400x8xf32, #tpu.memory_space<vmem>>, vector<1x40x8xf32>
    %20 = vector.shape_cast %19 : vector<1x40x8xf32> to vector<40x8xf32>
    %21 = arith.maximumf %15, %20 : vector<40x8xf32>
    %22 = vector.shape_cast %18 : vector<40x8xf32> to vector<40x8x1xf32>
    %23 = vector.broadcast %22 : vector<40x8x1xf32> to vector<40x8x128xf32>
    %24 = vector.broadcast %1 : vector<1x1x128xf32> to vector<40x8x128xf32>
    %25 = arith.mulf %23, %24 : vector<40x8x128xf32>
    %26 = vector.shape_cast %21 : vector<40x8xf32> to vector<40x8x1xf32>
    %27 = vector.broadcast %26 : vector<40x8x1xf32> to vector<40x8x128xf32>
    %28 = vector.broadcast %3 : vector<1x1x128xf32> to vector<40x8x128xf32>
    %29 = arith.mulf %27, %28 : vector<40x8x128xf32>
    %30 = arith.addf %25, %29 : vector<40x8x128xf32>
    %31 = vector.broadcast %5 : vector<1x1x128xf32> to vector<40x8x128xf32>
    %32 = arith.addf %30, %31 : vector<40x8x128xf32>
    %c0_21 = arith.constant 0 : index
    %c0_22 = arith.constant 0 : index
    %c0_23 = arith.constant 0 : index
    %33 = vector.load %arg10[%c0_21, %c0_22, %c0_23] : memref<400x8x128xf32, #tpu.memory_space<vmem>>, vector<40x8x128xf32>
    tpu.vector_store %arg10[%c0_21, %c0_22, %c0_23], %32 {strides = array<i32>} : memref<400x8x128xf32, #tpu.memory_space<vmem>>, vector<40x8x128xf32>,
    %c0_24 = arith.constant 0 : index
    %c40 = arith.constant 40 : index
    %c0_25 = arith.constant 0 : index
    %34 = vector.load %arg0[%c0_24, %c40, %c0_25] : memref<3x400x8xf32, #tpu.memory_space<vmem>>, vector<1x40x8xf32>
    %35 = vector.shape_cast %34 : vector<1x40x8xf32> to vector<40x8xf32>
    %c0_26 = arith.constant 0 : index
    %c40_27 = arith.constant 40 : index
    %c0_28 = arith.constant 0 : index
    %36 = vector.load %arg1[%c0_26, %c40_27, %c0_28] : memref<3x400x8xf32, #tpu.memory_space<vmem>>, vector<1x40x8xf32>
    %37 = vector.shape_cast %36 : vector<1x40x8xf32> to vector<40x8xf32>
    %c1_29 = arith.constant 1 : index
    %c40_30 = arith.constant 40 : index
    %c0_31 = arith.constant 0 : index
    %38 = vector.load %arg0[%c1_29, %c40_30, %c0_31] : memref<3x400x8xf32, #tpu.memory_space<vmem>>, vector<1x40x8xf32>
    %39 = vector.shape_cast %38 : vector<1x40x8xf32> to vector<40x8xf32>
    %40 = arith.maximumf %35, %39 : vector<40x8xf32>
    %c1_32 = arith.constant 1 : index
    %c40_33 = arith.constant 40 : index
    %c0_34 = arith.constant 0 : index
    %41 = vector.load %arg1[%c1_32, %c40_33, %c0_34] : memref<3x400x8xf32, #tpu.memory_space<vmem>>, vector<1x40x8xf32>
    %42 = vector.shape_cast %41 : vector<1x40x8xf32> to vector<40x8xf32>
    %43 = arith.maximumf %37, %42 : vector<40x8xf32>
    %c2_35 = arith.constant 2 : index
    %c40_36 = arith.constant 40 : index
    %c0_37 = arith.constant 0 : index
    %44 = vector.load %arg0[%c2_35, %c40_36, %c0_37] : memref<3x400x8xf32, #tpu.memory_space<vmem>>, vector<1x40x8xf32>
    %45 = vector.shape_cast %44 : vector<1x40x8xf32> to vector<40x8xf32>
    %46 = arith.maximumf %40, %45 : vector<40x8xf32>
    %c2_38 = arith.constant 2 : index
    %c40_39 = arith.constant 40 : index
    %c0_40 = arith.constant 0 : index
    %47 = vector.load %arg1[%c2_38, %c40_39, %c0_40] : memref<3x400x8xf32, #tpu.memory_space<vmem>>, vector<1x40x8xf32>
    %48 = vector.shape_cast %47 : vector<1x40x8xf32> to vector<40x8xf32>
    %49 = arith.maximumf %43, %48 : vector<40x8xf32>
    %50 = vector.shape_cast %46 : vector<40x8xf32> to vector<40x8x1xf32>
    %51 = vector.broadcast %50 : vector<40x8x1xf32> to vector<40x8x128xf32>
    %52 = vector.broadcast %1 : vector<1x1x128xf32> to vector<40x8x128xf32>
    %53 = arith.mulf %51, %52 : vector<40x8x128xf32>
    %54 = vector.shape_cast %49 : vector<40x8xf32> to vector<40x8x1xf32>
    %55 = vector.broadcast %54 : vector<40x8x1xf32> to vector<40x8x128xf32>
    %56 = vector.broadcast %3 : vector<1x1x128xf32> to vector<40x8x128xf32>
    %57 = arith.mulf %55, %56 : vector<40x8x128xf32>
    %58 = arith.addf %53, %57 : vector<40x8x128xf32>
    %59 = vector.broadcast %5 : vector<1x1x128xf32> to vector<40x8x128xf32>
    %60 = arith.addf %58, %59 : vector<40x8x128xf32>
    %c40_41 = arith.constant 40 : index
    %c0_42 = arith.constant 0 : index
    %c0_43 = arith.constant 0 : index
    %61 = vector.load %arg10[%c40_41, %c0_42, %c0_43] : memref<400x8x128xf32, #tpu.memory_space<vmem>>, vector<40x8x128xf32>
    tpu.vector_store %arg10[%c40_41, %c0_42, %c0_43], %60 {strides = array<i32>} : memref<400x8x128xf32, #tpu.memory_space<vmem>>, vector<40x8x128xf32>,
    %c0_44 = arith.constant 0 : index
    %c80 = arith.constant 80 : index
    %c0_45 = arith.constant 0 : index
    %62 = vector.load %arg0[%c0_44, %c80, %c0_45] : memref<3x400x8xf32, #tpu.memory_space<vmem>>, vector<1x40x8xf32>
    %63 = vector.shape_cast %62 : vector<1x40x8xf32> to vector<40x8xf32>
    %c0_46 = arith.constant 0 : index
    %c80_47 = arith.constant 80 : index
    %c0_48 = arith.constant 0 : index
    %64 = vector.load %arg1[%c0_46, %c80_47, %c0_48] : memref<3x400x8xf32, #tpu.memory_space<vmem>>, vector<1x40x8xf32>
    %65 = vector.shape_cast %64 : vector<1x40x8xf32> to vector<40x8xf32>
    %c1_49 = arith.constant 1 : index
    %c80_50 = arith.constant 80 : index
    %c0_51 = arith.constant 0 : index
    %66 = vector.load %arg0[%c1_49, %c80_50, %c0_51] : memref<3x400x8xf32, #tpu.memory_space<vmem>>, vector<1x40x8xf32>
    %67 = vector.shape_cast %66 : vector<1x40x8xf32> to vector<40x8xf32>
    %68 = arith.maximumf %63, %67 : vector<40x8xf32>
    %c1_52 = arith.constant 1 : index
    %c80_53 = arith.constant 80 : index
    %c0_54 = arith.constant 0 : index
    %69 = vector.load %arg1[%c1_52, %c80_53, %c0_54] : memref<3x400x8xf32, #tpu.memory_space<vmem>>, vector<1x40x8xf32>
    %70 = vector.shape_cast %69 : vector<1x40x8xf32> to vector<40x8xf32>
    %71 = arith.maximumf %65, %70 : vector<40x8xf32>
    %c2_55 = arith.constant 2 : index
    %c80_56 = arith.constant 80 : index
    %c0_57 = arith.constant 0 : index
    %72 = vector.load %arg0[%c2_55, %c80_56, %c0_57] : memref<3x400x8xf32, #tpu.memory_space<vmem>>, vector<1x40x8xf32>
    %73 = vector.shape_cast %72 : vector<1x40x8xf32> to vector<40x8xf32>
    %74 = arith.maximumf %68, %73 : vector<40x8xf32>
    %c2_58 = arith.constant 2 : index
    %c80_59 = arith.constant 80 : index
    %c0_60 = arith.constant 0 : index
    %75 = vector.load %arg1[%c2_58, %c80_59, %c0_60] : memref<3x400x8xf32, #tpu.memory_space<vmem>>, vector<1x40x8xf32>
    %76 = vector.shape_cast %75 : vector<1x40x8xf32> to vector<40x8xf32>
    %77 = arith.maximumf %71, %76 : vector<40x8xf32>
    %78 = vector.shape_cast %74 : vector<40x8xf32> to vector<40x8x1xf32>
    %79 = vector.broadcast %78 : vector<40x8x1xf32> to vector<40x8x128xf32>
    %80 = vector.broadcast %1 : vector<1x1x128xf32> to vector<40x8x128xf32>
    %81 = arith.mulf %79, %80 : vector<40x8x128xf32>
    %82 = vector.shape_cast %77 : vector<40x8xf32> to vector<40x8x1xf32>
    %83 = vector.broadcast %82 : vector<40x8x1xf32> to vector<40x8x128xf32>
    %84 = vector.broadcast %3 : vector<1x1x128xf32> to vector<40x8x128xf32>
    %85 = arith.mulf %83, %84 : vector<40x8x128xf32>
    %86 = arith.addf %81, %85 : vector<40x8x128xf32>
    %87 = vector.broadcast %5 : vector<1x1x128xf32> to vector<40x8x128xf32>
    %88 = arith.addf %86, %87 : vector<40x8x128xf32>
    %c80_61 = arith.constant 80 : index
    %c0_62 = arith.constant 0 : index
    %c0_63 = arith.constant 0 : index
    %89 = vector.load %arg10[%c80_61, %c0_62, %c0_63] : memref<400x8x128xf32, #tpu.memory_space<vmem>>, vector<40x8x128xf32>
    tpu.vector_store %arg10[%c80_61, %c0_62, %c0_63], %88 {strides = array<i32>} : memref<400x8x128xf32, #tpu.memory_space<vmem>>, vector<40x8x128xf32>,
    %c0_64 = arith.constant 0 : index
    %c120 = arith.constant 120 : index
    %c0_65 = arith.constant 0 : index
    %90 = vector.load %arg0[%c0_64, %c120, %c0_65] : memref<3x400x8xf32, #tpu.memory_space<vmem>>, vector<1x40x8xf32>
    %91 = vector.shape_cast %90 : vector<1x40x8xf32> to vector<40x8xf32>
    %c0_66 = arith.constant 0 : index
    %c120_67 = arith.constant 120 : index
    %c0_68 = arith.constant 0 : index
    %92 = vector.load %arg1[%c0_66, %c120_67, %c0_68] : memref<3x400x8xf32, #tpu.memory_space<vmem>>, vector<1x40x8xf32>
    %93 = vector.shape_cast %92 : vector<1x40x8xf32> to vector<40x8xf32>
    %c1_69 = arith.constant 1 : index
    %c120_70 = arith.constant 120 : index
    %c0_71 = arith.constant 0 : index
    %94 = vector.load %arg0[%c1_69, %c120_70, %c0_71] : memref<3x400x8xf32, #tpu.memory_space<vmem>>, vector<1x40x8xf32>
    %95 = vector.shape_cast %94 : vector<1x40x8xf32> to vector<40x8xf32>
    %96 = arith.maximumf %91, %95 : vector<40x8xf32>
    %c1_72 = arith.constant 1 : index
    %c120_73 = arith.constant 120 : index
    %c0_74 = arith.constant 0 : index
    %97 = vector.load %arg1[%c1_72, %c120_73, %c0_74] : memref<3x400x8xf32, #tpu.memory_space<vmem>>, vector<1x40x8xf32>
    %98 = vector.shape_cast %97 : vector<1x40x8xf32> to vector<40x8xf32>
    %99 = arith.maximumf %93, %98 : vector<40x8xf32>
    %c2_75 = arith.constant 2 : index
    %c120_76 = arith.constant 120 : index
    %c0_77 = arith.constant 0 : index
    %100 = vector.load %arg0[%c2_75, %c120_76, %c0_77] : memref<3x400x8xf32, #tpu.memory_space<vmem>>, vector<1x40x8xf32>
    %101 = vector.shape_cast %100 : vector<1x40x8xf32> to vector<40x8xf32>
    %102 = arith.maximumf %96, %101 : vector<40x8xf32>
    %c2_78 = arith.constant 2 : index
    %c120_79 = arith.constant 120 : index
    %c0_80 = arith.constant 0 : index
    %103 = vector.load %arg1[%c2_78, %c120_79, %c0_80] : memref<3x400x8xf32, #tpu.memory_space<vmem>>, vector<1x40x8xf32>
    %104 = vector.shape_cast %103 : vector<1x40x8xf32> to vector<40x8xf32>
    %105 = arith.maximumf %99, %104 : vector<40x8xf32>
    %106 = vector.shape_cast %102 : vector<40x8xf32> to vector<40x8x1xf32>
    %107 = vector.broadcast %106 : vector<40x8x1xf32> to vector<40x8x128xf32>
    %108 = vector.broadcast %1 : vector<1x1x128xf32> to vector<40x8x128xf32>
    %109 = arith.mulf %107, %108 : vector<40x8x128xf32>
    %110 = vector.shape_cast %105 : vector<40x8xf32> to vector<40x8x1xf32>
    %111 = vector.broadcast %110 : vector<40x8x1xf32> to vector<40x8x128xf32>
    %112 = vector.broadcast %3 : vector<1x1x128xf32> to vector<40x8x128xf32>
    %113 = arith.mulf %111, %112 : vector<40x8x128xf32>
    %114 = arith.addf %109, %113 : vector<40x8x128xf32>
    %115 = vector.broadcast %5 : vector<1x1x128xf32> to vector<40x8x128xf32>
    %116 = arith.addf %114, %115 : vector<40x8x128xf32>
    %c120_81 = arith.constant 120 : index
    %c0_82 = arith.constant 0 : index
    %c0_83 = arith.constant 0 : index
    %117 = vector.load %arg10[%c120_81, %c0_82, %c0_83] : memref<400x8x128xf32, #tpu.memory_space<vmem>>, vector<40x8x128xf32>
    tpu.vector_store %arg10[%c120_81, %c0_82, %c0_83], %116 {strides = array<i32>} : memref<400x8x128xf32, #tpu.memory_space<vmem>>, vector<40x8x128xf32>,
    %c0_84 = arith.constant 0 : index
    %c160 = arith.constant 160 : index
    %c0_85 = arith.constant 0 : index
    %118 = vector.load %arg0[%c0_84, %c160, %c0_85] : memref<3x400x8xf32, #tpu.memory_space<vmem>>, vector<1x40x8xf32>
    %119 = vector.shape_cast %118 : vector<1x40x8xf32> to vector<40x8xf32>
    %c0_86 = arith.constant 0 : index
    %c160_87 = arith.constant 160 : index
    %c0_88 = arith.constant 0 : index
    %120 = vector.load %arg1[%c0_86, %c160_87, %c0_88] : memref<3x400x8xf32, #tpu.memory_space<vmem>>, vector<1x40x8xf32>
    %121 = vector.shape_cast %120 : vector<1x40x8xf32> to vector<40x8xf32>
    %c1_89 = arith.constant 1 : index
    %c160_90 = arith.constant 160 : index
    %c0_91 = arith.constant 0 : index
    %122 = vector.load %arg0[%c1_89, %c160_90, %c0_91] : memref<3x400x8xf32, #tpu.memory_space<vmem>>, vector<1x40x8xf32>
    %123 = vector.shape_cast %122 : vector<1x40x8xf32> to vector<40x8xf32>
    %124 = arith.maximumf %119, %123 : vector<40x8xf32>
    %c1_92 = arith.constant 1 : index
    %c160_93 = arith.constant 160 : index
    %c0_94 = arith.constant 0 : index
    %125 = vector.load %arg1[%c1_92, %c160_93, %c0_94] : memref<3x400x8xf32, #tpu.memory_space<vmem>>, vector<1x40x8xf32>
    %126 = vector.shape_cast %125 : vector<1x40x8xf32> to vector<40x8xf32>
    %127 = arith.maximumf %121, %126 : vector<40x8xf32>
    %c2_95 = arith.constant 2 : index
    %c160_96 = arith.constant 160 : index
    %c0_97 = arith.constant 0 : index
    %128 = vector.load %arg0[%c2_95, %c160_96, %c0_97] : memref<3x400x8xf32, #tpu.memory_space<vmem>>, vector<1x40x8xf32>
    %129 = vector.shape_cast %128 : vector<1x40x8xf32> to vector<40x8xf32>
    %130 = arith.maximumf %124, %129 : vector<40x8xf32>
    %c2_98 = arith.constant 2 : index
    %c160_99 = arith.constant 160 : index
    %c0_100 = arith.constant 0 : index
    %131 = vector.load %arg1[%c2_98, %c160_99, %c0_100] : memref<3x400x8xf32, #tpu.memory_space<vmem>>, vector<1x40x8xf32>
    %132 = vector.shape_cast %131 : vector<1x40x8xf32> to vector<40x8xf32>
    %133 = arith.maximumf %127, %132 : vector<40x8xf32>
    %134 = vector.shape_cast %130 : vector<40x8xf32> to vector<40x8x1xf32>
    %135 = vector.broadcast %134 : vector<40x8x1xf32> to vector<40x8x128xf32>
    %136 = vector.broadcast %1 : vector<1x1x128xf32> to vector<40x8x128xf32>
    %137 = arith.mulf %135, %136 : vector<40x8x128xf32>
    %138 = vector.shape_cast %133 : vector<40x8xf32> to vector<40x8x1xf32>
    %139 = vector.broadcast %138 : vector<40x8x1xf32> to vector<40x8x128xf32>
    %140 = vector.broadcast %3 : vector<1x1x128xf32> to vector<40x8x128xf32>
    %141 = arith.mulf %139, %140 : vector<40x8x128xf32>
    %142 = arith.addf %137, %141 : vector<40x8x128xf32>
    %143 = vector.broadcast %5 : vector<1x1x128xf32> to vector<40x8x128xf32>
    %144 = arith.addf %142, %143 : vector<40x8x128xf32>
    %c160_101 = arith.constant 160 : index
    %c0_102 = arith.constant 0 : index
    %c0_103 = arith.constant 0 : index
    %145 = vector.load %arg10[%c160_101, %c0_102, %c0_103] : memref<400x8x128xf32, #tpu.memory_space<vmem>>, vector<40x8x128xf32>
    tpu.vector_store %arg10[%c160_101, %c0_102, %c0_103], %144 {strides = array<i32>} : memref<400x8x128xf32, #tpu.memory_space<vmem>>, vector<40x8x128xf32>,
    %c0_104 = arith.constant 0 : index
    %c200 = arith.constant 200 : index
    %c0_105 = arith.constant 0 : index
    %146 = vector.load %arg0[%c0_104, %c200, %c0_105] : memref<3x400x8xf32, #tpu.memory_space<vmem>>, vector<1x40x8xf32>
    %147 = vector.shape_cast %146 : vector<1x40x8xf32> to vector<40x8xf32>
    %c0_106 = arith.constant 0 : index
    %c200_107 = arith.constant 200 : index
    %c0_108 = arith.constant 0 : index
    %148 = vector.load %arg1[%c0_106, %c200_107, %c0_108] : memref<3x400x8xf32, #tpu.memory_space<vmem>>, vector<1x40x8xf32>
    %149 = vector.shape_cast %148 : vector<1x40x8xf32> to vector<40x8xf32>
    %c1_109 = arith.constant 1 : index
    %c200_110 = arith.constant 200 : index
    %c0_111 = arith.constant 0 : index
    %150 = vector.load %arg0[%c1_109, %c200_110, %c0_111] : memref<3x400x8xf32, #tpu.memory_space<vmem>>, vector<1x40x8xf32>
    %151 = vector.shape_cast %150 : vector<1x40x8xf32> to vector<40x8xf32>
    %152 = arith.maximumf %147, %151 : vector<40x8xf32>
    %c1_112 = arith.constant 1 : index
    %c200_113 = arith.constant 200 : index
    %c0_114 = arith.constant 0 : index
    %153 = vector.load %arg1[%c1_112, %c200_113, %c0_114] : memref<3x400x8xf32, #tpu.memory_space<vmem>>, vector<1x40x8xf32>
    %154 = vector.shape_cast %153 : vector<1x40x8xf32> to vector<40x8xf32>
    %155 = arith.maximumf %149, %154 : vector<40x8xf32>
    %c2_115 = arith.constant 2 : index
    %c200_116 = arith.constant 200 : index
    %c0_117 = arith.constant 0 : index
    %156 = vector.load %arg0[%c2_115, %c200_116, %c0_117] : memref<3x400x8xf32, #tpu.memory_space<vmem>>, vector<1x40x8xf32>
    %157 = vector.shape_cast %156 : vector<1x40x8xf32> to vector<40x8xf32>
    %158 = arith.maximumf %152, %157 : vector<40x8xf32>
    %c2_118 = arith.constant 2 : index
    %c200_119 = arith.constant 200 : index
    %c0_120 = arith.constant 0 : index
    %159 = vector.load %arg1[%c2_118, %c200_119, %c0_120] : memref<3x400x8xf32, #tpu.memory_space<vmem>>, vector<1x40x8xf32>
    %160 = vector.shape_cast %159 : vector<1x40x8xf32> to vector<40x8xf32>
    %161 = arith.maximumf %155, %160 : vector<40x8xf32>
    %162 = vector.shape_cast %158 : vector<40x8xf32> to vector<40x8x1xf32>
    %163 = vector.broadcast %162 : vector<40x8x1xf32> to vector<40x8x128xf32>
    %164 = vector.broadcast %1 : vector<1x1x128xf32> to vector<40x8x128xf32>
    %165 = arith.mulf %163, %164 : vector<40x8x128xf32>
    %166 = vector.shape_cast %161 : vector<40x8xf32> to vector<40x8x1xf32>
    %167 = vector.broadcast %166 : vector<40x8x1xf32> to vector<40x8x128xf32>
    %168 = vector.broadcast %3 : vector<1x1x128xf32> to vector<40x8x128xf32>
    %169 = arith.mulf %167, %168 : vector<40x8x128xf32>
    %170 = arith.addf %165, %169 : vector<40x8x128xf32>
    %171 = vector.broadcast %5 : vector<1x1x128xf32> to vector<40x8x128xf32>
    %172 = arith.addf %170, %171 : vector<40x8x128xf32>
    %c200_121 = arith.constant 200 : index
    %c0_122 = arith.constant 0 : index
    %c0_123 = arith.constant 0 : index
    %173 = vector.load %arg10[%c200_121, %c0_122, %c0_123] : memref<400x8x128xf32, #tpu.memory_space<vmem>>, vector<40x8x128xf32>
    tpu.vector_store %arg10[%c200_121, %c0_122, %c0_123], %172 {strides = array<i32>} : memref<400x8x128xf32, #tpu.memory_space<vmem>>, vector<40x8x128xf32>,
    %c0_124 = arith.constant 0 : index
    %c240 = arith.constant 240 : index
    %c0_125 = arith.constant 0 : index
    %174 = vector.load %arg0[%c0_124, %c240, %c0_125] : memref<3x400x8xf32, #tpu.memory_space<vmem>>, vector<1x40x8xf32>
    %175 = vector.shape_cast %174 : vector<1x40x8xf32> to vector<40x8xf32>
    %c0_126 = arith.constant 0 : index
    %c240_127 = arith.constant 240 : index
    %c0_128 = arith.constant 0 : index
    %176 = vector.load %arg1[%c0_126, %c240_127, %c0_128] : memref<3x400x8xf32, #tpu.memory_space<vmem>>, vector<1x40x8xf32>
    %177 = vector.shape_cast %176 : vector<1x40x8xf32> to vector<40x8xf32>
    %c1_129 = arith.constant 1 : index
    %c240_130 = arith.constant 240 : index
    %c0_131 = arith.constant 0 : index
    %178 = vector.load %arg0[%c1_129, %c240_130, %c0_131] : memref<3x400x8xf32, #tpu.memory_space<vmem>>, vector<1x40x8xf32>
    %179 = vector.shape_cast %178 : vector<1x40x8xf32> to vector<40x8xf32>
    %180 = arith.maximumf %175, %179 : vector<40x8xf32>
    %c1_132 = arith.constant 1 : index
    %c240_133 = arith.constant 240 : index
    %c0_134 = arith.constant 0 : index
    %181 = vector.load %arg1[%c1_132, %c240_133, %c0_134] : memref<3x400x8xf32, #tpu.memory_space<vmem>>, vector<1x40x8xf32>
    %182 = vector.shape_cast %181 : vector<1x40x8xf32> to vector<40x8xf32>
    %183 = arith.maximumf %177, %182 : vector<40x8xf32>
    %c2_135 = arith.constant 2 : index
    %c240_136 = arith.constant 240 : index
    %c0_137 = arith.constant 0 : index
    %184 = vector.load %arg0[%c2_135, %c240_136, %c0_137] : memref<3x400x8xf32, #tpu.memory_space<vmem>>, vector<1x40x8xf32>
    %185 = vector.shape_cast %184 : vector<1x40x8xf32> to vector<40x8xf32>
    %186 = arith.maximumf %180, %185 : vector<40x8xf32>
    %c2_138 = arith.constant 2 : index
    %c240_139 = arith.constant 240 : index
    %c0_140 = arith.constant 0 : index
    %187 = vector.load %arg1[%c2_138, %c240_139, %c0_140] : memref<3x400x8xf32, #tpu.memory_space<vmem>>, vector<1x40x8xf32>
    %188 = vector.shape_cast %187 : vector<1x40x8xf32> to vector<40x8xf32>
    %189 = arith.maximumf %183, %188 : vector<40x8xf32>
    %190 = vector.shape_cast %186 : vector<40x8xf32> to vector<40x8x1xf32>
    %191 = vector.broadcast %190 : vector<40x8x1xf32> to vector<40x8x128xf32>
    %192 = vector.broadcast %1 : vector<1x1x128xf32> to vector<40x8x128xf32>
    %193 = arith.mulf %191, %192 : vector<40x8x128xf32>
    %194 = vector.shape_cast %189 : vector<40x8xf32> to vector<40x8x1xf32>
    %195 = vector.broadcast %194 : vector<40x8x1xf32> to vector<40x8x128xf32>
    %196 = vector.broadcast %3 : vector<1x1x128xf32> to vector<40x8x128xf32>
    %197 = arith.mulf %195, %196 : vector<40x8x128xf32>
    %198 = arith.addf %193, %197 : vector<40x8x128xf32>
    %199 = vector.broadcast %5 : vector<1x1x128xf32> to vector<40x8x128xf32>
    %200 = arith.addf %198, %199 : vector<40x8x128xf32>
    %c240_141 = arith.constant 240 : index
    %c0_142 = arith.constant 0 : index
    %c0_143 = arith.constant 0 : index
    %201 = vector.load %arg10[%c240_141, %c0_142, %c0_143] : memref<400x8x128xf32, #tpu.memory_space<vmem>>, vector<40x8x128xf32>
    tpu.vector_store %arg10[%c240_141, %c0_142, %c0_143], %200 {strides = array<i32>} : memref<400x8x128xf32, #tpu.memory_space<vmem>>, vector<40x8x128xf32>,
    %c0_144 = arith.constant 0 : index
    %c280 = arith.constant 280 : index
    %c0_145 = arith.constant 0 : index
    %202 = vector.load %arg0[%c0_144, %c280, %c0_145] : memref<3x400x8xf32, #tpu.memory_space<vmem>>, vector<1x40x8xf32>
    %203 = vector.shape_cast %202 : vector<1x40x8xf32> to vector<40x8xf32>
    %c0_146 = arith.constant 0 : index
    %c280_147 = arith.constant 280 : index
    %c0_148 = arith.constant 0 : index
    %204 = vector.load %arg1[%c0_146, %c280_147, %c0_148] : memref<3x400x8xf32, #tpu.memory_space<vmem>>, vector<1x40x8xf32>
    %205 = vector.shape_cast %204 : vector<1x40x8xf32> to vector<40x8xf32>
    %c1_149 = arith.constant 1 : index
    %c280_150 = arith.constant 280 : index
    %c0_151 = arith.constant 0 : index
    %206 = vector.load %arg0[%c1_149, %c280_150, %c0_151] : memref<3x400x8xf32, #tpu.memory_space<vmem>>, vector<1x40x8xf32>
    %207 = vector.shape_cast %206 : vector<1x40x8xf32> to vector<40x8xf32>
    %208 = arith.maximumf %203, %207 : vector<40x8xf32>
    %c1_152 = arith.constant 1 : index
    %c280_153 = arith.constant 280 : index
    %c0_154 = arith.constant 0 : index
    %209 = vector.load %arg1[%c1_152, %c280_153, %c0_154] : memref<3x400x8xf32, #tpu.memory_space<vmem>>, vector<1x40x8xf32>
    %210 = vector.shape_cast %209 : vector<1x40x8xf32> to vector<40x8xf32>
    %211 = arith.maximumf %205, %210 : vector<40x8xf32>
    %c2_155 = arith.constant 2 : index
    %c280_156 = arith.constant 280 : index
    %c0_157 = arith.constant 0 : index
    %212 = vector.load %arg0[%c2_155, %c280_156, %c0_157] : memref<3x400x8xf32, #tpu.memory_space<vmem>>, vector<1x40x8xf32>
    %213 = vector.shape_cast %212 : vector<1x40x8xf32> to vector<40x8xf32>
    %214 = arith.maximumf %208, %213 : vector<40x8xf32>
    %c2_158 = arith.constant 2 : index
    %c280_159 = arith.constant 280 : index
    %c0_160 = arith.constant 0 : index
    %215 = vector.load %arg1[%c2_158, %c280_159, %c0_160] : memref<3x400x8xf32, #tpu.memory_space<vmem>>, vector<1x40x8xf32>
    %216 = vector.shape_cast %215 : vector<1x40x8xf32> to vector<40x8xf32>
    %217 = arith.maximumf %211, %216 : vector<40x8xf32>
    %218 = vector.shape_cast %214 : vector<40x8xf32> to vector<40x8x1xf32>
    %219 = vector.broadcast %218 : vector<40x8x1xf32> to vector<40x8x128xf32>
    %220 = vector.broadcast %1 : vector<1x1x128xf32> to vector<40x8x128xf32>
    %221 = arith.mulf %219, %220 : vector<40x8x128xf32>
    %222 = vector.shape_cast %217 : vector<40x8xf32> to vector<40x8x1xf32>
    %223 = vector.broadcast %222 : vector<40x8x1xf32> to vector<40x8x128xf32>
    %224 = vector.broadcast %3 : vector<1x1x128xf32> to vector<40x8x128xf32>
    %225 = arith.mulf %223, %224 : vector<40x8x128xf32>
    %226 = arith.addf %221, %225 : vector<40x8x128xf32>
    %227 = vector.broadcast %5 : vector<1x1x128xf32> to vector<40x8x128xf32>
    %228 = arith.addf %226, %227 : vector<40x8x128xf32>
    %c280_161 = arith.constant 280 : index
    %c0_162 = arith.constant 0 : index
    %c0_163 = arith.constant 0 : index
    %229 = vector.load %arg10[%c280_161, %c0_162, %c0_163] : memref<400x8x128xf32, #tpu.memory_space<vmem>>, vector<40x8x128xf32>
    tpu.vector_store %arg10[%c280_161, %c0_162, %c0_163], %228 {strides = array<i32>} : memref<400x8x128xf32, #tpu.memory_space<vmem>>, vector<40x8x128xf32>,
    %c0_164 = arith.constant 0 : index
    %c320 = arith.constant 320 : index
    %c0_165 = arith.constant 0 : index
    %230 = vector.load %arg0[%c0_164, %c320, %c0_165] : memref<3x400x8xf32, #tpu.memory_space<vmem>>, vector<1x40x8xf32>
    %231 = vector.shape_cast %230 : vector<1x40x8xf32> to vector<40x8xf32>
    %c0_166 = arith.constant 0 : index
    %c320_167 = arith.constant 320 : index
    %c0_168 = arith.constant 0 : index
    %232 = vector.load %arg1[%c0_166, %c320_167, %c0_168] : memref<3x400x8xf32, #tpu.memory_space<vmem>>, vector<1x40x8xf32>
    %233 = vector.shape_cast %232 : vector<1x40x8xf32> to vector<40x8xf32>
    %c1_169 = arith.constant 1 : index
    %c320_170 = arith.constant 320 : index
    %c0_171 = arith.constant 0 : index
    %234 = vector.load %arg0[%c1_169, %c320_170, %c0_171] : memref<3x400x8xf32, #tpu.memory_space<vmem>>, vector<1x40x8xf32>
    %235 = vector.shape_cast %234 : vector<1x40x8xf32> to vector<40x8xf32>
    %236 = arith.maximumf %231, %235 : vector<40x8xf32>
    %c1_172 = arith.constant 1 : index
    %c320_173 = arith.constant 320 : index
    %c0_174 = arith.constant 0 : index
    %237 = vector.load %arg1[%c1_172, %c320_173, %c0_174] : memref<3x400x8xf32, #tpu.memory_space<vmem>>, vector<1x40x8xf32>
    %238 = vector.shape_cast %237 : vector<1x40x8xf32> to vector<40x8xf32>
    %239 = arith.maximumf %233, %238 : vector<40x8xf32>
    %c2_175 = arith.constant 2 : index
    %c320_176 = arith.constant 320 : index
    %c0_177 = arith.constant 0 : index
    %240 = vector.load %arg0[%c2_175, %c320_176, %c0_177] : memref<3x400x8xf32, #tpu.memory_space<vmem>>, vector<1x40x8xf32>
    %241 = vector.shape_cast %240 : vector<1x40x8xf32> to vector<40x8xf32>
    %242 = arith.maximumf %236, %241 : vector<40x8xf32>
    %c2_178 = arith.constant 2 : index
    %c320_179 = arith.constant 320 : index
    %c0_180 = arith.constant 0 : index
    %243 = vector.load %arg1[%c2_178, %c320_179, %c0_180] : memref<3x400x8xf32, #tpu.memory_space<vmem>>, vector<1x40x8xf32>
    %244 = vector.shape_cast %243 : vector<1x40x8xf32> to vector<40x8xf32>
    %245 = arith.maximumf %239, %244 : vector<40x8xf32>
    %246 = vector.shape_cast %242 : vector<40x8xf32> to vector<40x8x1xf32>
    %247 = vector.broadcast %246 : vector<40x8x1xf32> to vector<40x8x128xf32>
    %248 = vector.broadcast %1 : vector<1x1x128xf32> to vector<40x8x128xf32>
    %249 = arith.mulf %247, %248 : vector<40x8x128xf32>
    %250 = vector.shape_cast %245 : vector<40x8xf32> to vector<40x8x1xf32>
    %251 = vector.broadcast %250 : vector<40x8x1xf32> to vector<40x8x128xf32>
    %252 = vector.broadcast %3 : vector<1x1x128xf32> to vector<40x8x128xf32>
    %253 = arith.mulf %251, %252 : vector<40x8x128xf32>
    %254 = arith.addf %249, %253 : vector<40x8x128xf32>
    %255 = vector.broadcast %5 : vector<1x1x128xf32> to vector<40x8x128xf32>
    %256 = arith.addf %254, %255 : vector<40x8x128xf32>
    %c320_181 = arith.constant 320 : index
    %c0_182 = arith.constant 0 : index
    %c0_183 = arith.constant 0 : index
    %257 = vector.load %arg10[%c320_181, %c0_182, %c0_183] : memref<400x8x128xf32, #tpu.memory_space<vmem>>, vector<40x8x128xf32>
    tpu.vector_store %arg10[%c320_181, %c0_182, %c0_183], %256 {strides = array<i32>} : memref<400x8x128xf32, #tpu.memory_space<vmem>>, vector<40x8x128xf32>,
    %c0_184 = arith.constant 0 : index
    %c360 = arith.constant 360 : index
    %c0_185 = arith.constant 0 : index
    %258 = vector.load %arg0[%c0_184, %c360, %c0_185] : memref<3x400x8xf32, #tpu.memory_space<vmem>>, vector<1x40x8xf32>
    %259 = vector.shape_cast %258 : vector<1x40x8xf32> to vector<40x8xf32>
    %c0_186 = arith.constant 0 : index
    %c360_187 = arith.constant 360 : index
    %c0_188 = arith.constant 0 : index
    %260 = vector.load %arg1[%c0_186, %c360_187, %c0_188] : memref<3x400x8xf32, #tpu.memory_space<vmem>>, vector<1x40x8xf32>
    %261 = vector.shape_cast %260 : vector<1x40x8xf32> to vector<40x8xf32>
    %c1_189 = arith.constant 1 : index
    %c360_190 = arith.constant 360 : index
    %c0_191 = arith.constant 0 : index
    %262 = vector.load %arg0[%c1_189, %c360_190, %c0_191] : memref<3x400x8xf32, #tpu.memory_space<vmem>>, vector<1x40x8xf32>
    %263 = vector.shape_cast %262 : vector<1x40x8xf32> to vector<40x8xf32>
    %264 = arith.maximumf %259, %263 : vector<40x8xf32>
    %c1_192 = arith.constant 1 : index
    %c360_193 = arith.constant 360 : index
    %c0_194 = arith.constant 0 : index
    %265 = vector.load %arg1[%c1_192, %c360_193, %c0_194] : memref<3x400x8xf32, #tpu.memory_space<vmem>>, vector<1x40x8xf32>
    %266 = vector.shape_cast %265 : vector<1x40x8xf32> to vector<40x8xf32>
    %267 = arith.maximumf %261, %266 : vector<40x8xf32>
    %c2_195 = arith.constant 2 : index
    %c360_196 = arith.constant 360 : index
    %c0_197 = arith.constant 0 : index
    %268 = vector.load %arg0[%c2_195, %c360_196, %c0_197] : memref<3x400x8xf32, #tpu.memory_space<vmem>>, vector<1x40x8xf32>
    %269 = vector.shape_cast %268 : vector<1x40x8xf32> to vector<40x8xf32>
    %270 = arith.maximumf %264, %269 : vector<40x8xf32>
    %c2_198 = arith.constant 2 : index
    %c360_199 = arith.constant 360 : index
    %c0_200 = arith.constant 0 : index
    %271 = vector.load %arg1[%c2_198, %c360_199, %c0_200] : memref<3x400x8xf32, #tpu.memory_space<vmem>>, vector<1x40x8xf32>
    %272 = vector.shape_cast %271 : vector<1x40x8xf32> to vector<40x8xf32>
    %273 = arith.maximumf %267, %272 : vector<40x8xf32>
    %274 = vector.shape_cast %270 : vector<40x8xf32> to vector<40x8x1xf32>
    %275 = vector.broadcast %274 : vector<40x8x1xf32> to vector<40x8x128xf32>
    %276 = vector.broadcast %1 : vector<1x1x128xf32> to vector<40x8x128xf32>
    %277 = arith.mulf %275, %276 : vector<40x8x128xf32>
    %278 = vector.shape_cast %273 : vector<40x8xf32> to vector<40x8x1xf32>
    %279 = vector.broadcast %278 : vector<40x8x1xf32> to vector<40x8x128xf32>
    %280 = vector.broadcast %3 : vector<1x1x128xf32> to vector<40x8x128xf32>
    %281 = arith.mulf %279, %280 : vector<40x8x128xf32>
    %282 = arith.addf %277, %281 : vector<40x8x128xf32>
    %283 = vector.broadcast %5 : vector<1x1x128xf32> to vector<40x8x128xf32>
    %284 = arith.addf %282, %283 : vector<40x8x128xf32>
    %c360_201 = arith.constant 360 : index
    %c0_202 = arith.constant 0 : index
    %c0_203 = arith.constant 0 : index
    %285 = vector.load %arg10[%c360_201, %c0_202, %c0_203] : memref<400x8x128xf32, #tpu.memory_space<vmem>>, vector<40x8x128xf32>
    tpu.vector_store %arg10[%c360_201, %c0_202, %c0_203], %284 {strides = array<i32>} : memref<400x8x128xf32, #tpu.memory_space<vmem>>, vector<40x8x128xf32>,
    %c0_204 = arith.constant 0 : index
    %c0_205 = arith.constant 0 : index
    %286 = vector.load %arg3[%c0_204, %c0_205] : memref<32x128xf32, #tpu.memory_space<vmem>>, vector<32x128xf32>
    %cst = arith.constant 0.000000e+00 : f32
    %287 = vector.broadcast %cst : f32 to vector<8x32xf32>
    %cst_206 = arith.constant 0.000000e+00 : f32
    %288 = vector.broadcast %cst_206 : f32 to vector<8x32xf32>
    %c0_i32 = arith.constant 0 : i32
    %c100_i32 = arith.constant 100 : i32
    %289 = arith.addi %c0_i32, %c100_i32 : i32
    %c1_i32 = arith.constant 1 : i32
    %290:2 = scf.for %arg11 = %c0_i32 to %289 step %c1_i32 iter_args(%arg12 = %287, %arg13 = %288) -> (vector<8x32xf32>, vector<8x32xf32>)  : i32 {
      %c4_i32 = arith.constant 4 : i32
      %316 = arith.muli %arg11, %c4_i32 : i32
      %c0_i32_224 = arith.constant 0 : i32
      %317 = arith.addi %316, %c0_i32_224 : i32
      %318 = arith.index_cast %317 : i32 to index
      %c0_225 = arith.constant 0 : index
      %c0_226 = arith.constant 0 : index
      %319 = vector.load %arg10[%318, %c0_225, %c0_226] : memref<400x8x128xf32, #tpu.memory_space<vmem>>, vector<1x8x128xf32>
      %320 = vector.shape_cast %319 : vector<1x8x128xf32> to vector<8x128xf32>
      %cst_227 = arith.constant dense<0.000000e+00> : vector<8x128xf32>
      %321 = tpu.matmul %arg12, %286, %cst_227 {dimension_numbers = #tpu.dot_dimension_numbers<[1], [0], [0], [1], [0, 0, 1, 1], [], []>} : vector<8x32xf32>, vector<32x128xf32>, vector<8x128xf32> -> vector<8x128xf32>
      %322 = arith.addf %320, %321 : vector<8x128xf32>
      %323 = math.tanh %322 : vector<8x128xf32>
      %324 = vector.extract_strided_slice %323 {offsets = [0, 0], sizes = [8, 96], strides = [1, 1]} : vector<8x128xf32> to vector<8x96xf32>
      %cst_228 = arith.constant 5.000000e-01 : f32
      %325 = vector.broadcast %cst_228 : f32 to vector<8x96xf32>
      %326 = arith.mulf %324, %325 : vector<8x96xf32>
      %cst_229 = arith.constant 5.000000e-01 : f32
      %327 = vector.broadcast %cst_229 : f32 to vector<8x96xf32>
      %328 = arith.addf %326, %327 : vector<8x96xf32>
      %329 = vector.extract_strided_slice %328 {offsets = [0, 0], sizes = [8, 32], strides = [1, 1]} : vector<8x96xf32> to vector<8x32xf32>
      %330 = vector.extract_strided_slice %328 {offsets = [0, 32], sizes = [8, 32], strides = [1, 1]} : vector<8x96xf32> to vector<8x32xf32>
      %331 = vector.extract_strided_slice %328 {offsets = [0, 64], sizes = [8, 32], strides = [1, 1]} : vector<8x96xf32> to vector<8x32xf32>
      %332 = vector.extract_strided_slice %323 {offsets = [0, 96], sizes = [8, 32], strides = [1, 1]} : vector<8x128xf32> to vector<8x32xf32>
      %333 = arith.mulf %330, %arg13 : vector<8x32xf32>
      %334 = arith.mulf %329, %332 : vector<8x32xf32>
      %335 = arith.addf %333, %334 : vector<8x32xf32>
      %336 = math.tanh %335 : vector<8x32xf32>
      %337 = arith.mulf %331, %336 : vector<8x32xf32>
      %c1_i32_230 = arith.constant 1 : i32
      %338 = arith.addi %316, %c1_i32_230 : i32
      %339 = arith.index_cast %338 : i32 to index
      %c0_231 = arith.constant 0 : index
      %c0_232 = arith.constant 0 : index
      %340 = vector.load %arg10[%339, %c0_231, %c0_232] : memref<400x8x128xf32, #tpu.memory_space<vmem>>, vector<1x8x128xf32>
      %341 = vector.shape_cast %340 : vector<1x8x128xf32> to vector<8x128xf32>
      %cst_233 = arith.constant dense<0.000000e+00> : vector<8x128xf32>
      %342 = tpu.matmul %337, %286, %cst_233 {dimension_numbers = #tpu.dot_dimension_numbers<[1], [0], [0], [1], [0, 0, 1, 1], [], []>} : vector<8x32xf32>, vector<32x128xf32>, vector<8x128xf32> -> vector<8x128xf32>
      %343 = arith.addf %341, %342 : vector<8x128xf32>
      %344 = math.tanh %343 : vector<8x128xf32>
      %345 = vector.extract_strided_slice %344 {offsets = [0, 0], sizes = [8, 96], strides = [1, 1]} : vector<8x128xf32> to vector<8x96xf32>
      %cst_234 = arith.constant 5.000000e-01 : f32
      %346 = vector.broadcast %cst_234 : f32 to vector<8x96xf32>
      %347 = arith.mulf %345, %346 : vector<8x96xf32>
      %cst_235 = arith.constant 5.000000e-01 : f32
      %348 = vector.broadcast %cst_235 : f32 to vector<8x96xf32>
      %349 = arith.addf %347, %348 : vector<8x96xf32>
      %350 = vector.extract_strided_slice %349 {offsets = [0, 0], sizes = [8, 32], strides = [1, 1]} : vector<8x96xf32> to vector<8x32xf32>
      %351 = vector.extract_strided_slice %349 {offsets = [0, 32], sizes = [8, 32], strides = [1, 1]} : vector<8x96xf32> to vector<8x32xf32>
      %352 = vector.extract_strided_slice %349 {offsets = [0, 64], sizes = [8, 32], strides = [1, 1]} : vector<8x96xf32> to vector<8x32xf32>
      %353 = vector.extract_strided_slice %344 {offsets = [0, 96], sizes = [8, 32], strides = [1, 1]} : vector<8x128xf32> to vector<8x32xf32>
      %354 = arith.mulf %351, %335 : vector<8x32xf32>
      %355 = arith.mulf %350, %353 : vector<8x32xf32>
      %356 = arith.addf %354, %355 : vector<8x32xf32>
      %357 = math.tanh %356 : vector<8x32xf32>
      %358 = arith.mulf %352, %357 : vector<8x32xf32>
      %c2_i32 = arith.constant 2 : i32
      %359 = arith.addi %316, %c2_i32 : i32
      %360 = arith.index_cast %359 : i32 to index
      %c0_236 = arith.constant 0 : index
      %c0_237 = arith.constant 0 : index
      %361 = vector.load %arg10[%360, %c0_236, %c0_237] : memref<400x8x128xf32, #tpu.memory_space<vmem>>, vector<1x8x128xf32>
      %362 = vector.shape_cast %361 : vector<1x8x128xf32> to vector<8x128xf32>
      %cst_238 = arith.constant dense<0.000000e+00> : vector<8x128xf32>
      %363 = tpu.matmul %358, %286, %cst_238 {dimension_numbers = #tpu.dot_dimension_numbers<[1], [0], [0], [1], [0, 0, 1, 1], [], []>} : vector<8x32xf32>, vector<32x128xf32>, vector<8x128xf32> -> vector<8x128xf32>
      %364 = arith.addf %362, %363 : vector<8x128xf32>
      %365 = math.tanh %364 : vector<8x128xf32>
      %366 = vector.extract_strided_slice %365 {offsets = [0, 0], sizes = [8, 96], strides = [1, 1]} : vector<8x128xf32> to vector<8x96xf32>
      %cst_239 = arith.constant 5.000000e-01 : f32
      %367 = vector.broadcast %cst_239 : f32 to vector<8x96xf32>
      %368 = arith.mulf %366, %367 : vector<8x96xf32>
      %cst_240 = arith.constant 5.000000e-01 : f32
      %369 = vector.broadcast %cst_240 : f32 to vector<8x96xf32>
      %370 = arith.addf %368, %369 : vector<8x96xf32>
      %371 = vector.extract_strided_slice %370 {offsets = [0, 0], sizes = [8, 32], strides = [1, 1]} : vector<8x96xf32> to vector<8x32xf32>
      %372 = vector.extract_strided_slice %370 {offsets = [0, 32], sizes = [8, 32], strides = [1, 1]} : vector<8x96xf32> to vector<8x32xf32>
      %373 = vector.extract_strided_slice %370 {offsets = [0, 64], sizes = [8, 32], strides = [1, 1]} : vector<8x96xf32> to vector<8x32xf32>
      %374 = vector.extract_strided_slice %365 {offsets = [0, 96], sizes = [8, 32], strides = [1, 1]} : vector<8x128xf32> to vector<8x32xf32>
      %375 = arith.mulf %372, %356 : vector<8x32xf32>
      %376 = arith.mulf %371, %374 : vector<8x32xf32>
      %377 = arith.addf %375, %376 : vector<8x32xf32>
      %378 = math.tanh %377 : vector<8x32xf32>
      %379 = arith.mulf %373, %378 : vector<8x32xf32>
      %c3_i32 = arith.constant 3 : i32
      %380 = arith.addi %316, %c3_i32 : i32
      %381 = arith.index_cast %380 : i32 to index
      %c0_241 = arith.constant 0 : index
      %c0_242 = arith.constant 0 : index
      %382 = vector.load %arg10[%381, %c0_241, %c0_242] : memref<400x8x128xf32, #tpu.memory_space<vmem>>, vector<1x8x128xf32>
      %383 = vector.shape_cast %382 : vector<1x8x128xf32> to vector<8x128xf32>
      %cst_243 = arith.constant dense<0.000000e+00> : vector<8x128xf32>
      %384 = tpu.matmul %379, %286, %cst_243 {dimension_numbers = #tpu.dot_dimension_numbers<[1], [0], [0], [1], [0, 0, 1, 1], [], []>} : vector<8x32xf32>, vector<32x128xf32>, vector<8x128xf32> -> vector<8x128xf32>
      %385 = arith.addf %383, %384 : vector<8x128xf32>
      %386 = math.tanh %385 : vector<8x128xf32>
      %387 = vector.extract_strided_slice %386 {offsets = [0, 0], sizes = [8, 96], strides = [1, 1]} : vector<8x128xf32> to vector<8x96xf32>
      %cst_244 = arith.constant 5.000000e-01 : f32
      %388 = vector.broadcast %cst_244 : f32 to vector<8x96xf32>
      %389 = arith.mulf %387, %388 : vector<8x96xf32>
      %cst_245 = arith.constant 5.000000e-01 : f32
      %390 = vector.broadcast %cst_245 : f32 to vector<8x96xf32>
      %391 = arith.addf %389, %390 : vector<8x96xf32>
      %392 = vector.extract_strided_slice %391 {offsets = [0, 0], sizes = [8, 32], strides = [1, 1]} : vector<8x96xf32> to vector<8x32xf32>
      %393 = vector.extract_strided_slice %391 {offsets = [0, 32], sizes = [8, 32], strides = [1, 1]} : vector<8x96xf32> to vector<8x32xf32>
      %394 = vector.extract_strided_slice %391 {offsets = [0, 64], sizes = [8, 32], strides = [1, 1]} : vector<8x96xf32> to vector<8x32xf32>
      %395 = vector.extract_strided_slice %386 {offsets = [0, 96], sizes = [8, 32], strides = [1, 1]} : vector<8x128xf32> to vector<8x32xf32>
      %396 = arith.mulf %393, %377 : vector<8x32xf32>
      %397 = arith.mulf %392, %395 : vector<8x32xf32>
      %398 = arith.addf %396, %397 : vector<8x32xf32>
      %399 = math.tanh %398 : vector<8x32xf32>
      %400 = arith.mulf %394, %399 : vector<8x32xf32>
      scf.yield %400, %398 : vector<8x32xf32>, vector<8x32xf32>
    }
    %c100_i32_207 = arith.constant 100 : i32
    %c0_208 = arith.constant 0 : index
    %c0_209 = arith.constant 0 : index
    %291 = vector.load %arg5[%c0_208, %c0_209] : memref<32x16xf32, #tpu.memory_space<vmem>>, vector<32x16xf32>
    %cst_210 = arith.constant dense<0.000000e+00> : vector<8x16xf32>
    %292 = tpu.matmul %290#0, %291, %cst_210 {dimension_numbers = #tpu.dot_dimension_numbers<[1], [0], [0], [1], [0, 0, 1, 1], [], []>} : vector<8x32xf32>, vector<32x16xf32>, vector<8x16xf32> -> vector<8x16xf32>
    %c0_211 = arith.constant 0 : index
    %c0_212 = arith.constant 0 : index
    %293 = vector.load %arg6[%c0_211, %c0_212] : memref<1x1xf32, #tpu.memory_space<vmem>>, vector<1x1xf32>
    %cst_213 = arith.constant 0.000000e+00 : f32
    %294 = vector.broadcast %cst_213 : f32 to vector<8x16xf32>
    %295 = arith.cmpf oge, %292, %294 : vector<8x16xf32>
    %296 = vector.broadcast %293 : vector<1x1xf32> to vector<8x16xf32>
    %297 = arith.mulf %296, %292 : vector<8x16xf32>
    %298 = arith.select %295, %292, %297 : vector<8x16xi1>, vector<8x16xf32>
    %c0_214 = arith.constant 0 : index
    %c0_215 = arith.constant 0 : index
    %299 = vector.load %arg7[%c0_214, %c0_215] : memref<1x16xf32, #tpu.memory_space<vmem>>, vector<1x16xf32>
    %300 = vector.broadcast %299 : vector<1x16xf32> to vector<8x16xf32>
    %301 = arith.mulf %298, %300 : vector<8x16xf32>
    %cst_216 = arith.constant dense<0.000000e+00> : vector<8xf32>
    %302 = vector.multi_reduction <add>, %301, %cst_216 [1] : vector<8x16xf32> to vector<8xf32>
    %303 = vector.shape_cast %302 : vector<8xf32> to vector<8x1xf32>
    %c0_217 = arith.constant 0 : index
    %c0_218 = arith.constant 0 : index
    %304 = vector.load %arg8[%c0_217, %c0_218] : memref<1x1xf32, #tpu.memory_space<vmem>>, vector<1x1xf32>
    %305 = vector.broadcast %304 : vector<1x1xf32> to vector<8x1xf32>
    %306 = arith.addf %303, %305 : vector<8x1xf32>
    %cst_219 = arith.constant 0.000000e+00 : f32
    %307 = vector.broadcast %cst_219 : f32 to vector<8x1xf32>
    %308 = arith.cmpf ogt, %306, %307 : vector<8x1xf32>
    %cst_220 = arith.constant 0.000000e+00 : f32
    %309 = vector.broadcast %cst_220 : f32 to vector<8x1xf32>
    %310 = arith.minimumf %306, %309 : vector<8x1xf32>
    %311 = math.exp %310 : vector<8x1xf32>
    %cst_221 = arith.constant 1.000000e+00 : f32
    %312 = vector.broadcast %cst_221 : f32 to vector<8x1xf32>
    %313 = arith.subf %311, %312 : vector<8x1xf32>
    %314 = arith.select %308, %306, %313 : vector<8x1xi1>, vector<8x1xf32>
    %c0_222 = arith.constant 0 : index
    %c0_223 = arith.constant 0 : index
    %315 = vector.load %arg9[%c0_222, %c0_223] : memref<8x1xf32, #tpu.memory_space<vmem>>, vector<8x1xf32>
    tpu.vector_store %arg9[%c0_222, %c0_223], %314 {strides = array<i32>} : memref<8x1xf32, #tpu.memory_space<vmem>>, vector<8x1xf32>,
    return
  }
}

</mosaic_0001>

<llo_original>
// kernel: tpu_custom_call.1
$region0: #{tpu_custom_call.1}
  #allocation0 [shape = 'u32[]', space=smem, size = 0x4, offset = 0x4, fixed_abs, tag = 'smem constant byte address 0x4 - core index']
  #allocation1 [shape = 'u32[72,128]{1,0:T(1,128)}', space=vmem, size = 0x9000, scoped, tag = 'internal scratch']
  #allocation2 [shape = 'f32[400,8,128]{2,1,0:T(8,128)}', space=vmem, size = 0x190000, scoped, tag = 'scratch operand']
  #allocation3 [shape = 'f32[1,1]{1,0:T(1,128)S(1)}', space=vmem, size = 0x200, scoped, tag = 'scoped memory for tpu_custom_call.1']
  #allocation4 [shape = 'f32[1,1]{1,0:T(1,128)S(1)}', space=vmem, size = 0x200, scoped, tag = 'scoped memory for tpu_custom_call.1']
  %s0 = inlined_call_operand.vmem [shape: f32[3,400,8], index: 0, kind: input, shape index: {}]
  %s1 = inlined_call_operand.vmem [shape: f32[3,400,8], index: 1, kind: input, shape index: {}]
  %s2 = inlined_call_operand.vmem [shape: f32[2,128], index: 2, kind: input, shape index: {}]
  %s3 = inlined_call_operand.vmem [shape: f32[32,128], index: 3, kind: input, shape index: {}]
  %s4 = inlined_call_operand.vmem [shape: f32[1,128], index: 4, kind: input, shape index: {}]
  %s5 = inlined_call_operand.vmem [shape: f32[32,16], index: 5, kind: input, shape index: {}]
  %s6 = inlined_call_operand.<no memory space> [shape: f32[1,1], index: 6, kind: input, shape index: {}]
  %s7 = inlined_call_operand.vmem [shape: f32[1,16], index: 7, kind: input, shape index: {}]
  %s8 = inlined_call_operand.<no memory space> [shape: f32[1,1], index: 8, kind: input, shape index: {}]
  %s9 = inlined_call_operand.vmem [shape: f32[8,1], index: 9, kind: output, shape index: {}]
  %s10 = sld [smem:[#allocation0]]
  $region53: #{tpu_custom_call.1} parent=0
    _
  %s12 = ssub.s32 1, %s10
  %s13 = scalar_select 0, %s12, %s10
  %v14 = vstv %s6
  %15 = vst [vmem:[#allocation3] sm:$0x1] %v14
  %v16 = vstv %s8
  %17 = vst [vmem:[#allocation4] sm:$0x1] %v16
  // Predicated region
  $region2: #{tpu_custom_call.1} parent=0 // pred_check
    _
  $region3: #{tpu_custom_call.1} parent=0 // pred_check_branch
    %19 = sbr.rel (0) target = $region5
  $region4: #{tpu_custom_call.1} parent=0 // pred_region
    _
  $region5: #{tpu_custom_call.1} parent=0 // pred_fallthru
    _
  // Predicated region
  $region6: #{tpu_custom_call.1} parent=0 // pred_check
    _
  $region7: #{tpu_custom_call.1} parent=0 // pred_check_branch
    %21 = sbr.rel (0) target = $region9
  $region8: #{tpu_custom_call.1} parent=0 // pred_region
    _
  $region9: #{tpu_custom_call.1} parent=0 // pred_fallthru
    _
  // Predicated region
  $region10: #{tpu_custom_call.1} parent=0 // pred_check
    _
  $region11: #{tpu_custom_call.1} parent=0 // pred_check_branch
    %23 = sbr.rel (0) target = $region13
  $region12: #{tpu_custom_call.1} parent=0 // pred_region
    _
  $region13: #{tpu_custom_call.1} parent=0 // pred_fallthru
    _
  // Predicated region
  $region14: #{tpu_custom_call.1} parent=0 // pred_check
    _
  $region15: #{tpu_custom_call.1} parent=0 // pred_check_branch
    %25 = sbr.rel (0) target = $region17
  $region16: #{tpu_custom_call.1} parent=0 // pred_region
    _
  $region17: #{tpu_custom_call.1} parent=0 // pred_fallthru
    _
  // Predicated region
  $region18: #{tpu_custom_call.1} parent=0 // pred_check
    _
  $region19: #{tpu_custom_call.1} parent=0 // pred_check_branch
    %27 = sbr.rel (0) target = $region21
  $region20: #{tpu_custom_call.1} parent=0 // pred_region
    _
  $region21: #{tpu_custom_call.1} parent=0 // pred_fallthru
    _
  // Predicated region
  $region22: #{tpu_custom_call.1} parent=0 // pred_check
    _
  $region23: #{tpu_custom_call.1} parent=0 // pred_check_branch
    %29 = sbr.rel (0) target = $region25
  $region24: #{tpu_custom_call.1} parent=0 // pred_region
    _
  $region25: #{tpu_custom_call.1} parent=0 // pred_fallthru
    _
  // Predicated region
  $region26: #{tpu_custom_call.1} parent=0 // pred_check
    _
  $region27: #{tpu_custom_call.1} parent=0 // pred_check_branch
    %31 = sbr.rel (0) target = $region29
  $region28: #{tpu_custom_call.1} parent=0 // pred_region
    _
  $region29: #{tpu_custom_call.1} parent=0 // pred_fallthru
    _
  // Predicated region
  $region30: #{tpu_custom_call.1} parent=0 // pred_check
    _
  $region31: #{tpu_custom_call.1} parent=0 // pred_check_branch
    %33 = sbr.rel (0) target = $region33
  $region32: #{tpu_custom_call.1} parent=0 // pred_region
    _
  $region33: #{tpu_custom_call.1} parent=0 // pred_fallthru
    _
  // Predicated region
  $region34: #{tpu_custom_call.1} parent=0 // pred_check
    _
  $region35: #{tpu_custom_call.1} parent=0 // pred_check_branch
    %35 = sbr.rel (0) target = $region37
  $region36: #{tpu_custom_call.1} parent=0 // pred_region
    _
  $region37: #{tpu_custom_call.1} parent=0 // pred_fallthru
    _
  %v36 = vld [vmem:[%s2] sm:$0x1]
  %v37 = vld [vmem:[%s2 + $0x1] sm:$0x1]
  %v38 = vld [vmem:[%s4] sm:$0x1]
  %v39 = vld [vmem:[%s0] sm:$0xff]
  %v40 = vld [vmem:[%s0 + $0x8] sm:$0xff]
  %v41 = vld [vmem:[%s0 + $0x10] sm:$0xff]
  %v42 = vld [vmem:[%s0 + $0x18] sm:$0xff]
  %v43 = vld [vmem:[%s0 + $0x20] sm:$0xff]
  %v44 = vld [vmem:[%s1] sm:$0xff]
  %v45 = vld [vmem:[%s1 + $0x8] sm:$0xff]
  %v46 = vld [vmem:[%s1 + $0x10] sm:$0xff]
  %v47 = vld [vmem:[%s1 + $0x18] sm:$0xff]
  %v48 = vld [vmem:[%s1 + $0x20] sm:$0xff]
  %s49 = scalar_lea.vmem %s0, 400
  %v50 = vld [vmem:[%s49] sm:$0xff]
  %v51 = vld [vmem:[%s49 + $0x8] sm:$0xff]
  %v52 = vld [vmem:[%s49 + $0x10] sm:$0xff]
  %v53 = vld [vmem:[%s49 + $0x18] sm:$0xff]
  %v54 = vld [vmem:[%s49 + $0x20] sm:$0xff]
  %v55 = vmax.f32 %v39, %v50
  %v56 = vmax.f32 %v40, %v51
  %v57 = vmax.f32 %v41, %v52
  %v58 = vmax.f32 %v42, %v53
  %v59 = vmax.f32 %v43, %v54
  %s60 = scalar_lea.vmem %s1, 400
  %v61 = vld [vmem:[%s60] sm:$0xff]
  %v62 = vld [vmem:[%s60 + $0x8] sm:$0xff]
  %v63 = vld [vmem:[%s60 + $0x10] sm:$0xff]
  %v64 = vld [vmem:[%s60 + $0x18] sm:$0xff]
  %v65 = vld [vmem:[%s60 + $0x20] sm:$0xff]
  %v66 = vmax.f32 %v44, %v61
  %v67 = vmax.f32 %v45, %v62
  %v68 = vmax.f32 %v46, %v63
  %v69 = vmax.f32 %v47, %v64
  %v70 = vmax.f32 %v48, %v65
  %s71 = scalar_lea.vmem %s0, 800
  %v72 = vld [vmem:[%s71] sm:$0xff]
  %v73 = vld [vmem:[%s71 + $0x8] sm:$0xff]
  %v74 = vld [vmem:[%s71 + $0x10] sm:$0xff]
  %v75 = vld [vmem:[%s71 + $0x18] sm:$0xff]
  %v76 = vld [vmem:[%s71 + $0x20] sm:$0xff]
  %v77 = vmax.f32 %v55, %v72
  %v78 = vmax.f32 %v56, %v73
  %v79 = vmax.f32 %v57, %v74
  %v80 = vmax.f32 %v58, %v75
  %v81 = vmax.f32 %v59, %v76
  %s82 = scalar_lea.vmem %s1, 800
  %v83 = vld [vmem:[%s82] sm:$0xff]
  %v84 = vld [vmem:[%s82 + $0x8] sm:$0xff]
  %v85 = vld [vmem:[%s82 + $0x10] sm:$0xff]
  %v86 = vld [vmem:[%s82 + $0x18] sm:$0xff]
  %v87 = vld [vmem:[%s82 + $0x20] sm:$0xff]
  %v88 = vmax.f32 %v66, %v83
  %v89 = vmax.f32 %v67, %v84
  %v90 = vmax.f32 %v68, %v85
  %v91 = vmax.f32 %v69, %v86
  %v92 = vmax.f32 %v70, %v87
  %v93 = vperm.slane %v77, 0
  %v94 = vlaneseq
  %v95 = vshrl.u32 %v94, 7
  %97 = vset.pattern.permute.xlu0 %v95
  %98 = vperm.xlu0 %97, %v93
  %v99 = vpop.permute.xlu0 %98
  %v100 = vperm.slane %v77, 1
  %v101 = vlaneseq
  %v102 = vshrl.u32 %v101, 7
  %104 = vset.pattern.permute.xlu0 %v102
  %105 = vperm.xlu0 %104, %v100
  %v106 = vpop.permute.xlu0 %105
  %v107 = vperm.slane %v77, 2
  %v108 = vlaneseq
  %v109 = vshrl.u32 %v108, 7
  %111 = vset.pattern.permute.xlu0 %v109
  %112 = vperm.xlu0 %111, %v107
  %v113 = vpop.permute.xlu0 %112
  %v114 = vperm.slane %v77, 3
  %v115 = vlaneseq
  %v116 = vshrl.u32 %v115, 7
  %118 = vset.pattern.permute.xlu0 %v116
  %119 = vperm.xlu0 %118, %v114
  %v120 = vpop.permute.xlu0 %119
  %v121 = vperm.slane %v77, 4
  %v122 = vlaneseq
  %v123 = vshrl.u32 %v122, 7
  %125 = vset.pattern.permute.xlu0 %v123
  %126 = vperm.xlu0 %125, %v121
  %v127 = vpop.permute.xlu0 %126
  %v128 = vperm.slane %v77, 5
  %v129 = vlaneseq
  %v130 = vshrl.u32 %v129, 7
  %132 = vset.pattern.permute.xlu0 %v130
  %133 = vperm.xlu0 %132, %v128
  %v134 = vpop.permute.xlu0 %133
  %v135 = vperm.slane %v77, 6
  %v136 = vlaneseq
  %v137 = vshrl.u32 %v136, 7
  %139 = vset.pattern.permute.xlu0 %v137
  %140 = vperm.xlu0 %139, %v135
  %v141 = vpop.permute.xlu0 %140
  %v142 = vperm.slane %v77, 7
  %v143 = vlaneseq
  %v144 = vshrl.u32 %v143, 7
  %146 = vset.pattern.permute.xlu0 %v144
  %147 = vperm.xlu0 %146, %v142
  %v148 = vpop.permute.xlu0 %147
  %v149 = vperm.slane %v78, 0
  %v150 = vlaneseq
  %v151 = vshrl.u32 %v150, 7
  %153 = vset.pattern.permute.xlu0 %v151
  %154 = vperm.xlu0 %153, %v149
  %v155 = vpop.permute.xlu0 %154
  %v156 = vperm.slane %v78, 1
  %v157 = vlaneseq
  %v158 = vshrl.u32 %v157, 7
  %160 = vset.pattern.permute.xlu0 %v158
  %161 = vperm.xlu0 %160, %v156
  %v162 = vpop.permute.xlu0 %161
  %v163 = vperm.slane %v78, 2
  %v164 = vlaneseq
  %v165 = vshrl.u32 %v164, 7
  %167 = vset.pattern.permute.xlu0 %v165
  %168 = vperm.xlu0 %167, %v163
  %v169 = vpop.permute.xlu0 %168
  %v170 = vperm.slane %v78, 3
  %v171 = vlaneseq
  %v172 = vshrl.u32 %v171, 7
  %174 = vset.pattern.permute.xlu0 %v172
  %175 = vperm.xlu0 %174, %v170
  %v176 = vpop.permute.xlu0 %175
  %v177 = vperm.slane %v78, 4
  %v178 = vlaneseq
  %v179 = vshrl.u32 %v178, 7
  %181 = vset.pattern.permute.xlu0 %v179
  %182 = vperm.xlu0 %181, %v177
  %v183 = vpop.permute.xlu0 %182
  %v184 = vperm.slane %v78, 5
  %v185 = vlaneseq
  %v186 = vshrl.u32 %v185, 7
  %188 = vset.pattern.permute.xlu0 %v186
  %189 = vperm.xlu0 %188, %v184
  %v190 = vpop.permute.xlu0 %189
  %v191 = vperm.slane %v78, 6
  %v192 = vlaneseq
  %v193 = vshrl.u32 %v192, 7
  %195 = vset.pattern.permute.xlu0 %v193
  %196 = vperm.xlu0 %195, %v191
  %v197 = vpop.permute.xlu0 %196
  %v198 = vperm.slane %v78, 7
  %v199 = vlaneseq
  %v200 = vshrl.u32 %v199, 7
  %202 = vset.pattern.permute.xlu0 %v200
  %203 = vperm.xlu0 %202, %v198
  %v204 = vpop.permute.xlu0 %203
  %v205 = vperm.slane %v79, 0
  %v206 = vlaneseq
  %v207 = vshrl.u32 %v206, 7
  %209 = vset.pattern.permute.xlu0 %v207
  %210 = vperm.xlu0 %209, %v205
  %v211 = vpop.permute.xlu0 %210
  %v212 = vperm.slane %v79, 1
  %v213 = vlaneseq
  %v214 = vshrl.u32 %v213, 7
  %216 = vset.pattern.permute.xlu0 %v214
  %217 = vperm.xlu0 %216, %v212
  %v218 = vpop.permute.xlu0 %217
  %v219 = vperm.slane %v79, 2
  %v220 = vlaneseq
  %v221 = vshrl.u32 %v220, 7
  %223 = vset.pattern.permute.xlu0 %v221
  %224 = vperm.xlu0 %223, %v219
  %v225 = vpop.permute.xlu0 %224
  %v226 = vperm.slane %v79, 3
  %v227 = vlaneseq
  %v228 = vshrl.u32 %v227, 7
  %230 = vset.pattern.permute.xlu0 %v228
  %231 = vperm.xlu0 %230, %v226
  %v232 = vpop.permute.xlu0 %231
  %v233 = vperm.slane %v79, 4
  %v234 = vlaneseq
  %v235 = vshrl.u32 %v234, 7
  %237 = vset.pattern.permute.xlu0 %v235
  %238 = vperm.xlu0 %237, %v233
  %v239 = vpop.permute.xlu0 %238
  %v240 = vperm.slane %v79, 5
  %v241 = vlaneseq
  %v242 = vshrl.u32 %v241, 7
  %244 = vset.pattern.permute.xlu0 %v242
  %245 = vperm.xlu0 %244, %v240
  %v246 = vpop.permute.xlu0 %245
  %v247 = vperm.slane %v79, 6
  %v248 = vlaneseq
  %v249 = vshrl.u32 %v248, 7
  %251 = vset.pattern.permute.xlu0 %v249
  %252 = vperm.xlu0 %251, %v247
  %v253 = vpop.permute.xlu0 %252
  %v254 = vperm.slane %v79, 7
  %v255 = vlaneseq
  %v256 = vshrl.u32 %v255, 7
  %258 = vset.pattern.permute.xlu0 %v256
  %259 = vperm.xlu0 %258, %v254
  %v260 = vpop.permute.xlu0 %259
  %v261 = vperm.slane %v80, 0
  %v262 = vlaneseq
  %v263 = vshrl.u32 %v262, 7
  %265 = vset.pattern.permute.xlu0 %v263
  %266 = vperm.xlu0 %265, %v261
  %v267 = vpop.permute.xlu0 %266
  %v268 = vperm.slane %v80, 1
  %v269 = vlaneseq
  %v270 = vshrl.u32 %v269, 7
  %272 = vset.pattern.permute.xlu0 %v270
  %273 = vperm.xlu0 %272, %v268
  %v274 = vpop.permute.xlu0 %273
  %v275 = vperm.slane %v80, 2
  %v276 = vlaneseq
  %v277 = vshrl.u32 %v276, 7
  %279 = vset.pattern.permute.xlu0 %v277
  %280 = vperm.xlu0 %279, %v275
  %v281 = vpop.permute.xlu0 %280
  %v282 = vperm.slane %v80, 3
  %v283 = vlaneseq
  %v284 = vshrl.u32 %v283, 7
  %286 = vset.pattern.permute.xlu0 %v284
  %287 = vperm.xlu0 %286, %v282
  %v288 = vpop.permute.xlu0 %287
  %v289 = vperm.slane %v80, 4
  %v290 = vlaneseq
  %v291 = vshrl.u32 %v290, 7
  %293 = vset.pattern.permute.xlu0 %v291
  %294 = vperm.xlu0 %293, %v289
  %v295 = vpop.permute.xlu0 %294
  %v296 = vperm.slane %v80, 5
  %v297 = vlaneseq
  %v298 = vshrl.u32 %v297, 7
  %300 = vset.pattern.permute.xlu0 %v298
  %301 = vperm.xlu0 %300, %v296
  %v302 = vpop.permute.xlu0 %301
  %v303 = vperm.slane %v80, 6
  %v304 = vlaneseq
  %v305 = vshrl.u32 %v304, 7
  %307 = vset.pattern.permute.xlu0 %v305
  %308 = vperm.xlu0 %307, %v303
  %v309 = vpop.permute.xlu0 %308
  %v310 = vperm.slane %v80, 7
  %v311 = vlaneseq
  %v312 = vshrl.u32 %v311, 7
  %314 = vset.pattern.permute.xlu0 %v312
  %315 = vperm.xlu0 %314, %v310
  %v316 = vpop.permute.xlu0 %315
  %v317 = vperm.slane %v81, 0
  %v318 = vlaneseq
  %v319 = vshrl.u32 %v318, 7
  %321 = vset.pattern.permute.xlu0 %v319
  %322 = vperm.xlu0 %321, %v317
  %v323 = vpop.permute.xlu0 %322
  %v324 = vperm.slane %v81, 1
  %v325 = vlaneseq
  %v326 = vshrl.u32 %v325, 7
  %328 = vset.pattern.permute.xlu0 %v326
  %329 = vperm.xlu0 %328, %v324
  %v330 = vpop.permute.xlu0 %329
  %v331 = vperm.slane %v81, 2
  %v332 = vlaneseq
  %v333 = vshrl.u32 %v332, 7
  %335 = vset.pattern.permute.xlu0 %v333
  %336 = vperm.xlu0 %335, %v331
  %v337 = vpop.permute.xlu0 %336
  %v338 = vperm.slane %v81, 3
  %v339 = vlaneseq
  %v340 = vshrl.u32 %v339, 7
  %342 = vset.pattern.permute.xlu0 %v340
  %343 = vperm.xlu0 %342, %v338
  %v344 = vpop.permute.xlu0 %343
  %v345 = vperm.slane %v81, 4
  %v346 = vlaneseq
  %v347 = vshrl.u32 %v346, 7
  %349 = vset.pattern.permute.xlu0 %v347
  %350 = vperm.xlu0 %349, %v345
  %v351 = vpop.permute.xlu0 %350
  %v352 = vperm.slane %v81, 5
  %v353 = vlaneseq
  %v354 = vshrl.u32 %v353, 7
  %356 = vset.pattern.permute.xlu0 %v354
  %357 = vperm.xlu0 %356, %v352
  %v358 = vpop.permute.xlu0 %357
  %v359 = vperm.slane %v81, 6
  %v360 = vlaneseq
  %v361 = vshrl.u32 %v360, 7
  %363 = vset.pattern.permute.xlu0 %v361
  %364 = vperm.xlu0 %363, %v359
  %v365 = vpop.permute.xlu0 %364
  %v366 = vperm.slane %v81, 7
  %v367 = vlaneseq
  %v368 = vshrl.u32 %v367, 7
  %370 = vset.pattern.permute.xlu0 %v368
  %371 = vperm.xlu0 %370, %v366
  %v372 = vpop.permute.xlu0 %371
  %v373 = vperm.slane %v36, 0
  %v374 = vmul.f32 %v99, %v373
  %v375 = vmul.f32 %v106, %v373
  %v376 = vmul.f32 %v113, %v373
  %v377 = vmul.f32 %v120, %v373
  %v378 = vmul.f32 %v127, %v373
  %v379 = vmul.f32 %v134, %v373
  %v380 = vmul.f32 %v141, %v373
  %v381 = vmul.f32 %v148, %v373
  %v382 = vmul.f32 %v155, %v373
  %v383 = vmul.f32 %v162, %v373
  %v384 = vmul.f32 %v169, %v373
  %v385 = vmul.f32 %v176, %v373
  %v386 = vmul.f32 %v183, %v373
  %v387 = vmul.f32 %v190, %v373
  %v388 = vmul.f32 %v197, %v373
  %v389 = vmul.f32 %v204, %v373
  %v390 = vmul.f32 %v211, %v373
  %v391 = vmul.f32 %v218, %v373
  %v392 = vmul.f32 %v225, %v373
  %v393 = vmul.f32 %v232, %v373
  %v394 = vmul.f32 %v239, %v373
  %v395 = vmul.f32 %v246, %v373
  %v396 = vmul.f32 %v253, %v373
  %v397 = vmul.f32 %v260, %v373
  %v398 = vmul.f32 %v267, %v373
  %v399 = vmul.f32 %v274, %v373
  %v400 = vmul.f32 %v281, %v373
  %v401 = vmul.f32 %v288, %v373
  %v402 = vmul.f32 %v295, %v373
  %v403 = vmul.f32 %v302, %v373
  %v404 = vmul.f32 %v309, %v373
  %v405 = vmul.f32 %v316, %v373
  %v406 = vmul.f32 %v323, %v373
  %v407 = vmul.f32 %v330, %v373
  %v408 = vmul.f32 %v337, %v373
  %v409 = vmul.f32 %v344, %v373
  %v410 = vmul.f32 %v351, %v373
  %v411 = vmul.f32 %v358, %v373
  %v412 = vmul.f32 %v365, %v373
  %v413 = vmul.f32 %v372, %v373
  %v414 = vperm.slane %v88, 0
  %v415 = vlaneseq
  %v416 = vshrl.u32 %v415, 7
  %418 = vset.pattern.permute.xlu0 %v416
  %419 = vperm.xlu0 %418, %v414
  %v420 = vpop.permute.xlu0 %419
  %v421 = vperm.slane %v88, 1
  %v422 = vlaneseq
  %v423 = vshrl.u32 %v422, 7
  %425 = vset.pattern.permute.xlu0 %v423
  %426 = vperm.xlu0 %425, %v421
  %v427 = vpop.permute.xlu0 %426
  %v428 = vperm.slane %v88, 2
  %v429 = vlaneseq
  %v430 = vshrl.u32 %v429, 7
  %432 = vset.pattern.permute.xlu0 %v430
  %433 = vperm.xlu0 %432, %v428
  %v434 = vpop.permute.xlu0 %433
  %v435 = vperm.slane %v88, 3
  %v436 = vlaneseq
  %v437 = vshrl.u32 %v436, 7
  %439 = vset.pattern.permute.xlu0 %v437
  %440 = vperm.xlu0 %439, %v435
  %v441 = vpop.permute.xlu0 %440
  %v442 = vperm.slane %v88, 4
  %v443 = vlaneseq
  %v444 = vshrl.u32 %v443, 7
  %446 = vset.pattern.permute.xlu0 %v444
  %447 = vperm.xlu0 %446, %v442
  %v448 = vpop.permute.xlu0 %447
  %v449 = vperm.slane %v88, 5
  %v450 = vlaneseq
  %v451 = vshrl.u32 %v450, 7
  %453 = vset.pattern.permute.xlu0 %v451
  %454 = vperm.xlu0 %453, %v449
  %v455 = vpop.permute.xlu0 %454
  %v456 = vperm.slane %v88, 6
  %v457 = vlaneseq
  %v458 = vshrl.u32 %v457, 7
  %460 = vset.pattern.permute.xlu0 %v458
  %461 = vperm.xlu0 %460, %v456
  %v462 = vpop.permute.xlu0 %461
  %v463 = vperm.slane %v88, 7
  %v464 = vlaneseq
  %v465 = vshrl.u32 %v464, 7
  %467 = vset.pattern.permute.xlu0 %v465
  %468 = vperm.xlu0 %467, %v463
  %v469 = vpop.permute.xlu0 %468
  %v470 = vperm.slane %v89, 0
  %v471 = vlaneseq
  %v472 = vshrl.u32 %v471, 7
  %474 = vset.pattern.permute.xlu0 %v472
  %475 = vperm.xlu0 %474, %v470
  %v476 = vpop.permute.xlu0 %475
  %v477 = vperm.slane %v89, 1
  %v478 = vlaneseq
  %v479 = vshrl.u32 %v478, 7
  %481 = vset.pattern.permute.xlu0 %v479
  %482 = vperm.xlu0 %481, %v477
  %v483 = vpop.permute.xlu0 %482
  %v484 = vperm.slane %v89, 2
  %v485 = vlaneseq
  %v486 = vshrl.u32 %v485, 7
  %488 = vset.pattern.permute.xlu0 %v486
  %489 = vperm.xlu0 %488, %v484
  %v490 = vpop.permute.xlu0 %489
  %v491 = vperm.slane %v89, 3
  %v492 = vlaneseq
  %v493 = vshrl.u32 %v492, 7
  %495 = vset.pattern.permute.xlu0 %v493
  %496 = vperm.xlu0 %495, %v491
  %v497 = vpop.permute.xlu0 %496
  %v498 = vperm.slane %v89, 4
  %v499 = vlaneseq
  %v500 = vshrl.u32 %v499, 7
  %502 = vset.pattern.permute.xlu0 %v500
  %503 = vperm.xlu0 %502, %v498
  %v504 = vpop.permute.xlu0 %503
  %v505 = vperm.slane %v89, 5
  %v506 = vlaneseq
  %v507 = vshrl.u32 %v506, 7
  %509 = vset.pattern.permute.xlu0 %v507
  %510 = vperm.xlu0 %509, %v505
  %v511 = vpop.permute.xlu0 %510
  %v512 = vperm.slane %v89, 6
  %v513 = vlaneseq
  %v514 = vshrl.u32 %v513, 7
  %516 = vset.pattern.permute.xlu0 %v514
  %517 = vperm.xlu0 %516, %v512
  %v518 = vpop.permute.xlu0 %517
  %v519 = vperm.slane %v89, 7
  %v520 = vlaneseq
  %v521 = vshrl.u32 %v520, 7
  %523 = vset.pattern.permute.xlu0 %v521
  %524 = vperm.xlu0 %523, %v519
  %v525 = vpop.permute.xlu0 %524
  %v526 = vperm.slane %v90, 0
  %v527 = vlaneseq
  %v528 = vshrl.u32 %v527, 7
  %530 = vset.pattern.permute.xlu0 %v528
  %531 = vperm.xlu0 %530, %v526
  %v532 = vpop.permute.xlu0 %531
  %v533 = vperm.slane %v90, 1
  %v534 = vlaneseq
  %v535 = vshrl.u32 %v534, 7
  %537 = vset.pattern.permute.xlu0 %v535
  %538 = vperm.xlu0 %537, %v533
  %v539 = vpop.permute.xlu0 %538
  %v540 = vperm.slane %v90, 2
  %v541 = vlaneseq
  %v542 = vshrl.u32 %v541, 7
  %544 = vset.pattern.permute.xlu0 %v542
  %545 = vperm.xlu0 %544, %v540
  %v546 = vpop.permute.xlu0 %545
  %v547 = vperm.slane %v90, 3
  %v548 = vlaneseq
  %v549 = vshrl.u32 %v548, 7
  %551 = vset.pattern.permute.xlu0 %v549
  %552 = vperm.xlu0 %551, %v547
  %v553 = vpop.permute.xlu0 %552
  %v554 = vperm.slane %v90, 4
  %v555 = vlaneseq
  %v556 = vshrl.u32 %v555, 7
  %558 = vset.pattern.permute.xlu0 %v556
  %559 = vperm.xlu0 %558, %v554
  %v560 = vpop.permute.xlu0 %559
  %v561 = vperm.slane %v90, 5
  %v562 = vlaneseq
  %v563 = vshrl.u32 %v562, 7
  %565 = vset.pattern.permute.xlu0 %v563
  %566 = vperm.xlu0 %565, %v561
  %v567 = vpop.permute.xlu0 %566
  %v568 = vperm.slane %v90, 6
  %v569 = vlaneseq
  %v570 = vshrl.u32 %v569, 7
  %572 = vset.pattern.permute.xlu0 %v570
  %573 = vperm.xlu0 %572, %v568
  %v574 = vpop.permute.xlu0 %573
  %v575 = vperm.slane %v90, 7
  %v576 = vlaneseq
  %v577 = vshrl.u32 %v576, 7
  %579 = vset.pattern.permute.xlu0 %v577
  %580 = vperm.xlu0 %579, %v575
  %v581 = vpop.permute.xlu0 %580
  %v582 = vperm.slane %v91, 0
  %v583 = vlaneseq
  %v584 = vshrl.u32 %v583, 7
  %586 = vset.pattern.permute.xlu0 %v584
  %587 = vperm.xlu0 %586, %v582
  %v588 = vpop.permute.xlu0 %587
  %v589 = vperm.slane %v91, 1
  %v590 = vlaneseq
  %v591 = vshrl.u32 %v590, 7
  %593 = vset.pattern.permute.xlu0 %v591
  %594 = vperm.xlu0 %593, %v589
  %v595 = vpop.permute.xlu0 %594
  %v596 = vperm.slane %v91, 2
  %v597 = vlaneseq
  %v598 = vshrl.u32 %v597, 7
  %600 = vset.pattern.permute.xlu0 %v598
  %601 = vperm.xlu0 %600, %v596
  %v602 = vpop.permute.xlu0 %601
  %v603 = vperm.slane %v91, 3
  %v604 = vlaneseq
  %v605 = vshrl.u32 %v604, 7
  %607 = vset.pattern.permute.xlu0 %v605
  %608 = vperm.xlu0 %607, %v603
  %v609 = vpop.permute.xlu0 %608
  %v610 = vperm.slane %v91, 4
  %v611 = vlaneseq
  %v612 = vshrl.u32 %v611, 7
  %614 = vset.pattern.permute.xlu0 %v612
  %615 = vperm.xlu0 %614, %v610
  %v616 = vpop.permute.xlu0 %615
  %v617 = vperm.slane %v91, 5
  %v618 = vlaneseq
  %v619 = vshrl.u32 %v618, 7
  %621 = vset.pattern.permute.xlu0 %v619
  %622 = vperm.xlu0 %621, %v617
  %v623 = vpop.permute.xlu0 %622
  %v624 = vperm.slane %v91, 6
  %v625 = vlaneseq
  %v626 = vshrl.u32 %v625, 7
  %628 = vset.pattern.permute.xlu0 %v626
  %629 = vperm.xlu0 %628, %v624
  %v630 = vpop.permute.xlu0 %629
  %v631 = vperm.slane %v91, 7
  %v632 = vlaneseq
  %v633 = vshrl.u32 %v632, 7
  %635 = vset.pattern.permute.xlu0 %v633
  %636 = vperm.xlu0 %635, %v631
  %v637 = vpop.permute.xlu0 %636
  %v638 = vperm.slane %v92, 0
  %v639 = vlaneseq
  %v640 = vshrl.u32 %v639, 7
  %642 = vset.pattern.permute.xlu0 %v640
  %643 = vperm.xlu0 %642, %v638
  %v644 = vpop.permute.xlu0 %643
  %v645 = vperm.slane %v92, 1
  %v646 = vlaneseq
  %v647 = vshrl.u32 %v646, 7
  %649 = vset.pattern.permute.xlu0 %v647
  %650 = vperm.xlu0 %649, %v645
  %v651 = vpop.permute.xlu0 %650
  %v652 = vperm.slane %v92, 2
  %v653 = vlaneseq
  %v654 = vshrl.u32 %v653, 7
  %656 = vset.pattern.permute.xlu0 %v654
  %657 = vperm.xlu0 %656, %v652
  %v658 = vpop.permute.xlu0 %657
  %v659 = vperm.slane %v92, 3
  %v660 = vlaneseq
  %v661 = vshrl.u32 %v660, 7
  %663 = vset.pattern.permute.xlu0 %v661
  %664 = vperm.xlu0 %663, %v659
  %v665 = vpop.permute.xlu0 %664
  %v666 = vperm.slane %v92, 4
  %v667 = vlaneseq
  %v668 = vshrl.u32 %v667, 7
  %670 = vset.pattern.permute.xlu0 %v668
  %671 = vperm.xlu0 %670, %v666
  %v672 = vpop.permute.xlu0 %671
  %v673 = vperm.slane %v92, 5
  %v674 = vlaneseq
  %v675 = vshrl.u32 %v674, 7
  %677 = vset.pattern.permute.xlu0 %v675
  %678 = vperm.xlu0 %677, %v673
  %v679 = vpop.permute.xlu0 %678
  %v680 = vperm.slane %v92, 6
  %v681 = vlaneseq
  %v682 = vshrl.u32 %v681, 7
  %684 = vset.pattern.permute.xlu0 %v682
  %685 = vperm.xlu0 %684, %v680
  %v686 = vpop.permute.xlu0 %685
  %v687 = vperm.slane %v92, 7
  %v688 = vlaneseq
  %v689 = vshrl.u32 %v688, 7
  %691 = vset.pattern.permute.xlu0 %v689
  %692 = vperm.xlu0 %691, %v687
  %v693 = vpop.permute.xlu0 %692
  %v694 = vperm.slane %v37, 0
  %v695 = vmul.f32 %v420, %v694
  %v696 = vmul.f32 %v427, %v694
  %v697 = vmul.f32 %v434, %v694
  %v698 = vmul.f32 %v441, %v694
  %v699 = vmul.f32 %v448, %v694
  %v700 = vmul.f32 %v455, %v694
  %v701 = vmul.f32 %v462, %v694
  %v702 = vmul.f32 %v469, %v694
  %v703 = vmul.f32 %v476, %v694
  %v704 = vmul.f32 %v483, %v694
  %v705 = vmul.f32 %v490, %v694
  %v706 = vmul.f32 %v497, %v694
  %v707 = vmul.f32 %v504, %v694
  %v708 = vmul.f32 %v511, %v694
  %v709 = vmul.f32 %v518, %v694
  %v710 = vmul.f32 %v525, %v694
  %v711 = vmul.f32 %v532, %v694
  %v712 = vmul.f32 %v539, %v694
  %v713 = vmul.f32 %v546, %v694
  %v714 = vmul.f32 %v553, %v694
  %v715 = vmul.f32 %v560, %v694
  %v716 = vmul.f32 %v567, %v694
  %v717 = vmul.f32 %v574, %v694
  %v718 = vmul.f32 %v581, %v694
  %v719 = vmul.f32 %v588, %v694
  %v720 = vmul.f32 %v595, %v694
  %v721 = vmul.f32 %v602, %v694
  %v722 = vmul.f32 %v609, %v694
  %v723 = vmul.f32 %v616, %v694
  %v724 = vmul.f32 %v623, %v694
  %v725 = vmul.f32 %v630, %v694
  %v726 = vmul.f32 %v637, %v694
  %v727 = vmul.f32 %v644, %v694
  %v728 = vmul.f32 %v651, %v694
  %v729 = vmul.f32 %v658, %v694
  %v730 = vmul.f32 %v665, %v694
  %v731 = vmul.f32 %v672, %v694
  %v732 = vmul.f32 %v679, %v694
  %v733 = vmul.f32 %v686, %v694
  %v734 = vmul.f32 %v693, %v694
  %v735 = vadd.f32 %v374, %v695
  %v736 = vadd.f32 %v375, %v696
  %v737 = vadd.f32 %v376, %v697
  %v738 = vadd.f32 %v377, %v698
  %v739 = vadd.f32 %v378, %v699
  %v740 = vadd.f32 %v379, %v700
  %v741 = vadd.f32 %v380, %v701
  %v742 = vadd.f32 %v381, %v702
  %v743 = vadd.f32 %v382, %v703
  %v744 = vadd.f32 %v383, %v704
  %v745 = vadd.f32 %v384, %v705
  %v746 = vadd.f32 %v385, %v706
  %v747 = vadd.f32 %v386, %v707
  %v748 = vadd.f32 %v387, %v708
  %v749 = vadd.f32 %v388, %v709
  %v750 = vadd.f32 %v389, %v710
  %v751 = vadd.f32 %v390, %v711
  %v752 = vadd.f32 %v391, %v712
  %v753 = vadd.f32 %v392, %v713
  %v754 = vadd.f32 %v393, %v714
  %v755 = vadd.f32 %v394, %v715
  %v756 = vadd.f32 %v395, %v716
  %v757 = vadd.f32 %v396, %v717
  %v758 = vadd.f32 %v397, %v718
  %v759 = vadd.f32 %v398, %v719
  %v760 = vadd.f32 %v399, %v720
  %v761 = vadd.f32 %v400, %v721
  %v762 = vadd.f32 %v401, %v722
  %v763 = vadd.f32 %v402, %v723
  %v764 = vadd.f32 %v403, %v724
  %v765 = vadd.f32 %v404, %v725
  %v766 = vadd.f32 %v405, %v726
  %v767 = vadd.f32 %v406, %v727
  %v768 = vadd.f32 %v407, %v728
  %v769 = vadd.f32 %v408, %v729
  %v770 = vadd.f32 %v409, %v730
  %v771 = vadd.f32 %v410, %v731
  %v772 = vadd.f32 %v411, %v732
  %v773 = vadd.f32 %v412, %v733
  %v774 = vadd.f32 %v413, %v734
  %v776 = vperm.slane %v38, 0
  %v778 = vadd.f32 %v735, %v776
  %v779 = vadd.f32 %v736, %v776
  %v780 = vadd.f32 %v737, %v776
  %v781 = vadd.f32 %v738, %v776
  %v782 = vadd.f32 %v739, %v776
  %v783 = vadd.f32 %v740, %v776
  %v784 = vadd.f32 %v741, %v776
  %v785 = vadd.f32 %v742, %v776
  %v786 = vadd.f32 %v743, %v776
  %v787 = vadd.f32 %v744, %v776
  %v788 = vadd.f32 %v745, %v776
  %v789 = vadd.f32 %v746, %v776
  %v790 = vadd.f32 %v747, %v776
  %v791 = vadd.f32 %v748, %v776
  %v792 = vadd.f32 %v749, %v776
  %v793 = vadd.f32 %v750, %v776
  %v794 = vadd.f32 %v751, %v776
  %v795 = vadd.f32 %v752, %v776
  %v796 = vadd.f32 %v753, %v776
  %v797 = vadd.f32 %v754, %v776
  %v798 = vadd.f32 %v755, %v776
  %v799 = vadd.f32 %v756, %v776
  %v800 = vadd.f32 %v757, %v776
  %v801 = vadd.f32 %v758, %v776
  %v802 = vadd.f32 %v759, %v776
  %v803 = vadd.f32 %v760, %v776
  %v804 = vadd.f32 %v761, %v776
  %v805 = vadd.f32 %v762, %v776
  %v806 = vadd.f32 %v763, %v776
  %v807 = vadd.f32 %v764, %v776
  %v808 = vadd.f32 %v765, %v776
  %v809 = vadd.f32 %v766, %v776
  %v810 = vadd.f32 %v767, %v776
  %v811 = vadd.f32 %v768, %v776
  %v812 = vadd.f32 %v769, %v776
  %v813 = vadd.f32 %v770, %v776
  %v814 = vadd.f32 %v771, %v776
  %v815 = vadd.f32 %v772, %v776
  %v816 = vadd.f32 %v773, %v776
  %v817 = vadd.f32 %v774, %v776
  %818 = vst [vmem:[#allocation2] sm:$0xff] %v778
  %819 = vst [vmem:[#allocation2 + $0x8] sm:$0xff] %v779
  %820 = vst [vmem:[#allocation2 + $0x10] sm:$0xff] %v780
  %821 = vst [vmem:[#allocation2 + $0x18] sm:$0xff] %v781
  %822 = vst [vmem:[#allocation2 + $0x20] sm:$0xff] %v782
  %823 = vst [vmem:[#allocation2 + $0x28] sm:$0xff] %v783
  %824 = vst [vmem:[#allocation2 + $0x30] sm:$0xff] %v784
  %825 = vst [vmem:[#allocation2 + $0x38] sm:$0xff] %v785
  %826 = vst [vmem:[#allocation2 + $0x40] sm:$0xff] %v786
  %827 = vst [vmem:[#allocation2 + $0x48] sm:$0xff] %v787
  %828 = vst [vmem:[#allocation2 + $0x50] sm:$0xff] %v788
  %829 = vst [vmem:[#allocation2 + $0x58] sm:$0xff] %v789
  %830 = vst [vmem:[#allocation2 + $0x60] sm:$0xff] %v790
  %831 = vst [vmem:[#allocation2 + $0x68] sm:$0xff] %v791
  %832 = vst [vmem:[#allocation2 + $0x70] sm:$0xff] %v792
  %833 = vst [vmem:[#allocation2 + $0x78] sm:$0xff] %v793
  %834 = vst [vmem:[#allocation2 + $0x80] sm:$0xff] %v794
  %835 = vst [vmem:[#allocation2 + $0x88] sm:$0xff] %v795
  %836 = vst [vmem:[#allocation2 + $0x90] sm:$0xff] %v796
  %837 = vst [vmem:[#allocation2 + $0x98] sm:$0xff] %v797
  %838 = vst [vmem:[#allocation2 + $0xa0] sm:$0xff] %v798
  %839 = vst [vmem:[#allocation2 + $0xa8] sm:$0xff] %v799
  %840 = vst [vmem:[#allocation2 + $0xb0] sm:$0xff] %v800
  %841 = vst [vmem:[#allocation2 + $0xb8] sm:$0xff] %v801
  %842 = vst [vmem:[#allocation2 + $0xc0] sm:$0xff] %v802
  %843 = vst [vmem:[#allocation2 + $0xc8] sm:$0xff] %v803
  %844 = vst [vmem:[#allocation2 + $0xd0] sm:$0xff] %v804
  %845 = vst [vmem:[#allocation2 + $0xd8] sm:$0xff] %v805
  %846 = vst [vmem:[#allocation2 + $0xe0] sm:$0xff] %v806
  %847 = vst [vmem:[#allocation2 + $0xe8] sm:$0xff] %v807
  %848 = vst [vmem:[#allocation2 + $0xf0] sm:$0xff] %v808
  %849 = vst [vmem:[#allocation2 + $0xf8] sm:$0xff] %v809
  %850 = vst [vmem:[#allocation2 + $0x100] sm:$0xff] %v810
  %851 = vst [vmem:[#allocation2 + $0x108] sm:$0xff] %v811
  %852 = vst [vmem:[#allocation2 + $0x110] sm:$0xff] %v812
  %853 = vst [vmem:[#allocation2 + $0x118] sm:$0xff] %v813
  %854 = vst [vmem:[#allocation2 + $0x120] sm:$0xff] %v814
  %855 = vst [vmem:[#allocation2 + $0x128] sm:$0xff] %v815
  %856 = vst [vmem:[#allocation2 + $0x130] sm:$0xff] %v816
  %857 = vst [vmem:[#allocation2 + $0x138] sm:$0xff] %v817
  %v858 = vld [vmem:[%s0 + $0x28] sm:$0xff]
  %v859 = vld [vmem:[%s0 + $0x30] sm:$0xff]
  %v860 = vld [vmem:[%s0 + $0x38] sm:$0xff]
  %v861 = vld [vmem:[%s0 + $0x40] sm:$0xff]
  %v862 = vld [vmem:[%s0 + $0x48] sm:$0xff]
  %v863 = vld [vmem:[%s1 + $0x28] sm:$0xff]
  %v864 = vld [vmem:[%s1 + $0x30] sm:$0xff]
  %v865 = vld [vmem:[%s1 + $0x38] sm:$0xff]
  %v866 = vld [vmem:[%s1 + $0x40] sm:$0xff]
  %v867 = vld [vmem:[%s1 + $0x48] sm:$0xff]
  %v868 = vld [vmem:[%s49 + $0x28] sm:$0xff]
  %v869 = vld [vmem:[%s49 + $0x30] sm:$0xff]
  %v870 = vld [vmem:[%s49 + $0x38] sm:$0xff]
  %v871 = vld [vmem:[%s49 + $0x40] sm:$0xff]
  %v872 = vld [vmem:[%s49 + $0x48] sm:$0xff]
  %v873 = vmax.f32 %v858, %v868
  %v874 = vmax.f32 %v859, %v869
  %v875 = vmax.f32 %v860, %v870
  %v876 = vmax.f32 %v861, %v871
  %v877 = vmax.f32 %v862, %v872
  %v878 = vld [vmem:[%s60 + $0x28] sm:$0xff]
  %v879 = vld [vmem:[%s60 + $0x30] sm:$0xff]
  %v880 = vld [vmem:[%s60 + $0x38] sm:$0xff]
  %v881 = vld [vmem:[%s60 + $0x40] sm:$0xff]
  %v882 = vld [vmem:[%s60 + $0x48] sm:$0xff]
  %v883 = vmax.f32 %v863, %v878
  %v884 = vmax.f32 %v864, %v879
  %v885 = vmax.f32 %v865, %v880
  %v886 = vmax.f32 %v866, %v881
  %v887 = vmax.f32 %v867, %v882
  %v888 = vld [vmem:[%s71 + $0x28] sm:$0xff]
  %v889 = vld [vmem:[%s71 + $0x30] sm:$0xff]
  %v890 = vld [vmem:[%s71 + $0x38] sm:$0xff]
  %v891 = vld [vmem:[%s71 + $0x40] sm:$0xff]
  %v892 = vld [vmem:[%s71 + $0x48] sm:$0xff]
  %v893 = vmax.f32 %v873, %v888
  %v894 = vmax.f32 %v874, %v889
  %v895 = vmax.f32 %v875, %v890
  %v896 = vmax.f32 %v876, %v891
  %v897 = vmax.f32 %v877, %v892
  %v898 = vld [vmem:[%s82 + $0x28] sm:$0xff]
  %v899 = vld [vmem:[%s82 + $0x30] sm:$0xff]
  %v900 = vld [vmem:[%s82 + $0x38] sm:$0xff]
  %v901 = vld [vmem:[%s82 + $0x40] sm:$0xff]
  %v902 = vld [vmem:[%s82 + $0x48] sm:$0xff]
  %v903 = vmax.f32 %v883, %v898
  %v904 = vmax.f32 %v884, %v899
  %v905 = vmax.f32 %v885, %v900
  %v906 = vmax.f32 %v886, %v901
  %v907 = vmax.f32 %v887, %v902
  %v908 = vperm.slane %v893, 0
  %v909 = vlaneseq
  %v910 = vshrl.u32 %v909, 7
  %912 = vset.pattern.permute.xlu0 %v910
  %913 = vperm.xlu0 %912, %v908
  %v914 = vpop.permute.xlu0 %913
  %v915 = vperm.slane %v893, 1
  %v916 = vlaneseq
  %v917 = vshrl.u32 %v916, 7
  %919 = vset.pattern.permute.xlu0 %v917
  %920 = vperm.xlu0 %919, %v915
  %v921 = vpop.permute.xlu0 %920
  %v922 = vperm.slane %v893, 2
  %v923 = vlaneseq
  %v924 = vshrl.u32 %v923, 7
  %926 = vset.pattern.permute.xlu0 %v924
  %927 = vperm.xlu0 %926, %v922
  %v928 = vpop.permute.xlu0 %927
  %v929 = vperm.slane %v893, 3
  %v930 = vlaneseq
  %v931 = vshrl.u32 %v930, 7
  %933 = vset.pattern.permute.xlu0 %v931
  %934 = vperm.xlu0 %933, %v929
  %v935 = vpop.permute.xlu0 %934
  %v936 = vperm.slane %v893, 4
  %v937 = vlaneseq
  %v938 = vshrl.u32 %v937, 7
  %940 = vset.pattern.permute.xlu0 %v938
  %941 = vperm.xlu0 %940, %v936
  %v942 = vpop.permute.xlu0 %941
  %v943 = vperm.slane %v893, 5
  %v944 = vlaneseq
  %v945 = vshrl.u32 %v944, 7
  %947 = vset.pattern.permute.xlu0 %v945
  %948 = vperm.xlu0 %947, %v943
  %v949 = vpop.permute.xlu0 %948
  %v950 = vperm.slane %v893, 6
  %v951 = vlaneseq
  %v952 = vshrl.u32 %v951, 7
  %954 = vset.pattern.permute.xlu0 %v952
  %955 = vperm.xlu0 %954, %v950
  %v956 = vpop.permute.xlu0 %955
  %v957 = vperm.slane %v893, 7
  %v958 = vlaneseq
  %v959 = vshrl.u32 %v958, 7
  %961 = vset.pattern.permute.xlu0 %v959
  %962 = vperm.xlu0 %961, %v957
  %v963 = vpop.permute.xlu0 %962
  %v964 = vperm.slane %v894, 0
  %v965 = vlaneseq
  %v966 = vshrl.u32 %v965, 7
  %968 = vset.pattern.permute.xlu0 %v966
  %969 = vperm.xlu0 %968, %v964
  %v970 = vpop.permute.xlu0 %969
  %v971 = vperm.slane %v894, 1
  %v972 = vlaneseq
  %v973 = vshrl.u32 %v972, 7
  %975 = vset.pattern.permute.xlu0 %v973
  %976 = vperm.xlu0 %975, %v971
  %v977 = vpop.permute.xlu0 %976
  %v978 = vperm.slane %v894, 2
  %v979 = vlaneseq
  %v980 = vshrl.u32 %v979, 7
  %982 = vset.pattern.permute.xlu0 %v980
  %983 = vperm.xlu0 %982, %v978
  %v984 = vpop.permute.xlu0 %983
  %v985 = vperm.slane %v894, 3
  %v986 = vlaneseq
  %v987 = vshrl.u32 %v986, 7
  %989 = vset.pattern.permute.xlu0 %v987
  %990 = vperm.xlu0 %989, %v985
  %v991 = vpop.permute.xlu0 %990
  %v992 = vperm.slane %v894, 4
  %v993 = vlaneseq
  %v994 = vshrl.u32 %v993, 7
  %996 = vset.pattern.permute.xlu0 %v994
  %997 = vperm.xlu0 %996, %v992
  %v998 = vpop.permute.xlu0 %997
  %v999 = vperm.slane %v894, 5
  %v1000 = vlaneseq
  %v1001 = vshrl.u32 %v1000, 7
  %1003 = vset.pattern.permute.xlu0 %v1001
  %1004 = vperm.xlu0 %1003, %v999
  %v1005 = vpop.permute.xlu0 %1004
  %v1006 = vperm.slane %v894, 6
  %v1007 = vlaneseq
  %v1008 = vshrl.u32 %v1007, 7
  %1010 = vset.pattern.permute.xlu0 %v1008
  %1011 = vperm.xlu0 %1010, %v1006
  %v1012 = vpop.permute.xlu0 %1011
  %v1013 = vperm.slane %v894, 7
  %v1014 = vlaneseq
  %v1015 = vshrl.u32 %v1014, 7
  %1017 = vset.pattern.permute.xlu0 %v1015
  %1018 = vperm.xlu0 %1017, %v1013
  %v1019 = vpop.permute.xlu0 %1018
  %v1020 = vperm.slane %v895, 0
  %v1021 = vlaneseq
  %v1022 = vshrl.u32 %v1021, 7
  %1024 = vset.pattern.permute.xlu0 %v1022
  %1025 = vperm.xlu0 %1024, %v1020
  %v1026 = vpop.permute.xlu0 %1025
  %v1027 = vperm.slane %v895, 1
  %v1028 = vlaneseq
  %v1029 = vshrl.u32 %v1028, 7
  %1031 = vset.pattern.permute.xlu0 %v1029
  %1032 = vperm.xlu0 %1031, %v1027
  %v1033 = vpop.permute.xlu0 %1032
  %v1034 = vperm.slane %v895, 2
  %v1035 = vlaneseq
  %v1036 = vshrl.u32 %v1035, 7
  %1038 = vset.pattern.permute.xlu0 %v1036
  %1039 = vperm.xlu0 %1038, %v1034
  %v1040 = vpop.permute.xlu0 %1039
  %v1041 = vperm.slane %v895, 3
  %v1042 = vlaneseq
  %v1043 = vshrl.u32 %v1042, 7
  %1045 = vset.pattern.permute.xlu0 %v1043
  %1046 = vperm.xlu0 %1045, %v1041
  %v1047 = vpop.permute.xlu0 %1046
  %v1048 = vperm.slane %v895, 4
  %v1049 = vlaneseq
  %v1050 = vshrl.u32 %v1049, 7
  %1052 = vset.pattern.permute.xlu0 %v1050
  %1053 = vperm.xlu0 %1052, %v1048
  %v1054 = vpop.permute.xlu0 %1053
  %v1055 = vperm.slane %v895, 5
  %v1056 = vlaneseq
  %v1057 = vshrl.u32 %v1056, 7
  %1059 = vset.pattern.permute.xlu0 %v1057
  %1060 = vperm.xlu0 %1059, %v1055
  %v1061 = vpop.permute.xlu0 %1060
  %v1062 = vperm.slane %v895, 6
  %v1063 = vlaneseq
  %v1064 = vshrl.u32 %v1063, 7
  %1066 = vset.pattern.permute.xlu0 %v1064
  %1067 = vperm.xlu0 %1066, %v1062
  %v1068 = vpop.permute.xlu0 %1067
  %v1069 = vperm.slane %v895, 7
  %v1070 = vlaneseq
  %v1071 = vshrl.u32 %v1070, 7
  %1073 = vset.pattern.permute.xlu0 %v1071
  %1074 = vperm.xlu0 %1073, %v1069
  %v1075 = vpop.permute.xlu0 %1074
  %v1076 = vperm.slane %v896, 0
  %v1077 = vlaneseq
  %v1078 = vshrl.u32 %v1077, 7
  %1080 = vset.pattern.permute.xlu0 %v1078
  %1081 = vperm.xlu0 %1080, %v1076
  %v1082 = vpop.permute.xlu0 %1081
  %v1083 = vperm.slane %v896, 1
  %v1084 = vlaneseq
  %v1085 = vshrl.u32 %v1084, 7
  %1087 = vset.pattern.permute.xlu0 %v1085
  %1088 = vperm.xlu0 %1087, %v1083
  %v1089 = vpop.permute.xlu0 %1088
  %v1090 = vperm.slane %v896, 2
  %v1091 = vlaneseq
  %v1092 = vshrl.u32 %v1091, 7
  %1094 = vset.pattern.permute.xlu0 %v1092
  %1095 = vperm.xlu0 %1094, %v1090
  %v1096 = vpop.permute.xlu0 %1095
  %v1097 = vperm.slane %v896, 3
  %v1098 = vlaneseq
  %v1099 = vshrl.u32 %v1098, 7
  %1101 = vset.pattern.permute.xlu0 %v1099
  %1102 = vperm.xlu0 %1101, %v1097
  %v1103 = vpop.permute.xlu0 %1102
  %v1104 = vperm.slane %v896, 4
  %v1105 = vlaneseq
  %v1106 = vshrl.u32 %v1105, 7
  %1108 = vset.pattern.permute.xlu0 %v1106
  %1109 = vperm.xlu0 %1108, %v1104
  %v1110 = vpop.permute.xlu0 %1109
  %v1111 = vperm.slane %v896, 5
  %v1112 = vlaneseq
  %v1113 = vshrl.u32 %v1112, 7
  %1115 = vset.pattern.permute.xlu0 %v1113
  %1116 = vperm.xlu0 %1115, %v1111
  %v1117 = vpop.permute.xlu0 %1116
  %v1118 = vperm.slane %v896, 6
  %v1119 = vlaneseq
  %v1120 = vshrl.u32 %v1119, 7
  %1122 = vset.pattern.permute.xlu0 %v1120
  %1123 = vperm.xlu0 %1122, %v1118
  %v1124 = vpop.permute.xlu0 %1123
  %v1125 = vperm.slane %v896, 7
  %v1126 = vlaneseq
  %v1127 = vshrl.u32 %v1126, 7
  %1129 = vset.pattern.permute.xlu0 %v1127
  %1130 = vperm.xlu0 %1129, %v1125
  %v1131 = vpop.permute.xlu0 %1130
  %v1132 = vperm.slane %v897, 0
  %v1133 = vlaneseq
  %v1134 = vshrl.u32 %v1133, 7
  %1136 = vset.pattern.permute.xlu0 %v1134
  %1137 = vperm.xlu0 %1136, %v1132
  %v1138 = vpop.permute.xlu0 %1137
  %v1139 = vperm.slane %v897, 1
  %v1140 = vlaneseq
  %v1141 = vshrl.u32 %v1140, 7
  %1143 = vset.pattern.permute.xlu0 %v1141
  %1144 = vperm.xlu0 %1143, %v1139
  %v1145 = vpop.permute.xlu0 %1144
  %v1146 = vperm.slane %v897, 2
  %v1147 = vlaneseq
  %v1148 = vshrl.u32 %v1147, 7
  %1150 = vset.pattern.permute.xlu0 %v1148
  %1151 = vperm.xlu0 %1150, %v1146
  %v1152 = vpop.permute.xlu0 %1151
  %v1153 = vperm.slane %v897, 3
  %v1154 = vlaneseq
  %v1155 = vshrl.u32 %v1154, 7
  %1157 = vset.pattern.permute.xlu0 %v1155
  %1158 = vperm.xlu0 %1157, %v1153
  %v1159 = vpop.permute.xlu0 %1158
  %v1160 = vperm.slane %v897, 4
  %v1161 = vlaneseq
  %v1162 = vshrl.u32 %v1161, 7
  %1164 = vset.pattern.permute.xlu0 %v1162
  %1165 = vperm.xlu0 %1164, %v1160
  %v1166 = vpop.permute.xlu0 %1165
  %v1167 = vperm.slane %v897, 5
  %v1168 = vlaneseq
  %v1169 = vshrl.u32 %v1168, 7
  %1171 = vset.pattern.permute.xlu0 %v1169
  %1172 = vperm.xlu0 %1171, %v1167
  %v1173 = vpop.permute.xlu0 %1172
  %v1174 = vperm.slane %v897, 6
  %v1175 = vlaneseq
  %v1176 = vshrl.u32 %v1175, 7
  %1178 = vset.pattern.permute.xlu0 %v1176
  %1179 = vperm.xlu0 %1178, %v1174
  %v1180 = vpop.permute.xlu0 %1179
  %v1181 = vperm.slane %v897, 7
  %v1182 = vlaneseq
  %v1183 = vshrl.u32 %v1182, 7
  %1185 = vset.pattern.permute.xlu0 %v1183
  %1186 = vperm.xlu0 %1185, %v1181
  %v1187 = vpop.permute.xlu0 %1186
  %v1188 = vmul.f32 %v914, %v373
  %v1189 = vmul.f32 %v921, %v373
  %v1190 = vmul.f32 %v928, %v373
  %v1191 = vmul.f32 %v935, %v373
  %v1192 = vmul.f32 %v942, %v373
  %v1193 = vmul.f32 %v949, %v373
  %v1194 = vmul.f32 %v956, %v373
  %v1195 = vmul.f32 %v963, %v373
  %v1196 = vmul.f32 %v970, %v373
  %v1197 = vmul.f32 %v977, %v373
  %v1198 = vmul.f32 %v984, %v373
  %v1199 = vmul.f32 %v991, %v373
  %v1200 = vmul.f32 %v998, %v373
  %v1201 = vmul.f32 %v1005, %v373
  %v1202 = vmul.f32 %v1012, %v373
  %v1203 = vmul.f32 %v1019, %v373
  %v1204 = vmul.f32 %v1026, %v373
  %v1205 = vmul.f32 %v1033, %v373
  %v1206 = vmul.f32 %v1040, %v373
  %v1207 = vmul.f32 %v1047, %v373
  %v1208 = vmul.f32 %v1054, %v373
  %v1209 = vmul.f32 %v1061, %v373
  %v1210 = vmul.f32 %v1068, %v373
  %v1211 = vmul.f32 %v1075, %v373
  %v1212 = vmul.f32 %v1082, %v373
  %v1213 = vmul.f32 %v1089, %v373
  %v1214 = vmul.f32 %v1096, %v373
  %v1215 = vmul.f32 %v1103, %v373
  %v1216 = vmul.f32 %v1110, %v373
  %v1217 = vmul.f32 %v1117, %v373
  %v1218 = vmul.f32 %v1124, %v373
  %v1219 = vmul.f32 %v1131, %v373
  %v1220 = vmul.f32 %v1138, %v373
  %v1221 = vmul.f32 %v1145, %v373
  %v1222 = vmul.f32 %v1152, %v373
  %v1223 = vmul.f32 %v1159, %v373
  %v1224 = vmul.f32 %v1166, %v373
  %v1225 = vmul.f32 %v1173, %v373
  %v1226 = vmul.f32 %v1180, %v373
  %v1227 = vmul.f32 %v1187, %v373
  %v1228 = vperm.slane %v903, 0
  %v1229 = vlaneseq
  %v1230 = vshrl.u32 %v1229, 7
  %1232 = vset.pattern.permute.xlu0 %v1230
  %1233 = vperm.xlu0 %1232, %v1228
  %v1234 = vpop.permute.xlu0 %1233
  %v1235 = vperm.slane %v903, 1
  %v1236 = vlaneseq
  %v1237 = vshrl.u32 %v1236, 7
  %1239 = vset.pattern.permute.xlu0 %v1237
  %1240 = vperm.xlu0 %1239, %v1235
  %v1241 = vpop.permute.xlu0 %1240
  %v1242 = vperm.slane %v903, 2
  %v1243 = vlaneseq
  %v1244 = vshrl.u32 %v1243, 7
  %1246 = vset.pattern.permute.xlu0 %v1244
  %1247 = vperm.xlu0 %1246, %v1242
  %v1248 = vpop.permute.xlu0 %1247
  %v1249 = vperm.slane %v903, 3
  %v1250 = vlaneseq
  %v1251 = vshrl.u32 %v1250, 7
  %1253 = vset.pattern.permute.xlu0 %v1251
  %1254 = vperm.xlu0 %1253, %v1249
  %v1255 = vpop.permute.xlu0 %1254
  %v1256 = vperm.slane %v903, 4
  %v1257 = vlaneseq
  %v1258 = vshrl.u32 %v1257, 7
  %1260 = vset.pattern.permute.xlu0 %v1258
  %1261 = vperm.xlu0 %1260, %v1256
  %v1262 = vpop.permute.xlu0 %1261
  %v1263 = vperm.slane %v903, 5
  %v1264 = vlaneseq
  %v1265 = vshrl.u32 %v1264, 7
  %1267 = vset.pattern.permute.xlu0 %v1265
  %1268 = vperm.xlu0 %1267, %v1263
  %v1269 = vpop.permute.xlu0 %1268
  %v1270 = vperm.slane %v903, 6
  %v1271 = vlaneseq
  %v1272 = vshrl.u32 %v1271, 7
  %1274 = vset.pattern.permute.xlu0 %v1272
  %1275 = vperm.xlu0 %1274, %v1270
  %v1276 = vpop.permute.xlu0 %1275
  %v1277 = vperm.slane %v903, 7
  %v1278 = vlaneseq
  %v1279 = vshrl.u32 %v1278, 7
  %1281 = vset.pattern.permute.xlu0 %v1279
  %1282 = vperm.xlu0 %1281, %v1277
  %v1283 = vpop.permute.xlu0 %1282
  %v1284 = vperm.slane %v904, 0
  %v1285 = vlaneseq
  %v1286 = vshrl.u32 %v1285, 7
  %1288 = vset.pattern.permute.xlu0 %v1286
  %1289 = vperm.xlu0 %1288, %v1284
  %v1290 = vpop.permute.xlu0 %1289
  %v1291 = vperm.slane %v904, 1
  %v1292 = vlaneseq
  %v1293 = vshrl.u32 %v1292, 7
  %1295 = vset.pattern.permute.xlu0 %v1293
  %1296 = vperm.xlu0 %1295, %v1291
  %v1297 = vpop.permute.xlu0 %1296
  %v1298 = vperm.slane %v904, 2
  %v1299 = vlaneseq
  %v1300 = vshrl.u32 %v1299, 7
  %1302 = vset.pattern.permute.xlu0 %v1300
  %1303 = vperm.xlu0 %1302, %v1298
  %v1304 = vpop.permute.xlu0 %1303
  %v1305 = vperm.slane %v904, 3
  %v1306 = vlaneseq
  %v1307 = vshrl.u32 %v1306, 7
  %1309 = vset.pattern.permute.xlu0 %v1307
  %1310 = vperm.xlu0 %1309, %v1305
  %v1311 = vpop.permute.xlu0 %1310
  %v1312 = vperm.slane %v904, 4
  %v1313 = vlaneseq
  %v1314 = vshrl.u32 %v1313, 7
  %1316 = vset.pattern.permute.xlu0 %v1314
  %1317 = vperm.xlu0 %1316, %v1312
  %v1318 = vpop.permute.xlu0 %1317
  %v1319 = vperm.slane %v904, 5
  %v1320 = vlaneseq
  %v1321 = vshrl.u32 %v1320, 7
  %1323 = vset.pattern.permute.xlu0 %v1321
  %1324 = vperm.xlu0 %1323, %v1319
  %v1325 = vpop.permute.xlu0 %1324
  %v1326 = vperm.slane %v904, 6
  %v1327 = vlaneseq
  %v1328 = vshrl.u32 %v1327, 7
  %1330 = vset.pattern.permute.xlu0 %v1328
  %1331 = vperm.xlu0 %1330, %v1326
  %v1332 = vpop.permute.xlu0 %1331
  %v1333 = vperm.slane %v904, 7
  %v1334 = vlaneseq
  %v1335 = vshrl.u32 %v1334, 7
  %1337 = vset.pattern.permute.xlu0 %v1335
  %1338 = vperm.xlu0 %1337, %v1333
  %v1339 = vpop.permute.xlu0 %1338
  %v1340 = vperm.slane %v905, 0
  %v1341 = vlaneseq
  %v1342 = vshrl.u32 %v1341, 7
  %1344 = vset.pattern.permute.xlu0 %v1342
  %1345 = vperm.xlu0 %1344, %v1340
  %v1346 = vpop.permute.xlu0 %1345
  %v1347 = vperm.slane %v905, 1
  %v1348 = vlaneseq
  %v1349 = vshrl.u32 %v1348, 7
  %1351 = vset.pattern.permute.xlu0 %v1349
  %1352 = vperm.xlu0 %1351, %v1347
  %v1353 = vpop.permute.xlu0 %1352
  %v1354 = vperm.slane %v905, 2
  %v1355 = vlaneseq
  %v1356 = vshrl.u32 %v1355, 7
  %1358 = vset.pattern.permute.xlu0 %v1356
  %1359 = vperm.xlu0 %1358, %v1354
  %v1360 = vpop.permute.xlu0 %1359
  %v1361 = vperm.slane %v905, 3
  %v1362 = vlaneseq
  %v1363 = vshrl.u32 %v1362, 7
  %1365 = vset.pattern.permute.xlu0 %v1363
  %1366 = vperm.xlu0 %1365, %v1361
  %v1367 = vpop.permute.xlu0 %1366
  %v1368 = vperm.slane %v905, 4
  %v1369 = vlaneseq
  %v1370 = vshrl.u32 %v1369, 7
  %1372 = vset.pattern.permute.xlu0 %v1370
  %1373 = vperm.xlu0 %1372, %v1368
  %v1374 = vpop.permute.xlu0 %1373
  %v1375 = vperm.slane %v905, 5
  %v1376 = vlaneseq
  %v1377 = vshrl.u32 %v1376, 7
  %1379 = vset.pattern.permute.xlu0 %v1377
  %1380 = vperm.xlu0 %1379, %v1375
  %v1381 = vpop.permute.xlu0 %1380
  %v1382 = vperm.slane %v905, 6
  %v1383 = vlaneseq
  %v1384 = vshrl.u32 %v1383, 7
  %1386 = vset.pattern.permute.xlu0 %v1384
  %1387 = vperm.xlu0 %1386, %v1382
  %v1388 = vpop.permute.xlu0 %1387
  %v1389 = vperm.slane %v905, 7
  %v1390 = vlaneseq
  %v1391 = vshrl.u32 %v1390, 7
  %1393 = vset.pattern.permute.xlu0 %v1391
  %1394 = vperm.xlu0 %1393, %v1389
  %v1395 = vpop.permute.xlu0 %1394
  %v1396 = vperm.slane %v906, 0
  %v1397 = vlaneseq
  %v1398 = vshrl.u32 %v1397, 7
  %1400 = vset.pattern.permute.xlu0 %v1398
  %1401 = vperm.xlu0 %1400, %v1396
  %v1402 = vpop.permute.xlu0 %1401
  %v1403 = vperm.slane %v906, 1
  %v1404 = vlaneseq
  %v1405 = vshrl.u32 %v1404, 7
  %1407 = vset.pattern.permute.xlu0 %v1405
  %1408 = vperm.xlu0 %1407, %v1403
  %v1409 = vpop.permute.xlu0 %1408
  %v1410 = vperm.slane %v906, 2
  %v1411 = vlaneseq
  %v1412 = vshrl.u32 %v1411, 7
  %1414 = vset.pattern.permute.xlu0 %v1412
  %1415 = vperm.xlu0 %1414, %v1410
  %v1416 = vpop.permute.xlu0 %1415
  %v1417 = vperm.slane %v906, 3
  %v1418 = vlaneseq
  %v1419 = vshrl.u32 %v1418, 7
  %1421 = vset.pattern.permute.xlu0 %v1419
  %1422 = vperm.xlu0 %1421, %v1417
  %v1423 = vpop.permute.xlu0 %1422
  %v1424 = vperm.slane %v906, 4
  %v1425 = vlaneseq
  %v1426 = vshrl.u32 %v1425, 7
  %1428 = vset.pattern.permute.xlu0 %v1426
  %1429 = vperm.xlu0 %1428, %v1424
  %v1430 = vpop.permute.xlu0 %1429
  %v1431 = vperm.slane %v906, 5
  %v1432 = vlaneseq
  %v1433 = vshrl.u32 %v1432, 7
  %1435 = vset.pattern.permute.xlu0 %v1433
  %1436 = vperm.xlu0 %1435, %v1431
  %v1437 = vpop.permute.xlu0 %1436
  %v1438 = vperm.slane %v906, 6
  %v1439 = vlaneseq
  %v1440 = vshrl.u32 %v1439, 7
  %1442 = vset.pattern.permute.xlu0 %v1440
  %1443 = vperm.xlu0 %1442, %v1438
  %v1444 = vpop.permute.xlu0 %1443
  %v1445 = vperm.slane %v906, 7
  %v1446 = vlaneseq
  %v1447 = vshrl.u32 %v1446, 7
  %1449 = vset.pattern.permute.xlu0 %v1447
  %1450 = vperm.xlu0 %1449, %v1445
  %v1451 = vpop.permute.xlu0 %1450
  %v1452 = vperm.slane %v907, 0
  %v1453 = vlaneseq
  %v1454 = vshrl.u32 %v1453, 7
  %1456 = vset.pattern.permute.xlu0 %v1454
  %1457 = vperm.xlu0 %1456, %v1452
  %v1458 = vpop.permute.xlu0 %1457
  %v1459 = vperm.slane %v907, 1
  %v1460 = vlaneseq
  %v1461 = vshrl.u32 %v1460, 7
  %1463 = vset.pattern.permute.xlu0 %v1461
  %1464 = vperm.xlu0 %1463, %v1459
  %v1465 = vpop.permute.xlu0 %1464
  %v1466 = vperm.slane %v907, 2
  %v1467 = vlaneseq
  %v1468 = vshrl.u32 %v1467, 7
  %1470 = vset.pattern.permute.xlu0 %v1468
  %1471 = vperm.xlu0 %1470, %v1466
  %v1472 = vpop.permute.xlu0 %1471
  %v1473 = vperm.slane %v907, 3
  %v1474 = vlaneseq
  %v1475 = vshrl.u32 %v1474, 7
  %1477 = vset.pattern.permute.xlu0 %v1475
  %1478 = vperm.xlu0 %1477, %v1473
  %v1479 = vpop.permute.xlu0 %1478
  %v1480 = vperm.slane %v907, 4
  %v1481 = vlaneseq
  %v1482 = vshrl.u32 %v1481, 7
  %1484 = vset.pattern.permute.xlu0 %v1482
  %1485 = vperm.xlu0 %1484, %v1480
  %v1486 = vpop.permute.xlu0 %1485
  %v1487 = vperm.slane %v907, 5
  %v1488 = vlaneseq
  %v1489 = vshrl.u32 %v1488, 7
  %1491 = vset.pattern.permute.xlu0 %v1489
  %1492 = vperm.xlu0 %1491, %v1487
  %v1493 = vpop.permute.xlu0 %1492
  %v1494 = vperm.slane %v907, 6
  %v1495 = vlaneseq
  %v1496 = vshrl.u32 %v1495, 7
  %1498 = vset.pattern.permute.xlu0 %v1496
  %1499 = vperm.xlu0 %1498, %v1494
  %v1500 = vpop.permute.xlu0 %1499
  %v1501 = vperm.slane %v907, 7
  %v1502 = vlaneseq
  %v1503 = vshrl.u32 %v1502, 7
  %1505 = vset.pattern.permute.xlu0 %v1503
  %1506 = vperm.xlu0 %1505, %v1501
  %v1507 = vpop.permute.xlu0 %1506
  %v1508 = vmul.f32 %v1234, %v694
  %v1509 = vmul.f32 %v1241, %v694
  %v1510 = vmul.f32 %v1248, %v694
  %v1511 = vmul.f32 %v1255, %v694
  %v1512 = vmul.f32 %v1262, %v694
  %v1513 = vmul.f32 %v1269, %v694
  %v1514 = vmul.f32 %v1276, %v694
  %v1515 = vmul.f32 %v1283, %v694
  %v1516 = vmul.f32 %v1290, %v694
  %v1517 = vmul.f32 %v1297, %v694
  %v1518 = vmul.f32 %v1304, %v694
  %v1519 = vmul.f32 %v1311, %v694
  %v1520 = vmul.f32 %v1318, %v694
  %v1521 = vmul.f32 %v1325, %v694
  %v1522 = vmul.f32 %v1332, %v694
  %v1523 = vmul.f32 %v1339, %v694
  %v1524 = vmul.f32 %v1346, %v694
  %v1525 = vmul.f32 %v1353, %v694
  %v1526 = vmul.f32 %v1360, %v694
  %v1527 = vmul.f32 %v1367, %v694
  %v1528 = vmul.f32 %v1374, %v694
  %v1529 = vmul.f32 %v1381, %v694
  %v1530 = vmul.f32 %v1388, %v694
  %v1531 = vmul.f32 %v1395, %v694
  %v1532 = vmul.f32 %v1402, %v694
  %v1533 = vmul.f32 %v1409, %v694
  %v1534 = vmul.f32 %v1416, %v694
  %v1535 = vmul.f32 %v1423, %v694
  %v1536 = vmul.f32 %v1430, %v694
  %v1537 = vmul.f32 %v1437, %v694
  %v1538 = vmul.f32 %v1444, %v694
  %v1539 = vmul.f32 %v1451, %v694
  %v1540 = vmul.f32 %v1458, %v694
  %v1541 = vmul.f32 %v1465, %v694
  %v1542 = vmul.f32 %v1472, %v694
  %v1543 = vmul.f32 %v1479, %v694
  %v1544 = vmul.f32 %v1486, %v694
  %v1545 = vmul.f32 %v1493, %v694
  %v1546 = vmul.f32 %v1500, %v694
  %v1547 = vmul.f32 %v1507, %v694
  %v1548 = vadd.f32 %v1188, %v1508
  %v1549 = vadd.f32 %v1189, %v1509
  %v1550 = vadd.f32 %v1190, %v1510
  %v1551 = vadd.f32 %v1191, %v1511
  %v1552 = vadd.f32 %v1192, %v1512
  %v1553 = vadd.f32 %v1193, %v1513
  %v1554 = vadd.f32 %v1194, %v1514
  %v1555 = vadd.f32 %v1195, %v1515
  %v1556 = vadd.f32 %v1196, %v1516
  %v1557 = vadd.f32 %v1197, %v1517
  %v1558 = vadd.f32 %v1198, %v1518
  %v1559 = vadd.f32 %v1199, %v1519
  %v1560 = vadd.f32 %v1200, %v1520
  %v1561 = vadd.f32 %v1201, %v1521
  %v1562 = vadd.f32 %v1202, %v1522
  %v1563 = vadd.f32 %v1203, %v1523
  %v1564 = vadd.f32 %v1204, %v1524
  %v1565 = vadd.f32 %v1205, %v1525
  %v1566 = vadd.f32 %v1206, %v1526
  %v1567 = vadd.f32 %v1207, %v1527
  %v1568 = vadd.f32 %v1208, %v1528
  %v1569 = vadd.f32 %v1209, %v1529
  %v1570 = vadd.f32 %v1210, %v1530
  %v1571 = vadd.f32 %v1211, %v1531
  %v1572 = vadd.f32 %v1212, %v1532
  %v1573 = vadd.f32 %v1213, %v1533
  %v1574 = vadd.f32 %v1214, %v1534
  %v1575 = vadd.f32 %v1215, %v1535
  %v1576 = vadd.f32 %v1216, %v1536
  %v1577 = vadd.f32 %v1217, %v1537
  %v1578 = vadd.f32 %v1218, %v1538
  %v1579 = vadd.f32 %v1219, %v1539
  %v1580 = vadd.f32 %v1220, %v1540
  %v1581 = vadd.f32 %v1221, %v1541
  %v1582 = vadd.f32 %v1222, %v1542
  %v1583 = vadd.f32 %v1223, %v1543
  %v1584 = vadd.f32 %v1224, %v1544
  %v1585 = vadd.f32 %v1225, %v1545
  %v1586 = vadd.f32 %v1226, %v1546
  %v1587 = vadd.f32 %v1227, %v1547
  %v1588 = vadd.f32 %v1548, %v776
  %v1589 = vadd.f32 %v1549, %v776
  %v1590 = vadd.f32 %v1550, %v776
  %v1591 = vadd.f32 %v1551, %v776
  %v1592 = vadd.f32 %v1552, %v776
  %v1593 = vadd.f32 %v1553, %v776
  %v1594 = vadd.f32 %v1554, %v776
  %v1595 = vadd.f32 %v1555, %v776
  %v1596 = vadd.f32 %v1556, %v776
  %v1597 = vadd.f32 %v1557, %v776
  %v1598 = vadd.f32 %v1558, %v776
  %v1599 = vadd.f32 %v1559, %v776
  %v1600 = vadd.f32 %v1560, %v776
  %v1601 = vadd.f32 %v1561, %v776
  %v1602 = vadd.f32 %v1562, %v776
  %v1603 = vadd.f32 %v1563, %v776
  %v1604 = vadd.f32 %v1564, %v776
  %v1605 = vadd.f32 %v1565, %v776
  %v1606 = vadd.f32 %v1566, %v776
  %v1607 = vadd.f32 %v1567, %v776
  %v1608 = vadd.f32 %v1568, %v776
  %v1609 = vadd.f32 %v1569, %v776
  %v1610 = vadd.f32 %v1570, %v776
  %v1611 = vadd.f32 %v1571, %v776
  %v1612 = vadd.f32 %v1572, %v776
  %v1613 = vadd.f32 %v1573, %v776
  %v1614 = vadd.f32 %v1574, %v776
  %v1615 = vadd.f32 %v1575, %v776
  %v1616 = vadd.f32 %v1576, %v776
  %v1617 = vadd.f32 %v1577, %v776
  %v1618 = vadd.f32 %v1578, %v776
  %v1619 = vadd.f32 %v1579, %v776
  %v1620 = vadd.f32 %v1580, %v776
  %v1621 = vadd.f32 %v1581, %v776
  %v1622 = vadd.f32 %v1582, %v776
  %v1623 = vadd.f32 %v1583, %v776
  %v1624 = vadd.f32 %v1584, %v776
  %v1625 = vadd.f32 %v1585, %v776
  %v1626 = vadd.f32 %v1586, %v776
  %v1627 = vadd.f32 %v1587, %v776
  %s1628 = scalar_lea.vmem [#allocation2], 320
  %1629 = vst [vmem:[%s1628] sm:$0xff] %v1588
  %1630 = vst [vmem:[%s1628 + $0x8] sm:$0xff] %v1589
  %1631 = vst [vmem:[%s1628 + $0x10] sm:$0xff] %v1590
  %1632 = vst [vmem:[%s1628 + $0x18] sm:$0xff] %v1591
  %1633 = vst [vmem:[%s1628 + $0x20] sm:$0xff] %v1592
  %1634 = vst [vmem:[%s1628 + $0x28] sm:$0xff] %v1593
  %1635 = vst [vmem:[%s1628 + $0x30] sm:$0xff] %v1594
  %1636 = vst [vmem:[%s1628 + $0x38] sm:$0xff] %v1595
  %1637 = vst [vmem:[%s1628 + $0x40] sm:$0xff] %v1596
  %1638 = vst [vmem:[%s1628 + $0x48] sm:$0xff] %v1597
  %1639 = vst [vmem:[%s1628 + $0x50] sm:$0xff] %v1598
  %1640 = vst [vmem:[%s1628 + $0x58] sm:$0xff] %v1599
  %1641 = vst [vmem:[%s1628 + $0x60] sm:$0xff] %v1600
  %1642 = vst [vmem:[%s1628 + $0x68] sm:$0xff] %v1601
  %1643 = vst [vmem:[%s1628 + $0x70] sm:$0xff] %v1602
  %1644 = vst [vmem:[%s1628 + $0x78] sm:$0xff] %v1603
  %1645 = vst [vmem:[%s1628 + $0x80] sm:$0xff] %v1604
  %1646 = vst [vmem:[%s1628 + $0x88] sm:$0xff] %v1605
  %1647 = vst [vmem:[%s1628 + $0x90] sm:$0xff] %v1606
  %1648 = vst [vmem:[%s1628 + $0x98] sm:$0xff] %v1607
  %1649 = vst [vmem:[%s1628 + $0xa0] sm:$0xff] %v1608
  %1650 = vst [vmem:[%s1628 + $0xa8] sm:$0xff] %v1609
  %1651 = vst [vmem:[%s1628 + $0xb0] sm:$0xff] %v1610
  %1652 = vst [vmem:[%s1628 + $0xb8] sm:$0xff] %v1611
  %1653 = vst [vmem:[%s1628 + $0xc0] sm:$0xff] %v1612
  %1654 = vst [vmem:[%s1628 + $0xc8] sm:$0xff] %v1613
  %1655 = vst [vmem:[%s1628 + $0xd0] sm:$0xff] %v1614
  %1656 = vst [vmem:[%s1628 + $0xd8] sm:$0xff] %v1615
  %1657 = vst [vmem:[%s1628 + $0xe0] sm:$0xff] %v1616
  %1658 = vst [vmem:[%s1628 + $0xe8] sm:$0xff] %v1617
  %1659 = vst [vmem:[%s1628 + $0xf0] sm:$0xff] %v1618
  %1660 = vst [vmem:[%s1628 + $0xf8] sm:$0xff] %v1619
  %1661 = vst [vmem:[%s1628 + $0x100] sm:$0xff] %v1620
  %1662 = vst [vmem:[%s1628 + $0x108] sm:$0xff] %v1621
  %1663 = vst [vmem:[%s1628 + $0x110] sm:$0xff] %v1622
  %1664 = vst [vmem:[%s1628 + $0x118] sm:$0xff] %v1623
  %1665 = vst [vmem:[%s1628 + $0x120] sm:$0xff] %v1624
  %1666 = vst [vmem:[%s1628 + $0x128] sm:$0xff] %v1625
  %1667 = vst [vmem:[%s1628 + $0x130] sm:$0xff] %v1626
  %1668 = vst [vmem:[%s1628 + $0x138] sm:$0xff] %v1627
  %v1669 = vld [vmem:[%s0 + $0x50] sm:$0xff]
  %v1670 = vld [vmem:[%s0 + $0x58] sm:$0xff]
  %v1671 = vld [vmem:[%s0 + $0x60] sm:$0xff]
  %v1672 = vld [vmem:[%s0 + $0x68] sm:$0xff]
  %v1673 = vld [vmem:[%s0 + $0x70] sm:$0xff]
  %v1674 = vld [vmem:[%s1 + $0x50] sm:$0xff]
  %v1675 = vld [vmem:[%s1 + $0x58] sm:$0xff]
  %v1676 = vld [vmem:[%s1 + $0x60] sm:$0xff]
  %v1677 = vld [vmem:[%s1 + $0x68] sm:$0xff]
  %v1678 = vld [vmem:[%s1 + $0x70] sm:$0xff]
  %v1679 = vld [vmem:[%s49 + $0x50] sm:$0xff]
  %v1680 = vld [vmem:[%s49 + $0x58] sm:$0xff]
  %v1681 = vld [vmem:[%s49 + $0x60] sm:$0xff]
  %v1682 = vld [vmem:[%s49 + $0x68] sm:$0xff]
  %v1683 = vld [vmem:[%s49 + $0x70] sm:$0xff]
  %v1684 = vmax.f32 %v1669, %v1679
  %v1685 = vmax.f32 %v1670, %v1680
  %v1686 = vmax.f32 %v1671, %v1681
  %v1687 = vmax.f32 %v1672, %v1682
  %v1688 = vmax.f32 %v1673, %v1683
  %v1689 = vld [vmem:[%s60 + $0x50] sm:$0xff]
  %v1690 = vld [vmem:[%s60 + $0x58] sm:$0xff]
  %v1691 = vld [vmem:[%s60 + $0x60] sm:$0xff]
  %v1692 = vld [vmem:[%s60 + $0x68] sm:$0xff]
  %v1693 = vld [vmem:[%s60 + $0x70] sm:$0xff]
  %v1694 = vmax.f32 %v1674, %v1689
  %v1695 = vmax.f32 %v1675, %v1690
  %v1696 = vmax.f32 %v1676, %v1691
  %v1697 = vmax.f32 %v1677, %v1692
  %v1698 = vmax.f32 %v1678, %v1693
  %v1699 = vld [vmem:[%s71 + $0x50] sm:$0xff]
  %v1700 = vld [vmem:[%s71 + $0x58] sm:$0xff]
  %v1701 = vld [vmem:[%s71 + $0x60] sm:$0xff]
  %v1702 = vld [vmem:[%s71 + $0x68] sm:$0xff]
  %v1703 = vld [vmem:[%s71 + $0x70] sm:$0xff]
  %v1704 = vmax.f32 %v1684, %v1699
  %v1705 = vmax.f32 %v1685, %v1700
  %v1706 = vmax.f32 %v1686, %v1701
  %v1707 = vmax.f32 %v1687, %v1702
  %v1708 = vmax.f32 %v1688, %v1703
  %v1709 = vld [vmem:[%s82 + $0x50] sm:$0xff]
  %v1710 = vld [vmem:[%s82 + $0x58] sm:$0xff]
  %v1711 = vld [vmem:[%s82 + $0x60] sm:$0xff]
  %v1712 = vld [vmem:[%s82 + $0x68] sm:$0xff]
  %v1713 = vld [vmem:[%s82 + $0x70] sm:$0xff]
  %v1714 = vmax.f32 %v1694, %v1709
  %v1715 = vmax.f32 %v1695, %v1710
  %v1716 = vmax.f32 %v1696, %v1711
  %v1717 = vmax.f32 %v1697, %v1712
  %v1718 = vmax.f32 %v1698, %v1713
  %v1719 = vperm.slane %v1704, 0
  %v1720 = vlaneseq
  %v1721 = vshrl.u32 %v1720, 7
  %1723 = vset.pattern.permute.xlu0 %v1721
  %1724 = vperm.xlu0 %1723, %v1719
  %v1725 = vpop.permute.xlu0 %1724
  %v1726 = vperm.slane %v1704, 1
  %v1727 = vlaneseq
  %v1728 = vshrl.u32 %v1727, 7
  %1730 = vset.pattern.permute.xlu0 %v1728
  %1731 = vperm.xlu0 %1730, %v1726
  %v1732 = vpop.permute.xlu0 %1731
  %v1733 = vperm.slane %v1704, 2
  %v1734 = vlaneseq
  %v1735 = vshrl.u32 %v1734, 7
  %1737 = vset.pattern.permute.xlu0 %v1735
  %1738 = vperm.xlu0 %1737, %v1733
  %v1739 = vpop.permute.xlu0 %1738
  %v1740 = vperm.slane %v1704, 3
  %v1741 = vlaneseq
  %v1742 = vshrl.u32 %v1741, 7
  %1744 = vset.pattern.permute.xlu0 %v1742
  %1745 = vperm.xlu0 %1744, %v1740
  %v1746 = vpop.permute.xlu0 %1745
  %v1747 = vperm.slane %v1704, 4
  %v1748 = vlaneseq
  %v1749 = vshrl.u32 %v1748, 7
  %1751 = vset.pattern.permute.xlu0 %v1749
  %1752 = vperm.xlu0 %1751, %v1747
  %v1753 = vpop.permute.xlu0 %1752
  %v1754 = vperm.slane %v1704, 5
  %v1755 = vlaneseq
  %v1756 = vshrl.u32 %v1755, 7
  %1758 = vset.pattern.permute.xlu0 %v1756
  %1759 = vperm.xlu0 %1758, %v1754
  %v1760 = vpop.permute.xlu0 %1759
  %v1761 = vperm.slane %v1704, 6
  %v1762 = vlaneseq
  %v1763 = vshrl.u32 %v1762, 7
  %1765 = vset.pattern.permute.xlu0 %v1763
  %1766 = vperm.xlu0 %1765, %v1761
  %v1767 = vpop.permute.xlu0 %1766
  %v1768 = vperm.slane %v1704, 7
  %v1769 = vlaneseq
  %v1770 = vshrl.u32 %v1769, 7
  %1772 = vset.pattern.permute.xlu0 %v1770
  %1773 = vperm.xlu0 %1772, %v1768
  %v1774 = vpop.permute.xlu0 %1773
  %v1775 = vperm.slane %v1705, 0
  %v1776 = vlaneseq
  %v1777 = vshrl.u32 %v1776, 7
  %1779 = vset.pattern.permute.xlu0 %v1777
  %1780 = vperm.xlu0 %1779, %v1775
  %v1781 = vpop.permute.xlu0 %1780
  %v1782 = vperm.slane %v1705, 1
  %v1783 = vlaneseq
  %v1784 = vshrl.u32 %v1783, 7
  %1786 = vset.pattern.permute.xlu0 %v1784
  %1787 = vperm.xlu0 %1786, %v1782
  %v1788 = vpop.permute.xlu0 %1787
  %v1789 = vperm.slane %v1705, 2
  %v1790 = vlaneseq
  %v1791 = vshrl.u32 %v1790, 7
  %1793 = vset.pattern.permute.xlu0 %v1791
  %1794 = vperm.xlu0 %1793, %v1789
  %v1795 = vpop.permute.xlu0 %1794
  %v1796 = vperm.slane %v1705, 3
  %v1797 = vlaneseq
  %v1798 = vshrl.u32 %v1797, 7
  %1800 = vset.pattern.permute.xlu0 %v1798
  %1801 = vperm.xlu0 %1800, %v1796
  %v1802 = vpop.permute.xlu0 %1801
  %v1803 = vperm.slane %v1705, 4
  %v1804 = vlaneseq
  %v1805 = vshrl.u32 %v1804, 7
  %1807 = vset.pattern.permute.xlu0 %v1805
  %1808 = vperm.xlu0 %1807, %v1803
  %v1809 = vpop.permute.xlu0 %1808
  %v1810 = vperm.slane %v1705, 5
  %v1811 = vlaneseq
  %v1812 = vshrl.u32 %v1811, 7
  %1814 = vset.pattern.permute.xlu0 %v1812
  %1815 = vperm.xlu0 %1814, %v1810
  %v1816 = vpop.permute.xlu0 %1815
  %v1817 = vperm.slane %v1705, 6
  %v1818 = vlaneseq
  %v1819 = vshrl.u32 %v1818, 7
  %1821 = vset.pattern.permute.xlu0 %v1819
  %1822 = vperm.xlu0 %1821, %v1817
  %v1823 = vpop.permute.xlu0 %1822
  %v1824 = vperm.slane %v1705, 7
  %v1825 = vlaneseq
  %v1826 = vshrl.u32 %v1825, 7
  %1828 = vset.pattern.permute.xlu0 %v1826
  %1829 = vperm.xlu0 %1828, %v1824
  %v1830 = vpop.permute.xlu0 %1829
  %v1831 = vperm.slane %v1706, 0
  %v1832 = vlaneseq
  %v1833 = vshrl.u32 %v1832, 7
  %1835 = vset.pattern.permute.xlu0 %v1833
  %1836 = vperm.xlu0 %1835, %v1831
  %v1837 = vpop.permute.xlu0 %1836
  %v1838 = vperm.slane %v1706, 1
  %v1839 = vlaneseq
  %v1840 = vshrl.u32 %v1839, 7
  %1842 = vset.pattern.permute.xlu0 %v1840
  %1843 = vperm.xlu0 %1842, %v1838
  %v1844 = vpop.permute.xlu0 %1843
  %v1845 = vperm.slane %v1706, 2
  %v1846 = vlaneseq
  %v1847 = vshrl.u32 %v1846, 7
  %1849 = vset.pattern.permute.xlu0 %v1847
  %1850 = vperm.xlu0 %1849, %v1845
  %v1851 = vpop.permute.xlu0 %1850
  %v1852 = vperm.slane %v1706, 3
  %v1853 = vlaneseq
  %v1854 = vshrl.u32 %v1853, 7
  %1856 = vset.pattern.permute.xlu0 %v1854
  %1857 = vperm.xlu0 %1856, %v1852
  %v1858 = vpop.permute.xlu0 %1857
  %v1859 = vperm.slane %v1706, 4
  %v1860 = vlaneseq
  %v1861 = vshrl.u32 %v1860, 7
  %1863 = vset.pattern.permute.xlu0 %v1861
  %1864 = vperm.xlu0 %1863, %v1859
  %v1865 = vpop.permute.xlu0 %1864
  %v1866 = vperm.slane %v1706, 5
  %v1867 = vlaneseq
  %v1868 = vshrl.u32 %v1867, 7
  %1870 = vset.pattern.permute.xlu0 %v1868
  %1871 = vperm.xlu0 %1870, %v1866
  %v1872 = vpop.permute.xlu0 %1871
  %v1873 = vperm.slane %v1706, 6
  %v1874 = vlaneseq
  %v1875 = vshrl.u32 %v1874, 7
  %1877 = vset.pattern.permute.xlu0 %v1875
  %1878 = vperm.xlu0 %1877, %v1873
  %v1879 = vpop.permute.xlu0 %1878
  %v1880 = vperm.slane %v1706, 7
  %v1881 = vlaneseq
  %v1882 = vshrl.u32 %v1881, 7
  %1884 = vset.pattern.permute.xlu0 %v1882
  %1885 = vperm.xlu0 %1884, %v1880
  %v1886 = vpop.permute.xlu0 %1885
  %v1887 = vperm.slane %v1707, 0
  %v1888 = vlaneseq
  %v1889 = vshrl.u32 %v1888, 7
  %1891 = vset.pattern.permute.xlu0 %v1889
  %1892 = vperm.xlu0 %1891, %v1887
  %v1893 = vpop.permute.xlu0 %1892
  %v1894 = vperm.slane %v1707, 1
  %v1895 = vlaneseq
  %v1896 = vshrl.u32 %v1895, 7
  %1898 = vset.pattern.permute.xlu0 %v1896
  %1899 = vperm.xlu0 %1898, %v1894
  %v1900 = vpop.permute.xlu0 %1899
  %v1901 = vperm.slane %v1707, 2
  %v1902 = vlaneseq
  %v1903 = vshrl.u32 %v1902, 7
  %1905 = vset.pattern.permute.xlu0 %v1903
  %1906 = vperm.xlu0 %1905, %v1901
  %v1907 = vpop.permute.xlu0 %1906
  %v1908 = vperm.slane %v1707, 3
  %v1909 = vlaneseq
  %v1910 = vshrl.u32 %v1909, 7
  %1912 = vset.pattern.permute.xlu0 %v1910
  %1913 = vperm.xlu0 %1912, %v1908
  %v1914 = vpop.permute.xlu0 %1913
  %v1915 = vperm.slane %v1707, 4
  %v1916 = vlaneseq
  %v1917 = vshrl.u32 %v1916, 7
  %1919 = vset.pattern.permute.xlu0 %v1917
  %1920 = vperm.xlu0 %1919, %v1915
  %v1921 = vpop.permute.xlu0 %1920
  %v1922 = vperm.slane %v1707, 5
  %v1923 = vlaneseq
  %v1924 = vshrl.u32 %v1923, 7
  %1926 = vset.pattern.permute.xlu0 %v1924
  %1927 = vperm.xlu0 %1926, %v1922
  %v1928 = vpop.permute.xlu0 %1927
  %v1929 = vperm.slane %v1707, 6
  %v1930 = vlaneseq
  %v1931 = vshrl.u32 %v1930, 7
  %1933 = vset.pattern.permute.xlu0 %v1931
  %1934 = vperm.xlu0 %1933, %v1929
  %v1935 = vpop.permute.xlu0 %1934
  %v1936 = vperm.slane %v1707, 7
  %v1937 = vlaneseq
  %v1938 = vshrl.u32 %v1937, 7
  %1940 = vset.pattern.permute.xlu0 %v1938
  %1941 = vperm.xlu0 %1940, %v1936
  %v1942 = vpop.permute.xlu0 %1941
  %v1943 = vperm.slane %v1708, 0
  %v1944 = vlaneseq
  %v1945 = vshrl.u32 %v1944, 7
  %1947 = vset.pattern.permute.xlu0 %v1945
  %1948 = vperm.xlu0 %1947, %v1943
  %v1949 = vpop.permute.xlu0 %1948
  %v1950 = vperm.slane %v1708, 1
  %v1951 = vlaneseq
  %v1952 = vshrl.u32 %v1951, 7
  %1954 = vset.pattern.permute.xlu0 %v1952
  %1955 = vperm.xlu0 %1954, %v1950
  %v1956 = vpop.permute.xlu0 %1955
  %v1957 = vperm.slane %v1708, 2
  %v1958 = vlaneseq
  %v1959 = vshrl.u32 %v1958, 7
  %1961 = vset.pattern.permute.xlu0 %v1959
  %1962 = vperm.xlu0 %1961, %v1957
  %v1963 = vpop.permute.xlu0 %1962
  %v1964 = vperm.slane %v1708, 3
  %v1965 = vlaneseq
  %v1966 = vshrl.u32 %v1965, 7
  %1968 = vset.pattern.permute.xlu0 %v1966
  %1969 = vperm.xlu0 %1968, %v1964
  %v1970 = vpop.permute.xlu0 %1969
  %v1971 = vperm.slane %v1708, 4
  %v1972 = vlaneseq
  %v1973 = vshrl.u32 %v1972, 7
  %1975 = vset.pattern.permute.xlu0 %v1973
  %1976 = vperm.xlu0 %1975, %v1971
  %v1977 = vpop.permute.xlu0 %1976
  %v1978 = vperm.slane %v1708, 5
  %v1979 = vlaneseq
  %v1980 = vshrl.u32 %v1979, 7
  %1982 = vset.pattern.permute.xlu0 %v1980
  %1983 = vperm.xlu0 %1982, %v1978
  %v1984 = vpop.permute.xlu0 %1983
  %v1985 = vperm.slane %v1708, 6
  %v1986 = vlaneseq
  %v1987 = vshrl.u32 %v1986, 7
  %1989 = vset.pattern.permute.xlu0 %v1987
  %1990 = vperm.xlu0 %1989, %v1985
  %v1991 = vpop.permute.xlu0 %1990
  %v1992 = vperm.slane %v1708, 7
  %v1993 = vlaneseq
  %v1994 = vshrl.u32 %v1993, 7
  %1996 = vset.pattern.permute.xlu0 %v1994
  %1997 = vperm.xlu0 %1996, %v1992
  %v1998 = vpop.permute.xlu0 %1997
  %v1999 = vmul.f32 %v1725, %v373
  %v2000 = vmul.f32 %v1732, %v373
  %v2001 = vmul.f32 %v1739, %v373
  %v2002 = vmul.f32 %v1746, %v373
  %v2003 = vmul.f32 %v1753, %v373
  %v2004 = vmul.f32 %v1760, %v373
  %v2005 = vmul.f32 %v1767, %v373
  %v2006 = vmul.f32 %v1774, %v373
  %v2007 = vmul.f32 %v1781, %v373
  %v2008 = vmul.f32 %v1788, %v373
  %v2009 = vmul.f32 %v1795, %v373
  %v2010 = vmul.f32 %v1802, %v373
  %v2011 = vmul.f32 %v1809, %v373
  %v2012 = vmul.f32 %v1816, %v373
  %v2013 = vmul.f32 %v1823, %v373
  %v2014 = vmul.f32 %v1830, %v373
  %v2015 = vmul.f32 %v1837, %v373
  %v2016 = vmul.f32 %v1844, %v373
  %v2017 = vmul.f32 %v1851, %v373
  %v2018 = vmul.f32 %v1858, %v373
  %v2019 = vmul.f32 %v1865, %v373
  %v2020 = vmul.f32 %v1872, %v373
  %v2021 = vmul.f32 %v1879, %v373
  %v2022 = vmul.f32 %v1886, %v373
  %v2023 = vmul.f32 %v1893, %v373
  %v2024 = vmul.f32 %v1900, %v373
  %v2025 = vmul.f32 %v1907, %v373
  %v2026 = vmul.f32 %v1914, %v373
  %v2027 = vmul.f32 %v1921, %v373
  %v2028 = vmul.f32 %v1928, %v373
  %v2029 = vmul.f32 %v1935, %v373
  %v2030 = vmul.f32 %v1942, %v373
  %v2031 = vmul.f32 %v1949, %v373
  %v2032 = vmul.f32 %v1956, %v373
  %v2033 = vmul.f32 %v1963, %v373
  %v2034 = vmul.f32 %v1970, %v373
  %v2035 = vmul.f32 %v1977, %v373
  %v2036 = vmul.f32 %v1984, %v373
  %v2037 = vmul.f32 %v1991, %v373
  %v2038 = vmul.f32 %v1998, %v373
  %v2039 = vperm.slane %v1714, 0
  %v2040 = vlaneseq
  %v2041 = vshrl.u32 %v2040, 7
  %2043 = vset.pattern.permute.xlu0 %v2041
  %2044 = vperm.xlu0 %2043, %v2039
  %v2045 = vpop.permute.xlu0 %2044
  %v2046 = vperm.slane %v1714, 1
  %v2047 = vlaneseq
  %v2048 = vshrl.u32 %v2047, 7
  %2050 = vset.pattern.permute.xlu0 %v2048
  %2051 = vperm.xlu0 %2050, %v2046
  %v2052 = vpop.permute.xlu0 %2051
  %v2053 = vperm.slane %v1714, 2
  %v2054 = vlaneseq
  %v2055 = vshrl.u32 %v2054, 7
  %2057 = vset.pattern.permute.xlu0 %v2055
  %2058 = vperm.xlu0 %2057, %v2053
  %v2059 = vpop.permute.xlu0 %2058
  %v2060 = vperm.slane %v1714, 3
  %v2061 = vlaneseq
  %v2062 = vshrl.u32 %v2061, 7
  %2064 = vset.pattern.permute.xlu0 %v2062
  %2065 = vperm.xlu0 %2064, %v2060
  %v2066 = vpop.permute.xlu0 %2065
  %v2067 = vperm.slane %v1714, 4
  %v2068 = vlaneseq
  %v2069 = vshrl.u32 %v2068, 7
  %2071 = vset.pattern.permute.xlu0 %v2069
  %2072 = vperm.xlu0 %2071, %v2067
  %v2073 = vpop.permute.xlu0 %2072
  %v2074 = vperm.slane %v1714, 5
  %v2075 = vlaneseq
  %v2076 = vshrl.u32 %v2075, 7
  %2078 = vset.pattern.permute.xlu0 %v2076
  %2079 = vperm.xlu0 %2078, %v2074
  %v2080 = vpop.permute.xlu0 %2079
  %v2081 = vperm.slane %v1714, 6
  %v2082 = vlaneseq
  %v2083 = vshrl.u32 %v2082, 7
  %2085 = vset.pattern.permute.xlu0 %v2083
  %2086 = vperm.xlu0 %2085, %v2081
  %v2087 = vpop.permute.xlu0 %2086
  %v2088 = vperm.slane %v1714, 7
  %v2089 = vlaneseq
  %v2090 = vshrl.u32 %v2089, 7
  %2092 = vset.pattern.permute.xlu0 %v2090
  %2093 = vperm.xlu0 %2092, %v2088
  %v2094 = vpop.permute.xlu0 %2093
  %v2095 = vperm.slane %v1715, 0
  %v2096 = vlaneseq
  %v2097 = vshrl.u32 %v2096, 7
  %2099 = vset.pattern.permute.xlu0 %v2097
  %2100 = vperm.xlu0 %2099, %v2095
  %v2101 = vpop.permute.xlu0 %2100
  %v2102 = vperm.slane %v1715, 1
  %v2103 = vlaneseq
  %v2104 = vshrl.u32 %v2103, 7
  %2106 = vset.pattern.permute.xlu0 %v2104
  %2107 = vperm.xlu0 %2106, %v2102
  %v2108 = vpop.permute.xlu0 %2107
  %v2109 = vperm.slane %v1715, 2
  %v2110 = vlaneseq
  %v2111 = vshrl.u32 %v2110, 7
  %2113 = vset.pattern.permute.xlu0 %v2111
  %2114 = vperm.xlu0 %2113, %v2109
  %v2115 = vpop.permute.xlu0 %2114
  %v2116 = vperm.slane %v1715, 3
  %v2117 = vlaneseq
  %v2118 = vshrl.u32 %v2117, 7
  %2120 = vset.pattern.permute.xlu0 %v2118
  %2121 = vperm.xlu0 %2120, %v2116
  %v2122 = vpop.permute.xlu0 %2121
  %v2123 = vperm.slane %v1715, 4
  %v2124 = vlaneseq
  %v2125 = vshrl.u32 %v2124, 7
  %2127 = vset.pattern.permute.xlu0 %v2125
  %2128 = vperm.xlu0 %2127, %v2123
  %v2129 = vpop.permute.xlu0 %2128
  %v2130 = vperm.slane %v1715, 5
  %v2131 = vlaneseq
  %v2132 = vshrl.u32 %v2131, 7
  %2134 = vset.pattern.permute.xlu0 %v2132
  %2135 = vperm.xlu0 %2134, %v2130
  %v2136 = vpop.permute.xlu0 %2135
  %v2137 = vperm.slane %v1715, 6
  %v2138 = vlaneseq
  %v2139 = vshrl.u32 %v2138, 7
  %2141 = vset.pattern.permute.xlu0 %v2139
  %2142 = vperm.xlu0 %2141, %v2137
  %v2143 = vpop.permute.xlu0 %2142
  %v2144 = vperm.slane %v1715, 7
  %v2145 = vlaneseq
  %v2146 = vshrl.u32 %v2145, 7
  %2148 = vset.pattern.permute.xlu0 %v2146
  %2149 = vperm.xlu0 %2148, %v2144
  %v2150 = vpop.permute.xlu0 %2149
  %v2151 = vperm.slane %v1716, 0
  %v2152 = vlaneseq
  %v2153 = vshrl.u32 %v2152, 7
  %2155 = vset.pattern.permute.xlu0 %v2153
  %2156 = vperm.xlu0 %2155, %v2151
  %v2157 = vpop.permute.xlu0 %2156
  %v2158 = vperm.slane %v1716, 1
  %v2159 = vlaneseq
  %v2160 = vshrl.u32 %v2159, 7
  %2162 = vset.pattern.permute.xlu0 %v2160
  %2163 = vperm.xlu0 %2162, %v2158
  %v2164 = vpop.permute.xlu0 %2163
  %v2165 = vperm.slane %v1716, 2
  %v2166 = vlaneseq
  %v2167 = vshrl.u32 %v2166, 7
  %2169 = vset.pattern.permute.xlu0 %v2167
  %2170 = vperm.xlu0 %2169, %v2165
  %v2171 = vpop.permute.xlu0 %2170
  %v2172 = vperm.slane %v1716, 3
  %v2173 = vlaneseq
  %v2174 = vshrl.u32 %v2173, 7
  %2176 = vset.pattern.permute.xlu0 %v2174
  %2177 = vperm.xlu0 %2176, %v2172
  %v2178 = vpop.permute.xlu0 %2177
  %v2179 = vperm.slane %v1716, 4
  %v2180 = vlaneseq
  %v2181 = vshrl.u32 %v2180, 7
  %2183 = vset.pattern.permute.xlu0 %v2181
  %2184 = vperm.xlu0 %2183, %v2179
  %v2185 = vpop.permute.xlu0 %2184
  %v2186 = vperm.slane %v1716, 5
  %v2187 = vlaneseq
  %v2188 = vshrl.u32 %v2187, 7
  %2190 = vset.pattern.permute.xlu0 %v2188
  %2191 = vperm.xlu0 %2190, %v2186
  %v2192 = vpop.permute.xlu0 %2191
  %v2193 = vperm.slane %v1716, 6
  %v2194 = vlaneseq
  %v2195 = vshrl.u32 %v2194, 7
  %2197 = vset.pattern.permute.xlu0 %v2195
  %2198 = vperm.xlu0 %2197, %v2193
  %v2199 = vpop.permute.xlu0 %2198
  %v2200 = vperm.slane %v1716, 7
  %v2201 = vlaneseq
  %v2202 = vshrl.u32 %v2201, 7
  %2204 = vset.pattern.permute.xlu0 %v2202
  %2205 = vperm.xlu0 %2204, %v2200
  %v2206 = vpop.permute.xlu0 %2205
  %v2207 = vperm.slane %v1717, 0
  %v2208 = vlaneseq
  %v2209 = vshrl.u32 %v2208, 7
  %2211 = vset.pattern.permute.xlu0 %v2209
  %2212 = vperm.xlu0 %2211, %v2207
  %v2213 = vpop.permute.xlu0 %2212
  %v2214 = vperm.slane %v1717, 1
  %v2215 = vlaneseq
  %v2216 = vshrl.u32 %v2215, 7
  %2218 = vset.pattern.permute.xlu0 %v2216
  %2219 = vperm.xlu0 %2218, %v2214
  %v2220 = vpop.permute.xlu0 %2219
  %v2221 = vperm.slane %v1717, 2
  %v2222 = vlaneseq
  %v2223 = vshrl.u32 %v2222, 7
  %2225 = vset.pattern.permute.xlu0 %v2223
  %2226 = vperm.xlu0 %2225, %v2221
  %v2227 = vpop.permute.xlu0 %2226
  %v2228 = vperm.slane %v1717, 3
  %v2229 = vlaneseq
  %v2230 = vshrl.u32 %v2229, 7
  %2232 = vset.pattern.permute.xlu0 %v2230
  %2233 = vperm.xlu0 %2232, %v2228
  %v2234 = vpop.permute.xlu0 %2233
  %v2235 = vperm.slane %v1717, 4
  %v2236 = vlaneseq
  %v2237 = vshrl.u32 %v2236, 7
  %2239 = vset.pattern.permute.xlu0 %v2237
  %2240 = vperm.xlu0 %2239, %v2235
  %v2241 = vpop.permute.xlu0 %2240
  %v2242 = vperm.slane %v1717, 5
  %v2243 = vlaneseq
  %v2244 = vshrl.u32 %v2243, 7
  %2246 = vset.pattern.permute.xlu0 %v2244
  %2247 = vperm.xlu0 %2246, %v2242
  %v2248 = vpop.permute.xlu0 %2247
  %v2249 = vperm.slane %v1717, 6
  %v2250 = vlaneseq
  %v2251 = vshrl.u32 %v2250, 7
  %2253 = vset.pattern.permute.xlu0 %v2251
  %2254 = vperm.xlu0 %2253, %v2249
  %v2255 = vpop.permute.xlu0 %2254
  %v2256 = vperm.slane %v1717, 7
  %v2257 = vlaneseq
  %v2258 = vshrl.u32 %v2257, 7
  %2260 = vset.pattern.permute.xlu0 %v2258
  %2261 = vperm.xlu0 %2260, %v2256
  %v2262 = vpop.permute.xlu0 %2261
  %v2263 = vperm.slane %v1718, 0
  %v2264 = vlaneseq
  %v2265 = vshrl.u32 %v2264, 7
  %2267 = vset.pattern.permute.xlu0 %v2265
  %2268 = vperm.xlu0 %2267, %v2263
  %v2269 = vpop.permute.xlu0 %2268
  %v2270 = vperm.slane %v1718, 1
  %v2271 = vlaneseq
  %v2272 = vshrl.u32 %v2271, 7
  %2274 = vset.pattern.permute.xlu0 %v2272
  %2275 = vperm.xlu0 %2274, %v2270
  %v2276 = vpop.permute.xlu0 %2275
  %v2277 = vperm.slane %v1718, 2
  %v2278 = vlaneseq
  %v2279 = vshrl.u32 %v2278, 7
  %2281 = vset.pattern.permute.xlu0 %v2279
  %2282 = vperm.xlu0 %2281, %v2277
  %v2283 = vpop.permute.xlu0 %2282
  %v2284 = vperm.slane %v1718, 3
  %v2285 = vlaneseq
  %v2286 = vshrl.u32 %v2285, 7
  %2288 = vset.pattern.permute.xlu0 %v2286
  %2289 = vperm.xlu0 %2288, %v2284
  %v2290 = vpop.permute.xlu0 %2289
  %v2291 = vperm.slane %v1718, 4
  %v2292 = vlaneseq
  %v2293 = vshrl.u32 %v2292, 7
  %2295 = vset.pattern.permute.xlu0 %v2293
  %2296 = vperm.xlu0 %2295, %v2291
  %v2297 = vpop.permute.xlu0 %2296
  %v2298 = vperm.slane %v1718, 5
  %v2299 = vlaneseq
  %v2300 = vshrl.u32 %v2299, 7
  %2302 = vset.pattern.permute.xlu0 %v2300
  %2303 = vperm.xlu0 %2302, %v2298
  %v2304 = vpop.permute.xlu0 %2303
  %v2305 = vperm.slane %v1718, 6
  %v2306 = vlaneseq
  %v2307 = vshrl.u32 %v2306, 7
  %2309 = vset.pattern.permute.xlu0 %v2307
  %2310 = vperm.xlu0 %2309, %v2305
  %v2311 = vpop.permute.xlu0 %2310
  %v2312 = vperm.slane %v1718, 7
  %v2313 = vlaneseq
  %v2314 = vshrl.u32 %v2313, 7
  %2316 = vset.pattern.permute.xlu0 %v2314
  %2317 = vperm.xlu0 %2316, %v2312
  %v2318 = vpop.permute.xlu0 %2317
  %v2319 = vmul.f32 %v2045, %v694
  %v2320 = vmul.f32 %v2052, %v694
  %v2321 = vmul.f32 %v2059, %v694
  %v2322 = vmul.f32 %v2066, %v694
  %v2323 = vmul.f32 %v2073, %v694
  %v2324 = vmul.f32 %v2080, %v694
  %v2325 = vmul.f32 %v2087, %v694
  %v2326 = vmul.f32 %v2094, %v694
  %v2327 = vmul.f32 %v2101, %v694
  %v2328 = vmul.f32 %v2108, %v694
  %v2329 = vmul.f32 %v2115, %v694
  %v2330 = vmul.f32 %v2122, %v694
  %v2331 = vmul.f32 %v2129, %v694
  %v2332 = vmul.f32 %v2136, %v694
  %v2333 = vmul.f32 %v2143, %v694
  %v2334 = vmul.f32 %v2150, %v694
  %v2335 = vmul.f32 %v2157, %v694
  %v2336 = vmul.f32 %v2164, %v694
  %v2337 = vmul.f32 %v2171, %v694
  %v2338 = vmul.f32 %v2178, %v694
  %v2339 = vmul.f32 %v2185, %v694
  %v2340 = vmul.f32 %v2192, %v694
  %v2341 = vmul.f32 %v2199, %v694
  %v2342 = vmul.f32 %v2206, %v694
  %v2343 = vmul.f32 %v2213, %v694
  %v2344 = vmul.f32 %v2220, %v694
  %v2345 = vmul.f32 %v2227, %v694
  %v2346 = vmul.f32 %v2234, %v694
  %v2347 = vmul.f32 %v2241, %v694
  %v2348 = vmul.f32 %v2248, %v694
  %v2349 = vmul.f32 %v2255, %v694
  %v2350 = vmul.f32 %v2262, %v694
  %v2351 = vmul.f32 %v2269, %v694
  %v2352 = vmul.f32 %v2276, %v694
  %v2353 = vmul.f32 %v2283, %v694
  %v2354 = vmul.f32 %v2290, %v694
  %v2355 = vmul.f32 %v2297, %v694
  %v2356 = vmul.f32 %v2304, %v694
  %v2357 = vmul.f32 %v2311, %v694
  %v2358 = vmul.f32 %v2318, %v694
  %v2359 = vadd.f32 %v1999, %v2319
  %v2360 = vadd.f32 %v2000, %v2320
  %v2361 = vadd.f32 %v2001, %v2321
  %v2362 = vadd.f32 %v2002, %v2322
  %v2363 = vadd.f32 %v2003, %v2323
  %v2364 = vadd.f32 %v2004, %v2324
  %v2365 = vadd.f32 %v2005, %v2325
  %v2366 = vadd.f32 %v2006, %v2326
  %v2367 = vadd.f32 %v2007, %v2327
  %v2368 = vadd.f32 %v2008, %v2328
  %v2369 = vadd.f32 %v2009, %v2329
  %v2370 = vadd.f32 %v2010, %v2330
  %v2371 = vadd.f32 %v2011, %v2331
  %v2372 = vadd.f32 %v2012, %v2332
  %v2373 = vadd.f32 %v2013, %v2333
  %v2374 = vadd.f32 %v2014, %v2334
  %v2375 = vadd.f32 %v2015, %v2335
  %v2376 = vadd.f32 %v2016, %v2336
  %v2377 = vadd.f32 %v2017, %v2337
  %v2378 = vadd.f32 %v2018, %v2338
  %v2379 = vadd.f32 %v2019, %v2339
  %v2380 = vadd.f32 %v2020, %v2340
  %v2381 = vadd.f32 %v2021, %v2341
  %v2382 = vadd.f32 %v2022, %v2342
  %v2383 = vadd.f32 %v2023, %v2343
  %v2384 = vadd.f32 %v2024, %v2344
  %v2385 = vadd.f32 %v2025, %v2345
  %v2386 = vadd.f32 %v2026, %v2346
  %v2387 = vadd.f32 %v2027, %v2347
  %v2388 = vadd.f32 %v2028, %v2348
  %v2389 = vadd.f32 %v2029, %v2349
  %v2390 = vadd.f32 %v2030, %v2350
  %v2391 = vadd.f32 %v2031, %v2351
  %v2392 = vadd.f32 %v2032, %v2352
  %v2393 = vadd.f32 %v2033, %v2353
  %v2394 = vadd.f32 %v2034, %v2354
  %v2395 = vadd.f32 %v2035, %v2355
  %v2396 = vadd.f32 %v2036, %v2356
  %v2397 = vadd.f32 %v2037, %v2357
  %v2398 = vadd.f32 %v2038, %v2358
  %v2399 = vadd.f32 %v2359, %v776
  %v2400 = vadd.f32 %v2360, %v776
  %v2401 = vadd.f32 %v2361, %v776
  %v2402 = vadd.f32 %v2362, %v776
  %v2403 = vadd.f32 %v2363, %v776
  %v2404 = vadd.f32 %v2364, %v776
  %v2405 = vadd.f32 %v2365, %v776
  %v2406 = vadd.f32 %v2366, %v776
  %v2407 = vadd.f32 %v2367, %v776
  %v2408 = vadd.f32 %v2368, %v776
  %v2409 = vadd.f32 %v2369, %v776
  %v2410 = vadd.f32 %v2370, %v776
  %v2411 = vadd.f32 %v2371, %v776
  %v2412 = vadd.f32 %v2372, %v776
  %v2413 = vadd.f32 %v2373, %v776
  %v2414 = vadd.f32 %v2374, %v776
  %v2415 = vadd.f32 %v2375, %v776
  %v2416 = vadd.f32 %v2376, %v776
  %v2417 = vadd.f32 %v2377, %v776
  %v2418 = vadd.f32 %v2378, %v776
  %v2419 = vadd.f32 %v2379, %v776
  %v2420 = vadd.f32 %v2380, %v776
  %v2421 = vadd.f32 %v2381, %v776
  %v2422 = vadd.f32 %v2382, %v776
  %v2423 = vadd.f32 %v2383, %v776
  %v2424 = vadd.f32 %v2384, %v776
  %v2425 = vadd.f32 %v2385, %v776
  %v2426 = vadd.f32 %v2386, %v776
  %v2427 = vadd.f32 %v2387, %v776
  %v2428 = vadd.f32 %v2388, %v776
  %v2429 = vadd.f32 %v2389, %v776
  %v2430 = vadd.f32 %v2390, %v776
  %v2431 = vadd.f32 %v2391, %v776
  %v2432 = vadd.f32 %v2392, %v776
  %v2433 = vadd.f32 %v2393, %v776
  %v2434 = vadd.f32 %v2394, %v776
  %v2435 = vadd.f32 %v2395, %v776
  %v2436 = vadd.f32 %v2396, %v776
  %v2437 = vadd.f32 %v2397, %v776
  %v2438 = vadd.f32 %v2398, %v776
  %s2439 = scalar_lea.vmem [#allocation2], 640
  %2440 = vst [vmem:[%s2439] sm:$0xff] %v2399
  %2441 = vst [vmem:[%s2439 + $0x8] sm:$0xff] %v2400
  %2442 = vst [vmem:[%s2439 + $0x10] sm:$0xff] %v2401
  %2443 = vst [vmem:[%s2439 + $0x18] sm:$0xff] %v2402
  %2444 = vst [vmem:[%s2439 + $0x20] sm:$0xff] %v2403
  %2445 = vst [vmem:[%s2439 + $0x28] sm:$0xff] %v2404
  %2446 = vst [vmem:[%s2439 + $0x30] sm:$0xff] %v2405
  %2447 = vst [vmem:[%s2439 + $0x38] sm:$0xff] %v2406
  %2448 = vst [vmem:[%s2439 + $0x40] sm:$0xff] %v2407
  %2449 = vst [vmem:[%s2439 + $0x48] sm:$0xff] %v2408
  %2450 = vst [vmem:[%s2439 + $0x50] sm:$0xff] %v2409
  %2451 = vst [vmem:[%s2439 + $0x58] sm:$0xff] %v2410
  %2452 = vst [vmem:[%s2439 + $0x60] sm:$0xff] %v2411
  %2453 = vst [vmem:[%s2439 + $0x68] sm:$0xff] %v2412
  %2454 = vst [vmem:[%s2439 + $0x70] sm:$0xff] %v2413
  %2455 = vst [vmem:[%s2439 + $0x78] sm:$0xff] %v2414
  %2456 = vst [vmem:[%s2439 + $0x80] sm:$0xff] %v2415
  %2457 = vst [vmem:[%s2439 + $0x88] sm:$0xff] %v2416
  %2458 = vst [vmem:[%s2439 + $0x90] sm:$0xff] %v2417
  %2459 = vst [vmem:[%s2439 + $0x98] sm:$0xff] %v2418
  %2460 = vst [vmem:[%s2439 + $0xa0] sm:$0xff] %v2419
  %2461 = vst [vmem:[%s2439 + $0xa8] sm:$0xff] %v2420
  %2462 = vst [vmem:[%s2439 + $0xb0] sm:$0xff] %v2421
  %2463 = vst [vmem:[%s2439 + $0xb8] sm:$0xff] %v2422
  %2464 = vst [vmem:[%s2439 + $0xc0] sm:$0xff] %v2423
  %2465 = vst [vmem:[%s2439 + $0xc8] sm:$0xff] %v2424
  %2466 = vst [vmem:[%s2439 + $0xd0] sm:$0xff] %v2425
  %2467 = vst [vmem:[%s2439 + $0xd8] sm:$0xff] %v2426
  %2468 = vst [vmem:[%s2439 + $0xe0] sm:$0xff] %v2427
  %2469 = vst [vmem:[%s2439 + $0xe8] sm:$0xff] %v2428
  %2470 = vst [vmem:[%s2439 + $0xf0] sm:$0xff] %v2429
  %2471 = vst [vmem:[%s2439 + $0xf8] sm:$0xff] %v2430
  %2472 = vst [vmem:[%s2439 + $0x100] sm:$0xff] %v2431
  %2473 = vst [vmem:[%s2439 + $0x108] sm:$0xff] %v2432
  %2474 = vst [vmem:[%s2439 + $0x110] sm:$0xff] %v2433
  %2475 = vst [vmem:[%s2439 + $0x118] sm:$0xff] %v2434
  %2476 = vst [vmem:[%s2439 + $0x120] sm:$0xff] %v2435
  %2477 = vst [vmem:[%s2439 + $0x128] sm:$0xff] %v2436
  %2478 = vst [vmem:[%s2439 + $0x130] sm:$0xff] %v2437
  %2479 = vst [vmem:[%s2439 + $0x138] sm:$0xff] %v2438
  %v2480 = vld [vmem:[%s0 + $0x78] sm:$0xff]
  %v2481 = vld [vmem:[%s0 + $0x80] sm:$0xff]
  %v2482 = vld [vmem:[%s0 + $0x88] sm:$0xff]
  %v2483 = vld [vmem:[%s0 + $0x90] sm:$0xff]
  %v2484 = vld [vmem:[%s0 + $0x98] sm:$0xff]
  %v2485 = vld [vmem:[%s1 + $0x78] sm:$0xff]
  %v2486 = vld [vmem:[%s1 + $0x80] sm:$0xff]
  %v2487 = vld [vmem:[%s1 + $0x88] sm:$0xff]
  %v2488 = vld [vmem:[%s1 + $0x90] sm:$0xff]
  %v2489 = vld [vmem:[%s1 + $0x98] sm:$0xff]
  %v2490 = vld [vmem:[%s49 + $0x78] sm:$0xff]
  %v2491 = vld [vmem:[%s49 + $0x80] sm:$0xff]
  %v2492 = vld [vmem:[%s49 + $0x88] sm:$0xff]
  %v2493 = vld [vmem:[%s49 + $0x90] sm:$0xff]
  %v2494 = vld [vmem:[%s49 + $0x98] sm:$0xff]
  %v2495 = vmax.f32 %v2480, %v2490
  %v2496 = vmax.f32 %v2481, %v2491
  %v2497 = vmax.f32 %v2482, %v2492
  %v2498 = vmax.f32 %v2483, %v2493
  %v2499 = vmax.f32 %v2484, %v2494
  %v2500 = vld [vmem:[%s60 + $0x78] sm:$0xff]
  %v2501 = vld [vmem:[%s60 + $0x80] sm:$0xff]
  %v2502 = vld [vmem:[%s60 + $0x88] sm:$0xff]
  %v2503 = vld [vmem:[%s60 + $0x90] sm:$0xff]
  %v2504 = vld [vmem:[%s60 + $0x98] sm:$0xff]
  %v2505 = vmax.f32 %v2485, %v2500
  %v2506 = vmax.f32 %v2486, %v2501
  %v2507 = vmax.f32 %v2487, %v2502
  %v2508 = vmax.f32 %v2488, %v2503
  %v2509 = vmax.f32 %v2489, %v2504
  %v2510 = vld [vmem:[%s71 + $0x78] sm:$0xff]
  %v2511 = vld [vmem:[%s71 + $0x80] sm:$0xff]
  %v2512 = vld [vmem:[%s71 + $0x88] sm:$0xff]
  %v2513 = vld [vmem:[%s71 + $0x90] sm:$0xff]
  %v2514 = vld [vmem:[%s71 + $0x98] sm:$0xff]
  %v2515 = vmax.f32 %v2495, %v2510
  %v2516 = vmax.f32 %v2496, %v2511
  %v2517 = vmax.f32 %v2497, %v2512
  %v2518 = vmax.f32 %v2498, %v2513
  %v2519 = vmax.f32 %v2499, %v2514
  %v2520 = vld [vmem:[%s82 + $0x78] sm:$0xff]
  %v2521 = vld [vmem:[%s82 + $0x80] sm:$0xff]
  %v2522 = vld [vmem:[%s82 + $0x88] sm:$0xff]
  %v2523 = vld [vmem:[%s82 + $0x90] sm:$0xff]
  %v2524 = vld [vmem:[%s82 + $0x98] sm:$0xff]
  %v2525 = vmax.f32 %v2505, %v2520
  %v2526 = vmax.f32 %v2506, %v2521
  %v2527 = vmax.f32 %v2507, %v2522
  %v2528 = vmax.f32 %v2508, %v2523
  %v2529 = vmax.f32 %v2509, %v2524
  %v2530 = vperm.slane %v2515, 0
  %v2531 = vlaneseq
  %v2532 = vshrl.u32 %v2531, 7
  %2534 = vset.pattern.permute.xlu0 %v2532
  %2535 = vperm.xlu0 %2534, %v2530
  %v2536 = vpop.permute.xlu0 %2535
  %v2537 = vperm.slane %v2515, 1
  %v2538 = vlaneseq
  %v2539 = vshrl.u32 %v2538, 7
  %2541 = vset.pattern.permute.xlu0 %v2539
  %2542 = vperm.xlu0 %2541, %v2537
  %v2543 = vpop.permute.xlu0 %2542
  %v2544 = vperm.slane %v2515, 2
  %v2545 = vlaneseq
  %v2546 = vshrl.u32 %v2545, 7
  %2548 = vset.pattern.permute.xlu0 %v2546
  %2549 = vperm.xlu0 %2548, %v2544
  %v2550 = vpop.permute.xlu0 %2549
  %v2551 = vperm.slane %v2515, 3
  %v2552 = vlaneseq
  %v2553 = vshrl.u32 %v2552, 7
  %2555 = vset.pattern.permute.xlu0 %v2553
  %2556 = vperm.xlu0 %2555, %v2551
  %v2557 = vpop.permute.xlu0 %2556
  %v2558 = vperm.slane %v2515, 4
  %v2559 = vlaneseq
  %v2560 = vshrl.u32 %v2559, 7
  %2562 = vset.pattern.permute.xlu0 %v2560
  %2563 = vperm.xlu0 %2562, %v2558
  %v2564 = vpop.permute.xlu0 %2563
  %v2565 = vperm.slane %v2515, 5
  %v2566 = vlaneseq
  %v2567 = vshrl.u32 %v2566, 7
  %2569 = vset.pattern.permute.xlu0 %v2567
  %2570 = vperm.xlu0 %2569, %v2565
  %v2571 = vpop.permute.xlu0 %2570
  %v2572 = vperm.slane %v2515, 6
  %v2573 = vlaneseq
  %v2574 = vshrl.u32 %v2573, 7
  %2576 = vset.pattern.permute.xlu0 %v2574
  %2577 = vperm.xlu0 %2576, %v2572
  %v2578 = vpop.permute.xlu0 %2577
  %v2579 = vperm.slane %v2515, 7
  %v2580 = vlaneseq
  %v2581 = vshrl.u32 %v2580, 7
  %2583 = vset.pattern.permute.xlu0 %v2581
  %2584 = vperm.xlu0 %2583, %v2579
  %v2585 = vpop.permute.xlu0 %2584
  %v2586 = vperm.slane %v2516, 0
  %v2587 = vlaneseq
  %v2588 = vshrl.u32 %v2587, 7
  %2590 = vset.pattern.permute.xlu0 %v2588
  %2591 = vperm.xlu0 %2590, %v2586
  %v2592 = vpop.permute.xlu0 %2591
  %v2593 = vperm.slane %v2516, 1
  %v2594 = vlaneseq
  %v2595 = vshrl.u32 %v2594, 7
  %2597 = vset.pattern.permute.xlu0 %v2595
  %2598 = vperm.xlu0 %2597, %v2593
  %v2599 = vpop.permute.xlu0 %2598
  %v2600 = vperm.slane %v2516, 2
  %v2601 = vlaneseq
  %v2602 = vshrl.u32 %v2601, 7
  %2604 = vset.pattern.permute.xlu0 %v2602
  %2605 = vperm.xlu0 %2604, %v2600
  %v2606 = vpop.permute.xlu0 %2605
  %v2607 = vperm.slane %v2516, 3
  %v2608 = vlaneseq
  %v2609 = vshrl.u32 %v2608, 7
  %2611 = vset.pattern.permute.xlu0 %v2609
  %2612 = vperm.xlu0 %2611, %v2607
  %v2613 = vpop.permute.xlu0 %2612
  %v2614 = vperm.slane %v2516, 4
  %v2615 = vlaneseq
  %v2616 = vshrl.u32 %v2615, 7
  %2618 = vset.pattern.permute.xlu0 %v2616
  %2619 = vperm.xlu0 %2618, %v2614
  %v2620 = vpop.permute.xlu0 %2619
  %v2621 = vperm.slane %v2516, 5
  %v2622 = vlaneseq
  %v2623 = vshrl.u32 %v2622, 7
  %2625 = vset.pattern.permute.xlu0 %v2623
  %2626 = vperm.xlu0 %2625, %v2621
  %v2627 = vpop.permute.xlu0 %2626
  %v2628 = vperm.slane %v2516, 6
  %v2629 = vlaneseq
  %v2630 = vshrl.u32 %v2629, 7
  %2632 = vset.pattern.permute.xlu0 %v2630
  %2633 = vperm.xlu0 %2632, %v2628
  %v2634 = vpop.permute.xlu0 %2633
  %v2635 = vperm.slane %v2516, 7
  %v2636 = vlaneseq
  %v2637 = vshrl.u32 %v2636, 7
  %2639 = vset.pattern.permute.xlu0 %v2637
  %2640 = vperm.xlu0 %2639, %v2635
  %v2641 = vpop.permute.xlu0 %2640
  %v2642 = vperm.slane %v2517, 0
  %v2643 = vlaneseq
  %v2644 = vshrl.u32 %v2643, 7
  %2646 = vset.pattern.permute.xlu0 %v2644
  %2647 = vperm.xlu0 %2646, %v2642
  %v2648 = vpop.permute.xlu0 %2647
  %v2649 = vperm.slane %v2517, 1
  %v2650 = vlaneseq
  %v2651 = vshrl.u32 %v2650, 7
  %2653 = vset.pattern.permute.xlu0 %v2651
  %2654 = vperm.xlu0 %2653, %v2649
  %v2655 = vpop.permute.xlu0 %2654
  %v2656 = vperm.slane %v2517, 2
  %v2657 = vlaneseq
  %v2658 = vshrl.u32 %v2657, 7
  %2660 = vset.pattern.permute.xlu0 %v2658
  %2661 = vperm.xlu0 %2660, %v2656
  %v2662 = vpop.permute.xlu0 %2661
  %v2663 = vperm.slane %v2517, 3
  %v2664 = vlaneseq
  %v2665 = vshrl.u32 %v2664, 7
  %2667 = vset.pattern.permute.xlu0 %v2665
  %2668 = vperm.xlu0 %2667, %v2663
  %v2669 = vpop.permute.xlu0 %2668
  %v2670 = vperm.slane %v2517, 4
  %v2671 = vlaneseq
  %v2672 = vshrl.u32 %v2671, 7
  %2674 = vset.pattern.permute.xlu0 %v2672
  %2675 = vperm.xlu0 %2674, %v2670
  %v2676 = vpop.permute.xlu0 %2675
  %v2677 = vperm.slane %v2517, 5
  %v2678 = vlaneseq
  %v2679 = vshrl.u32 %v2678, 7
  %2681 = vset.pattern.permute.xlu0 %v2679
  %2682 = vperm.xlu0 %2681, %v2677
  %v2683 = vpop.permute.xlu0 %2682
  %v2684 = vperm.slane %v2517, 6
  %v2685 = vlaneseq
  %v2686 = vshrl.u32 %v2685, 7
  %2688 = vset.pattern.permute.xlu0 %v2686
  %2689 = vperm.xlu0 %2688, %v2684
  %v2690 = vpop.permute.xlu0 %2689
  %v2691 = vperm.slane %v2517, 7
  %v2692 = vlaneseq
  %v2693 = vshrl.u32 %v2692, 7
  %2695 = vset.pattern.permute.xlu0 %v2693
  %2696 = vperm.xlu0 %2695, %v2691
  %v2697 = vpop.permute.xlu0 %2696
  %v2698 = vperm.slane %v2518, 0
  %v2699 = vlaneseq
  %v2700 = vshrl.u32 %v2699, 7
  %2702 = vset.pattern.permute.xlu0 %v2700
  %2703 = vperm.xlu0 %2702, %v2698
  %v2704 = vpop.permute.xlu0 %2703
  %v2705 = vperm.slane %v2518, 1
  %v2706 = vlaneseq
  %v2707 = vshrl.u32 %v2706, 7
  %2709 = vset.pattern.permute.xlu0 %v2707
  %2710 = vperm.xlu0 %2709, %v2705
  %v2711 = vpop.permute.xlu0 %2710
  %v2712 = vperm.slane %v2518, 2
  %v2713 = vlaneseq
  %v2714 = vshrl.u32 %v2713, 7
  %2716 = vset.pattern.permute.xlu0 %v2714
  %2717 = vperm.xlu0 %2716, %v2712
  %v2718 = vpop.permute.xlu0 %2717
  %v2719 = vperm.slane %v2518, 3
  %v2720 = vlaneseq
  %v2721 = vshrl.u32 %v2720, 7
  %2723 = vset.pattern.permute.xlu0 %v2721
  %2724 = vperm.xlu0 %2723, %v2719
  %v2725 = vpop.permute.xlu0 %2724
  %v2726 = vperm.slane %v2518, 4
  %v2727 = vlaneseq
  %v2728 = vshrl.u32 %v2727, 7
  %2730 = vset.pattern.permute.xlu0 %v2728
  %2731 = vperm.xlu0 %2730, %v2726
  %v2732 = vpop.permute.xlu0 %2731
  %v2733 = vperm.slane %v2518, 5
  %v2734 = vlaneseq
  %v2735 = vshrl.u32 %v2734, 7
  %2737 = vset.pattern.permute.xlu0 %v2735
  %2738 = vperm.xlu0 %2737, %v2733
  %v2739 = vpop.permute.xlu0 %2738
  %v2740 = vperm.slane %v2518, 6
  %v2741 = vlaneseq
  %v2742 = vshrl.u32 %v2741, 7
  %2744 = vset.pattern.permute.xlu0 %v2742
  %2745 = vperm.xlu0 %2744, %v2740
  %v2746 = vpop.permute.xlu0 %2745
  %v2747 = vperm.slane %v2518, 7
  %v2748 = vlaneseq
  %v2749 = vshrl.u32 %v2748, 7
  %2751 = vset.pattern.permute.xlu0 %v2749
  %2752 = vperm.xlu0 %2751, %v2747
  %v2753 = vpop.permute.xlu0 %2752
  %v2754 = vperm.slane %v2519, 0
  %v2755 = vlaneseq
  %v2756 = vshrl.u32 %v2755, 7
  %2758 = vset.pattern.permute.xlu0 %v2756
  %2759 = vperm.xlu0 %2758, %v2754
  %v2760 = vpop.permute.xlu0 %2759
  %v2761 = vperm.slane %v2519, 1
  %v2762 = vlaneseq
  %v2763 = vshrl.u32 %v2762, 7
  %2765 = vset.pattern.permute.xlu0 %v2763
  %2766 = vperm.xlu0 %2765, %v2761
  %v2767 = vpop.permute.xlu0 %2766
  %v2768 = vperm.slane %v2519, 2
  %v2769 = vlaneseq
  %v2770 = vshrl.u32 %v2769, 7
  %2772 = vset.pattern.permute.xlu0 %v2770
  %2773 = vperm.xlu0 %2772, %v2768
  %v2774 = vpop.permute.xlu0 %2773
  %v2775 = vperm.slane %v2519, 3
  %v2776 = vlaneseq
  %v2777 = vshrl.u32 %v2776, 7
  %2779 = vset.pattern.permute.xlu0 %v2777
  %2780 = vperm.xlu0 %2779, %v2775
  %v2781 = vpop.permute.xlu0 %2780
  %v2782 = vperm.slane %v2519, 4
  %v2783 = vlaneseq
  %v2784 = vshrl.u32 %v2783, 7
  %2786 = vset.pattern.permute.xlu0 %v2784
  %2787 = vperm.xlu0 %2786, %v2782
  %v2788 = vpop.permute.xlu0 %2787
  %v2789 = vperm.slane %v2519, 5
  %v2790 = vlaneseq
  %v2791 = vshrl.u32 %v2790, 7
  %2793 = vset.pattern.permute.xlu0 %v2791
  %2794 = vperm.xlu0 %2793, %v2789
  %v2795 = vpop.permute.xlu0 %2794
  %v2796 = vperm.slane %v2519, 6
  %v2797 = vlaneseq
  %v2798 = vshrl.u32 %v2797, 7
  %2800 = vset.pattern.permute.xlu0 %v2798
  %2801 = vperm.xlu0 %2800, %v2796
  %v2802 = vpop.permute.xlu0 %2801
  %v2803 = vperm.slane %v2519, 7
  %v2804 = vlaneseq
  %v2805 = vshrl.u32 %v2804, 7
  %2807 = vset.pattern.permute.xlu0 %v2805
  %2808 = vperm.xlu0 %2807, %v2803
  %v2809 = vpop.permute.xlu0 %2808
  %v2810 = vmul.f32 %v2536, %v373
  %v2811 = vmul.f32 %v2543, %v373
  %v2812 = vmul.f32 %v2550, %v373
  %v2813 = vmul.f32 %v2557, %v373
  %v2814 = vmul.f32 %v2564, %v373
  %v2815 = vmul.f32 %v2571, %v373
  %v2816 = vmul.f32 %v2578, %v373
  %v2817 = vmul.f32 %v2585, %v373
  %v2818 = vmul.f32 %v2592, %v373
  %v2819 = vmul.f32 %v2599, %v373
  %v2820 = vmul.f32 %v2606, %v373
  %v2821 = vmul.f32 %v2613, %v373
  %v2822 = vmul.f32 %v2620, %v373
  %v2823 = vmul.f32 %v2627, %v373
  %v2824 = vmul.f32 %v2634, %v373
  %v2825 = vmul.f32 %v2641, %v373
  %v2826 = vmul.f32 %v2648, %v373
  %v2827 = vmul.f32 %v2655, %v373
  %v2828 = vmul.f32 %v2662, %v373
  %v2829 = vmul.f32 %v2669, %v373
  %v2830 = vmul.f32 %v2676, %v373
  %v2831 = vmul.f32 %v2683, %v373
  %v2832 = vmul.f32 %v2690, %v373
  %v2833 = vmul.f32 %v2697, %v373
  %v2834 = vmul.f32 %v2704, %v373
  %v2835 = vmul.f32 %v2711, %v373
  %v2836 = vmul.f32 %v2718, %v373
  %v2837 = vmul.f32 %v2725, %v373
  %v2838 = vmul.f32 %v2732, %v373
  %v2839 = vmul.f32 %v2739, %v373
  %v2840 = vmul.f32 %v2746, %v373
  %v2841 = vmul.f32 %v2753, %v373
  %v2842 = vmul.f32 %v2760, %v373
  %v2843 = vmul.f32 %v2767, %v373
  %v2844 = vmul.f32 %v2774, %v373
  %v2845 = vmul.f32 %v2781, %v373
  %v2846 = vmul.f32 %v2788, %v373
  %v2847 = vmul.f32 %v2795, %v373
  %v2848 = vmul.f32 %v2802, %v373
  %v2849 = vmul.f32 %v2809, %v373
  %v2850 = vperm.slane %v2525, 0
  %v2851 = vlaneseq
  %v2852 = vshrl.u32 %v2851, 7
  %2854 = vset.pattern.permute.xlu0 %v2852
  %2855 = vperm.xlu0 %2854, %v2850
  %v2856 = vpop.permute.xlu0 %2855
  %v2857 = vperm.slane %v2525, 1
  %v2858 = vlaneseq
  %v2859 = vshrl.u32 %v2858, 7
  %2861 = vset.pattern.permute.xlu0 %v2859
  %2862 = vperm.xlu0 %2861, %v2857
  %v2863 = vpop.permute.xlu0 %2862
  %v2864 = vperm.slane %v2525, 2
  %v2865 = vlaneseq
  %v2866 = vshrl.u32 %v2865, 7
  %2868 = vset.pattern.permute.xlu0 %v2866
  %2869 = vperm.xlu0 %2868, %v2864
  %v2870 = vpop.permute.xlu0 %2869
  %v2871 = vperm.slane %v2525, 3
  %v2872 = vlaneseq
  %v2873 = vshrl.u32 %v2872, 7
  %2875 = vset.pattern.permute.xlu0 %v2873
  %2876 = vperm.xlu0 %2875, %v2871
  %v2877 = vpop.permute.xlu0 %2876
  %v2878 = vperm.slane %v2525, 4
  %v2879 = vlaneseq
  %v2880 = vshrl.u32 %v2879, 7
  %2882 = vset.pattern.permute.xlu0 %v2880
  %2883 = vperm.xlu0 %2882, %v2878
  %v2884 = vpop.permute.xlu0 %2883
  %v2885 = vperm.slane %v2525, 5
  %v2886 = vlaneseq
  %v2887 = vshrl.u32 %v2886, 7
  %2889 = vset.pattern.permute.xlu0 %v2887
  %2890 = vperm.xlu0 %2889, %v2885
  %v2891 = vpop.permute.xlu0 %2890
  %v2892 = vperm.slane %v2525, 6
  %v2893 = vlaneseq
  %v2894 = vshrl.u32 %v2893, 7
  %2896 = vset.pattern.permute.xlu0 %v2894
  %2897 = vperm.xlu0 %2896, %v2892
  %v2898 = vpop.permute.xlu0 %2897
  %v2899 = vperm.slane %v2525, 7
  %v2900 = vlaneseq
  %v2901 = vshrl.u32 %v2900, 7
  %2903 = vset.pattern.permute.xlu0 %v2901
  %2904 = vperm.xlu0 %2903, %v2899
  %v2905 = vpop.permute.xlu0 %2904
  %v2906 = vperm.slane %v2526, 0
  %v2907 = vlaneseq
  %v2908 = vshrl.u32 %v2907, 7
  %2910 = vset.pattern.permute.xlu0 %v2908
  %2911 = vperm.xlu0 %2910, %v2906
  %v2912 = vpop.permute.xlu0 %2911
  %v2913 = vperm.slane %v2526, 1
  %v2914 = vlaneseq
  %v2915 = vshrl.u32 %v2914, 7
  %2917 = vset.pattern.permute.xlu0 %v2915
  %2918 = vperm.xlu0 %2917, %v2913
  %v2919 = vpop.permute.xlu0 %2918
  %v2920 = vperm.slane %v2526, 2
  %v2921 = vlaneseq
  %v2922 = vshrl.u32 %v2921, 7
  %2924 = vset.pattern.permute.xlu0 %v2922
  %2925 = vperm.xlu0 %2924, %v2920
  %v2926 = vpop.permute.xlu0 %2925
  %v2927 = vperm.slane %v2526, 3
  %v2928 = vlaneseq
  %v2929 = vshrl.u32 %v2928, 7
  %2931 = vset.pattern.permute.xlu0 %v2929
  %2932 = vperm.xlu0 %2931, %v2927
  %v2933 = vpop.permute.xlu0 %2932
  %v2934 = vperm.slane %v2526, 4
  %v2935 = vlaneseq
  %v2936 = vshrl.u32 %v2935, 7
  %2938 = vset.pattern.permute.xlu0 %v2936
  %2939 = vperm.xlu0 %2938, %v2934
  %v2940 = vpop.permute.xlu0 %2939
  %v2941 = vperm.slane %v2526, 5
  %v2942 = vlaneseq
  %v2943 = vshrl.u32 %v2942, 7
  %2945 = vset.pattern.permute.xlu0 %v2943
  %2946 = vperm.xlu0 %2945, %v2941
  %v2947 = vpop.permute.xlu0 %2946
  %v2948 = vperm.slane %v2526, 6
  %v2949 = vlaneseq
  %v2950 = vshrl.u32 %v2949, 7
  %2952 = vset.pattern.permute.xlu0 %v2950
  %2953 = vperm.xlu0 %2952, %v2948
  %v2954 = vpop.permute.xlu0 %2953
  %v2955 = vperm.slane %v2526, 7
  %v2956 = vlaneseq
  %v2957 = vshrl.u32 %v2956, 7
  %2959 = vset.pattern.permute.xlu0 %v2957
  %2960 = vperm.xlu0 %2959, %v2955
  %v2961 = vpop.permute.xlu0 %2960
  %v2962 = vperm.slane %v2527, 0
  %v2963 = vlaneseq
  %v2964 = vshrl.u32 %v2963, 7
  %2966 = vset.pattern.permute.xlu0 %v2964
  %2967 = vperm.xlu0 %2966, %v2962
  %v2968 = vpop.permute.xlu0 %2967
  %v2969 = vperm.slane %v2527, 1
  %v2970 = vlaneseq
  %v2971 = vshrl.u32 %v2970, 7
  %2973 = vset.pattern.permute.xlu0 %v2971
  %2974 = vperm.xlu0 %2973, %v2969
  %v2975 = vpop.permute.xlu0 %2974
  %v2976 = vperm.slane %v2527, 2
  %v2977 = vlaneseq
  %v2978 = vshrl.u32 %v2977, 7
  %2980 = vset.pattern.permute.xlu0 %v2978
  %2981 = vperm.xlu0 %2980, %v2976
  %v2982 = vpop.permute.xlu0 %2981
  %v2983 = vperm.slane %v2527, 3
  %v2984 = vlaneseq
  %v2985 = vshrl.u32 %v2984, 7
  %2987 = vset.pattern.permute.xlu0 %v2985
  %2988 = vperm.xlu0 %2987, %v2983
  %v2989 = vpop.permute.xlu0 %2988
  %v2990 = vperm.slane %v2527, 4
  %v2991 = vlaneseq
  %v2992 = vshrl.u32 %v2991, 7
  %2994 = vset.pattern.permute.xlu0 %v2992
  %2995 = vperm.xlu0 %2994, %v2990
  %v2996 = vpop.permute.xlu0 %2995
  %v2997 = vperm.slane %v2527, 5
  %v2998 = vlaneseq
  %v2999 = vshrl.u32 %v2998, 7
  %3001 = vset.pattern.permute.xlu0 %v2999
  %3002 = vperm.xlu0 %3001, %v2997
  %v3003 = vpop.permute.xlu0 %3002
  %v3004 = vperm.slane %v2527, 6
  %v3005 = vlaneseq
  %v3006 = vshrl.u32 %v3005, 7
  %3008 = vset.pattern.permute.xlu0 %v3006
  %3009 = vperm.xlu0 %3008, %v3004
  %v3010 = vpop.permute.xlu0 %3009
  %v3011 = vperm.slane %v2527, 7
  %v3012 = vlaneseq
  %v3013 = vshrl.u32 %v3012, 7
  %3015 = vset.pattern.permute.xlu0 %v3013
  %3016 = vperm.xlu0 %3015, %v3011
  %v3017 = vpop.permute.xlu0 %3016
  %v3018 = vperm.slane %v2528, 0
  %v3019 = vlaneseq
  %v3020 = vshrl.u32 %v3019, 7
  %3022 = vset.pattern.permute.xlu0 %v3020
  %3023 = vperm.xlu0 %3022, %v3018
  %v3024 = vpop.permute.xlu0 %3023
  %v3025 = vperm.slane %v2528, 1
  %v3026 = vlaneseq
  %v3027 = vshrl.u32 %v3026, 7
  %3029 = vset.pattern.permute.xlu0 %v3027
  %3030 = vperm.xlu0 %3029, %v3025
  %v3031 = vpop.permute.xlu0 %3030
  %v3032 = vperm.slane %v2528, 2
  %v3033 = vlaneseq
  %v3034 = vshrl.u32 %v3033, 7
  %3036 = vset.pattern.permute.xlu0 %v3034
  %3037 = vperm.xlu0 %3036, %v3032
  %v3038 = vpop.permute.xlu0 %3037
  %v3039 = vperm.slane %v2528, 3
  %v3040 = vlaneseq
  %v3041 = vshrl.u32 %v3040, 7
  %3043 = vset.pattern.permute.xlu0 %v3041
  %3044 = vperm.xlu0 %3043, %v3039
  %v3045 = vpop.permute.xlu0 %3044
  %v3046 = vperm.slane %v2528, 4
  %v3047 = vlaneseq
  %v3048 = vshrl.u32 %v3047, 7
  %3050 = vset.pattern.permute.xlu0 %v3048
  %3051 = vperm.xlu0 %3050, %v3046
  %v3052 = vpop.permute.xlu0 %3051
  %v3053 = vperm.slane %v2528, 5
  %v3054 = vlaneseq
  %v3055 = vshrl.u32 %v3054, 7
  %3057 = vset.pattern.permute.xlu0 %v3055
  %3058 = vperm.xlu0 %3057, %v3053
  %v3059 = vpop.permute.xlu0 %3058
  %v3060 = vperm.slane %v2528, 6
  %v3061 = vlaneseq
  %v3062 = vshrl.u32 %v3061, 7
  %3064 = vset.pattern.permute.xlu0 %v3062
  %3065 = vperm.xlu0 %3064, %v3060
  %v3066 = vpop.permute.xlu0 %3065
  %v3067 = vperm.slane %v2528, 7
  %v3068 = vlaneseq
  %v3069 = vshrl.u32 %v3068, 7
  %3071 = vset.pattern.permute.xlu0 %v3069
  %3072 = vperm.xlu0 %3071, %v3067
  %v3073 = vpop.permute.xlu0 %3072
  %v3074 = vperm.slane %v2529, 0
  %v3075 = vlaneseq
  %v3076 = vshrl.u32 %v3075, 7
  %3078 = vset.pattern.permute.xlu0 %v3076
  %3079 = vperm.xlu0 %3078, %v3074
  %v3080 = vpop.permute.xlu0 %3079
  %v3081 = vperm.slane %v2529, 1
  %v3082 = vlaneseq
  %v3083 = vshrl.u32 %v3082, 7
  %3085 = vset.pattern.permute.xlu0 %v3083
  %3086 = vperm.xlu0 %3085, %v3081
  %v3087 = vpop.permute.xlu0 %3086
  %v3088 = vperm.slane %v2529, 2
  %v3089 = vlaneseq
  %v3090 = vshrl.u32 %v3089, 7
  %3092 = vset.pattern.permute.xlu0 %v3090
  %3093 = vperm.xlu0 %3092, %v3088
  %v3094 = vpop.permute.xlu0 %3093
  %v3095 = vperm.slane %v2529, 3
  %v3096 = vlaneseq
  %v3097 = vshrl.u32 %v3096, 7
  %3099 = vset.pattern.permute.xlu0 %v3097
  %3100 = vperm.xlu0 %3099, %v3095
  %v3101 = vpop.permute.xlu0 %3100
  %v3102 = vperm.slane %v2529, 4
  %v3103 = vlaneseq
  %v3104 = vshrl.u32 %v3103, 7
  %3106 = vset.pattern.permute.xlu0 %v3104
  %3107 = vperm.xlu0 %3106, %v3102
  %v3108 = vpop.permute.xlu0 %3107
  %v3109 = vperm.slane %v2529, 5
  %v3110 = vlaneseq
  %v3111 = vshrl.u32 %v3110, 7
  %3113 = vset.pattern.permute.xlu0 %v3111
  %3114 = vperm.xlu0 %3113, %v3109
  %v3115 = vpop.permute.xlu0 %3114
  %v3116 = vperm.slane %v2529, 6
  %v3117 = vlaneseq
  %v3118 = vshrl.u32 %v3117, 7
  %3120 = vset.pattern.permute.xlu0 %v3118
  %3121 = vperm.xlu0 %3120, %v3116
  %v3122 = vpop.permute.xlu0 %3121
  %v3123 = vperm.slane %v2529, 7
  %v3124 = vlaneseq
  %v3125 = vshrl.u32 %v3124, 7
  %3127 = vset.pattern.permute.xlu0 %v3125
  %3128 = vperm.xlu0 %3127, %v3123
  %v3129 = vpop.permute.xlu0 %3128
  %v3130 = vmul.f32 %v2856, %v694
  %v3131 = vmul.f32 %v2863, %v694
  %v3132 = vmul.f32 %v2870, %v694
  %v3133 = vmul.f32 %v2877, %v694
  %v3134 = vmul.f32 %v2884, %v694
  %v3135 = vmul.f32 %v2891, %v694
  %v3136 = vmul.f32 %v2898, %v694
  %v3137 = vmul.f32 %v2905, %v694
  %v3138 = vmul.f32 %v2912, %v694
  %v3139 = vmul.f32 %v2919, %v694
  %v3140 = vmul.f32 %v2926, %v694
  %v3141 = vmul.f32 %v2933, %v694
  %v3142 = vmul.f32 %v2940, %v694
  %v3143 = vmul.f32 %v2947, %v694
  %v3144 = vmul.f32 %v2954, %v694
  %v3145 = vmul.f32 %v2961, %v694
  %v3146 = vmul.f32 %v2968, %v694
  %v3147 = vmul.f32 %v2975, %v694
  %v3148 = vmul.f32 %v2982, %v694
  %v3149 = vmul.f32 %v2989, %v694
  %v3150 = vmul.f32 %v2996, %v694
  %v3151 = vmul.f32 %v3003, %v694
  %v3152 = vmul.f32 %v3010, %v694
  %v3153 = vmul.f32 %v3017, %v694
  %v3154 = vmul.f32 %v3024, %v694
  %v3155 = vmul.f32 %v3031, %v694
  %v3156 = vmul.f32 %v3038, %v694
  %v3157 = vmul.f32 %v3045, %v694
  %v3158 = vmul.f32 %v3052, %v694
  %v3159 = vmul.f32 %v3059, %v694
  %v3160 = vmul.f32 %v3066, %v694
  %v3161 = vmul.f32 %v3073, %v694
  %v3162 = vmul.f32 %v3080, %v694
  %v3163 = vmul.f32 %v3087, %v694
  %v3164 = vmul.f32 %v3094, %v694
  %v3165 = vmul.f32 %v3101, %v694
  %v3166 = vmul.f32 %v3108, %v694
  %v3167 = vmul.f32 %v3115, %v694
  %v3168 = vmul.f32 %v3122, %v694
  %v3169 = vmul.f32 %v3129, %v694
  %v3170 = vadd.f32 %v2810, %v3130
  %v3171 = vadd.f32 %v2811, %v3131
  %v3172 = vadd.f32 %v2812, %v3132
  %v3173 = vadd.f32 %v2813, %v3133
  %v3174 = vadd.f32 %v2814, %v3134
  %v3175 = vadd.f32 %v2815, %v3135
  %v3176 = vadd.f32 %v2816, %v3136
  %v3177 = vadd.f32 %v2817, %v3137
  %v3178 = vadd.f32 %v2818, %v3138
  %v3179 = vadd.f32 %v2819, %v3139
  %v3180 = vadd.f32 %v2820, %v3140
  %v3181 = vadd.f32 %v2821, %v3141
  %v3182 = vadd.f32 %v2822, %v3142
  %v3183 = vadd.f32 %v2823, %v3143
  %v3184 = vadd.f32 %v2824, %v3144
  %v3185 = vadd.f32 %v2825, %v3145
  %v3186 = vadd.f32 %v2826, %v3146
  %v3187 = vadd.f32 %v2827, %v3147
  %v3188 = vadd.f32 %v2828, %v3148
  %v3189 = vadd.f32 %v2829, %v3149
  %v3190 = vadd.f32 %v2830, %v3150
  %v3191 = vadd.f32 %v2831, %v3151
  %v3192 = vadd.f32 %v2832, %v3152
  %v3193 = vadd.f32 %v2833, %v3153
  %v3194 = vadd.f32 %v2834, %v3154
  %v3195 = vadd.f32 %v2835, %v3155
  %v3196 = vadd.f32 %v2836, %v3156
  %v3197 = vadd.f32 %v2837, %v3157
  %v3198 = vadd.f32 %v2838, %v3158
  %v3199 = vadd.f32 %v2839, %v3159
  %v3200 = vadd.f32 %v2840, %v3160
  %v3201 = vadd.f32 %v2841, %v3161
  %v3202 = vadd.f32 %v2842, %v3162
  %v3203 = vadd.f32 %v2843, %v3163
  %v3204 = vadd.f32 %v2844, %v3164
  %v3205 = vadd.f32 %v2845, %v3165
  %v3206 = vadd.f32 %v2846, %v3166
  %v3207 = vadd.f32 %v2847, %v3167
  %v3208 = vadd.f32 %v2848, %v3168
  %v3209 = vadd.f32 %v2849, %v3169
  %v3210 = vadd.f32 %v3170, %v776
  %v3211 = vadd.f32 %v3171, %v776
  %v3212 = vadd.f32 %v3172, %v776
  %v3213 = vadd.f32 %v3173, %v776
  %v3214 = vadd.f32 %v3174, %v776
  %v3215 = vadd.f32 %v3175, %v776
  %v3216 = vadd.f32 %v3176, %v776
  %v3217 = vadd.f32 %v3177, %v776
  %v3218 = vadd.f32 %v3178, %v776
  %v3219 = vadd.f32 %v3179, %v776
  %v3220 = vadd.f32 %v3180, %v776
  %v3221 = vadd.f32 %v3181, %v776
  %v3222 = vadd.f32 %v3182, %v776
  %v3223 = vadd.f32 %v3183, %v776
  %v3224 = vadd.f32 %v3184, %v776
  %v3225 = vadd.f32 %v3185, %v776
  %v3226 = vadd.f32 %v3186, %v776
  %v3227 = vadd.f32 %v3187, %v776
  %v3228 = vadd.f32 %v3188, %v776
  %v3229 = vadd.f32 %v3189, %v776
  %v3230 = vadd.f32 %v3190, %v776
  %v3231 = vadd.f32 %v3191, %v776
  %v3232 = vadd.f32 %v3192, %v776
  %v3233 = vadd.f32 %v3193, %v776
  %v3234 = vadd.f32 %v3194, %v776
  %v3235 = vadd.f32 %v3195, %v776
  %v3236 = vadd.f32 %v3196, %v776
  %v3237 = vadd.f32 %v3197, %v776
  %v3238 = vadd.f32 %v3198, %v776
  %v3239 = vadd.f32 %v3199, %v776
  %v3240 = vadd.f32 %v3200, %v776
  %v3241 = vadd.f32 %v3201, %v776
  %v3242 = vadd.f32 %v3202, %v776
  %v3243 = vadd.f32 %v3203, %v776
  %v3244 = vadd.f32 %v3204, %v776
  %v3245 = vadd.f32 %v3205, %v776
  %v3246 = vadd.f32 %v3206, %v776
  %v3247 = vadd.f32 %v3207, %v776
  %v3248 = vadd.f32 %v3208, %v776
  %v3249 = vadd.f32 %v3209, %v776
  %s3250 = scalar_lea.vmem [#allocation2], 960
  %3251 = vst [vmem:[%s3250] sm:$0xff] %v3210
  %3252 = vst [vmem:[%s3250 + $0x8] sm:$0xff] %v3211
  %3253 = vst [vmem:[%s3250 + $0x10] sm:$0xff] %v3212
  %3254 = vst [vmem:[%s3250 + $0x18] sm:$0xff] %v3213
  %3255 = vst [vmem:[%s3250 + $0x20] sm:$0xff] %v3214
  %3256 = vst [vmem:[%s3250 + $0x28] sm:$0xff] %v3215
  %3257 = vst [vmem:[%s3250 + $0x30] sm:$0xff] %v3216
  %3258 = vst [vmem:[%s3250 + $0x38] sm:$0xff] %v3217
  %3259 = vst [vmem:[%s3250 + $0x40] sm:$0xff] %v3218
  %3260 = vst [vmem:[%s3250 + $0x48] sm:$0xff] %v3219
  %3261 = vst [vmem:[%s3250 + $0x50] sm:$0xff] %v3220
  %3262 = vst [vmem:[%s3250 + $0x58] sm:$0xff] %v3221
  %3263 = vst [vmem:[%s3250 + $0x60] sm:$0xff] %v3222
  %3264 = vst [vmem:[%s3250 + $0x68] sm:$0xff] %v3223
  %3265 = vst [vmem:[%s3250 + $0x70] sm:$0xff] %v3224
  %3266 = vst [vmem:[%s3250 + $0x78] sm:$0xff] %v3225
  %3267 = vst [vmem:[%s3250 + $0x80] sm:$0xff] %v3226
  %3268 = vst [vmem:[%s3250 + $0x88] sm:$0xff] %v3227
  %3269 = vst [vmem:[%s3250 + $0x90] sm:$0xff] %v3228
  %3270 = vst [vmem:[%s3250 + $0x98] sm:$0xff] %v3229
  %3271 = vst [vmem:[%s3250 + $0xa0] sm:$0xff] %v3230
  %3272 = vst [vmem:[%s3250 + $0xa8] sm:$0xff] %v3231
  %3273 = vst [vmem:[%s3250 + $0xb0] sm:$0xff] %v3232
  %3274 = vst [vmem:[%s3250 + $0xb8] sm:$0xff] %v3233
  %3275 = vst [vmem:[%s3250 + $0xc0] sm:$0xff] %v3234
  %3276 = vst [vmem:[%s3250 + $0xc8] sm:$0xff] %v3235
  %3277 = vst [vmem:[%s3250 + $0xd0] sm:$0xff] %v3236
  %3278 = vst [vmem:[%s3250 + $0xd8] sm:$0xff] %v3237
  %3279 = vst [vmem:[%s3250 + $0xe0] sm:$0xff] %v3238
  %3280 = vst [vmem:[%s3250 + $0xe8] sm:$0xff] %v3239
  %3281 = vst [vmem:[%s3250 + $0xf0] sm:$0xff] %v3240
  %3282 = vst [vmem:[%s3250 + $0xf8] sm:$0xff] %v3241
  %3283 = vst [vmem:[%s3250 + $0x100] sm:$0xff] %v3242
  %3284 = vst [vmem:[%s3250 + $0x108] sm:$0xff] %v3243
  %3285 = vst [vmem:[%s3250 + $0x110] sm:$0xff] %v3244
  %3286 = vst [vmem:[%s3250 + $0x118] sm:$0xff] %v3245
  %3287 = vst [vmem:[%s3250 + $0x120] sm:$0xff] %v3246
  %3288 = vst [vmem:[%s3250 + $0x128] sm:$0xff] %v3247
  %3289 = vst [vmem:[%s3250 + $0x130] sm:$0xff] %v3248
  %3290 = vst [vmem:[%s3250 + $0x138] sm:$0xff] %v3249
  %v3291 = vld [vmem:[%s0 + $0xa0] sm:$0xff]
  %v3292 = vld [vmem:[%s0 + $0xa8] sm:$0xff]
  %v3293 = vld [vmem:[%s0 + $0xb0] sm:$0xff]
  %v3294 = vld [vmem:[%s0 + $0xb8] sm:$0xff]
  %v3295 = vld [vmem:[%s0 + $0xc0] sm:$0xff]
  %v3296 = vld [vmem:[%s1 + $0xa0] sm:$0xff]
  %v3297 = vld [vmem:[%s1 + $0xa8] sm:$0xff]
  %v3298 = vld [vmem:[%s1 + $0xb0] sm:$0xff]
  %v3299 = vld [vmem:[%s1 + $0xb8] sm:$0xff]
  %v3300 = vld [vmem:[%s1 + $0xc0] sm:$0xff]
  %v3301 = vld [vmem:[%s49 + $0xa0] sm:$0xff]
  %v3302 = vld [vmem:[%s49 + $0xa8] sm:$0xff]
  %v3303 = vld [vmem:[%s49 + $0xb0] sm:$0xff]
  %v3304 = vld [vmem:[%s49 + $0xb8] sm:$0xff]
  %v3305 = vld [vmem:[%s49 + $0xc0] sm:$0xff]
  %v3306 = vmax.f32 %v3291, %v3301
  %v3307 = vmax.f32 %v3292, %v3302
  %v3308 = vmax.f32 %v3293, %v3303
  %v3309 = vmax.f32 %v3294, %v3304
  %v3310 = vmax.f32 %v3295, %v3305
  %v3311 = vld [vmem:[%s60 + $0xa0] sm:$0xff]
  %v3312 = vld [vmem:[%s60 + $0xa8] sm:$0xff]
  %v3313 = vld [vmem:[%s60 + $0xb0] sm:$0xff]
  %v3314 = vld [vmem:[%s60 + $0xb8] sm:$0xff]
  %v3315 = vld [vmem:[%s60 + $0xc0] sm:$0xff]
  %v3316 = vmax.f32 %v3296, %v3311
  %v3317 = vmax.f32 %v3297, %v3312
  %v3318 = vmax.f32 %v3298, %v3313
  %v3319 = vmax.f32 %v3299, %v3314
  %v3320 = vmax.f32 %v3300, %v3315
  %v3321 = vld [vmem:[%s71 + $0xa0] sm:$0xff]
  %v3322 = vld [vmem:[%s71 + $0xa8] sm:$0xff]
  %v3323 = vld [vmem:[%s71 + $0xb0] sm:$0xff]
  %v3324 = vld [vmem:[%s71 + $0xb8] sm:$0xff]
  %v3325 = vld [vmem:[%s71 + $0xc0] sm:$0xff]
  %v3326 = vmax.f32 %v3306, %v3321
  %v3327 = vmax.f32 %v3307, %v3322
  %v3328 = vmax.f32 %v3308, %v3323
  %v3329 = vmax.f32 %v3309, %v3324
  %v3330 = vmax.f32 %v3310, %v3325
  %v3331 = vld [vmem:[%s82 + $0xa0] sm:$0xff]
  %v3332 = vld [vmem:[%s82 + $0xa8] sm:$0xff]
  %v3333 = vld [vmem:[%s82 + $0xb0] sm:$0xff]
  %v3334 = vld [vmem:[%s82 + $0xb8] sm:$0xff]
  %v3335 = vld [vmem:[%s82 + $0xc0] sm:$0xff]
  %v3336 = vmax.f32 %v3316, %v3331
  %v3337 = vmax.f32 %v3317, %v3332
  %v3338 = vmax.f32 %v3318, %v3333
  %v3339 = vmax.f32 %v3319, %v3334
  %v3340 = vmax.f32 %v3320, %v3335
  %v3341 = vperm.slane %v3326, 0
  %v3342 = vlaneseq
  %v3343 = vshrl.u32 %v3342, 7
  %3345 = vset.pattern.permute.xlu0 %v3343
  %3346 = vperm.xlu0 %3345, %v3341
  %v3347 = vpop.permute.xlu0 %3346
  %v3348 = vperm.slane %v3326, 1
  %v3349 = vlaneseq
  %v3350 = vshrl.u32 %v3349, 7
  %3352 = vset.pattern.permute.xlu0 %v3350
  %3353 = vperm.xlu0 %3352, %v3348
  %v3354 = vpop.permute.xlu0 %3353
  %v3355 = vperm.slane %v3326, 2
  %v3356 = vlaneseq
  %v3357 = vshrl.u32 %v3356, 7
  %3359 = vset.pattern.permute.xlu0 %v3357
  %3360 = vperm.xlu0 %3359, %v3355
  %v3361 = vpop.permute.xlu0 %3360
  %v3362 = vperm.slane %v3326, 3
  %v3363 = vlaneseq
  %v3364 = vshrl.u32 %v3363, 7
  %3366 = vset.pattern.permute.xlu0 %v3364
  %3367 = vperm.xlu0 %3366, %v3362
  %v3368 = vpop.permute.xlu0 %3367
  %v3369 = vperm.slane %v3326, 4
  %v3370 = vlaneseq
  %v3371 = vshrl.u32 %v3370, 7
  %3373 = vset.pattern.permute.xlu0 %v3371
  %3374 = vperm.xlu0 %3373, %v3369
  %v3375 = vpop.permute.xlu0 %3374
  %v3376 = vperm.slane %v3326, 5
  %v3377 = vlaneseq
  %v3378 = vshrl.u32 %v3377, 7
  %3380 = vset.pattern.permute.xlu0 %v3378
  %3381 = vperm.xlu0 %3380, %v3376
  %v3382 = vpop.permute.xlu0 %3381
  %v3383 = vperm.slane %v3326, 6
  %v3384 = vlaneseq
  %v3385 = vshrl.u32 %v3384, 7
  %3387 = vset.pattern.permute.xlu0 %v3385
  %3388 = vperm.xlu0 %3387, %v3383
  %v3389 = vpop.permute.xlu0 %3388
  %v3390 = vperm.slane %v3326, 7
  %v3391 = vlaneseq
  %v3392 = vshrl.u32 %v3391, 7
  %3394 = vset.pattern.permute.xlu0 %v3392
  %3395 = vperm.xlu0 %3394, %v3390
  %v3396 = vpop.permute.xlu0 %3395
  %v3397 = vperm.slane %v3327, 0
  %v3398 = vlaneseq
  %v3399 = vshrl.u32 %v3398, 7
  %3401 = vset.pattern.permute.xlu0 %v3399
  %3402 = vperm.xlu0 %3401, %v3397
  %v3403 = vpop.permute.xlu0 %3402
  %v3404 = vperm.slane %v3327, 1
  %v3405 = vlaneseq
  %v3406 = vshrl.u32 %v3405, 7
  %3408 = vset.pattern.permute.xlu0 %v3406
  %3409 = vperm.xlu0 %3408, %v3404
  %v3410 = vpop.permute.xlu0 %3409
  %v3411 = vperm.slane %v3327, 2
  %v3412 = vlaneseq
  %v3413 = vshrl.u32 %v3412, 7
  %3415 = vset.pattern.permute.xlu0 %v3413
  %3416 = vperm.xlu0 %3415, %v3411
  %v3417 = vpop.permute.xlu0 %3416
  %v3418 = vperm.slane %v3327, 3
  %v3419 = vlaneseq
  %v3420 = vshrl.u32 %v3419, 7
  %3422 = vset.pattern.permute.xlu0 %v3420
  %3423 = vperm.xlu0 %3422, %v3418
  %v3424 = vpop.permute.xlu0 %3423
  %v3425 = vperm.slane %v3327, 4
  %v3426 = vlaneseq
  %v3427 = vshrl.u32 %v3426, 7
  %3429 = vset.pattern.permute.xlu0 %v3427
  %3430 = vperm.xlu0 %3429, %v3425
  %v3431 = vpop.permute.xlu0 %3430
  %v3432 = vperm.slane %v3327, 5
  %v3433 = vlaneseq
  %v3434 = vshrl.u32 %v3433, 7
  %3436 = vset.pattern.permute.xlu0 %v3434
  %3437 = vperm.xlu0 %3436, %v3432
  %v3438 = vpop.permute.xlu0 %3437
  %v3439 = vperm.slane %v3327, 6
  %v3440 = vlaneseq
  %v3441 = vshrl.u32 %v3440, 7
  %3443 = vset.pattern.permute.xlu0 %v3441
  %3444 = vperm.xlu0 %3443, %v3439
  %v3445 = vpop.permute.xlu0 %3444
  %v3446 = vperm.slane %v3327, 7
  %v3447 = vlaneseq
  %v3448 = vshrl.u32 %v3447, 7
  %3450 = vset.pattern.permute.xlu0 %v3448
  %3451 = vperm.xlu0 %3450, %v3446
  %v3452 = vpop.permute.xlu0 %3451
  %v3453 = vperm.slane %v3328, 0
  %v3454 = vlaneseq
  %v3455 = vshrl.u32 %v3454, 7
  %3457 = vset.pattern.permute.xlu0 %v3455
  %3458 = vperm.xlu0 %3457, %v3453
  %v3459 = vpop.permute.xlu0 %3458
  %v3460 = vperm.slane %v3328, 1
  %v3461 = vlaneseq
  %v3462 = vshrl.u32 %v3461, 7
  %3464 = vset.pattern.permute.xlu0 %v3462
  %3465 = vperm.xlu0 %3464, %v3460
  %v3466 = vpop.permute.xlu0 %3465
  %v3467 = vperm.slane %v3328, 2
  %v3468 = vlaneseq
  %v3469 = vshrl.u32 %v3468, 7
  %3471 = vset.pattern.permute.xlu0 %v3469
  %3472 = vperm.xlu0 %3471, %v3467
  %v3473 = vpop.permute.xlu0 %3472
  %v3474 = vperm.slane %v3328, 3
  %v3475 = vlaneseq
  %v3476 = vshrl.u32 %v3475, 7
  %3478 = vset.pattern.permute.xlu0 %v3476
  %3479 = vperm.xlu0 %3478, %v3474
  %v3480 = vpop.permute.xlu0 %3479
  %v3481 = vperm.slane %v3328, 4
  %v3482 = vlaneseq
  %v3483 = vshrl.u32 %v3482, 7
  %3485 = vset.pattern.permute.xlu0 %v3483
  %3486 = vperm.xlu0 %3485, %v3481
  %v3487 = vpop.permute.xlu0 %3486
  %v3488 = vperm.slane %v3328, 5
  %v3489 = vlaneseq
  %v3490 = vshrl.u32 %v3489, 7
  %3492 = vset.pattern.permute.xlu0 %v3490
  %3493 = vperm.xlu0 %3492, %v3488
  %v3494 = vpop.permute.xlu0 %3493
  %v3495 = vperm.slane %v3328, 6
  %v3496 = vlaneseq
  %v3497 = vshrl.u32 %v3496, 7
  %3499 = vset.pattern.permute.xlu0 %v3497
  %3500 = vperm.xlu0 %3499, %v3495
  %v3501 = vpop.permute.xlu0 %3500
  %v3502 = vperm.slane %v3328, 7
  %v3503 = vlaneseq
  %v3504 = vshrl.u32 %v3503, 7
  %3506 = vset.pattern.permute.xlu0 %v3504
  %3507 = vperm.xlu0 %3506, %v3502
  %v3508 = vpop.permute.xlu0 %3507
  %v3509 = vperm.slane %v3329, 0
  %v3510 = vlaneseq
  %v3511 = vshrl.u32 %v3510, 7
  %3513 = vset.pattern.permute.xlu0 %v3511
  %3514 = vperm.xlu0 %3513, %v3509
  %v3515 = vpop.permute.xlu0 %3514
  %v3516 = vperm.slane %v3329, 1
  %v3517 = vlaneseq
  %v3518 = vshrl.u32 %v3517, 7
  %3520 = vset.pattern.permute.xlu0 %v3518
  %3521 = vperm.xlu0 %3520, %v3516
  %v3522 = vpop.permute.xlu0 %3521
  %v3523 = vperm.slane %v3329, 2
  %v3524 = vlaneseq
  %v3525 = vshrl.u32 %v3524, 7
  %3527 = vset.pattern.permute.xlu0 %v3525
  %3528 = vperm.xlu0 %3527, %v3523
  %v3529 = vpop.permute.xlu0 %3528
  %v3530 = vperm.slane %v3329, 3
  %v3531 = vlaneseq
  %v3532 = vshrl.u32 %v3531, 7
  %3534 = vset.pattern.permute.xlu0 %v3532
  %3535 = vperm.xlu0 %3534, %v3530
  %v3536 = vpop.permute.xlu0 %3535
  %v3537 = vperm.slane %v3329, 4
  %v3538 = vlaneseq
  %v3539 = vshrl.u32 %v3538, 7
  %3541 = vset.pattern.permute.xlu0 %v3539
  %3542 = vperm.xlu0 %3541, %v3537
  %v3543 = vpop.permute.xlu0 %3542
  %v3544 = vperm.slane %v3329, 5
  %v3545 = vlaneseq
  %v3546 = vshrl.u32 %v3545, 7
  %3548 = vset.pattern.permute.xlu0 %v3546
  %3549 = vperm.xlu0 %3548, %v3544
  %v3550 = vpop.permute.xlu0 %3549
  %v3551 = vperm.slane %v3329, 6
  %v3552 = vlaneseq
  %v3553 = vshrl.u32 %v3552, 7
  %3555 = vset.pattern.permute.xlu0 %v3553
  %3556 = vperm.xlu0 %3555, %v3551
  %v3557 = vpop.permute.xlu0 %3556
  %v3558 = vperm.slane %v3329, 7
  %v3559 = vlaneseq
  %v3560 = vshrl.u32 %v3559, 7
  %3562 = vset.pattern.permute.xlu0 %v3560
  %3563 = vperm.xlu0 %3562, %v3558
  %v3564 = vpop.permute.xlu0 %3563
  %v3565 = vperm.slane %v3330, 0
  %v3566 = vlaneseq
  %v3567 = vshrl.u32 %v3566, 7
  %3569 = vset.pattern.permute.xlu0 %v3567
  %3570 = vperm.xlu0 %3569, %v3565
  %v3571 = vpop.permute.xlu0 %3570
  %v3572 = vperm.slane %v3330, 1
  %v3573 = vlaneseq
  %v3574 = vshrl.u32 %v3573, 7
  %3576 = vset.pattern.permute.xlu0 %v3574
  %3577 = vperm.xlu0 %3576, %v3572
  %v3578 = vpop.permute.xlu0 %3577
  %v3579 = vperm.slane %v3330, 2
  %v3580 = vlaneseq
  %v3581 = vshrl.u32 %v3580, 7
  %3583 = vset.pattern.permute.xlu0 %v3581
  %3584 = vperm.xlu0 %3583, %v3579
  %v3585 = vpop.permute.xlu0 %3584
  %v3586 = vperm.slane %v3330, 3
  %v3587 = vlaneseq
  %v3588 = vshrl.u32 %v3587, 7
  %3590 = vset.pattern.permute.xlu0 %v3588
  %3591 = vperm.xlu0 %3590, %v3586
  %v3592 = vpop.permute.xlu0 %3591
  %v3593 = vperm.slane %v3330, 4
  %v3594 = vlaneseq
  %v3595 = vshrl.u32 %v3594, 7
  %3597 = vset.pattern.permute.xlu0 %v3595
  %3598 = vperm.xlu0 %3597, %v3593
  %v3599 = vpop.permute.xlu0 %3598
  %v3600 = vperm.slane %v3330, 5
  %v3601 = vlaneseq
  %v3602 = vshrl.u32 %v3601, 7
  %3604 = vset.pattern.permute.xlu0 %v3602
  %3605 = vperm.xlu0 %3604, %v3600
  %v3606 = vpop.permute.xlu0 %3605
  %v3607 = vperm.slane %v3330, 6
  %v3608 = vlaneseq
  %v3609 = vshrl.u32 %v3608, 7
  %3611 = vset.pattern.permute.xlu0 %v3609
  %3612 = vperm.xlu0 %3611, %v3607
  %v3613 = vpop.permute.xlu0 %3612
  %v3614 = vperm.slane %v3330, 7
  %v3615 = vlaneseq
  %v3616 = vshrl.u32 %v3615, 7
  %3618 = vset.pattern.permute.xlu0 %v3616
  %3619 = vperm.xlu0 %3618, %v3614
  %v3620 = vpop.permute.xlu0 %3619
  %v3621 = vmul.f32 %v3347, %v373
  %v3622 = vmul.f32 %v3354, %v373
  %v3623 = vmul.f32 %v3361, %v373
  %v3624 = vmul.f32 %v3368, %v373
  %v3625 = vmul.f32 %v3375, %v373
  %v3626 = vmul.f32 %v3382, %v373
  %v3627 = vmul.f32 %v3389, %v373
  %v3628 = vmul.f32 %v3396, %v373
  %v3629 = vmul.f32 %v3403, %v373
  %v3630 = vmul.f32 %v3410, %v373
  %v3631 = vmul.f32 %v3417, %v373
  %v3632 = vmul.f32 %v3424, %v373
  %v3633 = vmul.f32 %v3431, %v373
  %v3634 = vmul.f32 %v3438, %v373
  %v3635 = vmul.f32 %v3445, %v373
  %v3636 = vmul.f32 %v3452, %v373
  %v3637 = vmul.f32 %v3459, %v373
  %v3638 = vmul.f32 %v3466, %v373
  %v3639 = vmul.f32 %v3473, %v373
  %v3640 = vmul.f32 %v3480, %v373
  %v3641 = vmul.f32 %v3487, %v373
  %v3642 = vmul.f32 %v3494, %v373
  %v3643 = vmul.f32 %v3501, %v373
  %v3644 = vmul.f32 %v3508, %v373
  %v3645 = vmul.f32 %v3515, %v373
  %v3646 = vmul.f32 %v3522, %v373
  %v3647 = vmul.f32 %v3529, %v373
  %v3648 = vmul.f32 %v3536, %v373
  %v3649 = vmul.f32 %v3543, %v373
  %v3650 = vmul.f32 %v3550, %v373
  %v3651 = vmul.f32 %v3557, %v373
  %v3652 = vmul.f32 %v3564, %v373
  %v3653 = vmul.f32 %v3571, %v373
  %v3654 = vmul.f32 %v3578, %v373
  %v3655 = vmul.f32 %v3585, %v373
  %v3656 = vmul.f32 %v3592, %v373
  %v3657 = vmul.f32 %v3599, %v373
  %v3658 = vmul.f32 %v3606, %v373
  %v3659 = vmul.f32 %v3613, %v373
  %v3660 = vmul.f32 %v3620, %v373
  %v3661 = vperm.slane %v3336, 0
  %v3662 = vlaneseq
  %v3663 = vshrl.u32 %v3662, 7
  %3665 = vset.pattern.permute.xlu0 %v3663
  %3666 = vperm.xlu0 %3665, %v3661
  %v3667 = vpop.permute.xlu0 %3666
  %v3668 = vperm.slane %v3336, 1
  %v3669 = vlaneseq
  %v3670 = vshrl.u32 %v3669, 7
  %3672 = vset.pattern.permute.xlu0 %v3670
  %3673 = vperm.xlu0 %3672, %v3668
  %v3674 = vpop.permute.xlu0 %3673
  %v3675 = vperm.slane %v3336, 2
  %v3676 = vlaneseq
  %v3677 = vshrl.u32 %v3676, 7
  %3679 = vset.pattern.permute.xlu0 %v3677
  %3680 = vperm.xlu0 %3679, %v3675
  %v3681 = vpop.permute.xlu0 %3680
  %v3682 = vperm.slane %v3336, 3
  %v3683 = vlaneseq
  %v3684 = vshrl.u32 %v3683, 7
  %3686 = vset.pattern.permute.xlu0 %v3684
  %3687 = vperm.xlu0 %3686, %v3682
  %v3688 = vpop.permute.xlu0 %3687
  %v3689 = vperm.slane %v3336, 4
  %v3690 = vlaneseq
  %v3691 = vshrl.u32 %v3690, 7
  %3693 = vset.pattern.permute.xlu0 %v3691
  %3694 = vperm.xlu0 %3693, %v3689
  %v3695 = vpop.permute.xlu0 %3694
  %v3696 = vperm.slane %v3336, 5
  %v3697 = vlaneseq
  %v3698 = vshrl.u32 %v3697, 7
  %3700 = vset.pattern.permute.xlu0 %v3698
  %3701 = vperm.xlu0 %3700, %v3696
  %v3702 = vpop.permute.xlu0 %3701
  %v3703 = vperm.slane %v3336, 6
  %v3704 = vlaneseq
  %v3705 = vshrl.u32 %v3704, 7
  %3707 = vset.pattern.permute.xlu0 %v3705
  %3708 = vperm.xlu0 %3707, %v3703
  %v3709 = vpop.permute.xlu0 %3708
  %v3710 = vperm.slane %v3336, 7
  %v3711 = vlaneseq
  %v3712 = vshrl.u32 %v3711, 7
  %3714 = vset.pattern.permute.xlu0 %v3712
  %3715 = vperm.xlu0 %3714, %v3710
  %v3716 = vpop.permute.xlu0 %3715
  %v3717 = vperm.slane %v3337, 0
  %v3718 = vlaneseq
  %v3719 = vshrl.u32 %v3718, 7
  %3721 = vset.pattern.permute.xlu0 %v3719
  %3722 = vperm.xlu0 %3721, %v3717
  %v3723 = vpop.permute.xlu0 %3722
  %v3724 = vperm.slane %v3337, 1
  %v3725 = vlaneseq
  %v3726 = vshrl.u32 %v3725, 7
  %3728 = vset.pattern.permute.xlu0 %v3726
  %3729 = vperm.xlu0 %3728, %v3724
  %v3730 = vpop.permute.xlu0 %3729
  %v3731 = vperm.slane %v3337, 2
  %v3732 = vlaneseq
  %v3733 = vshrl.u32 %v3732, 7
  %3735 = vset.pattern.permute.xlu0 %v3733
  %3736 = vperm.xlu0 %3735, %v3731
  %v3737 = vpop.permute.xlu0 %3736
  %v3738 = vperm.slane %v3337, 3
  %v3739 = vlaneseq
  %v3740 = vshrl.u32 %v3739, 7
  %3742 = vset.pattern.permute.xlu0 %v3740
  %3743 = vperm.xlu0 %3742, %v3738
  %v3744 = vpop.permute.xlu0 %3743
  %v3745 = vperm.slane %v3337, 4
  %v3746 = vlaneseq
  %v3747 = vshrl.u32 %v3746, 7
  %3749 = vset.pattern.permute.xlu0 %v3747
  %3750 = vperm.xlu0 %3749, %v3745
  %v3751 = vpop.permute.xlu0 %3750
  %v3752 = vperm.slane %v3337, 5
  %v3753 = vlaneseq
  %v3754 = vshrl.u32 %v3753, 7
  %3756 = vset.pattern.permute.xlu0 %v3754
  %3757 = vperm.xlu0 %3756, %v3752
  %v3758 = vpop.permute.xlu0 %3757
  %v3759 = vperm.slane %v3337, 6
  %v3760 = vlaneseq
  %v3761 = vshrl.u32 %v3760, 7
  %3763 = vset.pattern.permute.xlu0 %v3761
  %3764 = vperm.xlu0 %3763, %v3759
  %v3765 = vpop.permute.xlu0 %3764
  %v3766 = vperm.slane %v3337, 7
  %v3767 = vlaneseq
  %v3768 = vshrl.u32 %v3767, 7
  %3770 = vset.pattern.permute.xlu0 %v3768
  %3771 = vperm.xlu0 %3770, %v3766
  %v3772 = vpop.permute.xlu0 %3771
  %v3773 = vperm.slane %v3338, 0
  %v3774 = vlaneseq
  %v3775 = vshrl.u32 %v3774, 7
  %3777 = vset.pattern.permute.xlu0 %v3775
  %3778 = vperm.xlu0 %3777, %v3773
  %v3779 = vpop.permute.xlu0 %3778
  %v3780 = vperm.slane %v3338, 1
  %v3781 = vlaneseq
  %v3782 = vshrl.u32 %v3781, 7
  %3784 = vset.pattern.permute.xlu0 %v3782
  %3785 = vperm.xlu0 %3784, %v3780
  %v3786 = vpop.permute.xlu0 %3785
  %v3787 = vperm.slane %v3338, 2
  %v3788 = vlaneseq
  %v3789 = vshrl.u32 %v3788, 7
  %3791 = vset.pattern.permute.xlu0 %v3789
  %3792 = vperm.xlu0 %3791, %v3787
  %v3793 = vpop.permute.xlu0 %3792
  %v3794 = vperm.slane %v3338, 3
  %v3795 = vlaneseq
  %v3796 = vshrl.u32 %v3795, 7
  %3798 = vset.pattern.permute.xlu0 %v3796
  %3799 = vperm.xlu0 %3798, %v3794
  %v3800 = vpop.permute.xlu0 %3799
  %v3801 = vperm.slane %v3338, 4
  %v3802 = vlaneseq
  %v3803 = vshrl.u32 %v3802, 7
  %3805 = vset.pattern.permute.xlu0 %v3803
  %3806 = vperm.xlu0 %3805, %v3801
  %v3807 = vpop.permute.xlu0 %3806
  %v3808 = vperm.slane %v3338, 5
  %v3809 = vlaneseq
  %v3810 = vshrl.u32 %v3809, 7
  %3812 = vset.pattern.permute.xlu0 %v3810
  %3813 = vperm.xlu0 %3812, %v3808
  %v3814 = vpop.permute.xlu0 %3813
  %v3815 = vperm.slane %v3338, 6
  %v3816 = vlaneseq
  %v3817 = vshrl.u32 %v3816, 7
  %3819 = vset.pattern.permute.xlu0 %v3817
  %3820 = vperm.xlu0 %3819, %v3815
  %v3821 = vpop.permute.xlu0 %3820
  %v3822 = vperm.slane %v3338, 7
  %v3823 = vlaneseq
  %v3824 = vshrl.u32 %v3823, 7
  %3826 = vset.pattern.permute.xlu0 %v3824
  %3827 = vperm.xlu0 %3826, %v3822
  %v3828 = vpop.permute.xlu0 %3827
  %v3829 = vperm.slane %v3339, 0
  %v3830 = vlaneseq
  %v3831 = vshrl.u32 %v3830, 7
  %3833 = vset.pattern.permute.xlu0 %v3831
  %3834 = vperm.xlu0 %3833, %v3829
  %v3835 = vpop.permute.xlu0 %3834
  %v3836 = vperm.slane %v3339, 1
  %v3837 = vlaneseq
  %v3838 = vshrl.u32 %v3837, 7
  %3840 = vset.pattern.permute.xlu0 %v3838
  %3841 = vperm.xlu0 %3840, %v3836
  %v3842 = vpop.permute.xlu0 %3841
  %v3843 = vperm.slane %v3339, 2
  %v3844 = vlaneseq
  %v3845 = vshrl.u32 %v3844, 7
  %3847 = vset.pattern.permute.xlu0 %v3845
  %3848 = vperm.xlu0 %3847, %v3843
  %v3849 = vpop.permute.xlu0 %3848
  %v3850 = vperm.slane %v3339, 3
  %v3851 = vlaneseq
  %v3852 = vshrl.u32 %v3851, 7
  %3854 = vset.pattern.permute.xlu0 %v3852
  %3855 = vperm.xlu0 %3854, %v3850
  %v3856 = vpop.permute.xlu0 %3855
  %v3857 = vperm.slane %v3339, 4
  %v3858 = vlaneseq
  %v3859 = vshrl.u32 %v3858, 7
  %3861 = vset.pattern.permute.xlu0 %v3859
  %3862 = vperm.xlu0 %3861, %v3857
  %v3863 = vpop.permute.xlu0 %3862
  %v3864 = vperm.slane %v3339, 5
  %v3865 = vlaneseq
  %v3866 = vshrl.u32 %v3865, 7
  %3868 = vset.pattern.permute.xlu0 %v3866
  %3869 = vperm.xlu0 %3868, %v3864
  %v3870 = vpop.permute.xlu0 %3869
  %v3871 = vperm.slane %v3339, 6
  %v3872 = vlaneseq
  %v3873 = vshrl.u32 %v3872, 7
  %3875 = vset.pattern.permute.xlu0 %v3873
  %3876 = vperm.xlu0 %3875, %v3871
  %v3877 = vpop.permute.xlu0 %3876
  %v3878 = vperm.slane %v3339, 7
  %v3879 = vlaneseq
  %v3880 = vshrl.u32 %v3879, 7
  %3882 = vset.pattern.permute.xlu0 %v3880
  %3883 = vperm.xlu0 %3882, %v3878
  %v3884 = vpop.permute.xlu0 %3883
  %v3885 = vperm.slane %v3340, 0
  %v3886 = vlaneseq
  %v3887 = vshrl.u32 %v3886, 7
  %3889 = vset.pattern.permute.xlu0 %v3887
  %3890 = vperm.xlu0 %3889, %v3885
  %v3891 = vpop.permute.xlu0 %3890
  %v3892 = vperm.slane %v3340, 1
  %v3893 = vlaneseq
  %v3894 = vshrl.u32 %v3893, 7
  %3896 = vset.pattern.permute.xlu0 %v3894
  %3897 = vperm.xlu0 %3896, %v3892
  %v3898 = vpop.permute.xlu0 %3897
  %v3899 = vperm.slane %v3340, 2
  %v3900 = vlaneseq
  %v3901 = vshrl.u32 %v3900, 7
  %3903 = vset.pattern.permute.xlu0 %v3901
  %3904 = vperm.xlu0 %3903, %v3899
  %v3905 = vpop.permute.xlu0 %3904
  %v3906 = vperm.slane %v3340, 3
  %v3907 = vlaneseq
  %v3908 = vshrl.u32 %v3907, 7
  %3910 = vset.pattern.permute.xlu0 %v3908
  %3911 = vperm.xlu0 %3910, %v3906
  %v3912 = vpop.permute.xlu0 %3911
  %v3913 = vperm.slane %v3340, 4
  %v3914 = vlaneseq
  %v3915 = vshrl.u32 %v3914, 7
  %3917 = vset.pattern.permute.xlu0 %v3915
  %3918 = vperm.xlu0 %3917, %v3913
  %v3919 = vpop.permute.xlu0 %3918
  %v3920 = vperm.slane %v3340, 5
  %v3921 = vlaneseq
  %v3922 = vshrl.u32 %v3921, 7
  %3924 = vset.pattern.permute.xlu0 %v3922
  %3925 = vperm.xlu0 %3924, %v3920
  %v3926 = vpop.permute.xlu0 %3925
  %v3927 = vperm.slane %v3340, 6
  %v3928 = vlaneseq
  %v3929 = vshrl.u32 %v3928, 7
  %3931 = vset.pattern.permute.xlu0 %v3929
  %3932 = vperm.xlu0 %3931, %v3927
  %v3933 = vpop.permute.xlu0 %3932
  %v3934 = vperm.slane %v3340, 7
  %v3935 = vlaneseq
  %v3936 = vshrl.u32 %v3935, 7
  %3938 = vset.pattern.permute.xlu0 %v3936
  %3939 = vperm.xlu0 %3938, %v3934
  %v3940 = vpop.permute.xlu0 %3939
  %v3941 = vmul.f32 %v3667, %v694
  %v3942 = vmul.f32 %v3674, %v694
  %v3943 = vmul.f32 %v3681, %v694
  %v3944 = vmul.f32 %v3688, %v694
  %v3945 = vmul.f32 %v3695, %v694
  %v3946 = vmul.f32 %v3702, %v694
  %v3947 = vmul.f32 %v3709, %v694
  %v3948 = vmul.f32 %v3716, %v694
  %v3949 = vmul.f32 %v3723, %v694
  %v3950 = vmul.f32 %v3730, %v694
  %v3951 = vmul.f32 %v3737, %v694
  %v3952 = vmul.f32 %v3744, %v694
  %v3953 = vmul.f32 %v3751, %v694
  %v3954 = vmul.f32 %v3758, %v694
  %v3955 = vmul.f32 %v3765, %v694
  %v3956 = vmul.f32 %v3772, %v694
  %v3957 = vmul.f32 %v3779, %v694
  %v3958 = vmul.f32 %v3786, %v694
  %v3959 = vmul.f32 %v3793, %v694
  %v3960 = vmul.f32 %v3800, %v694
  %v3961 = vmul.f32 %v3807, %v694
  %v3962 = vmul.f32 %v3814, %v694
  %v3963 = vmul.f32 %v3821, %v694
  %v3964 = vmul.f32 %v3828, %v694
  %v3965 = vmul.f32 %v3835, %v694
  %v3966 = vmul.f32 %v3842, %v694
  %v3967 = vmul.f32 %v3849, %v694
  %v3968 = vmul.f32 %v3856, %v694
  %v3969 = vmul.f32 %v3863, %v694
  %v3970 = vmul.f32 %v3870, %v694
  %v3971 = vmul.f32 %v3877, %v694
  %v3972 = vmul.f32 %v3884, %v694
  %v3973 = vmul.f32 %v3891, %v694
  %v3974 = vmul.f32 %v3898, %v694
  %v3975 = vmul.f32 %v3905, %v694
  %v3976 = vmul.f32 %v3912, %v694
  %v3977 = vmul.f32 %v3919, %v694
  %v3978 = vmul.f32 %v3926, %v694
  %v3979 = vmul.f32 %v3933, %v694
  %v3980 = vmul.f32 %v3940, %v694
  %v3981 = vadd.f32 %v3621, %v3941
  %v3982 = vadd.f32 %v3622, %v3942
  %v3983 = vadd.f32 %v3623, %v3943
  %v3984 = vadd.f32 %v3624, %v3944
  %v3985 = vadd.f32 %v3625, %v3945
  %v3986 = vadd.f32 %v3626, %v3946
  %v3987 = vadd.f32 %v3627, %v3947
  %v3988 = vadd.f32 %v3628, %v3948
  %v3989 = vadd.f32 %v3629, %v3949
  %v3990 = vadd.f32 %v3630, %v3950
  %v3991 = vadd.f32 %v3631, %v3951
  %v3992 = vadd.f32 %v3632, %v3952
  %v3993 = vadd.f32 %v3633, %v3953
  %v3994 = vadd.f32 %v3634, %v3954
  %v3995 = vadd.f32 %v3635, %v3955
  %v3996 = vadd.f32 %v3636, %v3956
  %v3997 = vadd.f32 %v3637, %v3957
  %v3998 = vadd.f32 %v3638, %v3958
  %v3999 = vadd.f32 %v3639, %v3959
  %v4000 = vadd.f32 %v3640, %v3960
  %v4001 = vadd.f32 %v3641, %v3961
  %v4002 = vadd.f32 %v3642, %v3962
  %v4003 = vadd.f32 %v3643, %v3963
  %v4004 = vadd.f32 %v3644, %v3964
  %v4005 = vadd.f32 %v3645, %v3965
  %v4006 = vadd.f32 %v3646, %v3966
  %v4007 = vadd.f32 %v3647, %v3967
  %v4008 = vadd.f32 %v3648, %v3968
  %v4009 = vadd.f32 %v3649, %v3969
  %v4010 = vadd.f32 %v3650, %v3970
  %v4011 = vadd.f32 %v3651, %v3971
  %v4012 = vadd.f32 %v3652, %v3972
  %v4013 = vadd.f32 %v3653, %v3973
  %v4014 = vadd.f32 %v3654, %v3974
  %v4015 = vadd.f32 %v3655, %v3975
  %v4016 = vadd.f32 %v3656, %v3976
  %v4017 = vadd.f32 %v3657, %v3977
  %v4018 = vadd.f32 %v3658, %v3978
  %v4019 = vadd.f32 %v3659, %v3979
  %v4020 = vadd.f32 %v3660, %v3980
  %v4021 = vadd.f32 %v3981, %v776
  %v4022 = vadd.f32 %v3982, %v776
  %v4023 = vadd.f32 %v3983, %v776
  %v4024 = vadd.f32 %v3984, %v776
  %v4025 = vadd.f32 %v3985, %v776
  %v4026 = vadd.f32 %v3986, %v776
  %v4027 = vadd.f32 %v3987, %v776
  %v4028 = vadd.f32 %v3988, %v776
  %v4029 = vadd.f32 %v3989, %v776
  %v4030 = vadd.f32 %v3990, %v776
  %v4031 = vadd.f32 %v3991, %v776
  %v4032 = vadd.f32 %v3992, %v776
  %v4033 = vadd.f32 %v3993, %v776
  %v4034 = vadd.f32 %v3994, %v776
  %v4035 = vadd.f32 %v3995, %v776
  %v4036 = vadd.f32 %v3996, %v776
  %v4037 = vadd.f32 %v3997, %v776
  %v4038 = vadd.f32 %v3998, %v776
  %v4039 = vadd.f32 %v3999, %v776
  %v4040 = vadd.f32 %v4000, %v776
  %v4041 = vadd.f32 %v4001, %v776
  %v4042 = vadd.f32 %v4002, %v776
  %v4043 = vadd.f32 %v4003, %v776
  %v4044 = vadd.f32 %v4004, %v776
  %v4045 = vadd.f32 %v4005, %v776
  %v4046 = vadd.f32 %v4006, %v776
  %v4047 = vadd.f32 %v4007, %v776
  %v4048 = vadd.f32 %v4008, %v776
  %v4049 = vadd.f32 %v4009, %v776
  %v4050 = vadd.f32 %v4010, %v776
  %v4051 = vadd.f32 %v4011, %v776
  %v4052 = vadd.f32 %v4012, %v776
  %v4053 = vadd.f32 %v4013, %v776
  %v4054 = vadd.f32 %v4014, %v776
  %v4055 = vadd.f32 %v4015, %v776
  %v4056 = vadd.f32 %v4016, %v776
  %v4057 = vadd.f32 %v4017, %v776
  %v4058 = vadd.f32 %v4018, %v776
  %v4059 = vadd.f32 %v4019, %v776
  %v4060 = vadd.f32 %v4020, %v776
  %s4061 = scalar_lea.vmem [#allocation2], 1280
  %4062 = vst [vmem:[%s4061] sm:$0xff] %v4021
  %4063 = vst [vmem:[%s4061 + $0x8] sm:$0xff] %v4022
  %4064 = vst [vmem:[%s4061 + $0x10] sm:$0xff] %v4023
  %4065 = vst [vmem:[%s4061 + $0x18] sm:$0xff] %v4024
  %4066 = vst [vmem:[%s4061 + $0x20] sm:$0xff] %v4025
  %4067 = vst [vmem:[%s4061 + $0x28] sm:$0xff] %v4026
  %4068 = vst [vmem:[%s4061 + $0x30] sm:$0xff] %v4027
  %4069 = vst [vmem:[%s4061 + $0x38] sm:$0xff] %v4028
  %4070 = vst [vmem:[%s4061 + $0x40] sm:$0xff] %v4029
  %4071 = vst [vmem:[%s4061 + $0x48] sm:$0xff] %v4030
  %4072 = vst [vmem:[%s4061 + $0x50] sm:$0xff] %v4031
  %4073 = vst [vmem:[%s4061 + $0x58] sm:$0xff] %v4032
  %4074 = vst [vmem:[%s4061 + $0x60] sm:$0xff] %v4033
  %4075 = vst [vmem:[%s4061 + $0x68] sm:$0xff] %v4034
  %4076 = vst [vmem:[%s4061 + $0x70] sm:$0xff] %v4035
  %4077 = vst [vmem:[%s4061 + $0x78] sm:$0xff] %v4036
  %4078 = vst [vmem:[%s4061 + $0x80] sm:$0xff] %v4037
  %4079 = vst [vmem:[%s4061 + $0x88] sm:$0xff] %v4038
  %4080 = vst [vmem:[%s4061 + $0x90] sm:$0xff] %v4039
  %4081 = vst [vmem:[%s4061 + $0x98] sm:$0xff] %v4040
  %4082 = vst [vmem:[%s4061 + $0xa0] sm:$0xff] %v4041
  %4083 = vst [vmem:[%s4061 + $0xa8] sm:$0xff] %v4042
  %4084 = vst [vmem:[%s4061 + $0xb0] sm:$0xff] %v4043
  %4085 = vst [vmem:[%s4061 + $0xb8] sm:$0xff] %v4044
  %4086 = vst [vmem:[%s4061 + $0xc0] sm:$0xff] %v4045
  %4087 = vst [vmem:[%s4061 + $0xc8] sm:$0xff] %v4046
  %4088 = vst [vmem:[%s4061 + $0xd0] sm:$0xff] %v4047
  %4089 = vst [vmem:[%s4061 + $0xd8] sm:$0xff] %v4048
  %4090 = vst [vmem:[%s4061 + $0xe0] sm:$0xff] %v4049
  %4091 = vst [vmem:[%s4061 + $0xe8] sm:$0xff] %v4050
  %4092 = vst [vmem:[%s4061 + $0xf0] sm:$0xff] %v4051
  %4093 = vst [vmem:[%s4061 + $0xf8] sm:$0xff] %v4052
  %4094 = vst [vmem:[%s4061 + $0x100] sm:$0xff] %v4053
  %4095 = vst [vmem:[%s4061 + $0x108] sm:$0xff] %v4054
  %4096 = vst [vmem:[%s4061 + $0x110] sm:$0xff] %v4055
  %4097 = vst [vmem:[%s4061 + $0x118] sm:$0xff] %v4056
  %4098 = vst [vmem:[%s4061 + $0x120] sm:$0xff] %v4057
  %4099 = vst [vmem:[%s4061 + $0x128] sm:$0xff] %v4058
  %4100 = vst [vmem:[%s4061 + $0x130] sm:$0xff] %v4059
  %4101 = vst [vmem:[%s4061 + $0x138] sm:$0xff] %v4060
  %v4102 = vld [vmem:[%s0 + $0xc8] sm:$0xff]
  %v4103 = vld [vmem:[%s0 + $0xd0] sm:$0xff]
  %v4104 = vld [vmem:[%s0 + $0xd8] sm:$0xff]
  %v4105 = vld [vmem:[%s0 + $0xe0] sm:$0xff]
  %v4106 = vld [vmem:[%s0 + $0xe8] sm:$0xff]
  %v4107 = vld [vmem:[%s1 + $0xc8] sm:$0xff]
  %v4108 = vld [vmem:[%s1 + $0xd0] sm:$0xff]
  %v4109 = vld [vmem:[%s1 + $0xd8] sm:$0xff]
  %v4110 = vld [vmem:[%s1 + $0xe0] sm:$0xff]
  %v4111 = vld [vmem:[%s1 + $0xe8] sm:$0xff]
  %v4112 = vld [vmem:[%s49 + $0xc8] sm:$0xff]
  %v4113 = vld [vmem:[%s49 + $0xd0] sm:$0xff]
  %v4114 = vld [vmem:[%s49 + $0xd8] sm:$0xff]
  %v4115 = vld [vmem:[%s49 + $0xe0] sm:$0xff]
  %v4116 = vld [vmem:[%s49 + $0xe8] sm:$0xff]
  %v4117 = vmax.f32 %v4102, %v4112
  %v4118 = vmax.f32 %v4103, %v4113
  %v4119 = vmax.f32 %v4104, %v4114
  %v4120 = vmax.f32 %v4105, %v4115
  %v4121 = vmax.f32 %v4106, %v4116
  %v4122 = vld [vmem:[%s60 + $0xc8] sm:$0xff]
  %v4123 = vld [vmem:[%s60 + $0xd0] sm:$0xff]
  %v4124 = vld [vmem:[%s60 + $0xd8] sm:$0xff]
  %v4125 = vld [vmem:[%s60 + $0xe0] sm:$0xff]
  %v4126 = vld [vmem:[%s60 + $0xe8] sm:$0xff]
  %v4127 = vmax.f32 %v4107, %v4122
  %v4128 = vmax.f32 %v4108, %v4123
  %v4129 = vmax.f32 %v4109, %v4124
  %v4130 = vmax.f32 %v4110, %v4125
  %v4131 = vmax.f32 %v4111, %v4126
  %v4132 = vld [vmem:[%s71 + $0xc8] sm:$0xff]
  %v4133 = vld [vmem:[%s71 + $0xd0] sm:$0xff]
  %v4134 = vld [vmem:[%s71 + $0xd8] sm:$0xff]
  %v4135 = vld [vmem:[%s71 + $0xe0] sm:$0xff]
  %v4136 = vld [vmem:[%s71 + $0xe8] sm:$0xff]
  %v4137 = vmax.f32 %v4117, %v4132
  %v4138 = vmax.f32 %v4118, %v4133
  %v4139 = vmax.f32 %v4119, %v4134
  %v4140 = vmax.f32 %v4120, %v4135
  %v4141 = vmax.f32 %v4121, %v4136
  %v4142 = vld [vmem:[%s82 + $0xc8] sm:$0xff]
  %v4143 = vld [vmem:[%s82 + $0xd0] sm:$0xff]
  %v4144 = vld [vmem:[%s82 + $0xd8] sm:$0xff]
  %v4145 = vld [vmem:[%s82 + $0xe0] sm:$0xff]
  %v4146 = vld [vmem:[%s82 + $0xe8] sm:$0xff]
  %v4147 = vmax.f32 %v4127, %v4142
  %v4148 = vmax.f32 %v4128, %v4143
  %v4149 = vmax.f32 %v4129, %v4144
  %v4150 = vmax.f32 %v4130, %v4145
  %v4151 = vmax.f32 %v4131, %v4146
  %v4152 = vperm.slane %v4137, 0
  %v4153 = vlaneseq
  %v4154 = vshrl.u32 %v4153, 7
  %4156 = vset.pattern.permute.xlu0 %v4154
  %4157 = vperm.xlu0 %4156, %v4152
  %v4158 = vpop.permute.xlu0 %4157
  %v4159 = vperm.slane %v4137, 1
  %v4160 = vlaneseq
  %v4161 = vshrl.u32 %v4160, 7
  %4163 = vset.pattern.permute.xlu0 %v4161
  %4164 = vperm.xlu0 %4163, %v4159
  %v4165 = vpop.permute.xlu0 %4164
  %v4166 = vperm.slane %v4137, 2
  %v4167 = vlaneseq
  %v4168 = vshrl.u32 %v4167, 7
  %4170 = vset.pattern.permute.xlu0 %v4168
  %4171 = vperm.xlu0 %4170, %v4166
  %v4172 = vpop.permute.xlu0 %4171
  %v4173 = vperm.slane %v4137, 3
  %v4174 = vlaneseq
  %v4175 = vshrl.u32 %v4174, 7
  %4177 = vset.pattern.permute.xlu0 %v4175
  %4178 = vperm.xlu0 %4177, %v4173
  %v4179 = vpop.permute.xlu0 %4178
  %v4180 = vperm.slane %v4137, 4
  %v4181 = vlaneseq
  %v4182 = vshrl.u32 %v4181, 7
  %4184 = vset.pattern.permute.xlu0 %v4182
  %4185 = vperm.xlu0 %4184, %v4180
  %v4186 = vpop.permute.xlu0 %4185
  %v4187 = vperm.slane %v4137, 5
  %v4188 = vlaneseq
  %v4189 = vshrl.u32 %v4188, 7
  %4191 = vset.pattern.permute.xlu0 %v4189
  %4192 = vperm.xlu0 %4191, %v4187
  %v4193 = vpop.permute.xlu0 %4192
  %v4194 = vperm.slane %v4137, 6
  %v4195 = vlaneseq
  %v4196 = vshrl.u32 %v4195, 7
  %4198 = vset.pattern.permute.xlu0 %v4196
  %4199 = vperm.xlu0 %4198, %v4194
  %v4200 = vpop.permute.xlu0 %4199
  %v4201 = vperm.slane %v4137, 7
  %v4202 = vlaneseq
  %v4203 = vshrl.u32 %v4202, 7
  %4205 = vset.pattern.permute.xlu0 %v4203
  %4206 = vperm.xlu0 %4205, %v4201
  %v4207 = vpop.permute.xlu0 %4206
  %v4208 = vperm.slane %v4138, 0
  %v4209 = vlaneseq
  %v4210 = vshrl.u32 %v4209, 7
  %4212 = vset.pattern.permute.xlu0 %v4210
  %4213 = vperm.xlu0 %4212, %v4208
  %v4214 = vpop.permute.xlu0 %4213
  %v4215 = vperm.slane %v4138, 1
  %v4216 = vlaneseq
  %v4217 = vshrl.u32 %v4216, 7
  %4219 = vset.pattern.permute.xlu0 %v4217
  %4220 = vperm.xlu0 %4219, %v4215
  %v4221 = vpop.permute.xlu0 %4220
  %v4222 = vperm.slane %v4138, 2
  %v4223 = vlaneseq
  %v4224 = vshrl.u32 %v4223, 7
  %4226 = vset.pattern.permute.xlu0 %v4224
  %4227 = vperm.xlu0 %4226, %v4222
  %v4228 = vpop.permute.xlu0 %4227
  %v4229 = vperm.slane %v4138, 3
  %v4230 = vlaneseq
  %v4231 = vshrl.u32 %v4230, 7
  %4233 = vset.pattern.permute.xlu0 %v4231
  %4234 = vperm.xlu0 %4233, %v4229
  %v4235 = vpop.permute.xlu0 %4234
  %v4236 = vperm.slane %v4138, 4
  %v4237 = vlaneseq
  %v4238 = vshrl.u32 %v4237, 7
  %4240 = vset.pattern.permute.xlu0 %v4238
  %4241 = vperm.xlu0 %4240, %v4236
  %v4242 = vpop.permute.xlu0 %4241
  %v4243 = vperm.slane %v4138, 5
  %v4244 = vlaneseq
  %v4245 = vshrl.u32 %v4244, 7
  %4247 = vset.pattern.permute.xlu0 %v4245
  %4248 = vperm.xlu0 %4247, %v4243
  %v4249 = vpop.permute.xlu0 %4248
  %v4250 = vperm.slane %v4138, 6
  %v4251 = vlaneseq
  %v4252 = vshrl.u32 %v4251, 7
  %4254 = vset.pattern.permute.xlu0 %v4252
  %4255 = vperm.xlu0 %4254, %v4250
  %v4256 = vpop.permute.xlu0 %4255
  %v4257 = vperm.slane %v4138, 7
  %v4258 = vlaneseq
  %v4259 = vshrl.u32 %v4258, 7
  %4261 = vset.pattern.permute.xlu0 %v4259
  %4262 = vperm.xlu0 %4261, %v4257
  %v4263 = vpop.permute.xlu0 %4262
  %v4264 = vperm.slane %v4139, 0
  %v4265 = vlaneseq
  %v4266 = vshrl.u32 %v4265, 7
  %4268 = vset.pattern.permute.xlu0 %v4266
  %4269 = vperm.xlu0 %4268, %v4264
  %v4270 = vpop.permute.xlu0 %4269
  %v4271 = vperm.slane %v4139, 1
  %v4272 = vlaneseq
  %v4273 = vshrl.u32 %v4272, 7
  %4275 = vset.pattern.permute.xlu0 %v4273
  %4276 = vperm.xlu0 %4275, %v4271
  %v4277 = vpop.permute.xlu0 %4276
  %v4278 = vperm.slane %v4139, 2
  %v4279 = vlaneseq
  %v4280 = vshrl.u32 %v4279, 7
  %4282 = vset.pattern.permute.xlu0 %v4280
  %4283 = vperm.xlu0 %4282, %v4278
  %v4284 = vpop.permute.xlu0 %4283
  %v4285 = vperm.slane %v4139, 3
  %v4286 = vlaneseq
  %v4287 = vshrl.u32 %v4286, 7
  %4289 = vset.pattern.permute.xlu0 %v4287
  %4290 = vperm.xlu0 %4289, %v4285
  %v4291 = vpop.permute.xlu0 %4290
  %v4292 = vperm.slane %v4139, 4
  %v4293 = vlaneseq
  %v4294 = vshrl.u32 %v4293, 7
  %4296 = vset.pattern.permute.xlu0 %v4294
  %4297 = vperm.xlu0 %4296, %v4292
  %v4298 = vpop.permute.xlu0 %4297
  %v4299 = vperm.slane %v4139, 5
  %v4300 = vlaneseq
  %v4301 = vshrl.u32 %v4300, 7
  %4303 = vset.pattern.permute.xlu0 %v4301
  %4304 = vperm.xlu0 %4303, %v4299
  %v4305 = vpop.permute.xlu0 %4304
  %v4306 = vperm.slane %v4139, 6
  %v4307 = vlaneseq
  %v4308 = vshrl.u32 %v4307, 7
  %4310 = vset.pattern.permute.xlu0 %v4308
  %4311 = vperm.xlu0 %4310, %v4306
  %v4312 = vpop.permute.xlu0 %4311
  %v4313 = vperm.slane %v4139, 7
  %v4314 = vlaneseq
  %v4315 = vshrl.u32 %v4314, 7
  %4317 = vset.pattern.permute.xlu0 %v4315
  %4318 = vperm.xlu0 %4317, %v4313
  %v4319 = vpop.permute.xlu0 %4318
  %v4320 = vperm.slane %v4140, 0
  %v4321 = vlaneseq
  %v4322 = vshrl.u32 %v4321, 7
  %4324 = vset.pattern.permute.xlu0 %v4322
  %4325 = vperm.xlu0 %4324, %v4320
  %v4326 = vpop.permute.xlu0 %4325
  %v4327 = vperm.slane %v4140, 1
  %v4328 = vlaneseq
  %v4329 = vshrl.u32 %v4328, 7
  %4331 = vset.pattern.permute.xlu0 %v4329
  %4332 = vperm.xlu0 %4331, %v4327
  %v4333 = vpop.permute.xlu0 %4332
  %v4334 = vperm.slane %v4140, 2
  %v4335 = vlaneseq
  %v4336 = vshrl.u32 %v4335, 7
  %4338 = vset.pattern.permute.xlu0 %v4336
  %4339 = vperm.xlu0 %4338, %v4334
  %v4340 = vpop.permute.xlu0 %4339
  %v4341 = vperm.slane %v4140, 3
  %v4342 = vlaneseq
  %v4343 = vshrl.u32 %v4342, 7
  %4345 = vset.pattern.permute.xlu0 %v4343
  %4346 = vperm.xlu0 %4345, %v4341
  %v4347 = vpop.permute.xlu0 %4346
  %v4348 = vperm.slane %v4140, 4
  %v4349 = vlaneseq
  %v4350 = vshrl.u32 %v4349, 7
  %4352 = vset.pattern.permute.xlu0 %v4350
  %4353 = vperm.xlu0 %4352, %v4348
  %v4354 = vpop.permute.xlu0 %4353
  %v4355 = vperm.slane %v4140, 5
  %v4356 = vlaneseq
  %v4357 = vshrl.u32 %v4356, 7
  %4359 = vset.pattern.permute.xlu0 %v4357
  %4360 = vperm.xlu0 %4359, %v4355
  %v4361 = vpop.permute.xlu0 %4360
  %v4362 = vperm.slane %v4140, 6
  %v4363 = vlaneseq
  %v4364 = vshrl.u32 %v4363, 7
  %4366 = vset.pattern.permute.xlu0 %v4364
  %4367 = vperm.xlu0 %4366, %v4362
  %v4368 = vpop.permute.xlu0 %4367
  %v4369 = vperm.slane %v4140, 7
  %v4370 = vlaneseq
  %v4371 = vshrl.u32 %v4370, 7
  %4373 = vset.pattern.permute.xlu0 %v4371
  %4374 = vperm.xlu0 %4373, %v4369
  %v4375 = vpop.permute.xlu0 %4374
  %v4376 = vperm.slane %v4141, 0
  %v4377 = vlaneseq
  %v4378 = vshrl.u32 %v4377, 7
  %4380 = vset.pattern.permute.xlu0 %v4378
  %4381 = vperm.xlu0 %4380, %v4376
  %v4382 = vpop.permute.xlu0 %4381
  %v4383 = vperm.slane %v4141, 1
  %v4384 = vlaneseq
  %v4385 = vshrl.u32 %v4384, 7
  %4387 = vset.pattern.permute.xlu0 %v4385
  %4388 = vperm.xlu0 %4387, %v4383
  %v4389 = vpop.permute.xlu0 %4388
  %v4390 = vperm.slane %v4141, 2
  %v4391 = vlaneseq
  %v4392 = vshrl.u32 %v4391, 7
  %4394 = vset.pattern.permute.xlu0 %v4392
  %4395 = vperm.xlu0 %4394, %v4390
  %v4396 = vpop.permute.xlu0 %4395
  %v4397 = vperm.slane %v4141, 3
  %v4398 = vlaneseq
  %v4399 = vshrl.u32 %v4398, 7
  %4401 = vset.pattern.permute.xlu0 %v4399
  %4402 = vperm.xlu0 %4401, %v4397
  %v4403 = vpop.permute.xlu0 %4402
  %v4404 = vperm.slane %v4141, 4
  %v4405 = vlaneseq
  %v4406 = vshrl.u32 %v4405, 7
  %4408 = vset.pattern.permute.xlu0 %v4406
  %4409 = vperm.xlu0 %4408, %v4404
  %v4410 = vpop.permute.xlu0 %4409
  %v4411 = vperm.slane %v4141, 5
  %v4412 = vlaneseq
  %v4413 = vshrl.u32 %v4412, 7
  %4415 = vset.pattern.permute.xlu0 %v4413
  %4416 = vperm.xlu0 %4415, %v4411
  %v4417 = vpop.permute.xlu0 %4416
  %v4418 = vperm.slane %v4141, 6
  %v4419 = vlaneseq
  %v4420 = vshrl.u32 %v4419, 7
  %4422 = vset.pattern.permute.xlu0 %v4420
  %4423 = vperm.xlu0 %4422, %v4418
  %v4424 = vpop.permute.xlu0 %4423
  %v4425 = vperm.slane %v4141, 7
  %v4426 = vlaneseq
  %v4427 = vshrl.u32 %v4426, 7
  %4429 = vset.pattern.permute.xlu0 %v4427
  %4430 = vperm.xlu0 %4429, %v4425
  %v4431 = vpop.permute.xlu0 %4430
  %v4432 = vmul.f32 %v4158, %v373
  %v4433 = vmul.f32 %v4165, %v373
  %v4434 = vmul.f32 %v4172, %v373
  %v4435 = vmul.f32 %v4179, %v373
  %v4436 = vmul.f32 %v4186, %v373
  %v4437 = vmul.f32 %v4193, %v373
  %v4438 = vmul.f32 %v4200, %v373
  %v4439 = vmul.f32 %v4207, %v373
  %v4440 = vmul.f32 %v4214, %v373
  %v4441 = vmul.f32 %v4221, %v373
  %v4442 = vmul.f32 %v4228, %v373
  %v4443 = vmul.f32 %v4235, %v373
  %v4444 = vmul.f32 %v4242, %v373
  %v4445 = vmul.f32 %v4249, %v373
  %v4446 = vmul.f32 %v4256, %v373
  %v4447 = vmul.f32 %v4263, %v373
  %v4448 = vmul.f32 %v4270, %v373
  %v4449 = vmul.f32 %v4277, %v373
  %v4450 = vmul.f32 %v4284, %v373
  %v4451 = vmul.f32 %v4291, %v373
  %v4452 = vmul.f32 %v4298, %v373
  %v4453 = vmul.f32 %v4305, %v373
  %v4454 = vmul.f32 %v4312, %v373
  %v4455 = vmul.f32 %v4319, %v373
  %v4456 = vmul.f32 %v4326, %v373
  %v4457 = vmul.f32 %v4333, %v373
  %v4458 = vmul.f32 %v4340, %v373
  %v4459 = vmul.f32 %v4347, %v373
  %v4460 = vmul.f32 %v4354, %v373
  %v4461 = vmul.f32 %v4361, %v373
  %v4462 = vmul.f32 %v4368, %v373
  %v4463 = vmul.f32 %v4375, %v373
  %v4464 = vmul.f32 %v4382, %v373
  %v4465 = vmul.f32 %v4389, %v373
  %v4466 = vmul.f32 %v4396, %v373
  %v4467 = vmul.f32 %v4403, %v373
  %v4468 = vmul.f32 %v4410, %v373
  %v4469 = vmul.f32 %v4417, %v373
  %v4470 = vmul.f32 %v4424, %v373
  %v4471 = vmul.f32 %v4431, %v373
  %v4472 = vperm.slane %v4147, 0
  %v4473 = vlaneseq
  %v4474 = vshrl.u32 %v4473, 7
  %4476 = vset.pattern.permute.xlu0 %v4474
  %4477 = vperm.xlu0 %4476, %v4472
  %v4478 = vpop.permute.xlu0 %4477
  %v4479 = vperm.slane %v4147, 1
  %v4480 = vlaneseq
  %v4481 = vshrl.u32 %v4480, 7
  %4483 = vset.pattern.permute.xlu0 %v4481
  %4484 = vperm.xlu0 %4483, %v4479
  %v4485 = vpop.permute.xlu0 %4484
  %v4486 = vperm.slane %v4147, 2
  %v4487 = vlaneseq
  %v4488 = vshrl.u32 %v4487, 7
  %4490 = vset.pattern.permute.xlu0 %v4488
  %4491 = vperm.xlu0 %4490, %v4486
  %v4492 = vpop.permute.xlu0 %4491
  %v4493 = vperm.slane %v4147, 3
  %v4494 = vlaneseq
  %v4495 = vshrl.u32 %v4494, 7
  %4497 = vset.pattern.permute.xlu0 %v4495
  %4498 = vperm.xlu0 %4497, %v4493
  %v4499 = vpop.permute.xlu0 %4498
  %v4500 = vperm.slane %v4147, 4
  %v4501 = vlaneseq
  %v4502 = vshrl.u32 %v4501, 7
  %4504 = vset.pattern.permute.xlu0 %v4502
  %4505 = vperm.xlu0 %4504, %v4500
  %v4506 = vpop.permute.xlu0 %4505
  %v4507 = vperm.slane %v4147, 5
  %v4508 = vlaneseq
  %v4509 = vshrl.u32 %v4508, 7
  %4511 = vset.pattern.permute.xlu0 %v4509
  %4512 = vperm.xlu0 %4511, %v4507
  %v4513 = vpop.permute.xlu0 %4512
  %v4514 = vperm.slane %v4147, 6
  %v4515 = vlaneseq
  %v4516 = vshrl.u32 %v4515, 7
  %4518 = vset.pattern.permute.xlu0 %v4516
  %4519 = vperm.xlu0 %4518, %v4514
  %v4520 = vpop.permute.xlu0 %4519
  %v4521 = vperm.slane %v4147, 7
  %v4522 = vlaneseq
  %v4523 = vshrl.u32 %v4522, 7
  %4525 = vset.pattern.permute.xlu0 %v4523
  %4526 = vperm.xlu0 %4525, %v4521
  %v4527 = vpop.permute.xlu0 %4526
  %v4528 = vperm.slane %v4148, 0
  %v4529 = vlaneseq
  %v4530 = vshrl.u32 %v4529, 7
  %4532 = vset.pattern.permute.xlu0 %v4530
  %4533 = vperm.xlu0 %4532, %v4528
  %v4534 = vpop.permute.xlu0 %4533
  %v4535 = vperm.slane %v4148, 1
  %v4536 = vlaneseq
  %v4537 = vshrl.u32 %v4536, 7
  %4539 = vset.pattern.permute.xlu0 %v4537
  %4540 = vperm.xlu0 %4539, %v4535
  %v4541 = vpop.permute.xlu0 %4540
  %v4542 = vperm.slane %v4148, 2
  %v4543 = vlaneseq
  %v4544 = vshrl.u32 %v4543, 7
  %4546 = vset.pattern.permute.xlu0 %v4544
  %4547 = vperm.xlu0 %4546, %v4542
  %v4548 = vpop.permute.xlu0 %4547
  %v4549 = vperm.slane %v4148, 3
  %v4550 = vlaneseq
  %v4551 = vshrl.u32 %v4550, 7
  %4553 = vset.pattern.permute.xlu0 %v4551
  %4554 = vperm.xlu0 %4553, %v4549
  %v4555 = vpop.permute.xlu0 %4554
  %v4556 = vperm.slane %v4148, 4
  %v4557 = vlaneseq
  %v4558 = vshrl.u32 %v4557, 7
  %4560 = vset.pattern.permute.xlu0 %v4558
  %4561 = vperm.xlu0 %4560, %v4556
  %v4562 = vpop.permute.xlu0 %4561
  %v4563 = vperm.slane %v4148, 5
  %v4564 = vlaneseq
  %v4565 = vshrl.u32 %v4564, 7
  %4567 = vset.pattern.permute.xlu0 %v4565
  %4568 = vperm.xlu0 %4567, %v4563
  %v4569 = vpop.permute.xlu0 %4568
  %v4570 = vperm.slane %v4148, 6
  %v4571 = vlaneseq
  %v4572 = vshrl.u32 %v4571, 7
  %4574 = vset.pattern.permute.xlu0 %v4572
  %4575 = vperm.xlu0 %4574, %v4570
  %v4576 = vpop.permute.xlu0 %4575
  %v4577 = vperm.slane %v4148, 7
  %v4578 = vlaneseq
  %v4579 = vshrl.u32 %v4578, 7
  %4581 = vset.pattern.permute.xlu0 %v4579
  %4582 = vperm.xlu0 %4581, %v4577
  %v4583 = vpop.permute.xlu0 %4582
  %v4584 = vperm.slane %v4149, 0
  %v4585 = vlaneseq
  %v4586 = vshrl.u32 %v4585, 7
  %4588 = vset.pattern.permute.xlu0 %v4586
  %4589 = vperm.xlu0 %4588, %v4584
  %v4590 = vpop.permute.xlu0 %4589
  %v4591 = vperm.slane %v4149, 1
  %v4592 = vlaneseq
  %v4593 = vshrl.u32 %v4592, 7
  %4595 = vset.pattern.permute.xlu0 %v4593
  %4596 = vperm.xlu0 %4595, %v4591
  %v4597 = vpop.permute.xlu0 %4596
  %v4598 = vperm.slane %v4149, 2
  %v4599 = vlaneseq
  %v4600 = vshrl.u32 %v4599, 7
  %4602 = vset.pattern.permute.xlu0 %v4600
  %4603 = vperm.xlu0 %4602, %v4598
  %v4604 = vpop.permute.xlu0 %4603
  %v4605 = vperm.slane %v4149, 3
  %v4606 = vlaneseq
  %v4607 = vshrl.u32 %v4606, 7
  %4609 = vset.pattern.permute.xlu0 %v4607
  %4610 = vperm.xlu0 %4609, %v4605
  %v4611 = vpop.permute.xlu0 %4610
  %v4612 = vperm.slane %v4149, 4
  %v4613 = vlaneseq
  %v4614 = vshrl.u32 %v4613, 7
  %4616 = vset.pattern.permute.xlu0 %v4614
  %4617 = vperm.xlu0 %4616, %v4612
  %v4618 = vpop.permute.xlu0 %4617
  %v4619 = vperm.slane %v4149, 5
  %v4620 = vlaneseq
  %v4621 = vshrl.u32 %v4620, 7
  %4623 = vset.pattern.permute.xlu0 %v4621
  %4624 = vperm.xlu0 %4623, %v4619
  %v4625 = vpop.permute.xlu0 %4624
  %v4626 = vperm.slane %v4149, 6
  %v4627 = vlaneseq
  %v4628 = vshrl.u32 %v4627, 7
  %4630 = vset.pattern.permute.xlu0 %v4628
  %4631 = vperm.xlu0 %4630, %v4626
  %v4632 = vpop.permute.xlu0 %4631
  %v4633 = vperm.slane %v4149, 7
  %v4634 = vlaneseq
  %v4635 = vshrl.u32 %v4634, 7
  %4637 = vset.pattern.permute.xlu0 %v4635
  %4638 = vperm.xlu0 %4637, %v4633
  %v4639 = vpop.permute.xlu0 %4638
  %v4640 = vperm.slane %v4150, 0
  %v4641 = vlaneseq
  %v4642 = vshrl.u32 %v4641, 7
  %4644 = vset.pattern.permute.xlu0 %v4642
  %4645 = vperm.xlu0 %4644, %v4640
  %v4646 = vpop.permute.xlu0 %4645
  %v4647 = vperm.slane %v4150, 1
  %v4648 = vlaneseq
  %v4649 = vshrl.u32 %v4648, 7
  %4651 = vset.pattern.permute.xlu0 %v4649
  %4652 = vperm.xlu0 %4651, %v4647
  %v4653 = vpop.permute.xlu0 %4652
  %v4654 = vperm.slane %v4150, 2
  %v4655 = vlaneseq
  %v4656 = vshrl.u32 %v4655, 7
  %4658 = vset.pattern.permute.xlu0 %v4656
  %4659 = vperm.xlu0 %4658, %v4654
  %v4660 = vpop.permute.xlu0 %4659
  %v4661 = vperm.slane %v4150, 3
  %v4662 = vlaneseq
  %v4663 = vshrl.u32 %v4662, 7
  %4665 = vset.pattern.permute.xlu0 %v4663
  %4666 = vperm.xlu0 %4665, %v4661
  %v4667 = vpop.permute.xlu0 %4666
  %v4668 = vperm.slane %v4150, 4
  %v4669 = vlaneseq
  %v4670 = vshrl.u32 %v4669, 7
  %4672 = vset.pattern.permute.xlu0 %v4670
  %4673 = vperm.xlu0 %4672, %v4668
  %v4674 = vpop.permute.xlu0 %4673
  %v4675 = vperm.slane %v4150, 5
  %v4676 = vlaneseq
  %v4677 = vshrl.u32 %v4676, 7
  %4679 = vset.pattern.permute.xlu0 %v4677
  %4680 = vperm.xlu0 %4679, %v4675
  %v4681 = vpop.permute.xlu0 %4680
  %v4682 = vperm.slane %v4150, 6
  %v4683 = vlaneseq
  %v4684 = vshrl.u32 %v4683, 7
  %4686 = vset.pattern.permute.xlu0 %v4684
  %4687 = vperm.xlu0 %4686, %v4682
  %v4688 = vpop.permute.xlu0 %4687
  %v4689 = vperm.slane %v4150, 7
  %v4690 = vlaneseq
  %v4691 = vshrl.u32 %v4690, 7
  %4693 = vset.pattern.permute.xlu0 %v4691
  %4694 = vperm.xlu0 %4693, %v4689
  %v4695 = vpop.permute.xlu0 %4694
  %v4696 = vperm.slane %v4151, 0
  %v4697 = vlaneseq
  %v4698 = vshrl.u32 %v4697, 7
  %4700 = vset.pattern.permute.xlu0 %v4698
  %4701 = vperm.xlu0 %4700, %v4696
  %v4702 = vpop.permute.xlu0 %4701
  %v4703 = vperm.slane %v4151, 1
  %v4704 = vlaneseq
  %v4705 = vshrl.u32 %v4704, 7
  %4707 = vset.pattern.permute.xlu0 %v4705
  %4708 = vperm.xlu0 %4707, %v4703
  %v4709 = vpop.permute.xlu0 %4708
  %v4710 = vperm.slane %v4151, 2
  %v4711 = vlaneseq
  %v4712 = vshrl.u32 %v4711, 7
  %4714 = vset.pattern.permute.xlu0 %v4712
  %4715 = vperm.xlu0 %4714, %v4710
  %v4716 = vpop.permute.xlu0 %4715
  %v4717 = vperm.slane %v4151, 3
  %v4718 = vlaneseq
  %v4719 = vshrl.u32 %v4718, 7
  %4721 = vset.pattern.permute.xlu0 %v4719
  %4722 = vperm.xlu0 %4721, %v4717
  %v4723 = vpop.permute.xlu0 %4722
  %v4724 = vperm.slane %v4151, 4
  %v4725 = vlaneseq
  %v4726 = vshrl.u32 %v4725, 7
  %4728 = vset.pattern.permute.xlu0 %v4726
  %4729 = vperm.xlu0 %4728, %v4724
  %v4730 = vpop.permute.xlu0 %4729
  %v4731 = vperm.slane %v4151, 5
  %v4732 = vlaneseq
  %v4733 = vshrl.u32 %v4732, 7
  %4735 = vset.pattern.permute.xlu0 %v4733
  %4736 = vperm.xlu0 %4735, %v4731
  %v4737 = vpop.permute.xlu0 %4736
  %v4738 = vperm.slane %v4151, 6
  %v4739 = vlaneseq
  %v4740 = vshrl.u32 %v4739, 7
  %4742 = vset.pattern.permute.xlu0 %v4740
  %4743 = vperm.xlu0 %4742, %v4738
  %v4744 = vpop.permute.xlu0 %4743
  %v4745 = vperm.slane %v4151, 7
  %v4746 = vlaneseq
  %v4747 = vshrl.u32 %v4746, 7
  %4749 = vset.pattern.permute.xlu0 %v4747
  %4750 = vperm.xlu0 %4749, %v4745
  %v4751 = vpop.permute.xlu0 %4750
  %v4752 = vmul.f32 %v4478, %v694
  %v4753 = vmul.f32 %v4485, %v694
  %v4754 = vmul.f32 %v4492, %v694
  %v4755 = vmul.f32 %v4499, %v694
  %v4756 = vmul.f32 %v4506, %v694
  %v4757 = vmul.f32 %v4513, %v694
  %v4758 = vmul.f32 %v4520, %v694
  %v4759 = vmul.f32 %v4527, %v694
  %v4760 = vmul.f32 %v4534, %v694
  %v4761 = vmul.f32 %v4541, %v694
  %v4762 = vmul.f32 %v4548, %v694
  %v4763 = vmul.f32 %v4555, %v694
  %v4764 = vmul.f32 %v4562, %v694
  %v4765 = vmul.f32 %v4569, %v694
  %v4766 = vmul.f32 %v4576, %v694
  %v4767 = vmul.f32 %v4583, %v694
  %v4768 = vmul.f32 %v4590, %v694
  %v4769 = vmul.f32 %v4597, %v694
  %v4770 = vmul.f32 %v4604, %v694
  %v4771 = vmul.f32 %v4611, %v694
  %v4772 = vmul.f32 %v4618, %v694
  %v4773 = vmul.f32 %v4625, %v694
  %v4774 = vmul.f32 %v4632, %v694
  %v4775 = vmul.f32 %v4639, %v694
  %v4776 = vmul.f32 %v4646, %v694
  %v4777 = vmul.f32 %v4653, %v694
  %v4778 = vmul.f32 %v4660, %v694
  %v4779 = vmul.f32 %v4667, %v694
  %v4780 = vmul.f32 %v4674, %v694
  %v4781 = vmul.f32 %v4681, %v694
  %v4782 = vmul.f32 %v4688, %v694
  %v4783 = vmul.f32 %v4695, %v694
  %v4784 = vmul.f32 %v4702, %v694
  %v4785 = vmul.f32 %v4709, %v694
  %v4786 = vmul.f32 %v4716, %v694
  %v4787 = vmul.f32 %v4723, %v694
  %v4788 = vmul.f32 %v4730, %v694
  %v4789 = vmul.f32 %v4737, %v694
  %v4790 = vmul.f32 %v4744, %v694
  %v4791 = vmul.f32 %v4751, %v694
  %v4792 = vadd.f32 %v4432, %v4752
  %v4793 = vadd.f32 %v4433, %v4753
  %v4794 = vadd.f32 %v4434, %v4754
  %v4795 = vadd.f32 %v4435, %v4755
  %v4796 = vadd.f32 %v4436, %v4756
  %v4797 = vadd.f32 %v4437, %v4757
  %v4798 = vadd.f32 %v4438, %v4758
  %v4799 = vadd.f32 %v4439, %v4759
  %v4800 = vadd.f32 %v4440, %v4760
  %v4801 = vadd.f32 %v4441, %v4761
  %v4802 = vadd.f32 %v4442, %v4762
  %v4803 = vadd.f32 %v4443, %v4763
  %v4804 = vadd.f32 %v4444, %v4764
  %v4805 = vadd.f32 %v4445, %v4765
  %v4806 = vadd.f32 %v4446, %v4766
  %v4807 = vadd.f32 %v4447, %v4767
  %v4808 = vadd.f32 %v4448, %v4768
  %v4809 = vadd.f32 %v4449, %v4769
  %v4810 = vadd.f32 %v4450, %v4770
  %v4811 = vadd.f32 %v4451, %v4771
  %v4812 = vadd.f32 %v4452, %v4772
  %v4813 = vadd.f32 %v4453, %v4773
  %v4814 = vadd.f32 %v4454, %v4774
  %v4815 = vadd.f32 %v4455, %v4775
  %v4816 = vadd.f32 %v4456, %v4776
  %v4817 = vadd.f32 %v4457, %v4777
  %v4818 = vadd.f32 %v4458, %v4778
  %v4819 = vadd.f32 %v4459, %v4779
  %v4820 = vadd.f32 %v4460, %v4780
  %v4821 = vadd.f32 %v4461, %v4781
  %v4822 = vadd.f32 %v4462, %v4782
  %v4823 = vadd.f32 %v4463, %v4783
  %v4824 = vadd.f32 %v4464, %v4784
  %v4825 = vadd.f32 %v4465, %v4785
  %v4826 = vadd.f32 %v4466, %v4786
  %v4827 = vadd.f32 %v4467, %v4787
  %v4828 = vadd.f32 %v4468, %v4788
  %v4829 = vadd.f32 %v4469, %v4789
  %v4830 = vadd.f32 %v4470, %v4790
  %v4831 = vadd.f32 %v4471, %v4791
  %v4832 = vadd.f32 %v4792, %v776
  %v4833 = vadd.f32 %v4793, %v776
  %v4834 = vadd.f32 %v4794, %v776
  %v4835 = vadd.f32 %v4795, %v776
  %v4836 = vadd.f32 %v4796, %v776
  %v4837 = vadd.f32 %v4797, %v776
  %v4838 = vadd.f32 %v4798, %v776
  %v4839 = vadd.f32 %v4799, %v776
  %v4840 = vadd.f32 %v4800, %v776
  %v4841 = vadd.f32 %v4801, %v776
  %v4842 = vadd.f32 %v4802, %v776
  %v4843 = vadd.f32 %v4803, %v776
  %v4844 = vadd.f32 %v4804, %v776
  %v4845 = vadd.f32 %v4805, %v776
  %v4846 = vadd.f32 %v4806, %v776
  %v4847 = vadd.f32 %v4807, %v776
  %v4848 = vadd.f32 %v4808, %v776
  %v4849 = vadd.f32 %v4809, %v776
  %v4850 = vadd.f32 %v4810, %v776
  %v4851 = vadd.f32 %v4811, %v776
  %v4852 = vadd.f32 %v4812, %v776
  %v4853 = vadd.f32 %v4813, %v776
  %v4854 = vadd.f32 %v4814, %v776
  %v4855 = vadd.f32 %v4815, %v776
  %v4856 = vadd.f32 %v4816, %v776
  %v4857 = vadd.f32 %v4817, %v776
  %v4858 = vadd.f32 %v4818, %v776
  %v4859 = vadd.f32 %v4819, %v776
  %v4860 = vadd.f32 %v4820, %v776
  %v4861 = vadd.f32 %v4821, %v776
  %v4862 = vadd.f32 %v4822, %v776
  %v4863 = vadd.f32 %v4823, %v776
  %v4864 = vadd.f32 %v4824, %v776
  %v4865 = vadd.f32 %v4825, %v776
  %v4866 = vadd.f32 %v4826, %v776
  %v4867 = vadd.f32 %v4827, %v776
  %v4868 = vadd.f32 %v4828, %v776
  %v4869 = vadd.f32 %v4829, %v776
  %v4870 = vadd.f32 %v4830, %v776
  %v4871 = vadd.f32 %v4831, %v776
  %s4872 = scalar_lea.vmem [#allocation2], 1600
  %4873 = vst [vmem:[%s4872] sm:$0xff] %v4832
  %4874 = vst [vmem:[%s4872 + $0x8] sm:$0xff] %v4833
  %4875 = vst [vmem:[%s4872 + $0x10] sm:$0xff] %v4834
  %4876 = vst [vmem:[%s4872 + $0x18] sm:$0xff] %v4835
  %4877 = vst [vmem:[%s4872 + $0x20] sm:$0xff] %v4836
  %4878 = vst [vmem:[%s4872 + $0x28] sm:$0xff] %v4837
  %4879 = vst [vmem:[%s4872 + $0x30] sm:$0xff] %v4838
  %4880 = vst [vmem:[%s4872 + $0x38] sm:$0xff] %v4839
  %4881 = vst [vmem:[%s4872 + $0x40] sm:$0xff] %v4840
  %4882 = vst [vmem:[%s4872 + $0x48] sm:$0xff] %v4841
  %4883 = vst [vmem:[%s4872 + $0x50] sm:$0xff] %v4842
  %4884 = vst [vmem:[%s4872 + $0x58] sm:$0xff] %v4843
  %4885 = vst [vmem:[%s4872 + $0x60] sm:$0xff] %v4844
  %4886 = vst [vmem:[%s4872 + $0x68] sm:$0xff] %v4845
  %4887 = vst [vmem:[%s4872 + $0x70] sm:$0xff] %v4846
  %4888 = vst [vmem:[%s4872 + $0x78] sm:$0xff] %v4847
  %4889 = vst [vmem:[%s4872 + $0x80] sm:$0xff] %v4848
  %4890 = vst [vmem:[%s4872 + $0x88] sm:$0xff] %v4849
  %4891 = vst [vmem:[%s4872 + $0x90] sm:$0xff] %v4850
  %4892 = vst [vmem:[%s4872 + $0x98] sm:$0xff] %v4851
  %4893 = vst [vmem:[%s4872 + $0xa0] sm:$0xff] %v4852
  %4894 = vst [vmem:[%s4872 + $0xa8] sm:$0xff] %v4853
  %4895 = vst [vmem:[%s4872 + $0xb0] sm:$0xff] %v4854
  %4896 = vst [vmem:[%s4872 + $0xb8] sm:$0xff] %v4855
  %4897 = vst [vmem:[%s4872 + $0xc0] sm:$0xff] %v4856
  %4898 = vst [vmem:[%s4872 + $0xc8] sm:$0xff] %v4857
  %4899 = vst [vmem:[%s4872 + $0xd0] sm:$0xff] %v4858
  %4900 = vst [vmem:[%s4872 + $0xd8] sm:$0xff] %v4859
  %4901 = vst [vmem:[%s4872 + $0xe0] sm:$0xff] %v4860
  %4902 = vst [vmem:[%s4872 + $0xe8] sm:$0xff] %v4861
  %4903 = vst [vmem:[%s4872 + $0xf0] sm:$0xff] %v4862
  %4904 = vst [vmem:[%s4872 + $0xf8] sm:$0xff] %v4863
  %4905 = vst [vmem:[%s4872 + $0x100] sm:$0xff] %v4864
  %4906 = vst [vmem:[%s4872 + $0x108] sm:$0xff] %v4865
  %4907 = vst [vmem:[%s4872 + $0x110] sm:$0xff] %v4866
  %4908 = vst [vmem:[%s4872 + $0x118] sm:$0xff] %v4867
  %4909 = vst [vmem:[%s4872 + $0x120] sm:$0xff] %v4868
  %4910 = vst [vmem:[%s4872 + $0x128] sm:$0xff] %v4869
  %4911 = vst [vmem:[%s4872 + $0x130] sm:$0xff] %v4870
  %4912 = vst [vmem:[%s4872 + $0x138] sm:$0xff] %v4871
  %v4913 = vld [vmem:[%s0 + $0xf0] sm:$0xff]
  %v4914 = vld [vmem:[%s0 + $0xf8] sm:$0xff]
  %v4915 = vld [vmem:[%s0 + $0x100] sm:$0xff]
  %v4916 = vld [vmem:[%s0 + $0x108] sm:$0xff]
  %v4917 = vld [vmem:[%s0 + $0x110] sm:$0xff]
  %v4918 = vld [vmem:[%s1 + $0xf0] sm:$0xff]
  %v4919 = vld [vmem:[%s1 + $0xf8] sm:$0xff]
  %v4920 = vld [vmem:[%s1 + $0x100] sm:$0xff]
  %v4921 = vld [vmem:[%s1 + $0x108] sm:$0xff]
  %v4922 = vld [vmem:[%s1 + $0x110] sm:$0xff]
  %v4923 = vld [vmem:[%s49 + $0xf0] sm:$0xff]
  %v4924 = vld [vmem:[%s49 + $0xf8] sm:$0xff]
  %v4925 = vld [vmem:[%s49 + $0x100] sm:$0xff]
  %v4926 = vld [vmem:[%s49 + $0x108] sm:$0xff]
  %v4927 = vld [vmem:[%s49 + $0x110] sm:$0xff]
  %v4928 = vmax.f32 %v4913, %v4923
  %v4929 = vmax.f32 %v4914, %v4924
  %v4930 = vmax.f32 %v4915, %v4925
  %v4931 = vmax.f32 %v4916, %v4926
  %v4932 = vmax.f32 %v4917, %v4927
  %v4933 = vld [vmem:[%s60 + $0xf0] sm:$0xff]
  %v4934 = vld [vmem:[%s60 + $0xf8] sm:$0xff]
  %v4935 = vld [vmem:[%s60 + $0x100] sm:$0xff]
  %v4936 = vld [vmem:[%s60 + $0x108] sm:$0xff]
  %v4937 = vld [vmem:[%s60 + $0x110] sm:$0xff]
  %v4938 = vmax.f32 %v4918, %v4933
  %v4939 = vmax.f32 %v4919, %v4934
  %v4940 = vmax.f32 %v4920, %v4935
  %v4941 = vmax.f32 %v4921, %v4936
  %v4942 = vmax.f32 %v4922, %v4937
  %v4943 = vld [vmem:[%s71 + $0xf0] sm:$0xff]
  %v4944 = vld [vmem:[%s71 + $0xf8] sm:$0xff]
  %v4945 = vld [vmem:[%s71 + $0x100] sm:$0xff]
  %v4946 = vld [vmem:[%s71 + $0x108] sm:$0xff]
  %v4947 = vld [vmem:[%s71 + $0x110] sm:$0xff]
  %v4948 = vmax.f32 %v4928, %v4943
  %v4949 = vmax.f32 %v4929, %v4944
  %v4950 = vmax.f32 %v4930, %v4945
  %v4951 = vmax.f32 %v4931, %v4946
  %v4952 = vmax.f32 %v4932, %v4947
  %v4953 = vld [vmem:[%s82 + $0xf0] sm:$0xff]
  %v4954 = vld [vmem:[%s82 + $0xf8] sm:$0xff]
  %v4955 = vld [vmem:[%s82 + $0x100] sm:$0xff]
  %v4956 = vld [vmem:[%s82 + $0x108] sm:$0xff]
  %v4957 = vld [vmem:[%s82 + $0x110] sm:$0xff]
  %v4958 = vmax.f32 %v4938, %v4953
  %v4959 = vmax.f32 %v4939, %v4954
  %v4960 = vmax.f32 %v4940, %v4955
  %v4961 = vmax.f32 %v4941, %v4956
  %v4962 = vmax.f32 %v4942, %v4957
  %v4963 = vperm.slane %v4948, 0
  %v4964 = vlaneseq
  %v4965 = vshrl.u32 %v4964, 7
  %4967 = vset.pattern.permute.xlu0 %v4965
  %4968 = vperm.xlu0 %4967, %v4963
  %v4969 = vpop.permute.xlu0 %4968
  %v4970 = vperm.slane %v4948, 1
  %v4971 = vlaneseq
  %v4972 = vshrl.u32 %v4971, 7
  %4974 = vset.pattern.permute.xlu0 %v4972
  %4975 = vperm.xlu0 %4974, %v4970
  %v4976 = vpop.permute.xlu0 %4975
  %v4977 = vperm.slane %v4948, 2
  %v4978 = vlaneseq
  %v4979 = vshrl.u32 %v4978, 7
  %4981 = vset.pattern.permute.xlu0 %v4979
  %4982 = vperm.xlu0 %4981, %v4977
  %v4983 = vpop.permute.xlu0 %4982
  %v4984 = vperm.slane %v4948, 3
  %v4985 = vlaneseq
  %v4986 = vshrl.u32 %v4985, 7
  %4988 = vset.pattern.permute.xlu0 %v4986
  %4989 = vperm.xlu0 %4988, %v4984
  %v4990 = vpop.permute.xlu0 %4989
  %v4991 = vperm.slane %v4948, 4
  %v4992 = vlaneseq
  %v4993 = vshrl.u32 %v4992, 7
  %4995 = vset.pattern.permute.xlu0 %v4993
  %4996 = vperm.xlu0 %4995, %v4991
  %v4997 = vpop.permute.xlu0 %4996
  %v4998 = vperm.slane %v4948, 5
  %v4999 = vlaneseq
  %v5000 = vshrl.u32 %v4999, 7
  %5002 = vset.pattern.permute.xlu0 %v5000
  %5003 = vperm.xlu0 %5002, %v4998
  %v5004 = vpop.permute.xlu0 %5003
  %v5005 = vperm.slane %v4948, 6
  %v5006 = vlaneseq
  %v5007 = vshrl.u32 %v5006, 7
  %5009 = vset.pattern.permute.xlu0 %v5007
  %5010 = vperm.xlu0 %5009, %v5005
  %v5011 = vpop.permute.xlu0 %5010
  %v5012 = vperm.slane %v4948, 7
  %v5013 = vlaneseq
  %v5014 = vshrl.u32 %v5013, 7
  %5016 = vset.pattern.permute.xlu0 %v5014
  %5017 = vperm.xlu0 %5016, %v5012
  %v5018 = vpop.permute.xlu0 %5017
  %v5019 = vperm.slane %v4949, 0
  %v5020 = vlaneseq
  %v5021 = vshrl.u32 %v5020, 7
  %5023 = vset.pattern.permute.xlu0 %v5021
  %5024 = vperm.xlu0 %5023, %v5019
  %v5025 = vpop.permute.xlu0 %5024
  %v5026 = vperm.slane %v4949, 1
  %v5027 = vlaneseq
  %v5028 = vshrl.u32 %v5027, 7
  %5030 = vset.pattern.permute.xlu0 %v5028
  %5031 = vperm.xlu0 %5030, %v5026
  %v5032 = vpop.permute.xlu0 %5031
  %v5033 = vperm.slane %v4949, 2
  %v5034 = vlaneseq
  %v5035 = vshrl.u32 %v5034, 7
  %5037 = vset.pattern.permute.xlu0 %v5035
  %5038 = vperm.xlu0 %5037, %v5033
  %v5039 = vpop.permute.xlu0 %5038
  %v5040 = vperm.slane %v4949, 3
  %v5041 = vlaneseq
  %v5042 = vshrl.u32 %v5041, 7
  %5044 = vset.pattern.permute.xlu0 %v5042
  %5045 = vperm.xlu0 %5044, %v5040
  %v5046 = vpop.permute.xlu0 %5045
  %v5047 = vperm.slane %v4949, 4
  %v5048 = vlaneseq
  %v5049 = vshrl.u32 %v5048, 7
  %5051 = vset.pattern.permute.xlu0 %v5049
  %5052 = vperm.xlu0 %5051, %v5047
  %v5053 = vpop.permute.xlu0 %5052
  %v5054 = vperm.slane %v4949, 5
  %v5055 = vlaneseq
  %v5056 = vshrl.u32 %v5055, 7
  %5058 = vset.pattern.permute.xlu0 %v5056
  %5059 = vperm.xlu0 %5058, %v5054
  %v5060 = vpop.permute.xlu0 %5059
  %v5061 = vperm.slane %v4949, 6
  %v5062 = vlaneseq
  %v5063 = vshrl.u32 %v5062, 7
  %5065 = vset.pattern.permute.xlu0 %v5063
  %5066 = vperm.xlu0 %5065, %v5061
  %v5067 = vpop.permute.xlu0 %5066
  %v5068 = vperm.slane %v4949, 7
  %v5069 = vlaneseq
  %v5070 = vshrl.u32 %v5069, 7
  %5072 = vset.pattern.permute.xlu0 %v5070
  %5073 = vperm.xlu0 %5072, %v5068
  %v5074 = vpop.permute.xlu0 %5073
  %v5075 = vperm.slane %v4950, 0
  %v5076 = vlaneseq
  %v5077 = vshrl.u32 %v5076, 7
  %5079 = vset.pattern.permute.xlu0 %v5077
  %5080 = vperm.xlu0 %5079, %v5075
  %v5081 = vpop.permute.xlu0 %5080
  %v5082 = vperm.slane %v4950, 1
  %v5083 = vlaneseq
  %v5084 = vshrl.u32 %v5083, 7
  %5086 = vset.pattern.permute.xlu0 %v5084
  %5087 = vperm.xlu0 %5086, %v5082
  %v5088 = vpop.permute.xlu0 %5087
  %v5089 = vperm.slane %v4950, 2
  %v5090 = vlaneseq
  %v5091 = vshrl.u32 %v5090, 7
  %5093 = vset.pattern.permute.xlu0 %v5091
  %5094 = vperm.xlu0 %5093, %v5089
  %v5095 = vpop.permute.xlu0 %5094
  %v5096 = vperm.slane %v4950, 3
  %v5097 = vlaneseq
  %v5098 = vshrl.u32 %v5097, 7
  %5100 = vset.pattern.permute.xlu0 %v5098
  %5101 = vperm.xlu0 %5100, %v5096
  %v5102 = vpop.permute.xlu0 %5101
  %v5103 = vperm.slane %v4950, 4
  %v5104 = vlaneseq
  %v5105 = vshrl.u32 %v5104, 7
  %5107 = vset.pattern.permute.xlu0 %v5105
  %5108 = vperm.xlu0 %5107, %v5103
  %v5109 = vpop.permute.xlu0 %5108
  %v5110 = vperm.slane %v4950, 5
  %v5111 = vlaneseq
  %v5112 = vshrl.u32 %v5111, 7
  %5114 = vset.pattern.permute.xlu0 %v5112
  %5115 = vperm.xlu0 %5114, %v5110
  %v5116 = vpop.permute.xlu0 %5115
  %v5117 = vperm.slane %v4950, 6
  %v5118 = vlaneseq
  %v5119 = vshrl.u32 %v5118, 7
  %5121 = vset.pattern.permute.xlu0 %v5119
  %5122 = vperm.xlu0 %5121, %v5117
  %v5123 = vpop.permute.xlu0 %5122
  %v5124 = vperm.slane %v4950, 7
  %v5125 = vlaneseq
  %v5126 = vshrl.u32 %v5125, 7
  %5128 = vset.pattern.permute.xlu0 %v5126
  %5129 = vperm.xlu0 %5128, %v5124
  %v5130 = vpop.permute.xlu0 %5129
  %v5131 = vperm.slane %v4951, 0
  %v5132 = vlaneseq
  %v5133 = vshrl.u32 %v5132, 7
  %5135 = vset.pattern.permute.xlu0 %v5133
  %5136 = vperm.xlu0 %5135, %v5131
  %v5137 = vpop.permute.xlu0 %5136
  %v5138 = vperm.slane %v4951, 1
  %v5139 = vlaneseq
  %v5140 = vshrl.u32 %v5139, 7
  %5142 = vset.pattern.permute.xlu0 %v5140
  %5143 = vperm.xlu0 %5142, %v5138
  %v5144 = vpop.permute.xlu0 %5143
  %v5145 = vperm.slane %v4951, 2
  %v5146 = vlaneseq
  %v5147 = vshrl.u32 %v5146, 7
  %5149 = vset.pattern.permute.xlu0 %v5147
  %5150 = vperm.xlu0 %5149, %v5145
  %v5151 = vpop.permute.xlu0 %5150
  %v5152 = vperm.slane %v4951, 3
  %v5153 = vlaneseq
  %v5154 = vshrl.u32 %v5153, 7
  %5156 = vset.pattern.permute.xlu0 %v5154
  %5157 = vperm.xlu0 %5156, %v5152
  %v5158 = vpop.permute.xlu0 %5157
  %v5159 = vperm.slane %v4951, 4
  %v5160 = vlaneseq
  %v5161 = vshrl.u32 %v5160, 7
  %5163 = vset.pattern.permute.xlu0 %v5161
  %5164 = vperm.xlu0 %5163, %v5159
  %v5165 = vpop.permute.xlu0 %5164
  %v5166 = vperm.slane %v4951, 5
  %v5167 = vlaneseq
  %v5168 = vshrl.u32 %v5167, 7
  %5170 = vset.pattern.permute.xlu0 %v5168
  %5171 = vperm.xlu0 %5170, %v5166
  %v5172 = vpop.permute.xlu0 %5171
  %v5173 = vperm.slane %v4951, 6
  %v5174 = vlaneseq
  %v5175 = vshrl.u32 %v5174, 7
  %5177 = vset.pattern.permute.xlu0 %v5175
  %5178 = vperm.xlu0 %5177, %v5173
  %v5179 = vpop.permute.xlu0 %5178
  %v5180 = vperm.slane %v4951, 7
  %v5181 = vlaneseq
  %v5182 = vshrl.u32 %v5181, 7
  %5184 = vset.pattern.permute.xlu0 %v5182
  %5185 = vperm.xlu0 %5184, %v5180
  %v5186 = vpop.permute.xlu0 %5185
  %v5187 = vperm.slane %v4952, 0
  %v5188 = vlaneseq
  %v5189 = vshrl.u32 %v5188, 7
  %5191 = vset.pattern.permute.xlu0 %v5189
  %5192 = vperm.xlu0 %5191, %v5187
  %v5193 = vpop.permute.xlu0 %5192
  %v5194 = vperm.slane %v4952, 1
  %v5195 = vlaneseq
  %v5196 = vshrl.u32 %v5195, 7
  %5198 = vset.pattern.permute.xlu0 %v5196
  %5199 = vperm.xlu0 %5198, %v5194
  %v5200 = vpop.permute.xlu0 %5199
  %v5201 = vperm.slane %v4952, 2
  %v5202 = vlaneseq
  %v5203 = vshrl.u32 %v5202, 7
  %5205 = vset.pattern.permute.xlu0 %v5203
  %5206 = vperm.xlu0 %5205, %v5201
  %v5207 = vpop.permute.xlu0 %5206
  %v5208 = vperm.slane %v4952, 3
  %v5209 = vlaneseq
  %v5210 = vshrl.u32 %v5209, 7
  %5212 = vset.pattern.permute.xlu0 %v5210
  %5213 = vperm.xlu0 %5212, %v5208
  %v5214 = vpop.permute.xlu0 %5213
  %v5215 = vperm.slane %v4952, 4
  %v5216 = vlaneseq
  %v5217 = vshrl.u32 %v5216, 7
  %5219 = vset.pattern.permute.xlu0 %v5217
  %5220 = vperm.xlu0 %5219, %v5215
  %v5221 = vpop.permute.xlu0 %5220
  %v5222 = vperm.slane %v4952, 5
  %v5223 = vlaneseq
  %v5224 = vshrl.u32 %v5223, 7
  %5226 = vset.pattern.permute.xlu0 %v5224
  %5227 = vperm.xlu0 %5226, %v5222
  %v5228 = vpop.permute.xlu0 %5227
  %v5229 = vperm.slane %v4952, 6
  %v5230 = vlaneseq
  %v5231 = vshrl.u32 %v5230, 7
  %5233 = vset.pattern.permute.xlu0 %v5231
  %5234 = vperm.xlu0 %5233, %v5229
  %v5235 = vpop.permute.xlu0 %5234
  %v5236 = vperm.slane %v4952, 7
  %v5237 = vlaneseq
  %v5238 = vshrl.u32 %v5237, 7
  %5240 = vset.pattern.permute.xlu0 %v5238
  %5241 = vperm.xlu0 %5240, %v5236
  %v5242 = vpop.permute.xlu0 %5241
  %v5243 = vmul.f32 %v4969, %v373
  %v5244 = vmul.f32 %v4976, %v373
  %v5245 = vmul.f32 %v4983, %v373
  %v5246 = vmul.f32 %v4990, %v373
  %v5247 = vmul.f32 %v4997, %v373
  %v5248 = vmul.f32 %v5004, %v373
  %v5249 = vmul.f32 %v5011, %v373
  %v5250 = vmul.f32 %v5018, %v373
  %v5251 = vmul.f32 %v5025, %v373
  %v5252 = vmul.f32 %v5032, %v373
  %v5253 = vmul.f32 %v5039, %v373
  %v5254 = vmul.f32 %v5046, %v373
  %v5255 = vmul.f32 %v5053, %v373
  %v5256 = vmul.f32 %v5060, %v373
  %v5257 = vmul.f32 %v5067, %v373
  %v5258 = vmul.f32 %v5074, %v373
  %v5259 = vmul.f32 %v5081, %v373
  %v5260 = vmul.f32 %v5088, %v373
  %v5261 = vmul.f32 %v5095, %v373
  %v5262 = vmul.f32 %v5102, %v373
  %v5263 = vmul.f32 %v5109, %v373
  %v5264 = vmul.f32 %v5116, %v373
  %v5265 = vmul.f32 %v5123, %v373
  %v5266 = vmul.f32 %v5130, %v373
  %v5267 = vmul.f32 %v5137, %v373
  %v5268 = vmul.f32 %v5144, %v373
  %v5269 = vmul.f32 %v5151, %v373
  %v5270 = vmul.f32 %v5158, %v373
  %v5271 = vmul.f32 %v5165, %v373
  %v5272 = vmul.f32 %v5172, %v373
  %v5273 = vmul.f32 %v5179, %v373
  %v5274 = vmul.f32 %v5186, %v373
  %v5275 = vmul.f32 %v5193, %v373
  %v5276 = vmul.f32 %v5200, %v373
  %v5277 = vmul.f32 %v5207, %v373
  %v5278 = vmul.f32 %v5214, %v373
  %v5279 = vmul.f32 %v5221, %v373
  %v5280 = vmul.f32 %v5228, %v373
  %v5281 = vmul.f32 %v5235, %v373
  %v5282 = vmul.f32 %v5242, %v373
  %v5283 = vperm.slane %v4958, 0
  %v5284 = vlaneseq
  %v5285 = vshrl.u32 %v5284, 7
  %5287 = vset.pattern.permute.xlu0 %v5285
  %5288 = vperm.xlu0 %5287, %v5283
  %v5289 = vpop.permute.xlu0 %5288
  %v5290 = vperm.slane %v4958, 1
  %v5291 = vlaneseq
  %v5292 = vshrl.u32 %v5291, 7
  %5294 = vset.pattern.permute.xlu0 %v5292
  %5295 = vperm.xlu0 %5294, %v5290
  %v5296 = vpop.permute.xlu0 %5295
  %v5297 = vperm.slane %v4958, 2
  %v5298 = vlaneseq
  %v5299 = vshrl.u32 %v5298, 7
  %5301 = vset.pattern.permute.xlu0 %v5299
  %5302 = vperm.xlu0 %5301, %v5297
  %v5303 = vpop.permute.xlu0 %5302
  %v5304 = vperm.slane %v4958, 3
  %v5305 = vlaneseq
  %v5306 = vshrl.u32 %v5305, 7
  %5308 = vset.pattern.permute.xlu0 %v5306
  %5309 = vperm.xlu0 %5308, %v5304
  %v5310 = vpop.permute.xlu0 %5309
  %v5311 = vperm.slane %v4958, 4
  %v5312 = vlaneseq
  %v5313 = vshrl.u32 %v5312, 7
  %5315 = vset.pattern.permute.xlu0 %v5313
  %5316 = vperm.xlu0 %5315, %v5311
  %v5317 = vpop.permute.xlu0 %5316
  %v5318 = vperm.slane %v4958, 5
  %v5319 = vlaneseq
  %v5320 = vshrl.u32 %v5319, 7
  %5322 = vset.pattern.permute.xlu0 %v5320
  %5323 = vperm.xlu0 %5322, %v5318
  %v5324 = vpop.permute.xlu0 %5323
  %v5325 = vperm.slane %v4958, 6
  %v5326 = vlaneseq
  %v5327 = vshrl.u32 %v5326, 7
  %5329 = vset.pattern.permute.xlu0 %v5327
  %5330 = vperm.xlu0 %5329, %v5325
  %v5331 = vpop.permute.xlu0 %5330
  %v5332 = vperm.slane %v4958, 7
  %v5333 = vlaneseq
  %v5334 = vshrl.u32 %v5333, 7
  %5336 = vset.pattern.permute.xlu0 %v5334
  %5337 = vperm.xlu0 %5336, %v5332
  %v5338 = vpop.permute.xlu0 %5337
  %v5339 = vperm.slane %v4959, 0
  %v5340 = vlaneseq
  %v5341 = vshrl.u32 %v5340, 7
  %5343 = vset.pattern.permute.xlu0 %v5341
  %5344 = vperm.xlu0 %5343, %v5339
  %v5345 = vpop.permute.xlu0 %5344
  %v5346 = vperm.slane %v4959, 1
  %v5347 = vlaneseq
  %v5348 = vshrl.u32 %v5347, 7
  %5350 = vset.pattern.permute.xlu0 %v5348
  %5351 = vperm.xlu0 %5350, %v5346
  %v5352 = vpop.permute.xlu0 %5351
  %v5353 = vperm.slane %v4959, 2
  %v5354 = vlaneseq
  %v5355 = vshrl.u32 %v5354, 7
  %5357 = vset.pattern.permute.xlu0 %v5355
  %5358 = vperm.xlu0 %5357, %v5353
  %v5359 = vpop.permute.xlu0 %5358
  %v5360 = vperm.slane %v4959, 3
  %v5361 = vlaneseq
  %v5362 = vshrl.u32 %v5361, 7
  %5364 = vset.pattern.permute.xlu0 %v5362
  %5365 = vperm.xlu0 %5364, %v5360
  %v5366 = vpop.permute.xlu0 %5365
  %v5367 = vperm.slane %v4959, 4
  %v5368 = vlaneseq
  %v5369 = vshrl.u32 %v5368, 7
  %5371 = vset.pattern.permute.xlu0 %v5369
  %5372 = vperm.xlu0 %5371, %v5367
  %v5373 = vpop.permute.xlu0 %5372
  %v5374 = vperm.slane %v4959, 5
  %v5375 = vlaneseq
  %v5376 = vshrl.u32 %v5375, 7
  %5378 = vset.pattern.permute.xlu0 %v5376
  %5379 = vperm.xlu0 %5378, %v5374
  %v5380 = vpop.permute.xlu0 %5379
  %v5381 = vperm.slane %v4959, 6
  %v5382 = vlaneseq
  %v5383 = vshrl.u32 %v5382, 7
  %5385 = vset.pattern.permute.xlu0 %v5383
  %5386 = vperm.xlu0 %5385, %v5381
  %v5387 = vpop.permute.xlu0 %5386
  %v5388 = vperm.slane %v4959, 7
  %v5389 = vlaneseq
  %v5390 = vshrl.u32 %v5389, 7
  %5392 = vset.pattern.permute.xlu0 %v5390
  %5393 = vperm.xlu0 %5392, %v5388
  %v5394 = vpop.permute.xlu0 %5393
  %v5395 = vperm.slane %v4960, 0
  %v5396 = vlaneseq
  %v5397 = vshrl.u32 %v5396, 7
  %5399 = vset.pattern.permute.xlu0 %v5397
  %5400 = vperm.xlu0 %5399, %v5395
  %v5401 = vpop.permute.xlu0 %5400
  %v5402 = vperm.slane %v4960, 1
  %v5403 = vlaneseq
  %v5404 = vshrl.u32 %v5403, 7
  %5406 = vset.pattern.permute.xlu0 %v5404
  %5407 = vperm.xlu0 %5406, %v5402
  %v5408 = vpop.permute.xlu0 %5407
  %v5409 = vperm.slane %v4960, 2
  %v5410 = vlaneseq
  %v5411 = vshrl.u32 %v5410, 7
  %5413 = vset.pattern.permute.xlu0 %v5411
  %5414 = vperm.xlu0 %5413, %v5409
  %v5415 = vpop.permute.xlu0 %5414
  %v5416 = vperm.slane %v4960, 3
  %v5417 = vlaneseq
  %v5418 = vshrl.u32 %v5417, 7
  %5420 = vset.pattern.permute.xlu0 %v5418
  %5421 = vperm.xlu0 %5420, %v5416
  %v5422 = vpop.permute.xlu0 %5421
  %v5423 = vperm.slane %v4960, 4
  %v5424 = vlaneseq
  %v5425 = vshrl.u32 %v5424, 7
  %5427 = vset.pattern.permute.xlu0 %v5425
  %5428 = vperm.xlu0 %5427, %v5423
  %v5429 = vpop.permute.xlu0 %5428
  %v5430 = vperm.slane %v4960, 5
  %v5431 = vlaneseq
  %v5432 = vshrl.u32 %v5431, 7
  %5434 = vset.pattern.permute.xlu0 %v5432
  %5435 = vperm.xlu0 %5434, %v5430
  %v5436 = vpop.permute.xlu0 %5435
  %v5437 = vperm.slane %v4960, 6
  %v5438 = vlaneseq
  %v5439 = vshrl.u32 %v5438, 7
  %5441 = vset.pattern.permute.xlu0 %v5439
  %5442 = vperm.xlu0 %5441, %v5437
  %v5443 = vpop.permute.xlu0 %5442
  %v5444 = vperm.slane %v4960, 7
  %v5445 = vlaneseq
  %v5446 = vshrl.u32 %v5445, 7
  %5448 = vset.pattern.permute.xlu0 %v5446
  %5449 = vperm.xlu0 %5448, %v5444
  %v5450 = vpop.permute.xlu0 %5449
  %v5451 = vperm.slane %v4961, 0
  %v5452 = vlaneseq
  %v5453 = vshrl.u32 %v5452, 7
  %5455 = vset.pattern.permute.xlu0 %v5453
  %5456 = vperm.xlu0 %5455, %v5451
  %v5457 = vpop.permute.xlu0 %5456
  %v5458 = vperm.slane %v4961, 1
  %v5459 = vlaneseq
  %v5460 = vshrl.u32 %v5459, 7
  %5462 = vset.pattern.permute.xlu0 %v5460
  %5463 = vperm.xlu0 %5462, %v5458
  %v5464 = vpop.permute.xlu0 %5463
  %v5465 = vperm.slane %v4961, 2
  %v5466 = vlaneseq
  %v5467 = vshrl.u32 %v5466, 7
  %5469 = vset.pattern.permute.xlu0 %v5467
  %5470 = vperm.xlu0 %5469, %v5465
  %v5471 = vpop.permute.xlu0 %5470
  %v5472 = vperm.slane %v4961, 3
  %v5473 = vlaneseq
  %v5474 = vshrl.u32 %v5473, 7
  %5476 = vset.pattern.permute.xlu0 %v5474
  %5477 = vperm.xlu0 %5476, %v5472
  %v5478 = vpop.permute.xlu0 %5477
  %v5479 = vperm.slane %v4961, 4
  %v5480 = vlaneseq
  %v5481 = vshrl.u32 %v5480, 7
  %5483 = vset.pattern.permute.xlu0 %v5481
  %5484 = vperm.xlu0 %5483, %v5479
  %v5485 = vpop.permute.xlu0 %5484
  %v5486 = vperm.slane %v4961, 5
  %v5487 = vlaneseq
  %v5488 = vshrl.u32 %v5487, 7
  %5490 = vset.pattern.permute.xlu0 %v5488
  %5491 = vperm.xlu0 %5490, %v5486
  %v5492 = vpop.permute.xlu0 %5491
  %v5493 = vperm.slane %v4961, 6
  %v5494 = vlaneseq
  %v5495 = vshrl.u32 %v5494, 7
  %5497 = vset.pattern.permute.xlu0 %v5495
  %5498 = vperm.xlu0 %5497, %v5493
  %v5499 = vpop.permute.xlu0 %5498
  %v5500 = vperm.slane %v4961, 7
  %v5501 = vlaneseq
  %v5502 = vshrl.u32 %v5501, 7
  %5504 = vset.pattern.permute.xlu0 %v5502
  %5505 = vperm.xlu0 %5504, %v5500
  %v5506 = vpop.permute.xlu0 %5505
  %v5507 = vperm.slane %v4962, 0
  %v5508 = vlaneseq
  %v5509 = vshrl.u32 %v5508, 7
  %5511 = vset.pattern.permute.xlu0 %v5509
  %5512 = vperm.xlu0 %5511, %v5507
  %v5513 = vpop.permute.xlu0 %5512
  %v5514 = vperm.slane %v4962, 1
  %v5515 = vlaneseq
  %v5516 = vshrl.u32 %v5515, 7
  %5518 = vset.pattern.permute.xlu0 %v5516
  %5519 = vperm.xlu0 %5518, %v5514
  %v5520 = vpop.permute.xlu0 %5519
  %v5521 = vperm.slane %v4962, 2
  %v5522 = vlaneseq
  %v5523 = vshrl.u32 %v5522, 7
  %5525 = vset.pattern.permute.xlu0 %v5523
  %5526 = vperm.xlu0 %5525, %v5521
  %v5527 = vpop.permute.xlu0 %5526
  %v5528 = vperm.slane %v4962, 3
  %v5529 = vlaneseq
  %v5530 = vshrl.u32 %v5529, 7
  %5532 = vset.pattern.permute.xlu0 %v5530
  %5533 = vperm.xlu0 %5532, %v5528
  %v5534 = vpop.permute.xlu0 %5533
  %v5535 = vperm.slane %v4962, 4
  %v5536 = vlaneseq
  %v5537 = vshrl.u32 %v5536, 7
  %5539 = vset.pattern.permute.xlu0 %v5537
  %5540 = vperm.xlu0 %5539, %v5535
  %v5541 = vpop.permute.xlu0 %5540
  %v5542 = vperm.slane %v4962, 5
  %v5543 = vlaneseq
  %v5544 = vshrl.u32 %v5543, 7
  %5546 = vset.pattern.permute.xlu0 %v5544
  %5547 = vperm.xlu0 %5546, %v5542
  %v5548 = vpop.permute.xlu0 %5547
  %v5549 = vperm.slane %v4962, 6
  %v5550 = vlaneseq
  %v5551 = vshrl.u32 %v5550, 7
  %5553 = vset.pattern.permute.xlu0 %v5551
  %5554 = vperm.xlu0 %5553, %v5549
  %v5555 = vpop.permute.xlu0 %5554
  %v5556 = vperm.slane %v4962, 7
  %v5557 = vlaneseq
  %v5558 = vshrl.u32 %v5557, 7
  %5560 = vset.pattern.permute.xlu0 %v5558
  %5561 = vperm.xlu0 %5560, %v5556
  %v5562 = vpop.permute.xlu0 %5561
  %v5563 = vmul.f32 %v5289, %v694
  %v5564 = vmul.f32 %v5296, %v694
  %v5565 = vmul.f32 %v5303, %v694
  %v5566 = vmul.f32 %v5310, %v694
  %v5567 = vmul.f32 %v5317, %v694
  %v5568 = vmul.f32 %v5324, %v694
  %v5569 = vmul.f32 %v5331, %v694
  %v5570 = vmul.f32 %v5338, %v694
  %v5571 = vmul.f32 %v5345, %v694
  %v5572 = vmul.f32 %v5352, %v694
  %v5573 = vmul.f32 %v5359, %v694
  %v5574 = vmul.f32 %v5366, %v694
  %v5575 = vmul.f32 %v5373, %v694
  %v5576 = vmul.f32 %v5380, %v694
  %v5577 = vmul.f32 %v5387, %v694
  %v5578 = vmul.f32 %v5394, %v694
  %v5579 = vmul.f32 %v5401, %v694
  %v5580 = vmul.f32 %v5408, %v694
  %v5581 = vmul.f32 %v5415, %v694
  %v5582 = vmul.f32 %v5422, %v694
  %v5583 = vmul.f32 %v5429, %v694
  %v5584 = vmul.f32 %v5436, %v694
  %v5585 = vmul.f32 %v5443, %v694
  %v5586 = vmul.f32 %v5450, %v694
  %v5587 = vmul.f32 %v5457, %v694
  %v5588 = vmul.f32 %v5464, %v694
  %v5589 = vmul.f32 %v5471, %v694
  %v5590 = vmul.f32 %v5478, %v694
  %v5591 = vmul.f32 %v5485, %v694
  %v5592 = vmul.f32 %v5492, %v694
  %v5593 = vmul.f32 %v5499, %v694
  %v5594 = vmul.f32 %v5506, %v694
  %v5595 = vmul.f32 %v5513, %v694
  %v5596 = vmul.f32 %v5520, %v694
  %v5597 = vmul.f32 %v5527, %v694
  %v5598 = vmul.f32 %v5534, %v694
  %v5599 = vmul.f32 %v5541, %v694
  %v5600 = vmul.f32 %v5548, %v694
  %v5601 = vmul.f32 %v5555, %v694
  %v5602 = vmul.f32 %v5562, %v694
  %v5603 = vadd.f32 %v5243, %v5563
  %v5604 = vadd.f32 %v5244, %v5564
  %v5605 = vadd.f32 %v5245, %v5565
  %v5606 = vadd.f32 %v5246, %v5566
  %v5607 = vadd.f32 %v5247, %v5567
  %v5608 = vadd.f32 %v5248, %v5568
  %v5609 = vadd.f32 %v5249, %v5569
  %v5610 = vadd.f32 %v5250, %v5570
  %v5611 = vadd.f32 %v5251, %v5571
  %v5612 = vadd.f32 %v5252, %v5572
  %v5613 = vadd.f32 %v5253, %v5573
  %v5614 = vadd.f32 %v5254, %v5574
  %v5615 = vadd.f32 %v5255, %v5575
  %v5616 = vadd.f32 %v5256, %v5576
  %v5617 = vadd.f32 %v5257, %v5577
  %v5618 = vadd.f32 %v5258, %v5578
  %v5619 = vadd.f32 %v5259, %v5579
  %v5620 = vadd.f32 %v5260, %v5580
  %v5621 = vadd.f32 %v5261, %v5581
  %v5622 = vadd.f32 %v5262, %v5582
  %v5623 = vadd.f32 %v5263, %v5583
  %v5624 = vadd.f32 %v5264, %v5584
  %v5625 = vadd.f32 %v5265, %v5585
  %v5626 = vadd.f32 %v5266, %v5586
  %v5627 = vadd.f32 %v5267, %v5587
  %v5628 = vadd.f32 %v5268, %v5588
  %v5629 = vadd.f32 %v5269, %v5589
  %v5630 = vadd.f32 %v5270, %v5590
  %v5631 = vadd.f32 %v5271, %v5591
  %v5632 = vadd.f32 %v5272, %v5592
  %v5633 = vadd.f32 %v5273, %v5593
  %v5634 = vadd.f32 %v5274, %v5594
  %v5635 = vadd.f32 %v5275, %v5595
  %v5636 = vadd.f32 %v5276, %v5596
  %v5637 = vadd.f32 %v5277, %v5597
  %v5638 = vadd.f32 %v5278, %v5598
  %v5639 = vadd.f32 %v5279, %v5599
  %v5640 = vadd.f32 %v5280, %v5600
  %v5641 = vadd.f32 %v5281, %v5601
  %v5642 = vadd.f32 %v5282, %v5602
  %v5643 = vadd.f32 %v5603, %v776
  %v5644 = vadd.f32 %v5604, %v776
  %v5645 = vadd.f32 %v5605, %v776
  %v5646 = vadd.f32 %v5606, %v776
  %v5647 = vadd.f32 %v5607, %v776
  %v5648 = vadd.f32 %v5608, %v776
  %v5649 = vadd.f32 %v5609, %v776
  %v5650 = vadd.f32 %v5610, %v776
  %v5651 = vadd.f32 %v5611, %v776
  %v5652 = vadd.f32 %v5612, %v776
  %v5653 = vadd.f32 %v5613, %v776
  %v5654 = vadd.f32 %v5614, %v776
  %v5655 = vadd.f32 %v5615, %v776
  %v5656 = vadd.f32 %v5616, %v776
  %v5657 = vadd.f32 %v5617, %v776
  %v5658 = vadd.f32 %v5618, %v776
  %v5659 = vadd.f32 %v5619, %v776
  %v5660 = vadd.f32 %v5620, %v776
  %v5661 = vadd.f32 %v5621, %v776
  %v5662 = vadd.f32 %v5622, %v776
  %v5663 = vadd.f32 %v5623, %v776
  %v5664 = vadd.f32 %v5624, %v776
  %v5665 = vadd.f32 %v5625, %v776
  %v5666 = vadd.f32 %v5626, %v776
  %v5667 = vadd.f32 %v5627, %v776
  %v5668 = vadd.f32 %v5628, %v776
  %v5669 = vadd.f32 %v5629, %v776
  %v5670 = vadd.f32 %v5630, %v776
  %v5671 = vadd.f32 %v5631, %v776
  %v5672 = vadd.f32 %v5632, %v776
  %v5673 = vadd.f32 %v5633, %v776
  %v5674 = vadd.f32 %v5634, %v776
  %v5675 = vadd.f32 %v5635, %v776
  %v5676 = vadd.f32 %v5636, %v776
  %v5677 = vadd.f32 %v5637, %v776
  %v5678 = vadd.f32 %v5638, %v776
  %v5679 = vadd.f32 %v5639, %v776
  %v5680 = vadd.f32 %v5640, %v776
  %v5681 = vadd.f32 %v5641, %v776
  %v5682 = vadd.f32 %v5642, %v776
  %s5683 = scalar_lea.vmem [#allocation2], 1920
  %5684 = vst [vmem:[%s5683] sm:$0xff] %v5643
  %5685 = vst [vmem:[%s5683 + $0x8] sm:$0xff] %v5644
  %5686 = vst [vmem:[%s5683 + $0x10] sm:$0xff] %v5645
  %5687 = vst [vmem:[%s5683 + $0x18] sm:$0xff] %v5646
  %5688 = vst [vmem:[%s5683 + $0x20] sm:$0xff] %v5647
  %5689 = vst [vmem:[%s5683 + $0x28] sm:$0xff] %v5648
  %5690 = vst [vmem:[%s5683 + $0x30] sm:$0xff] %v5649
  %5691 = vst [vmem:[%s5683 + $0x38] sm:$0xff] %v5650
  %5692 = vst [vmem:[%s5683 + $0x40] sm:$0xff] %v5651
  %5693 = vst [vmem:[%s5683 + $0x48] sm:$0xff] %v5652
  %5694 = vst [vmem:[%s5683 + $0x50] sm:$0xff] %v5653
  %5695 = vst [vmem:[%s5683 + $0x58] sm:$0xff] %v5654
  %5696 = vst [vmem:[%s5683 + $0x60] sm:$0xff] %v5655
  %5697 = vst [vmem:[%s5683 + $0x68] sm:$0xff] %v5656
  %5698 = vst [vmem:[%s5683 + $0x70] sm:$0xff] %v5657
  %5699 = vst [vmem:[%s5683 + $0x78] sm:$0xff] %v5658
  %5700 = vst [vmem:[%s5683 + $0x80] sm:$0xff] %v5659
  %5701 = vst [vmem:[%s5683 + $0x88] sm:$0xff] %v5660
  %5702 = vst [vmem:[%s5683 + $0x90] sm:$0xff] %v5661
  %5703 = vst [vmem:[%s5683 + $0x98] sm:$0xff] %v5662
  %5704 = vst [vmem:[%s5683 + $0xa0] sm:$0xff] %v5663
  %5705 = vst [vmem:[%s5683 + $0xa8] sm:$0xff] %v5664
  %5706 = vst [vmem:[%s5683 + $0xb0] sm:$0xff] %v5665
  %5707 = vst [vmem:[%s5683 + $0xb8] sm:$0xff] %v5666
  %5708 = vst [vmem:[%s5683 + $0xc0] sm:$0xff] %v5667
  %5709 = vst [vmem:[%s5683 + $0xc8] sm:$0xff] %v5668
  %5710 = vst [vmem:[%s5683 + $0xd0] sm:$0xff] %v5669
  %5711 = vst [vmem:[%s5683 + $0xd8] sm:$0xff] %v5670
  %5712 = vst [vmem:[%s5683 + $0xe0] sm:$0xff] %v5671
  %5713 = vst [vmem:[%s5683 + $0xe8] sm:$0xff] %v5672
  %5714 = vst [vmem:[%s5683 + $0xf0] sm:$0xff] %v5673
  %5715 = vst [vmem:[%s5683 + $0xf8] sm:$0xff] %v5674
  %5716 = vst [vmem:[%s5683 + $0x100] sm:$0xff] %v5675
  %5717 = vst [vmem:[%s5683 + $0x108] sm:$0xff] %v5676
  %5718 = vst [vmem:[%s5683 + $0x110] sm:$0xff] %v5677
  %5719 = vst [vmem:[%s5683 + $0x118] sm:$0xff] %v5678
  %5720 = vst [vmem:[%s5683 + $0x120] sm:$0xff] %v5679
  %5721 = vst [vmem:[%s5683 + $0x128] sm:$0xff] %v5680
  %5722 = vst [vmem:[%s5683 + $0x130] sm:$0xff] %v5681
  %5723 = vst [vmem:[%s5683 + $0x138] sm:$0xff] %v5682
  %v5724 = vld [vmem:[%s0 + $0x118] sm:$0xff]
  %v5725 = vld [vmem:[%s0 + $0x120] sm:$0xff]
  %v5726 = vld [vmem:[%s0 + $0x128] sm:$0xff]
  %v5727 = vld [vmem:[%s0 + $0x130] sm:$0xff]
  %v5728 = vld [vmem:[%s0 + $0x138] sm:$0xff]
  %v5729 = vld [vmem:[%s1 + $0x118] sm:$0xff]
  %v5730 = vld [vmem:[%s1 + $0x120] sm:$0xff]
  %v5731 = vld [vmem:[%s1 + $0x128] sm:$0xff]
  %v5732 = vld [vmem:[%s1 + $0x130] sm:$0xff]
  %v5733 = vld [vmem:[%s1 + $0x138] sm:$0xff]
  %v5734 = vld [vmem:[%s49 + $0x118] sm:$0xff]
  %v5735 = vld [vmem:[%s49 + $0x120] sm:$0xff]
  %v5736 = vld [vmem:[%s49 + $0x128] sm:$0xff]
  %v5737 = vld [vmem:[%s49 + $0x130] sm:$0xff]
  %v5738 = vld [vmem:[%s49 + $0x138] sm:$0xff]
  %v5739 = vmax.f32 %v5724, %v5734
  %v5740 = vmax.f32 %v5725, %v5735
  %v5741 = vmax.f32 %v5726, %v5736
  %v5742 = vmax.f32 %v5727, %v5737
  %v5743 = vmax.f32 %v5728, %v5738
  %v5744 = vld [vmem:[%s60 + $0x118] sm:$0xff]
  %v5745 = vld [vmem:[%s60 + $0x120] sm:$0xff]
  %v5746 = vld [vmem:[%s60 + $0x128] sm:$0xff]
  %v5747 = vld [vmem:[%s60 + $0x130] sm:$0xff]
  %v5748 = vld [vmem:[%s60 + $0x138] sm:$0xff]
  %v5749 = vmax.f32 %v5729, %v5744
  %v5750 = vmax.f32 %v5730, %v5745
  %v5751 = vmax.f32 %v5731, %v5746
  %v5752 = vmax.f32 %v5732, %v5747
  %v5753 = vmax.f32 %v5733, %v5748
  %v5754 = vld [vmem:[%s71 + $0x118] sm:$0xff]
  %v5755 = vld [vmem:[%s71 + $0x120] sm:$0xff]
  %v5756 = vld [vmem:[%s71 + $0x128] sm:$0xff]
  %v5757 = vld [vmem:[%s71 + $0x130] sm:$0xff]
  %v5758 = vld [vmem:[%s71 + $0x138] sm:$0xff]
  %v5759 = vmax.f32 %v5739, %v5754
  %v5760 = vmax.f32 %v5740, %v5755
  %v5761 = vmax.f32 %v5741, %v5756
  %v5762 = vmax.f32 %v5742, %v5757
  %v5763 = vmax.f32 %v5743, %v5758
  %v5764 = vld [vmem:[%s82 + $0x118] sm:$0xff]
  %v5765 = vld [vmem:[%s82 + $0x120] sm:$0xff]
  %v5766 = vld [vmem:[%s82 + $0x128] sm:$0xff]
  %v5767 = vld [vmem:[%s82 + $0x130] sm:$0xff]
  %v5768 = vld [vmem:[%s82 + $0x138] sm:$0xff]
  %v5769 = vmax.f32 %v5749, %v5764
  %v5770 = vmax.f32 %v5750, %v5765
  %v5771 = vmax.f32 %v5751, %v5766
  %v5772 = vmax.f32 %v5752, %v5767
  %v5773 = vmax.f32 %v5753, %v5768
  %v5774 = vperm.slane %v5759, 0
  %v5775 = vlaneseq
  %v5776 = vshrl.u32 %v5775, 7
  %5778 = vset.pattern.permute.xlu0 %v5776
  %5779 = vperm.xlu0 %5778, %v5774
  %v5780 = vpop.permute.xlu0 %5779
  %v5781 = vperm.slane %v5759, 1
  %v5782 = vlaneseq
  %v5783 = vshrl.u32 %v5782, 7
  %5785 = vset.pattern.permute.xlu0 %v5783
  %5786 = vperm.xlu0 %5785, %v5781
  %v5787 = vpop.permute.xlu0 %5786
  %v5788 = vperm.slane %v5759, 2
  %v5789 = vlaneseq
  %v5790 = vshrl.u32 %v5789, 7
  %5792 = vset.pattern.permute.xlu0 %v5790
  %5793 = vperm.xlu0 %5792, %v5788
  %v5794 = vpop.permute.xlu0 %5793
  %v5795 = vperm.slane %v5759, 3
  %v5796 = vlaneseq
  %v5797 = vshrl.u32 %v5796, 7
  %5799 = vset.pattern.permute.xlu0 %v5797
  %5800 = vperm.xlu0 %5799, %v5795
  %v5801 = vpop.permute.xlu0 %5800
  %v5802 = vperm.slane %v5759, 4
  %v5803 = vlaneseq
  %v5804 = vshrl.u32 %v5803, 7
  %5806 = vset.pattern.permute.xlu0 %v5804
  %5807 = vperm.xlu0 %5806, %v5802
  %v5808 = vpop.permute.xlu0 %5807
  %v5809 = vperm.slane %v5759, 5
  %v5810 = vlaneseq
  %v5811 = vshrl.u32 %v5810, 7
  %5813 = vset.pattern.permute.xlu0 %v5811
  %5814 = vperm.xlu0 %5813, %v5809
  %v5815 = vpop.permute.xlu0 %5814
  %v5816 = vperm.slane %v5759, 6
  %v5817 = vlaneseq
  %v5818 = vshrl.u32 %v5817, 7
  %5820 = vset.pattern.permute.xlu0 %v5818
  %5821 = vperm.xlu0 %5820, %v5816
  %v5822 = vpop.permute.xlu0 %5821
  %v5823 = vperm.slane %v5759, 7
  %v5824 = vlaneseq
  %v5825 = vshrl.u32 %v5824, 7
  %5827 = vset.pattern.permute.xlu0 %v5825
  %5828 = vperm.xlu0 %5827, %v5823
  %v5829 = vpop.permute.xlu0 %5828
  %v5830 = vperm.slane %v5760, 0
  %v5831 = vlaneseq
  %v5832 = vshrl.u32 %v5831, 7
  %5834 = vset.pattern.permute.xlu0 %v5832
  %5835 = vperm.xlu0 %5834, %v5830
  %v5836 = vpop.permute.xlu0 %5835
  %v5837 = vperm.slane %v5760, 1
  %v5838 = vlaneseq
  %v5839 = vshrl.u32 %v5838, 7
  %5841 = vset.pattern.permute.xlu0 %v5839
  %5842 = vperm.xlu0 %5841, %v5837
  %v5843 = vpop.permute.xlu0 %5842
  %v5844 = vperm.slane %v5760, 2
  %v5845 = vlaneseq
  %v5846 = vshrl.u32 %v5845, 7
  %5848 = vset.pattern.permute.xlu0 %v5846
  %5849 = vperm.xlu0 %5848, %v5844
  %v5850 = vpop.permute.xlu0 %5849
  %v5851 = vperm.slane %v5760, 3
  %v5852 = vlaneseq
  %v5853 = vshrl.u32 %v5852, 7
  %5855 = vset.pattern.permute.xlu0 %v5853
  %5856 = vperm.xlu0 %5855, %v5851
  %v5857 = vpop.permute.xlu0 %5856
  %v5858 = vperm.slane %v5760, 4
  %v5859 = vlaneseq
  %v5860 = vshrl.u32 %v5859, 7
  %5862 = vset.pattern.permute.xlu0 %v5860
  %5863 = vperm.xlu0 %5862, %v5858
  %v5864 = vpop.permute.xlu0 %5863
  %v5865 = vperm.slane %v5760, 5
  %v5866 = vlaneseq
  %v5867 = vshrl.u32 %v5866, 7
  %5869 = vset.pattern.permute.xlu0 %v5867
  %5870 = vperm.xlu0 %5869, %v5865
  %v5871 = vpop.permute.xlu0 %5870
  %v5872 = vperm.slane %v5760, 6
  %v5873 = vlaneseq
  %v5874 = vshrl.u32 %v5873, 7
  %5876 = vset.pattern.permute.xlu0 %v5874
  %5877 = vperm.xlu0 %5876, %v5872
  %v5878 = vpop.permute.xlu0 %5877
  %v5879 = vperm.slane %v5760, 7
  %v5880 = vlaneseq
  %v5881 = vshrl.u32 %v5880, 7
  %5883 = vset.pattern.permute.xlu0 %v5881
  %5884 = vperm.xlu0 %5883, %v5879
  %v5885 = vpop.permute.xlu0 %5884
  %v5886 = vperm.slane %v5761, 0
  %v5887 = vlaneseq
  %v5888 = vshrl.u32 %v5887, 7
  %5890 = vset.pattern.permute.xlu0 %v5888
  %5891 = vperm.xlu0 %5890, %v5886
  %v5892 = vpop.permute.xlu0 %5891
  %v5893 = vperm.slane %v5761, 1
  %v5894 = vlaneseq
  %v5895 = vshrl.u32 %v5894, 7
  %5897 = vset.pattern.permute.xlu0 %v5895
  %5898 = vperm.xlu0 %5897, %v5893
  %v5899 = vpop.permute.xlu0 %5898
  %v5900 = vperm.slane %v5761, 2
  %v5901 = vlaneseq
  %v5902 = vshrl.u32 %v5901, 7
  %5904 = vset.pattern.permute.xlu0 %v5902
  %5905 = vperm.xlu0 %5904, %v5900
  %v5906 = vpop.permute.xlu0 %5905
  %v5907 = vperm.slane %v5761, 3
  %v5908 = vlaneseq
  %v5909 = vshrl.u32 %v5908, 7
  %5911 = vset.pattern.permute.xlu0 %v5909
  %5912 = vperm.xlu0 %5911, %v5907
  %v5913 = vpop.permute.xlu0 %5912
  %v5914 = vperm.slane %v5761, 4
  %v5915 = vlaneseq
  %v5916 = vshrl.u32 %v5915, 7
  %5918 = vset.pattern.permute.xlu0 %v5916
  %5919 = vperm.xlu0 %5918, %v5914
  %v5920 = vpop.permute.xlu0 %5919
  %v5921 = vperm.slane %v5761, 5
  %v5922 = vlaneseq
  %v5923 = vshrl.u32 %v5922, 7
  %5925 = vset.pattern.permute.xlu0 %v5923
  %5926 = vperm.xlu0 %5925, %v5921
  %v5927 = vpop.permute.xlu0 %5926
  %v5928 = vperm.slane %v5761, 6
  %v5929 = vlaneseq
  %v5930 = vshrl.u32 %v5929, 7
  %5932 = vset.pattern.permute.xlu0 %v5930
  %5933 = vperm.xlu0 %5932, %v5928
  %v5934 = vpop.permute.xlu0 %5933
  %v5935 = vperm.slane %v5761, 7
  %v5936 = vlaneseq
  %v5937 = vshrl.u32 %v5936, 7
  %5939 = vset.pattern.permute.xlu0 %v5937
  %5940 = vperm.xlu0 %5939, %v5935
  %v5941 = vpop.permute.xlu0 %5940
  %v5942 = vperm.slane %v5762, 0
  %v5943 = vlaneseq
  %v5944 = vshrl.u32 %v5943, 7
  %5946 = vset.pattern.permute.xlu0 %v5944
  %5947 = vperm.xlu0 %5946, %v5942
  %v5948 = vpop.permute.xlu0 %5947
  %v5949 = vperm.slane %v5762, 1
  %v5950 = vlaneseq
  %v5951 = vshrl.u32 %v5950, 7
  %5953 = vset.pattern.permute.xlu0 %v5951
  %5954 = vperm.xlu0 %5953, %v5949
  %v5955 = vpop.permute.xlu0 %5954
  %v5956 = vperm.slane %v5762, 2
  %v5957 = vlaneseq
  %v5958 = vshrl.u32 %v5957, 7
  %5960 = vset.pattern.permute.xlu0 %v5958
  %5961 = vperm.xlu0 %5960, %v5956
  %v5962 = vpop.permute.xlu0 %5961
  %v5963 = vperm.slane %v5762, 3
  %v5964 = vlaneseq
  %v5965 = vshrl.u32 %v5964, 7
  %5967 = vset.pattern.permute.xlu0 %v5965
  %5968 = vperm.xlu0 %5967, %v5963
  %v5969 = vpop.permute.xlu0 %5968
  %v5970 = vperm.slane %v5762, 4
  %v5971 = vlaneseq
  %v5972 = vshrl.u32 %v5971, 7
  %5974 = vset.pattern.permute.xlu0 %v5972
  %5975 = vperm.xlu0 %5974, %v5970
  %v5976 = vpop.permute.xlu0 %5975
  %v5977 = vperm.slane %v5762, 5
  %v5978 = vlaneseq
  %v5979 = vshrl.u32 %v5978, 7
  %5981 = vset.pattern.permute.xlu0 %v5979
  %5982 = vperm.xlu0 %5981, %v5977
  %v5983 = vpop.permute.xlu0 %5982
  %v5984 = vperm.slane %v5762, 6
  %v5985 = vlaneseq
  %v5986 = vshrl.u32 %v5985, 7
  %5988 = vset.pattern.permute.xlu0 %v5986
  %5989 = vperm.xlu0 %5988, %v5984
  %v5990 = vpop.permute.xlu0 %5989
  %v5991 = vperm.slane %v5762, 7
  %v5992 = vlaneseq
  %v5993 = vshrl.u32 %v5992, 7
  %5995 = vset.pattern.permute.xlu0 %v5993
  %5996 = vperm.xlu0 %5995, %v5991
  %v5997 = vpop.permute.xlu0 %5996
  %v5998 = vperm.slane %v5763, 0
  %v5999 = vlaneseq
  %v6000 = vshrl.u32 %v5999, 7
  %6002 = vset.pattern.permute.xlu0 %v6000
  %6003 = vperm.xlu0 %6002, %v5998
  %v6004 = vpop.permute.xlu0 %6003
  %v6005 = vperm.slane %v5763, 1
  %v6006 = vlaneseq
  %v6007 = vshrl.u32 %v6006, 7
  %6009 = vset.pattern.permute.xlu0 %v6007
  %6010 = vperm.xlu0 %6009, %v6005
  %v6011 = vpop.permute.xlu0 %6010
  %v6012 = vperm.slane %v5763, 2
  %v6013 = vlaneseq
  %v6014 = vshrl.u32 %v6013, 7
  %6016 = vset.pattern.permute.xlu0 %v6014
  %6017 = vperm.xlu0 %6016, %v6012
  %v6018 = vpop.permute.xlu0 %6017
  %v6019 = vperm.slane %v5763, 3
  %v6020 = vlaneseq
  %v6021 = vshrl.u32 %v6020, 7
  %6023 = vset.pattern.permute.xlu0 %v6021
  %6024 = vperm.xlu0 %6023, %v6019
  %v6025 = vpop.permute.xlu0 %6024
  %v6026 = vperm.slane %v5763, 4
  %v6027 = vlaneseq
  %v6028 = vshrl.u32 %v6027, 7
  %6030 = vset.pattern.permute.xlu0 %v6028
  %6031 = vperm.xlu0 %6030, %v6026
  %v6032 = vpop.permute.xlu0 %6031
  %v6033 = vperm.slane %v5763, 5
  %v6034 = vlaneseq
  %v6035 = vshrl.u32 %v6034, 7
  %6037 = vset.pattern.permute.xlu0 %v6035
  %6038 = vperm.xlu0 %6037, %v6033
  %v6039 = vpop.permute.xlu0 %6038
  %v6040 = vperm.slane %v5763, 6
  %v6041 = vlaneseq
  %v6042 = vshrl.u32 %v6041, 7
  %6044 = vset.pattern.permute.xlu0 %v6042
  %6045 = vperm.xlu0 %6044, %v6040
  %v6046 = vpop.permute.xlu0 %6045
  %v6047 = vperm.slane %v5763, 7
  %v6048 = vlaneseq
  %v6049 = vshrl.u32 %v6048, 7
  %6051 = vset.pattern.permute.xlu0 %v6049
  %6052 = vperm.xlu0 %6051, %v6047
  %v6053 = vpop.permute.xlu0 %6052
  %v6054 = vmul.f32 %v5780, %v373
  %v6055 = vmul.f32 %v5787, %v373
  %v6056 = vmul.f32 %v5794, %v373
  %v6057 = vmul.f32 %v5801, %v373
  %v6058 = vmul.f32 %v5808, %v373
  %v6059 = vmul.f32 %v5815, %v373
  %v6060 = vmul.f32 %v5822, %v373
  %v6061 = vmul.f32 %v5829, %v373
  %v6062 = vmul.f32 %v5836, %v373
  %v6063 = vmul.f32 %v5843, %v373
  %v6064 = vmul.f32 %v5850, %v373
  %v6065 = vmul.f32 %v5857, %v373
  %v6066 = vmul.f32 %v5864, %v373
  %v6067 = vmul.f32 %v5871, %v373
  %v6068 = vmul.f32 %v5878, %v373
  %v6069 = vmul.f32 %v5885, %v373
  %v6070 = vmul.f32 %v5892, %v373
  %v6071 = vmul.f32 %v5899, %v373
  %v6072 = vmul.f32 %v5906, %v373
  %v6073 = vmul.f32 %v5913, %v373
  %v6074 = vmul.f32 %v5920, %v373
  %v6075 = vmul.f32 %v5927, %v373
  %v6076 = vmul.f32 %v5934, %v373
  %v6077 = vmul.f32 %v5941, %v373
  %v6078 = vmul.f32 %v5948, %v373
  %v6079 = vmul.f32 %v5955, %v373
  %v6080 = vmul.f32 %v5962, %v373
  %v6081 = vmul.f32 %v5969, %v373
  %v6082 = vmul.f32 %v5976, %v373
  %v6083 = vmul.f32 %v5983, %v373
  %v6084 = vmul.f32 %v5990, %v373
  %v6085 = vmul.f32 %v5997, %v373
  %v6086 = vmul.f32 %v6004, %v373
  %v6087 = vmul.f32 %v6011, %v373
  %v6088 = vmul.f32 %v6018, %v373
  %v6089 = vmul.f32 %v6025, %v373
  %v6090 = vmul.f32 %v6032, %v373
  %v6091 = vmul.f32 %v6039, %v373
  %v6092 = vmul.f32 %v6046, %v373
  %v6093 = vmul.f32 %v6053, %v373
  %v6094 = vperm.slane %v5769, 0
  %v6095 = vlaneseq
  %v6096 = vshrl.u32 %v6095, 7
  %6098 = vset.pattern.permute.xlu0 %v6096
  %6099 = vperm.xlu0 %6098, %v6094
  %v6100 = vpop.permute.xlu0 %6099
  %v6101 = vperm.slane %v5769, 1
  %v6102 = vlaneseq
  %v6103 = vshrl.u32 %v6102, 7
  %6105 = vset.pattern.permute.xlu0 %v6103
  %6106 = vperm.xlu0 %6105, %v6101
  %v6107 = vpop.permute.xlu0 %6106
  %v6108 = vperm.slane %v5769, 2
  %v6109 = vlaneseq
  %v6110 = vshrl.u32 %v6109, 7
  %6112 = vset.pattern.permute.xlu0 %v6110
  %6113 = vperm.xlu0 %6112, %v6108
  %v6114 = vpop.permute.xlu0 %6113
  %v6115 = vperm.slane %v5769, 3
  %v6116 = vlaneseq
  %v6117 = vshrl.u32 %v6116, 7
  %6119 = vset.pattern.permute.xlu0 %v6117
  %6120 = vperm.xlu0 %6119, %v6115
  %v6121 = vpop.permute.xlu0 %6120
  %v6122 = vperm.slane %v5769, 4
  %v6123 = vlaneseq
  %v6124 = vshrl.u32 %v6123, 7
  %6126 = vset.pattern.permute.xlu0 %v6124
  %6127 = vperm.xlu0 %6126, %v6122
  %v6128 = vpop.permute.xlu0 %6127
  %v6129 = vperm.slane %v5769, 5
  %v6130 = vlaneseq
  %v6131 = vshrl.u32 %v6130, 7
  %6133 = vset.pattern.permute.xlu0 %v6131
  %6134 = vperm.xlu0 %6133, %v6129
  %v6135 = vpop.permute.xlu0 %6134
  %v6136 = vperm.slane %v5769, 6
  %v6137 = vlaneseq
  %v6138 = vshrl.u32 %v6137, 7
  %6140 = vset.pattern.permute.xlu0 %v6138
  %6141 = vperm.xlu0 %6140, %v6136
  %v6142 = vpop.permute.xlu0 %6141
  %v6143 = vperm.slane %v5769, 7
  %v6144 = vlaneseq
  %v6145 = vshrl.u32 %v6144, 7
  %6147 = vset.pattern.permute.xlu0 %v6145
  %6148 = vperm.xlu0 %6147, %v6143
  %v6149 = vpop.permute.xlu0 %6148
  %v6150 = vperm.slane %v5770, 0
  %v6151 = vlaneseq
  %v6152 = vshrl.u32 %v6151, 7
  %6154 = vset.pattern.permute.xlu0 %v6152
  %6155 = vperm.xlu0 %6154, %v6150
  %v6156 = vpop.permute.xlu0 %6155
  %v6157 = vperm.slane %v5770, 1
  %v6158 = vlaneseq
  %v6159 = vshrl.u32 %v6158, 7
  %6161 = vset.pattern.permute.xlu0 %v6159
  %6162 = vperm.xlu0 %6161, %v6157
  %v6163 = vpop.permute.xlu0 %6162
  %v6164 = vperm.slane %v5770, 2
  %v6165 = vlaneseq
  %v6166 = vshrl.u32 %v6165, 7
  %6168 = vset.pattern.permute.xlu0 %v6166
  %6169 = vperm.xlu0 %6168, %v6164
  %v6170 = vpop.permute.xlu0 %6169
  %v6171 = vperm.slane %v5770, 3
  %v6172 = vlaneseq
  %v6173 = vshrl.u32 %v6172, 7
  %6175 = vset.pattern.permute.xlu0 %v6173
  %6176 = vperm.xlu0 %6175, %v6171
  %v6177 = vpop.permute.xlu0 %6176
  %v6178 = vperm.slane %v5770, 4
  %v6179 = vlaneseq
  %v6180 = vshrl.u32 %v6179, 7
  %6182 = vset.pattern.permute.xlu0 %v6180
  %6183 = vperm.xlu0 %6182, %v6178
  %v6184 = vpop.permute.xlu0 %6183
  %v6185 = vperm.slane %v5770, 5
  %v6186 = vlaneseq
  %v6187 = vshrl.u32 %v6186, 7
  %6189 = vset.pattern.permute.xlu0 %v6187
  %6190 = vperm.xlu0 %6189, %v6185
  %v6191 = vpop.permute.xlu0 %6190
  %v6192 = vperm.slane %v5770, 6
  %v6193 = vlaneseq
  %v6194 = vshrl.u32 %v6193, 7
  %6196 = vset.pattern.permute.xlu0 %v6194
  %6197 = vperm.xlu0 %6196, %v6192
  %v6198 = vpop.permute.xlu0 %6197
  %v6199 = vperm.slane %v5770, 7
  %v6200 = vlaneseq
  %v6201 = vshrl.u32 %v6200, 7
  %6203 = vset.pattern.permute.xlu0 %v6201
  %6204 = vperm.xlu0 %6203, %v6199
  %v6205 = vpop.permute.xlu0 %6204
  %v6206 = vperm.slane %v5771, 0
  %v6207 = vlaneseq
  %v6208 = vshrl.u32 %v6207, 7
  %6210 = vset.pattern.permute.xlu0 %v6208
  %6211 = vperm.xlu0 %6210, %v6206
  %v6212 = vpop.permute.xlu0 %6211
  %v6213 = vperm.slane %v5771, 1
  %v6214 = vlaneseq
  %v6215 = vshrl.u32 %v6214, 7
  %6217 = vset.pattern.permute.xlu0 %v6215
  %6218 = vperm.xlu0 %6217, %v6213
  %v6219 = vpop.permute.xlu0 %6218
  %v6220 = vperm.slane %v5771, 2
  %v6221 = vlaneseq
  %v6222 = vshrl.u32 %v6221, 7
  %6224 = vset.pattern.permute.xlu0 %v6222
  %6225 = vperm.xlu0 %6224, %v6220
  %v6226 = vpop.permute.xlu0 %6225
  %v6227 = vperm.slane %v5771, 3
  %v6228 = vlaneseq
  %v6229 = vshrl.u32 %v6228, 7
  %6231 = vset.pattern.permute.xlu0 %v6229
  %6232 = vperm.xlu0 %6231, %v6227
  %v6233 = vpop.permute.xlu0 %6232
  %v6234 = vperm.slane %v5771, 4
  %v6235 = vlaneseq
  %v6236 = vshrl.u32 %v6235, 7
  %6238 = vset.pattern.permute.xlu0 %v6236
  %6239 = vperm.xlu0 %6238, %v6234
  %v6240 = vpop.permute.xlu0 %6239
  %v6241 = vperm.slane %v5771, 5
  %v6242 = vlaneseq
  %v6243 = vshrl.u32 %v6242, 7
  %6245 = vset.pattern.permute.xlu0 %v6243
  %6246 = vperm.xlu0 %6245, %v6241
  %v6247 = vpop.permute.xlu0 %6246
  %v6248 = vperm.slane %v5771, 6
  %v6249 = vlaneseq
  %v6250 = vshrl.u32 %v6249, 7
  %6252 = vset.pattern.permute.xlu0 %v6250
  %6253 = vperm.xlu0 %6252, %v6248
  %v6254 = vpop.permute.xlu0 %6253
  %v6255 = vperm.slane %v5771, 7
  %v6256 = vlaneseq
  %v6257 = vshrl.u32 %v6256, 7
  %6259 = vset.pattern.permute.xlu0 %v6257
  %6260 = vperm.xlu0 %6259, %v6255
  %v6261 = vpop.permute.xlu0 %6260
  %v6262 = vperm.slane %v5772, 0
  %v6263 = vlaneseq
  %v6264 = vshrl.u32 %v6263, 7
  %6266 = vset.pattern.permute.xlu0 %v6264
  %6267 = vperm.xlu0 %6266, %v6262
  %v6268 = vpop.permute.xlu0 %6267
  %v6269 = vperm.slane %v5772, 1
  %v6270 = vlaneseq
  %v6271 = vshrl.u32 %v6270, 7
  %6273 = vset.pattern.permute.xlu0 %v6271
  %6274 = vperm.xlu0 %6273, %v6269
  %v6275 = vpop.permute.xlu0 %6274
  %v6276 = vperm.slane %v5772, 2
  %v6277 = vlaneseq
  %v6278 = vshrl.u32 %v6277, 7
  %6280 = vset.pattern.permute.xlu0 %v6278
  %6281 = vperm.xlu0 %6280, %v6276
  %v6282 = vpop.permute.xlu0 %6281
  %v6283 = vperm.slane %v5772, 3
  %v6284 = vlaneseq
  %v6285 = vshrl.u32 %v6284, 7
  %6287 = vset.pattern.permute.xlu0 %v6285
  %6288 = vperm.xlu0 %6287, %v6283
  %v6289 = vpop.permute.xlu0 %6288
  %v6290 = vperm.slane %v5772, 4
  %v6291 = vlaneseq
  %v6292 = vshrl.u32 %v6291, 7
  %6294 = vset.pattern.permute.xlu0 %v6292
  %6295 = vperm.xlu0 %6294, %v6290
  %v6296 = vpop.permute.xlu0 %6295
  %v6297 = vperm.slane %v5772, 5
  %v6298 = vlaneseq
  %v6299 = vshrl.u32 %v6298, 7
  %6301 = vset.pattern.permute.xlu0 %v6299
  %6302 = vperm.xlu0 %6301, %v6297
  %v6303 = vpop.permute.xlu0 %6302
  %v6304 = vperm.slane %v5772, 6
  %v6305 = vlaneseq
  %v6306 = vshrl.u32 %v6305, 7
  %6308 = vset.pattern.permute.xlu0 %v6306
  %6309 = vperm.xlu0 %6308, %v6304
  %v6310 = vpop.permute.xlu0 %6309
  %v6311 = vperm.slane %v5772, 7
  %v6312 = vlaneseq
  %v6313 = vshrl.u32 %v6312, 7
  %6315 = vset.pattern.permute.xlu0 %v6313
  %6316 = vperm.xlu0 %6315, %v6311
  %v6317 = vpop.permute.xlu0 %6316
  %v6318 = vperm.slane %v5773, 0
  %v6319 = vlaneseq
  %v6320 = vshrl.u32 %v6319, 7
  %6322 = vset.pattern.permute.xlu0 %v6320
  %6323 = vperm.xlu0 %6322, %v6318
  %v6324 = vpop.permute.xlu0 %6323
  %v6325 = vperm.slane %v5773, 1
  %v6326 = vlaneseq
  %v6327 = vshrl.u32 %v6326, 7
  %6329 = vset.pattern.permute.xlu0 %v6327
  %6330 = vperm.xlu0 %6329, %v6325
  %v6331 = vpop.permute.xlu0 %6330
  %v6332 = vperm.slane %v5773, 2
  %v6333 = vlaneseq
  %v6334 = vshrl.u32 %v6333, 7
  %6336 = vset.pattern.permute.xlu0 %v6334
  %6337 = vperm.xlu0 %6336, %v6332
  %v6338 = vpop.permute.xlu0 %6337
  %v6339 = vperm.slane %v5773, 3
  %v6340 = vlaneseq
  %v6341 = vshrl.u32 %v6340, 7
  %6343 = vset.pattern.permute.xlu0 %v6341
  %6344 = vperm.xlu0 %6343, %v6339
  %v6345 = vpop.permute.xlu0 %6344
  %v6346 = vperm.slane %v5773, 4
  %v6347 = vlaneseq
  %v6348 = vshrl.u32 %v6347, 7
  %6350 = vset.pattern.permute.xlu0 %v6348
  %6351 = vperm.xlu0 %6350, %v6346
  %v6352 = vpop.permute.xlu0 %6351
  %v6353 = vperm.slane %v5773, 5
  %v6354 = vlaneseq
  %v6355 = vshrl.u32 %v6354, 7
  %6357 = vset.pattern.permute.xlu0 %v6355
  %6358 = vperm.xlu0 %6357, %v6353
  %v6359 = vpop.permute.xlu0 %6358
  %v6360 = vperm.slane %v5773, 6
  %v6361 = vlaneseq
  %v6362 = vshrl.u32 %v6361, 7
  %6364 = vset.pattern.permute.xlu0 %v6362
  %6365 = vperm.xlu0 %6364, %v6360
  %v6366 = vpop.permute.xlu0 %6365
  %v6367 = vperm.slane %v5773, 7
  %v6368 = vlaneseq
  %v6369 = vshrl.u32 %v6368, 7
  %6371 = vset.pattern.permute.xlu0 %v6369
  %6372 = vperm.xlu0 %6371, %v6367
  %v6373 = vpop.permute.xlu0 %6372
  %v6374 = vmul.f32 %v6100, %v694
  %v6375 = vmul.f32 %v6107, %v694
  %v6376 = vmul.f32 %v6114, %v694
  %v6377 = vmul.f32 %v6121, %v694
  %v6378 = vmul.f32 %v6128, %v694
  %v6379 = vmul.f32 %v6135, %v694
  %v6380 = vmul.f32 %v6142, %v694
  %v6381 = vmul.f32 %v6149, %v694
  %v6382 = vmul.f32 %v6156, %v694
  %v6383 = vmul.f32 %v6163, %v694
  %v6384 = vmul.f32 %v6170, %v694
  %v6385 = vmul.f32 %v6177, %v694
  %v6386 = vmul.f32 %v6184, %v694
  %v6387 = vmul.f32 %v6191, %v694
  %v6388 = vmul.f32 %v6198, %v694
  %v6389 = vmul.f32 %v6205, %v694
  %v6390 = vmul.f32 %v6212, %v694
  %v6391 = vmul.f32 %v6219, %v694
  %v6392 = vmul.f32 %v6226, %v694
  %v6393 = vmul.f32 %v6233, %v694
  %v6394 = vmul.f32 %v6240, %v694
  %v6395 = vmul.f32 %v6247, %v694
  %v6396 = vmul.f32 %v6254, %v694
  %v6397 = vmul.f32 %v6261, %v694
  %v6398 = vmul.f32 %v6268, %v694
  %v6399 = vmul.f32 %v6275, %v694
  %v6400 = vmul.f32 %v6282, %v694
  %v6401 = vmul.f32 %v6289, %v694
  %v6402 = vmul.f32 %v6296, %v694
  %v6403 = vmul.f32 %v6303, %v694
  %v6404 = vmul.f32 %v6310, %v694
  %v6405 = vmul.f32 %v6317, %v694
  %v6406 = vmul.f32 %v6324, %v694
  %v6407 = vmul.f32 %v6331, %v694
  %v6408 = vmul.f32 %v6338, %v694
  %v6409 = vmul.f32 %v6345, %v694
  %v6410 = vmul.f32 %v6352, %v694
  %v6411 = vmul.f32 %v6359, %v694
  %v6412 = vmul.f32 %v6366, %v694
  %v6413 = vmul.f32 %v6373, %v694
  %v6414 = vadd.f32 %v6054, %v6374
  %v6415 = vadd.f32 %v6055, %v6375
  %v6416 = vadd.f32 %v6056, %v6376
  %v6417 = vadd.f32 %v6057, %v6377
  %v6418 = vadd.f32 %v6058, %v6378
  %v6419 = vadd.f32 %v6059, %v6379
  %v6420 = vadd.f32 %v6060, %v6380
  %v6421 = vadd.f32 %v6061, %v6381
  %v6422 = vadd.f32 %v6062, %v6382
  %v6423 = vadd.f32 %v6063, %v6383
  %v6424 = vadd.f32 %v6064, %v6384
  %v6425 = vadd.f32 %v6065, %v6385
  %v6426 = vadd.f32 %v6066, %v6386
  %v6427 = vadd.f32 %v6067, %v6387
  %v6428 = vadd.f32 %v6068, %v6388
  %v6429 = vadd.f32 %v6069, %v6389
  %v6430 = vadd.f32 %v6070, %v6390
  %v6431 = vadd.f32 %v6071, %v6391
  %v6432 = vadd.f32 %v6072, %v6392
  %v6433 = vadd.f32 %v6073, %v6393
  %v6434 = vadd.f32 %v6074, %v6394
  %v6435 = vadd.f32 %v6075, %v6395
  %v6436 = vadd.f32 %v6076, %v6396
  %v6437 = vadd.f32 %v6077, %v6397
  %v6438 = vadd.f32 %v6078, %v6398
  %v6439 = vadd.f32 %v6079, %v6399
  %v6440 = vadd.f32 %v6080, %v6400
  %v6441 = vadd.f32 %v6081, %v6401
  %v6442 = vadd.f32 %v6082, %v6402
  %v6443 = vadd.f32 %v6083, %v6403
  %v6444 = vadd.f32 %v6084, %v6404
  %v6445 = vadd.f32 %v6085, %v6405
  %v6446 = vadd.f32 %v6086, %v6406
  %v6447 = vadd.f32 %v6087, %v6407
  %v6448 = vadd.f32 %v6088, %v6408
  %v6449 = vadd.f32 %v6089, %v6409
  %v6450 = vadd.f32 %v6090, %v6410
  %v6451 = vadd.f32 %v6091, %v6411
  %v6452 = vadd.f32 %v6092, %v6412
  %v6453 = vadd.f32 %v6093, %v6413
  %v6454 = vadd.f32 %v6414, %v776
  %v6455 = vadd.f32 %v6415, %v776
  %v6456 = vadd.f32 %v6416, %v776
  %v6457 = vadd.f32 %v6417, %v776
  %v6458 = vadd.f32 %v6418, %v776
  %v6459 = vadd.f32 %v6419, %v776
  %v6460 = vadd.f32 %v6420, %v776
  %v6461 = vadd.f32 %v6421, %v776
  %v6462 = vadd.f32 %v6422, %v776
  %v6463 = vadd.f32 %v6423, %v776
  %v6464 = vadd.f32 %v6424, %v776
  %v6465 = vadd.f32 %v6425, %v776
  %v6466 = vadd.f32 %v6426, %v776
  %v6467 = vadd.f32 %v6427, %v776
  %v6468 = vadd.f32 %v6428, %v776
  %v6469 = vadd.f32 %v6429, %v776
  %v6470 = vadd.f32 %v6430, %v776
  %v6471 = vadd.f32 %v6431, %v776
  %v6472 = vadd.f32 %v6432, %v776
  %v6473 = vadd.f32 %v6433, %v776
  %v6474 = vadd.f32 %v6434, %v776
  %v6475 = vadd.f32 %v6435, %v776
  %v6476 = vadd.f32 %v6436, %v776
  %v6477 = vadd.f32 %v6437, %v776
  %v6478 = vadd.f32 %v6438, %v776
  %v6479 = vadd.f32 %v6439, %v776
  %v6480 = vadd.f32 %v6440, %v776
  %v6481 = vadd.f32 %v6441, %v776
  %v6482 = vadd.f32 %v6442, %v776
  %v6483 = vadd.f32 %v6443, %v776
  %v6484 = vadd.f32 %v6444, %v776
  %v6485 = vadd.f32 %v6445, %v776
  %v6486 = vadd.f32 %v6446, %v776
  %v6487 = vadd.f32 %v6447, %v776
  %v6488 = vadd.f32 %v6448, %v776
  %v6489 = vadd.f32 %v6449, %v776
  %v6490 = vadd.f32 %v6450, %v776
  %v6491 = vadd.f32 %v6451, %v776
  %v6492 = vadd.f32 %v6452, %v776
  %v6493 = vadd.f32 %v6453, %v776
  %s6494 = scalar_lea.vmem [#allocation2], 2240
  %6495 = vst [vmem:[%s6494] sm:$0xff] %v6454
  %6496 = vst [vmem:[%s6494 + $0x8] sm:$0xff] %v6455
  %6497 = vst [vmem:[%s6494 + $0x10] sm:$0xff] %v6456
  %6498 = vst [vmem:[%s6494 + $0x18] sm:$0xff] %v6457
  %6499 = vst [vmem:[%s6494 + $0x20] sm:$0xff] %v6458
  %6500 = vst [vmem:[%s6494 + $0x28] sm:$0xff] %v6459
  %6501 = vst [vmem:[%s6494 + $0x30] sm:$0xff] %v6460
  %6502 = vst [vmem:[%s6494 + $0x38] sm:$0xff] %v6461
  %6503 = vst [vmem:[%s6494 + $0x40] sm:$0xff] %v6462
  %6504 = vst [vmem:[%s6494 + $0x48] sm:$0xff] %v6463
  %6505 = vst [vmem:[%s6494 + $0x50] sm:$0xff] %v6464
  %6506 = vst [vmem:[%s6494 + $0x58] sm:$0xff] %v6465
  %6507 = vst [vmem:[%s6494 + $0x60] sm:$0xff] %v6466
  %6508 = vst [vmem:[%s6494 + $0x68] sm:$0xff] %v6467
  %6509 = vst [vmem:[%s6494 + $0x70] sm:$0xff] %v6468
  %6510 = vst [vmem:[%s6494 + $0x78] sm:$0xff] %v6469
  %6511 = vst [vmem:[%s6494 + $0x80] sm:$0xff] %v6470
  %6512 = vst [vmem:[%s6494 + $0x88] sm:$0xff] %v6471
  %6513 = vst [vmem:[%s6494 + $0x90] sm:$0xff] %v6472
  %6514 = vst [vmem:[%s6494 + $0x98] sm:$0xff] %v6473
  %6515 = vst [vmem:[%s6494 + $0xa0] sm:$0xff] %v6474
  %6516 = vst [vmem:[%s6494 + $0xa8] sm:$0xff] %v6475
  %6517 = vst [vmem:[%s6494 + $0xb0] sm:$0xff] %v6476
  %6518 = vst [vmem:[%s6494 + $0xb8] sm:$0xff] %v6477
  %6519 = vst [vmem:[%s6494 + $0xc0] sm:$0xff] %v6478
  %6520 = vst [vmem:[%s6494 + $0xc8] sm:$0xff] %v6479
  %6521 = vst [vmem:[%s6494 + $0xd0] sm:$0xff] %v6480
  %6522 = vst [vmem:[%s6494 + $0xd8] sm:$0xff] %v6481
  %6523 = vst [vmem:[%s6494 + $0xe0] sm:$0xff] %v6482
  %6524 = vst [vmem:[%s6494 + $0xe8] sm:$0xff] %v6483
  %6525 = vst [vmem:[%s6494 + $0xf0] sm:$0xff] %v6484
  %6526 = vst [vmem:[%s6494 + $0xf8] sm:$0xff] %v6485
  %6527 = vst [vmem:[%s6494 + $0x100] sm:$0xff] %v6486
  %6528 = vst [vmem:[%s6494 + $0x108] sm:$0xff] %v6487
  %6529 = vst [vmem:[%s6494 + $0x110] sm:$0xff] %v6488
  %6530 = vst [vmem:[%s6494 + $0x118] sm:$0xff] %v6489
  %6531 = vst [vmem:[%s6494 + $0x120] sm:$0xff] %v6490
  %6532 = vst [vmem:[%s6494 + $0x128] sm:$0xff] %v6491
  %6533 = vst [vmem:[%s6494 + $0x130] sm:$0xff] %v6492
  %6534 = vst [vmem:[%s6494 + $0x138] sm:$0xff] %v6493
  %v6535 = vld [vmem:[%s0 + $0x140] sm:$0xff]
  %v6536 = vld [vmem:[%s0 + $0x148] sm:$0xff]
  %v6537 = vld [vmem:[%s0 + $0x150] sm:$0xff]
  %v6538 = vld [vmem:[%s0 + $0x158] sm:$0xff]
  %v6539 = vld [vmem:[%s0 + $0x160] sm:$0xff]
  %v6540 = vld [vmem:[%s1 + $0x140] sm:$0xff]
  %v6541 = vld [vmem:[%s1 + $0x148] sm:$0xff]
  %v6542 = vld [vmem:[%s1 + $0x150] sm:$0xff]
  %v6543 = vld [vmem:[%s1 + $0x158] sm:$0xff]
  %v6544 = vld [vmem:[%s1 + $0x160] sm:$0xff]
  %v6545 = vld [vmem:[%s49 + $0x140] sm:$0xff]
  %v6546 = vld [vmem:[%s49 + $0x148] sm:$0xff]
  %v6547 = vld [vmem:[%s49 + $0x150] sm:$0xff]
  %v6548 = vld [vmem:[%s49 + $0x158] sm:$0xff]
  %v6549 = vld [vmem:[%s49 + $0x160] sm:$0xff]
  %v6550 = vmax.f32 %v6535, %v6545
  %v6551 = vmax.f32 %v6536, %v6546
  %v6552 = vmax.f32 %v6537, %v6547
  %v6553 = vmax.f32 %v6538, %v6548
  %v6554 = vmax.f32 %v6539, %v6549
  %v6555 = vld [vmem:[%s60 + $0x140] sm:$0xff]
  %v6556 = vld [vmem:[%s60 + $0x148] sm:$0xff]
  %v6557 = vld [vmem:[%s60 + $0x150] sm:$0xff]
  %v6558 = vld [vmem:[%s60 + $0x158] sm:$0xff]
  %v6559 = vld [vmem:[%s60 + $0x160] sm:$0xff]
  %v6560 = vmax.f32 %v6540, %v6555
  %v6561 = vmax.f32 %v6541, %v6556
  %v6562 = vmax.f32 %v6542, %v6557
  %v6563 = vmax.f32 %v6543, %v6558
  %v6564 = vmax.f32 %v6544, %v6559
  %v6565 = vld [vmem:[%s71 + $0x140] sm:$0xff]
  %v6566 = vld [vmem:[%s71 + $0x148] sm:$0xff]
  %v6567 = vld [vmem:[%s71 + $0x150] sm:$0xff]
  %v6568 = vld [vmem:[%s71 + $0x158] sm:$0xff]
  %v6569 = vld [vmem:[%s71 + $0x160] sm:$0xff]
  %v6570 = vmax.f32 %v6550, %v6565
  %v6571 = vmax.f32 %v6551, %v6566
  %v6572 = vmax.f32 %v6552, %v6567
  %v6573 = vmax.f32 %v6553, %v6568
  %v6574 = vmax.f32 %v6554, %v6569
  %v6575 = vld [vmem:[%s82 + $0x140] sm:$0xff]
  %v6576 = vld [vmem:[%s82 + $0x148] sm:$0xff]
  %v6577 = vld [vmem:[%s82 + $0x150] sm:$0xff]
  %v6578 = vld [vmem:[%s82 + $0x158] sm:$0xff]
  %v6579 = vld [vmem:[%s82 + $0x160] sm:$0xff]
  %v6580 = vmax.f32 %v6560, %v6575
  %v6581 = vmax.f32 %v6561, %v6576
  %v6582 = vmax.f32 %v6562, %v6577
  %v6583 = vmax.f32 %v6563, %v6578
  %v6584 = vmax.f32 %v6564, %v6579
  %v6585 = vperm.slane %v6570, 0
  %v6586 = vlaneseq
  %v6587 = vshrl.u32 %v6586, 7
  %6589 = vset.pattern.permute.xlu0 %v6587
  %6590 = vperm.xlu0 %6589, %v6585
  %v6591 = vpop.permute.xlu0 %6590
  %v6592 = vperm.slane %v6570, 1
  %v6593 = vlaneseq
  %v6594 = vshrl.u32 %v6593, 7
  %6596 = vset.pattern.permute.xlu0 %v6594
  %6597 = vperm.xlu0 %6596, %v6592
  %v6598 = vpop.permute.xlu0 %6597
  %v6599 = vperm.slane %v6570, 2
  %v6600 = vlaneseq
  %v6601 = vshrl.u32 %v6600, 7
  %6603 = vset.pattern.permute.xlu0 %v6601
  %6604 = vperm.xlu0 %6603, %v6599
  %v6605 = vpop.permute.xlu0 %6604
  %v6606 = vperm.slane %v6570, 3
  %v6607 = vlaneseq
  %v6608 = vshrl.u32 %v6607, 7
  %6610 = vset.pattern.permute.xlu0 %v6608
  %6611 = vperm.xlu0 %6610, %v6606
  %v6612 = vpop.permute.xlu0 %6611
  %v6613 = vperm.slane %v6570, 4
  %v6614 = vlaneseq
  %v6615 = vshrl.u32 %v6614, 7
  %6617 = vset.pattern.permute.xlu0 %v6615
  %6618 = vperm.xlu0 %6617, %v6613
  %v6619 = vpop.permute.xlu0 %6618
  %v6620 = vperm.slane %v6570, 5
  %v6621 = vlaneseq
  %v6622 = vshrl.u32 %v6621, 7
  %6624 = vset.pattern.permute.xlu0 %v6622
  %6625 = vperm.xlu0 %6624, %v6620
  %v6626 = vpop.permute.xlu0 %6625
  %v6627 = vperm.slane %v6570, 6
  %v6628 = vlaneseq
  %v6629 = vshrl.u32 %v6628, 7
  %6631 = vset.pattern.permute.xlu0 %v6629
  %6632 = vperm.xlu0 %6631, %v6627
  %v6633 = vpop.permute.xlu0 %6632
  %v6634 = vperm.slane %v6570, 7
  %v6635 = vlaneseq
  %v6636 = vshrl.u32 %v6635, 7
  %6638 = vset.pattern.permute.xlu0 %v6636
  %6639 = vperm.xlu0 %6638, %v6634
  %v6640 = vpop.permute.xlu0 %6639
  %v6641 = vperm.slane %v6571, 0
  %v6642 = vlaneseq
  %v6643 = vshrl.u32 %v6642, 7
  %6645 = vset.pattern.permute.xlu0 %v6643
  %6646 = vperm.xlu0 %6645, %v6641
  %v6647 = vpop.permute.xlu0 %6646
  %v6648 = vperm.slane %v6571, 1
  %v6649 = vlaneseq
  %v6650 = vshrl.u32 %v6649, 7
  %6652 = vset.pattern.permute.xlu0 %v6650
  %6653 = vperm.xlu0 %6652, %v6648
  %v6654 = vpop.permute.xlu0 %6653
  %v6655 = vperm.slane %v6571, 2
  %v6656 = vlaneseq
  %v6657 = vshrl.u32 %v6656, 7
  %6659 = vset.pattern.permute.xlu0 %v6657
  %6660 = vperm.xlu0 %6659, %v6655
  %v6661 = vpop.permute.xlu0 %6660
  %v6662 = vperm.slane %v6571, 3
  %v6663 = vlaneseq
  %v6664 = vshrl.u32 %v6663, 7
  %6666 = vset.pattern.permute.xlu0 %v6664
  %6667 = vperm.xlu0 %6666, %v6662
  %v6668 = vpop.permute.xlu0 %6667
  %v6669 = vperm.slane %v6571, 4
  %v6670 = vlaneseq
  %v6671 = vshrl.u32 %v6670, 7
  %6673 = vset.pattern.permute.xlu0 %v6671
  %6674 = vperm.xlu0 %6673, %v6669
  %v6675 = vpop.permute.xlu0 %6674
  %v6676 = vperm.slane %v6571, 5
  %v6677 = vlaneseq
  %v6678 = vshrl.u32 %v6677, 7
  %6680 = vset.pattern.permute.xlu0 %v6678
  %6681 = vperm.xlu0 %6680, %v6676
  %v6682 = vpop.permute.xlu0 %6681
  %v6683 = vperm.slane %v6571, 6
  %v6684 = vlaneseq
  %v6685 = vshrl.u32 %v6684, 7
  %6687 = vset.pattern.permute.xlu0 %v6685
  %6688 = vperm.xlu0 %6687, %v6683
  %v6689 = vpop.permute.xlu0 %6688
  %v6690 = vperm.slane %v6571, 7
  %v6691 = vlaneseq
  %v6692 = vshrl.u32 %v6691, 7
  %6694 = vset.pattern.permute.xlu0 %v6692
  %6695 = vperm.xlu0 %6694, %v6690
  %v6696 = vpop.permute.xlu0 %6695
  %v6697 = vperm.slane %v6572, 0
  %v6698 = vlaneseq
  %v6699 = vshrl.u32 %v6698, 7
  %6701 = vset.pattern.permute.xlu0 %v6699
  %6702 = vperm.xlu0 %6701, %v6697
  %v6703 = vpop.permute.xlu0 %6702
  %v6704 = vperm.slane %v6572, 1
  %v6705 = vlaneseq
  %v6706 = vshrl.u32 %v6705, 7
  %6708 = vset.pattern.permute.xlu0 %v6706
  %6709 = vperm.xlu0 %6708, %v6704
  %v6710 = vpop.permute.xlu0 %6709
  %v6711 = vperm.slane %v6572, 2
  %v6712 = vlaneseq
  %v6713 = vshrl.u32 %v6712, 7
  %6715 = vset.pattern.permute.xlu0 %v6713
  %6716 = vperm.xlu0 %6715, %v6711
  %v6717 = vpop.permute.xlu0 %6716
  %v6718 = vperm.slane %v6572, 3
  %v6719 = vlaneseq
  %v6720 = vshrl.u32 %v6719, 7
  %6722 = vset.pattern.permute.xlu0 %v6720
  %6723 = vperm.xlu0 %6722, %v6718
  %v6724 = vpop.permute.xlu0 %6723
  %v6725 = vperm.slane %v6572, 4
  %v6726 = vlaneseq
  %v6727 = vshrl.u32 %v6726, 7
  %6729 = vset.pattern.permute.xlu0 %v6727
  %6730 = vperm.xlu0 %6729, %v6725
  %v6731 = vpop.permute.xlu0 %6730
  %v6732 = vperm.slane %v6572, 5
  %v6733 = vlaneseq
  %v6734 = vshrl.u32 %v6733, 7
  %6736 = vset.pattern.permute.xlu0 %v6734
  %6737 = vperm.xlu0 %6736, %v6732
  %v6738 = vpop.permute.xlu0 %6737
  %v6739 = vperm.slane %v6572, 6
  %v6740 = vlaneseq
  %v6741 = vshrl.u32 %v6740, 7
  %6743 = vset.pattern.permute.xlu0 %v6741
  %6744 = vperm.xlu0 %6743, %v6739
  %v6745 = vpop.permute.xlu0 %6744
  %v6746 = vperm.slane %v6572, 7
  %v6747 = vlaneseq
  %v6748 = vshrl.u32 %v6747, 7
  %6750 = vset.pattern.permute.xlu0 %v6748
  %6751 = vperm.xlu0 %6750, %v6746
  %v6752 = vpop.permute.xlu0 %6751
  %v6753 = vperm.slane %v6573, 0
  %v6754 = vlaneseq
  %v6755 = vshrl.u32 %v6754, 7
  %6757 = vset.pattern.permute.xlu0 %v6755
  %6758 = vperm.xlu0 %6757, %v6753
  %v6759 = vpop.permute.xlu0 %6758
  %v6760 = vperm.slane %v6573, 1
  %v6761 = vlaneseq
  %v6762 = vshrl.u32 %v6761, 7
  %6764 = vset.pattern.permute.xlu0 %v6762
  %6765 = vperm.xlu0 %6764, %v6760
  %v6766 = vpop.permute.xlu0 %6765
  %v6767 = vperm.slane %v6573, 2
  %v6768 = vlaneseq
  %v6769 = vshrl.u32 %v6768, 7
  %6771 = vset.pattern.permute.xlu0 %v6769
  %6772 = vperm.xlu0 %6771, %v6767
  %v6773 = vpop.permute.xlu0 %6772
  %v6774 = vperm.slane %v6573, 3
  %v6775 = vlaneseq
  %v6776 = vshrl.u32 %v6775, 7
  %6778 = vset.pattern.permute.xlu0 %v6776
  %6779 = vperm.xlu0 %6778, %v6774
  %v6780 = vpop.permute.xlu0 %6779
  %v6781 = vperm.slane %v6573, 4
  %v6782 = vlaneseq
  %v6783 = vshrl.u32 %v6782, 7
  %6785 = vset.pattern.permute.xlu0 %v6783
  %6786 = vperm.xlu0 %6785, %v6781
  %v6787 = vpop.permute.xlu0 %6786
  %v6788 = vperm.slane %v6573, 5
  %v6789 = vlaneseq
  %v6790 = vshrl.u32 %v6789, 7
  %6792 = vset.pattern.permute.xlu0 %v6790
  %6793 = vperm.xlu0 %6792, %v6788
  %v6794 = vpop.permute.xlu0 %6793
  %v6795 = vperm.slane %v6573, 6
  %v6796 = vlaneseq
  %v6797 = vshrl.u32 %v6796, 7
  %6799 = vset.pattern.permute.xlu0 %v6797
  %6800 = vperm.xlu0 %6799, %v6795
  %v6801 = vpop.permute.xlu0 %6800
  %v6802 = vperm.slane %v6573, 7
  %v6803 = vlaneseq
  %v6804 = vshrl.u32 %v6803, 7
  %6806 = vset.pattern.permute.xlu0 %v6804
  %6807 = vperm.xlu0 %6806, %v6802
  %v6808 = vpop.permute.xlu0 %6807
  %v6809 = vperm.slane %v6574, 0
  %v6810 = vlaneseq
  %v6811 = vshrl.u32 %v6810, 7
  %6813 = vset.pattern.permute.xlu0 %v6811
  %6814 = vperm.xlu0 %6813, %v6809
  %v6815 = vpop.permute.xlu0 %6814
  %v6816 = vperm.slane %v6574, 1
  %v6817 = vlaneseq
  %v6818 = vshrl.u32 %v6817, 7
  %6820 = vset.pattern.permute.xlu0 %v6818
  %6821 = vperm.xlu0 %6820, %v6816
  %v6822 = vpop.permute.xlu0 %6821
  %v6823 = vperm.slane %v6574, 2
  %v6824 = vlaneseq
  %v6825 = vshrl.u32 %v6824, 7
  %6827 = vset.pattern.permute.xlu0 %v6825
  %6828 = vperm.xlu0 %6827, %v6823
  %v6829 = vpop.permute.xlu0 %6828
  %v6830 = vperm.slane %v6574, 3
  %v6831 = vlaneseq
  %v6832 = vshrl.u32 %v6831, 7
  %6834 = vset.pattern.permute.xlu0 %v6832
  %6835 = vperm.xlu0 %6834, %v6830
  %v6836 = vpop.permute.xlu0 %6835
  %v6837 = vperm.slane %v6574, 4
  %v6838 = vlaneseq
  %v6839 = vshrl.u32 %v6838, 7
  %6841 = vset.pattern.permute.xlu0 %v6839
  %6842 = vperm.xlu0 %6841, %v6837
  %v6843 = vpop.permute.xlu0 %6842
  %v6844 = vperm.slane %v6574, 5
  %v6845 = vlaneseq
  %v6846 = vshrl.u32 %v6845, 7
  %6848 = vset.pattern.permute.xlu0 %v6846
  %6849 = vperm.xlu0 %6848, %v6844
  %v6850 = vpop.permute.xlu0 %6849
  %v6851 = vperm.slane %v6574, 6
  %v6852 = vlaneseq
  %v6853 = vshrl.u32 %v6852, 7
  %6855 = vset.pattern.permute.xlu0 %v6853
  %6856 = vperm.xlu0 %6855, %v6851
  %v6857 = vpop.permute.xlu0 %6856
  %v6858 = vperm.slane %v6574, 7
  %v6859 = vlaneseq
  %v6860 = vshrl.u32 %v6859, 7
  %6862 = vset.pattern.permute.xlu0 %v6860
  %6863 = vperm.xlu0 %6862, %v6858
  %v6864 = vpop.permute.xlu0 %6863
  %v6865 = vmul.f32 %v6591, %v373
  %v6866 = vmul.f32 %v6598, %v373
  %v6867 = vmul.f32 %v6605, %v373
  %v6868 = vmul.f32 %v6612, %v373
  %v6869 = vmul.f32 %v6619, %v373
  %v6870 = vmul.f32 %v6626, %v373
  %v6871 = vmul.f32 %v6633, %v373
  %v6872 = vmul.f32 %v6640, %v373
  %v6873 = vmul.f32 %v6647, %v373
  %v6874 = vmul.f32 %v6654, %v373
  %v6875 = vmul.f32 %v6661, %v373
  %v6876 = vmul.f32 %v6668, %v373
  %v6877 = vmul.f32 %v6675, %v373
  %v6878 = vmul.f32 %v6682, %v373
  %v6879 = vmul.f32 %v6689, %v373
  %v6880 = vmul.f32 %v6696, %v373
  %v6881 = vmul.f32 %v6703, %v373
  %v6882 = vmul.f32 %v6710, %v373
  %v6883 = vmul.f32 %v6717, %v373
  %v6884 = vmul.f32 %v6724, %v373
  %v6885 = vmul.f32 %v6731, %v373
  %v6886 = vmul.f32 %v6738, %v373
  %v6887 = vmul.f32 %v6745, %v373
  %v6888 = vmul.f32 %v6752, %v373
  %v6889 = vmul.f32 %v6759, %v373
  %v6890 = vmul.f32 %v6766, %v373
  %v6891 = vmul.f32 %v6773, %v373
  %v6892 = vmul.f32 %v6780, %v373
  %v6893 = vmul.f32 %v6787, %v373
  %v6894 = vmul.f32 %v6794, %v373
  %v6895 = vmul.f32 %v6801, %v373
  %v6896 = vmul.f32 %v6808, %v373
  %v6897 = vmul.f32 %v6815, %v373
  %v6898 = vmul.f32 %v6822, %v373
  %v6899 = vmul.f32 %v6829, %v373
  %v6900 = vmul.f32 %v6836, %v373
  %v6901 = vmul.f32 %v6843, %v373
  %v6902 = vmul.f32 %v6850, %v373
  %v6903 = vmul.f32 %v6857, %v373
  %v6904 = vmul.f32 %v6864, %v373
  %v6905 = vperm.slane %v6580, 0
  %v6906 = vlaneseq
  %v6907 = vshrl.u32 %v6906, 7
  %6909 = vset.pattern.permute.xlu0 %v6907
  %6910 = vperm.xlu0 %6909, %v6905
  %v6911 = vpop.permute.xlu0 %6910
  %v6912 = vperm.slane %v6580, 1
  %v6913 = vlaneseq
  %v6914 = vshrl.u32 %v6913, 7
  %6916 = vset.pattern.permute.xlu0 %v6914
  %6917 = vperm.xlu0 %6916, %v6912
  %v6918 = vpop.permute.xlu0 %6917
  %v6919 = vperm.slane %v6580, 2
  %v6920 = vlaneseq
  %v6921 = vshrl.u32 %v6920, 7
  %6923 = vset.pattern.permute.xlu0 %v6921
  %6924 = vperm.xlu0 %6923, %v6919
  %v6925 = vpop.permute.xlu0 %6924
  %v6926 = vperm.slane %v6580, 3
  %v6927 = vlaneseq
  %v6928 = vshrl.u32 %v6927, 7
  %6930 = vset.pattern.permute.xlu0 %v6928
  %6931 = vperm.xlu0 %6930, %v6926
  %v6932 = vpop.permute.xlu0 %6931
  %v6933 = vperm.slane %v6580, 4
  %v6934 = vlaneseq
  %v6935 = vshrl.u32 %v6934, 7
  %6937 = vset.pattern.permute.xlu0 %v6935
  %6938 = vperm.xlu0 %6937, %v6933
  %v6939 = vpop.permute.xlu0 %6938
  %v6940 = vperm.slane %v6580, 5
  %v6941 = vlaneseq
  %v6942 = vshrl.u32 %v6941, 7
  %6944 = vset.pattern.permute.xlu0 %v6942
  %6945 = vperm.xlu0 %6944, %v6940
  %v6946 = vpop.permute.xlu0 %6945
  %v6947 = vperm.slane %v6580, 6
  %v6948 = vlaneseq
  %v6949 = vshrl.u32 %v6948, 7
  %6951 = vset.pattern.permute.xlu0 %v6949
  %6952 = vperm.xlu0 %6951, %v6947
  %v6953 = vpop.permute.xlu0 %6952
  %v6954 = vperm.slane %v6580, 7
  %v6955 = vlaneseq
  %v6956 = vshrl.u32 %v6955, 7
  %6958 = vset.pattern.permute.xlu0 %v6956
  %6959 = vperm.xlu0 %6958, %v6954
  %v6960 = vpop.permute.xlu0 %6959
  %v6961 = vperm.slane %v6581, 0
  %v6962 = vlaneseq
  %v6963 = vshrl.u32 %v6962, 7
  %6965 = vset.pattern.permute.xlu0 %v6963
  %6966 = vperm.xlu0 %6965, %v6961
  %v6967 = vpop.permute.xlu0 %6966
  %v6968 = vperm.slane %v6581, 1
  %v6969 = vlaneseq
  %v6970 = vshrl.u32 %v6969, 7
  %6972 = vset.pattern.permute.xlu0 %v6970
  %6973 = vperm.xlu0 %6972, %v6968
  %v6974 = vpop.permute.xlu0 %6973
  %v6975 = vperm.slane %v6581, 2
  %v6976 = vlaneseq
  %v6977 = vshrl.u32 %v6976, 7
  %6979 = vset.pattern.permute.xlu0 %v6977
  %6980 = vperm.xlu0 %6979, %v6975
  %v6981 = vpop.permute.xlu0 %6980
  %v6982 = vperm.slane %v6581, 3
  %v6983 = vlaneseq
  %v6984 = vshrl.u32 %v6983, 7
  %6986 = vset.pattern.permute.xlu0 %v6984
  %6987 = vperm.xlu0 %6986, %v6982
  %v6988 = vpop.permute.xlu0 %6987
  %v6989 = vperm.slane %v6581, 4
  %v6990 = vlaneseq
  %v6991 = vshrl.u32 %v6990, 7
  %6993 = vset.pattern.permute.xlu0 %v6991
  %6994 = vperm.xlu0 %6993, %v6989
  %v6995 = vpop.permute.xlu0 %6994
  %v6996 = vperm.slane %v6581, 5
  %v6997 = vlaneseq
  %v6998 = vshrl.u32 %v6997, 7
  %7000 = vset.pattern.permute.xlu0 %v6998
  %7001 = vperm.xlu0 %7000, %v6996
  %v7002 = vpop.permute.xlu0 %7001
  %v7003 = vperm.slane %v6581, 6
  %v7004 = vlaneseq
  %v7005 = vshrl.u32 %v7004, 7
  %7007 = vset.pattern.permute.xlu0 %v7005
  %7008 = vperm.xlu0 %7007, %v7003
  %v7009 = vpop.permute.xlu0 %7008
  %v7010 = vperm.slane %v6581, 7
  %v7011 = vlaneseq
  %v7012 = vshrl.u32 %v7011, 7
  %7014 = vset.pattern.permute.xlu0 %v7012
  %7015 = vperm.xlu0 %7014, %v7010
  %v7016 = vpop.permute.xlu0 %7015
  %v7017 = vperm.slane %v6582, 0
  %v7018 = vlaneseq
  %v7019 = vshrl.u32 %v7018, 7
  %7021 = vset.pattern.permute.xlu0 %v7019
  %7022 = vperm.xlu0 %7021, %v7017
  %v7023 = vpop.permute.xlu0 %7022
  %v7024 = vperm.slane %v6582, 1
  %v7025 = vlaneseq
  %v7026 = vshrl.u32 %v7025, 7
  %7028 = vset.pattern.permute.xlu0 %v7026
  %7029 = vperm.xlu0 %7028, %v7024
  %v7030 = vpop.permute.xlu0 %7029
  %v7031 = vperm.slane %v6582, 2
  %v7032 = vlaneseq
  %v7033 = vshrl.u32 %v7032, 7
  %7035 = vset.pattern.permute.xlu0 %v7033
  %7036 = vperm.xlu0 %7035, %v7031
  %v7037 = vpop.permute.xlu0 %7036
  %v7038 = vperm.slane %v6582, 3
  %v7039 = vlaneseq
  %v7040 = vshrl.u32 %v7039, 7
  %7042 = vset.pattern.permute.xlu0 %v7040
  %7043 = vperm.xlu0 %7042, %v7038
  %v7044 = vpop.permute.xlu0 %7043
  %v7045 = vperm.slane %v6582, 4
  %v7046 = vlaneseq
  %v7047 = vshrl.u32 %v7046, 7
  %7049 = vset.pattern.permute.xlu0 %v7047
  %7050 = vperm.xlu0 %7049, %v7045
  %v7051 = vpop.permute.xlu0 %7050
  %v7052 = vperm.slane %v6582, 5
  %v7053 = vlaneseq
  %v7054 = vshrl.u32 %v7053, 7
  %7056 = vset.pattern.permute.xlu0 %v7054
  %7057 = vperm.xlu0 %7056, %v7052
  %v7058 = vpop.permute.xlu0 %7057
  %v7059 = vperm.slane %v6582, 6
  %v7060 = vlaneseq
  %v7061 = vshrl.u32 %v7060, 7
  %7063 = vset.pattern.permute.xlu0 %v7061
  %7064 = vperm.xlu0 %7063, %v7059
  %v7065 = vpop.permute.xlu0 %7064
  %v7066 = vperm.slane %v6582, 7
  %v7067 = vlaneseq
  %v7068 = vshrl.u32 %v7067, 7
  %7070 = vset.pattern.permute.xlu0 %v7068
  %7071 = vperm.xlu0 %7070, %v7066
  %v7072 = vpop.permute.xlu0 %7071
  %v7073 = vperm.slane %v6583, 0
  %v7074 = vlaneseq
  %v7075 = vshrl.u32 %v7074, 7
  %7077 = vset.pattern.permute.xlu0 %v7075
  %7078 = vperm.xlu0 %7077, %v7073
  %v7079 = vpop.permute.xlu0 %7078
  %v7080 = vperm.slane %v6583, 1
  %v7081 = vlaneseq
  %v7082 = vshrl.u32 %v7081, 7
  %7084 = vset.pattern.permute.xlu0 %v7082
  %7085 = vperm.xlu0 %7084, %v7080
  %v7086 = vpop.permute.xlu0 %7085
  %v7087 = vperm.slane %v6583, 2
  %v7088 = vlaneseq
  %v7089 = vshrl.u32 %v7088, 7
  %7091 = vset.pattern.permute.xlu0 %v7089
  %7092 = vperm.xlu0 %7091, %v7087
  %v7093 = vpop.permute.xlu0 %7092
  %v7094 = vperm.slane %v6583, 3
  %v7095 = vlaneseq
  %v7096 = vshrl.u32 %v7095, 7
  %7098 = vset.pattern.permute.xlu0 %v7096
  %7099 = vperm.xlu0 %7098, %v7094
  %v7100 = vpop.permute.xlu0 %7099
  %v7101 = vperm.slane %v6583, 4
  %v7102 = vlaneseq
  %v7103 = vshrl.u32 %v7102, 7
  %7105 = vset.pattern.permute.xlu0 %v7103
  %7106 = vperm.xlu0 %7105, %v7101
  %v7107 = vpop.permute.xlu0 %7106
  %v7108 = vperm.slane %v6583, 5
  %v7109 = vlaneseq
  %v7110 = vshrl.u32 %v7109, 7
  %7112 = vset.pattern.permute.xlu0 %v7110
  %7113 = vperm.xlu0 %7112, %v7108
  %v7114 = vpop.permute.xlu0 %7113
  %v7115 = vperm.slane %v6583, 6
  %v7116 = vlaneseq
  %v7117 = vshrl.u32 %v7116, 7
  %7119 = vset.pattern.permute.xlu0 %v7117
  %7120 = vperm.xlu0 %7119, %v7115
  %v7121 = vpop.permute.xlu0 %7120
  %v7122 = vperm.slane %v6583, 7
  %v7123 = vlaneseq
  %v7124 = vshrl.u32 %v7123, 7
  %7126 = vset.pattern.permute.xlu0 %v7124
  %7127 = vperm.xlu0 %7126, %v7122
  %v7128 = vpop.permute.xlu0 %7127
  %v7129 = vperm.slane %v6584, 0
  %v7130 = vlaneseq
  %v7131 = vshrl.u32 %v7130, 7
  %7133 = vset.pattern.permute.xlu0 %v7131
  %7134 = vperm.xlu0 %7133, %v7129
  %v7135 = vpop.permute.xlu0 %7134
  %v7136 = vperm.slane %v6584, 1
  %v7137 = vlaneseq
  %v7138 = vshrl.u32 %v7137, 7
  %7140 = vset.pattern.permute.xlu0 %v7138
  %7141 = vperm.xlu0 %7140, %v7136
  %v7142 = vpop.permute.xlu0 %7141
  %v7143 = vperm.slane %v6584, 2
  %v7144 = vlaneseq
  %v7145 = vshrl.u32 %v7144, 7
  %7147 = vset.pattern.permute.xlu0 %v7145
  %7148 = vperm.xlu0 %7147, %v7143
  %v7149 = vpop.permute.xlu0 %7148
  %v7150 = vperm.slane %v6584, 3
  %v7151 = vlaneseq
  %v7152 = vshrl.u32 %v7151, 7
  %7154 = vset.pattern.permute.xlu0 %v7152
  %7155 = vperm.xlu0 %7154, %v7150
  %v7156 = vpop.permute.xlu0 %7155
  %v7157 = vperm.slane %v6584, 4
  %v7158 = vlaneseq
  %v7159 = vshrl.u32 %v7158, 7
  %7161 = vset.pattern.permute.xlu0 %v7159
  %7162 = vperm.xlu0 %7161, %v7157
  %v7163 = vpop.permute.xlu0 %7162
  %v7164 = vperm.slane %v6584, 5
  %v7165 = vlaneseq
  %v7166 = vshrl.u32 %v7165, 7
  %7168 = vset.pattern.permute.xlu0 %v7166
  %7169 = vperm.xlu0 %7168, %v7164
  %v7170 = vpop.permute.xlu0 %7169
  %v7171 = vperm.slane %v6584, 6
  %v7172 = vlaneseq
  %v7173 = vshrl.u32 %v7172, 7
  %7175 = vset.pattern.permute.xlu0 %v7173
  %7176 = vperm.xlu0 %7175, %v7171
  %v7177 = vpop.permute.xlu0 %7176
  %v7178 = vperm.slane %v6584, 7
  %v7179 = vlaneseq
  %v7180 = vshrl.u32 %v7179, 7
  %7182 = vset.pattern.permute.xlu0 %v7180
  %7183 = vperm.xlu0 %7182, %v7178
  %v7184 = vpop.permute.xlu0 %7183
  %v7185 = vmul.f32 %v6911, %v694
  %v7186 = vmul.f32 %v6918, %v694
  %v7187 = vmul.f32 %v6925, %v694
  %v7188 = vmul.f32 %v6932, %v694
  %v7189 = vmul.f32 %v6939, %v694
  %v7190 = vmul.f32 %v6946, %v694
  %v7191 = vmul.f32 %v6953, %v694
  %v7192 = vmul.f32 %v6960, %v694
  %v7193 = vmul.f32 %v6967, %v694
  %v7194 = vmul.f32 %v6974, %v694
  %v7195 = vmul.f32 %v6981, %v694
  %v7196 = vmul.f32 %v6988, %v694
  %v7197 = vmul.f32 %v6995, %v694
  %v7198 = vmul.f32 %v7002, %v694
  %v7199 = vmul.f32 %v7009, %v694
  %v7200 = vmul.f32 %v7016, %v694
  %v7201 = vmul.f32 %v7023, %v694
  %v7202 = vmul.f32 %v7030, %v694
  %v7203 = vmul.f32 %v7037, %v694
  %v7204 = vmul.f32 %v7044, %v694
  %v7205 = vmul.f32 %v7051, %v694
  %v7206 = vmul.f32 %v7058, %v694
  %v7207 = vmul.f32 %v7065, %v694
  %v7208 = vmul.f32 %v7072, %v694
  %v7209 = vmul.f32 %v7079, %v694
  %v7210 = vmul.f32 %v7086, %v694
  %v7211 = vmul.f32 %v7093, %v694
  %v7212 = vmul.f32 %v7100, %v694
  %v7213 = vmul.f32 %v7107, %v694
  %v7214 = vmul.f32 %v7114, %v694
  %v7215 = vmul.f32 %v7121, %v694
  %v7216 = vmul.f32 %v7128, %v694
  %v7217 = vmul.f32 %v7135, %v694
  %v7218 = vmul.f32 %v7142, %v694
  %v7219 = vmul.f32 %v7149, %v694
  %v7220 = vmul.f32 %v7156, %v694
  %v7221 = vmul.f32 %v7163, %v694
  %v7222 = vmul.f32 %v7170, %v694
  %v7223 = vmul.f32 %v7177, %v694
  %v7224 = vmul.f32 %v7184, %v694
  %v7225 = vadd.f32 %v6865, %v7185
  %v7226 = vadd.f32 %v6866, %v7186
  %v7227 = vadd.f32 %v6867, %v7187
  %v7228 = vadd.f32 %v6868, %v7188
  %v7229 = vadd.f32 %v6869, %v7189
  %v7230 = vadd.f32 %v6870, %v7190
  %v7231 = vadd.f32 %v6871, %v7191
  %v7232 = vadd.f32 %v6872, %v7192
  %v7233 = vadd.f32 %v6873, %v7193
  %v7234 = vadd.f32 %v6874, %v7194
  %v7235 = vadd.f32 %v6875, %v7195
  %v7236 = vadd.f32 %v6876, %v7196
  %v7237 = vadd.f32 %v6877, %v7197
  %v7238 = vadd.f32 %v6878, %v7198
  %v7239 = vadd.f32 %v6879, %v7199
  %v7240 = vadd.f32 %v6880, %v7200
  %v7241 = vadd.f32 %v6881, %v7201
  %v7242 = vadd.f32 %v6882, %v7202
  %v7243 = vadd.f32 %v6883, %v7203
  %v7244 = vadd.f32 %v6884, %v7204
  %v7245 = vadd.f32 %v6885, %v7205
  %v7246 = vadd.f32 %v6886, %v7206
  %v7247 = vadd.f32 %v6887, %v7207
  %v7248 = vadd.f32 %v6888, %v7208
  %v7249 = vadd.f32 %v6889, %v7209
  %v7250 = vadd.f32 %v6890, %v7210
  %v7251 = vadd.f32 %v6891, %v7211
  %v7252 = vadd.f32 %v6892, %v7212
  %v7253 = vadd.f32 %v6893, %v7213
  %v7254 = vadd.f32 %v6894, %v7214
  %v7255 = vadd.f32 %v6895, %v7215
  %v7256 = vadd.f32 %v6896, %v7216
  %v7257 = vadd.f32 %v6897, %v7217
  %v7258 = vadd.f32 %v6898, %v7218
  %v7259 = vadd.f32 %v6899, %v7219
  %v7260 = vadd.f32 %v6900, %v7220
  %v7261 = vadd.f32 %v6901, %v7221
  %v7262 = vadd.f32 %v6902, %v7222
  %v7263 = vadd.f32 %v6903, %v7223
  %v7264 = vadd.f32 %v6904, %v7224
  %v7265 = vadd.f32 %v7225, %v776
  %v7266 = vadd.f32 %v7226, %v776
  %v7267 = vadd.f32 %v7227, %v776
  %v7268 = vadd.f32 %v7228, %v776
  %v7269 = vadd.f32 %v7229, %v776
  %v7270 = vadd.f32 %v7230, %v776
  %v7271 = vadd.f32 %v7231, %v776
  %v7272 = vadd.f32 %v7232, %v776
  %v7273 = vadd.f32 %v7233, %v776
  %v7274 = vadd.f32 %v7234, %v776
  %v7275 = vadd.f32 %v7235, %v776
  %v7276 = vadd.f32 %v7236, %v776
  %v7277 = vadd.f32 %v7237, %v776
  %v7278 = vadd.f32 %v7238, %v776
  %v7279 = vadd.f32 %v7239, %v776
  %v7280 = vadd.f32 %v7240, %v776
  %v7281 = vadd.f32 %v7241, %v776
  %v7282 = vadd.f32 %v7242, %v776
  %v7283 = vadd.f32 %v7243, %v776
  %v7284 = vadd.f32 %v7244, %v776
  %v7285 = vadd.f32 %v7245, %v776
  %v7286 = vadd.f32 %v7246, %v776
  %v7287 = vadd.f32 %v7247, %v776
  %v7288 = vadd.f32 %v7248, %v776
  %v7289 = vadd.f32 %v7249, %v776
  %v7290 = vadd.f32 %v7250, %v776
  %v7291 = vadd.f32 %v7251, %v776
  %v7292 = vadd.f32 %v7252, %v776
  %v7293 = vadd.f32 %v7253, %v776
  %v7294 = vadd.f32 %v7254, %v776
  %v7295 = vadd.f32 %v7255, %v776
  %v7296 = vadd.f32 %v7256, %v776
  %v7297 = vadd.f32 %v7257, %v776
  %v7298 = vadd.f32 %v7258, %v776
  %v7299 = vadd.f32 %v7259, %v776
  %v7300 = vadd.f32 %v7260, %v776
  %v7301 = vadd.f32 %v7261, %v776
  %v7302 = vadd.f32 %v7262, %v776
  %v7303 = vadd.f32 %v7263, %v776
  %v7304 = vadd.f32 %v7264, %v776
  %s7305 = scalar_lea.vmem [#allocation2], 2560
  %7306 = vst [vmem:[%s7305] sm:$0xff] %v7265
  %7307 = vst [vmem:[%s7305 + $0x8] sm:$0xff] %v7266
  %7308 = vst [vmem:[%s7305 + $0x10] sm:$0xff] %v7267
  %7309 = vst [vmem:[%s7305 + $0x18] sm:$0xff] %v7268
  %7310 = vst [vmem:[%s7305 + $0x20] sm:$0xff] %v7269
  %7311 = vst [vmem:[%s7305 + $0x28] sm:$0xff] %v7270
  %7312 = vst [vmem:[%s7305 + $0x30] sm:$0xff] %v7271
  %7313 = vst [vmem:[%s7305 + $0x38] sm:$0xff] %v7272
  %7314 = vst [vmem:[%s7305 + $0x40] sm:$0xff] %v7273
  %7315 = vst [vmem:[%s7305 + $0x48] sm:$0xff] %v7274
  %7316 = vst [vmem:[%s7305 + $0x50] sm:$0xff] %v7275
  %7317 = vst [vmem:[%s7305 + $0x58] sm:$0xff] %v7276
  %7318 = vst [vmem:[%s7305 + $0x60] sm:$0xff] %v7277
  %7319 = vst [vmem:[%s7305 + $0x68] sm:$0xff] %v7278
  %7320 = vst [vmem:[%s7305 + $0x70] sm:$0xff] %v7279
  %7321 = vst [vmem:[%s7305 + $0x78] sm:$0xff] %v7280
  %7322 = vst [vmem:[%s7305 + $0x80] sm:$0xff] %v7281
  %7323 = vst [vmem:[%s7305 + $0x88] sm:$0xff] %v7282
  %7324 = vst [vmem:[%s7305 + $0x90] sm:$0xff] %v7283
  %7325 = vst [vmem:[%s7305 + $0x98] sm:$0xff] %v7284
  %7326 = vst [vmem:[%s7305 + $0xa0] sm:$0xff] %v7285
  %7327 = vst [vmem:[%s7305 + $0xa8] sm:$0xff] %v7286
  %7328 = vst [vmem:[%s7305 + $0xb0] sm:$0xff] %v7287
  %7329 = vst [vmem:[%s7305 + $0xb8] sm:$0xff] %v7288
  %7330 = vst [vmem:[%s7305 + $0xc0] sm:$0xff] %v7289
  %7331 = vst [vmem:[%s7305 + $0xc8] sm:$0xff] %v7290
  %7332 = vst [vmem:[%s7305 + $0xd0] sm:$0xff] %v7291
  %7333 = vst [vmem:[%s7305 + $0xd8] sm:$0xff] %v7292
  %7334 = vst [vmem:[%s7305 + $0xe0] sm:$0xff] %v7293
  %7335 = vst [vmem:[%s7305 + $0xe8] sm:$0xff] %v7294
  %7336 = vst [vmem:[%s7305 + $0xf0] sm:$0xff] %v7295
  %7337 = vst [vmem:[%s7305 + $0xf8] sm:$0xff] %v7296
  %7338 = vst [vmem:[%s7305 + $0x100] sm:$0xff] %v7297
  %7339 = vst [vmem:[%s7305 + $0x108] sm:$0xff] %v7298
  %7340 = vst [vmem:[%s7305 + $0x110] sm:$0xff] %v7299
  %7341 = vst [vmem:[%s7305 + $0x118] sm:$0xff] %v7300
  %7342 = vst [vmem:[%s7305 + $0x120] sm:$0xff] %v7301
  %7343 = vst [vmem:[%s7305 + $0x128] sm:$0xff] %v7302
  %7344 = vst [vmem:[%s7305 + $0x130] sm:$0xff] %v7303
  %7345 = vst [vmem:[%s7305 + $0x138] sm:$0xff] %v7304
  %v7346 = vld [vmem:[%s0 + $0x168] sm:$0xff]
  %v7347 = vld [vmem:[%s0 + $0x170] sm:$0xff]
  %v7348 = vld [vmem:[%s0 + $0x178] sm:$0xff]
  %v7349 = vld [vmem:[%s0 + $0x180] sm:$0xff]
  %v7350 = vld [vmem:[%s0 + $0x188] sm:$0xff]
  %v7351 = vld [vmem:[%s1 + $0x168] sm:$0xff]
  %v7352 = vld [vmem:[%s1 + $0x170] sm:$0xff]
  %v7353 = vld [vmem:[%s1 + $0x178] sm:$0xff]
  %v7354 = vld [vmem:[%s1 + $0x180] sm:$0xff]
  %v7355 = vld [vmem:[%s1 + $0x188] sm:$0xff]
  %v7356 = vld [vmem:[%s49 + $0x168] sm:$0xff]
  %v7357 = vld [vmem:[%s49 + $0x170] sm:$0xff]
  %v7358 = vld [vmem:[%s49 + $0x178] sm:$0xff]
  %v7359 = vld [vmem:[%s49 + $0x180] sm:$0xff]
  %v7360 = vld [vmem:[%s49 + $0x188] sm:$0xff]
  %v7361 = vmax.f32 %v7346, %v7356
  %v7362 = vmax.f32 %v7347, %v7357
  %v7363 = vmax.f32 %v7348, %v7358
  %v7364 = vmax.f32 %v7349, %v7359
  %v7365 = vmax.f32 %v7350, %v7360
  %v7366 = vld [vmem:[%s60 + $0x168] sm:$0xff]
  %v7367 = vld [vmem:[%s60 + $0x170] sm:$0xff]
  %v7368 = vld [vmem:[%s60 + $0x178] sm:$0xff]
  %v7369 = vld [vmem:[%s60 + $0x180] sm:$0xff]
  %v7370 = vld [vmem:[%s60 + $0x188] sm:$0xff]
  %v7371 = vmax.f32 %v7351, %v7366
  %v7372 = vmax.f32 %v7352, %v7367
  %v7373 = vmax.f32 %v7353, %v7368
  %v7374 = vmax.f32 %v7354, %v7369
  %v7375 = vmax.f32 %v7355, %v7370
  %v7376 = vld [vmem:[%s71 + $0x168] sm:$0xff]
  %v7377 = vld [vmem:[%s71 + $0x170] sm:$0xff]
  %v7378 = vld [vmem:[%s71 + $0x178] sm:$0xff]
  %v7379 = vld [vmem:[%s71 + $0x180] sm:$0xff]
  %v7380 = vld [vmem:[%s71 + $0x188] sm:$0xff]
  %v7381 = vmax.f32 %v7361, %v7376
  %v7382 = vmax.f32 %v7362, %v7377
  %v7383 = vmax.f32 %v7363, %v7378
  %v7384 = vmax.f32 %v7364, %v7379
  %v7385 = vmax.f32 %v7365, %v7380
  %v7386 = vld [vmem:[%s82 + $0x168] sm:$0xff]
  %v7387 = vld [vmem:[%s82 + $0x170] sm:$0xff]
  %v7388 = vld [vmem:[%s82 + $0x178] sm:$0xff]
  %v7389 = vld [vmem:[%s82 + $0x180] sm:$0xff]
  %v7390 = vld [vmem:[%s82 + $0x188] sm:$0xff]
  %v7391 = vmax.f32 %v7371, %v7386
  %v7392 = vmax.f32 %v7372, %v7387
  %v7393 = vmax.f32 %v7373, %v7388
  %v7394 = vmax.f32 %v7374, %v7389
  %v7395 = vmax.f32 %v7375, %v7390
  %v7396 = vperm.slane %v7381, 0
  %v7397 = vlaneseq
  %v7398 = vshrl.u32 %v7397, 7
  %7400 = vset.pattern.permute.xlu0 %v7398
  %7401 = vperm.xlu0 %7400, %v7396
  %v7402 = vpop.permute.xlu0 %7401
  %v7403 = vperm.slane %v7381, 1
  %v7404 = vlaneseq
  %v7405 = vshrl.u32 %v7404, 7
  %7407 = vset.pattern.permute.xlu0 %v7405
  %7408 = vperm.xlu0 %7407, %v7403
  %v7409 = vpop.permute.xlu0 %7408
  %v7410 = vperm.slane %v7381, 2
  %v7411 = vlaneseq
  %v7412 = vshrl.u32 %v7411, 7
  %7414 = vset.pattern.permute.xlu0 %v7412
  %7415 = vperm.xlu0 %7414, %v7410
  %v7416 = vpop.permute.xlu0 %7415
  %v7417 = vperm.slane %v7381, 3
  %v7418 = vlaneseq
  %v7419 = vshrl.u32 %v7418, 7
  %7421 = vset.pattern.permute.xlu0 %v7419
  %7422 = vperm.xlu0 %7421, %v7417
  %v7423 = vpop.permute.xlu0 %7422
  %v7424 = vperm.slane %v7381, 4
  %v7425 = vlaneseq
  %v7426 = vshrl.u32 %v7425, 7
  %7428 = vset.pattern.permute.xlu0 %v7426
  %7429 = vperm.xlu0 %7428, %v7424
  %v7430 = vpop.permute.xlu0 %7429
  %v7431 = vperm.slane %v7381, 5
  %v7432 = vlaneseq
  %v7433 = vshrl.u32 %v7432, 7
  %7435 = vset.pattern.permute.xlu0 %v7433
  %7436 = vperm.xlu0 %7435, %v7431
  %v7437 = vpop.permute.xlu0 %7436
  %v7438 = vperm.slane %v7381, 6
  %v7439 = vlaneseq
  %v7440 = vshrl.u32 %v7439, 7
  %7442 = vset.pattern.permute.xlu0 %v7440
  %7443 = vperm.xlu0 %7442, %v7438
  %v7444 = vpop.permute.xlu0 %7443
  %v7445 = vperm.slane %v7381, 7
  %v7446 = vlaneseq
  %v7447 = vshrl.u32 %v7446, 7
  %7449 = vset.pattern.permute.xlu0 %v7447
  %7450 = vperm.xlu0 %7449, %v7445
  %v7451 = vpop.permute.xlu0 %7450
  %v7452 = vperm.slane %v7382, 0
  %v7453 = vlaneseq
  %v7454 = vshrl.u32 %v7453, 7
  %7456 = vset.pattern.permute.xlu0 %v7454
  %7457 = vperm.xlu0 %7456, %v7452
  %v7458 = vpop.permute.xlu0 %7457
  %v7459 = vperm.slane %v7382, 1
  %v7460 = vlaneseq
  %v7461 = vshrl.u32 %v7460, 7
  %7463 = vset.pattern.permute.xlu0 %v7461
  %7464 = vperm.xlu0 %7463, %v7459
  %v7465 = vpop.permute.xlu0 %7464
  %v7466 = vperm.slane %v7382, 2
  %v7467 = vlaneseq
  %v7468 = vshrl.u32 %v7467, 7
  %7470 = vset.pattern.permute.xlu0 %v7468
  %7471 = vperm.xlu0 %7470, %v7466
  %v7472 = vpop.permute.xlu0 %7471
  %v7473 = vperm.slane %v7382, 3
  %v7474 = vlaneseq
  %v7475 = vshrl.u32 %v7474, 7
  %7477 = vset.pattern.permute.xlu0 %v7475
  %7478 = vperm.xlu0 %7477, %v7473
  %v7479 = vpop.permute.xlu0 %7478
  %v7480 = vperm.slane %v7382, 4
  %v7481 = vlaneseq
  %v7482 = vshrl.u32 %v7481, 7
  %7484 = vset.pattern.permute.xlu0 %v7482
  %7485 = vperm.xlu0 %7484, %v7480
  %v7486 = vpop.permute.xlu0 %7485
  %v7487 = vperm.slane %v7382, 5
  %v7488 = vlaneseq
  %v7489 = vshrl.u32 %v7488, 7
  %7491 = vset.pattern.permute.xlu0 %v7489
  %7492 = vperm.xlu0 %7491, %v7487
  %v7493 = vpop.permute.xlu0 %7492
  %v7494 = vperm.slane %v7382, 6
  %v7495 = vlaneseq
  %v7496 = vshrl.u32 %v7495, 7
  %7498 = vset.pattern.permute.xlu0 %v7496
  %7499 = vperm.xlu0 %7498, %v7494
  %v7500 = vpop.permute.xlu0 %7499
  %v7501 = vperm.slane %v7382, 7
  %v7502 = vlaneseq
  %v7503 = vshrl.u32 %v7502, 7
  %7505 = vset.pattern.permute.xlu0 %v7503
  %7506 = vperm.xlu0 %7505, %v7501
  %v7507 = vpop.permute.xlu0 %7506
  %v7508 = vperm.slane %v7383, 0
  %v7509 = vlaneseq
  %v7510 = vshrl.u32 %v7509, 7
  %7512 = vset.pattern.permute.xlu0 %v7510
  %7513 = vperm.xlu0 %7512, %v7508
  %v7514 = vpop.permute.xlu0 %7513
  %v7515 = vperm.slane %v7383, 1
  %v7516 = vlaneseq
  %v7517 = vshrl.u32 %v7516, 7
  %7519 = vset.pattern.permute.xlu0 %v7517
  %7520 = vperm.xlu0 %7519, %v7515
  %v7521 = vpop.permute.xlu0 %7520
  %v7522 = vperm.slane %v7383, 2
  %v7523 = vlaneseq
  %v7524 = vshrl.u32 %v7523, 7
  %7526 = vset.pattern.permute.xlu0 %v7524
  %7527 = vperm.xlu0 %7526, %v7522
  %v7528 = vpop.permute.xlu0 %7527
  %v7529 = vperm.slane %v7383, 3
  %v7530 = vlaneseq
  %v7531 = vshrl.u32 %v7530, 7
  %7533 = vset.pattern.permute.xlu0 %v7531
  %7534 = vperm.xlu0 %7533, %v7529
  %v7535 = vpop.permute.xlu0 %7534
  %v7536 = vperm.slane %v7383, 4
  %v7537 = vlaneseq
  %v7538 = vshrl.u32 %v7537, 7
  %7540 = vset.pattern.permute.xlu0 %v7538
  %7541 = vperm.xlu0 %7540, %v7536
  %v7542 = vpop.permute.xlu0 %7541
  %v7543 = vperm.slane %v7383, 5
  %v7544 = vlaneseq
  %v7545 = vshrl.u32 %v7544, 7
  %7547 = vset.pattern.permute.xlu0 %v7545
  %7548 = vperm.xlu0 %7547, %v7543
  %v7549 = vpop.permute.xlu0 %7548
  %v7550 = vperm.slane %v7383, 6
  %v7551 = vlaneseq
  %v7552 = vshrl.u32 %v7551, 7
  %7554 = vset.pattern.permute.xlu0 %v7552
  %7555 = vperm.xlu0 %7554, %v7550
  %v7556 = vpop.permute.xlu0 %7555
  %v7557 = vperm.slane %v7383, 7
  %v7558 = vlaneseq
  %v7559 = vshrl.u32 %v7558, 7
  %7561 = vset.pattern.permute.xlu0 %v7559
  %7562 = vperm.xlu0 %7561, %v7557
  %v7563 = vpop.permute.xlu0 %7562
  %v7564 = vperm.slane %v7384, 0
  %v7565 = vlaneseq
  %v7566 = vshrl.u32 %v7565, 7
  %7568 = vset.pattern.permute.xlu0 %v7566
  %7569 = vperm.xlu0 %7568, %v7564
  %v7570 = vpop.permute.xlu0 %7569
  %v7571 = vperm.slane %v7384, 1
  %v7572 = vlaneseq
  %v7573 = vshrl.u32 %v7572, 7
  %7575 = vset.pattern.permute.xlu0 %v7573
  %7576 = vperm.xlu0 %7575, %v7571
  %v7577 = vpop.permute.xlu0 %7576
  %v7578 = vperm.slane %v7384, 2
  %v7579 = vlaneseq
  %v7580 = vshrl.u32 %v7579, 7
  %7582 = vset.pattern.permute.xlu0 %v7580
  %7583 = vperm.xlu0 %7582, %v7578
  %v7584 = vpop.permute.xlu0 %7583
  %v7585 = vperm.slane %v7384, 3
  %v7586 = vlaneseq
  %v7587 = vshrl.u32 %v7586, 7
  %7589 = vset.pattern.permute.xlu0 %v7587
  %7590 = vperm.xlu0 %7589, %v7585
  %v7591 = vpop.permute.xlu0 %7590
  %v7592 = vperm.slane %v7384, 4
  %v7593 = vlaneseq
  %v7594 = vshrl.u32 %v7593, 7
  %7596 = vset.pattern.permute.xlu0 %v7594
  %7597 = vperm.xlu0 %7596, %v7592
  %v7598 = vpop.permute.xlu0 %7597
  %v7599 = vperm.slane %v7384, 5
  %v7600 = vlaneseq
  %v7601 = vshrl.u32 %v7600, 7
  %7603 = vset.pattern.permute.xlu0 %v7601
  %7604 = vperm.xlu0 %7603, %v7599
  %v7605 = vpop.permute.xlu0 %7604
  %v7606 = vperm.slane %v7384, 6
  %v7607 = vlaneseq
  %v7608 = vshrl.u32 %v7607, 7
  %7610 = vset.pattern.permute.xlu0 %v7608
  %7611 = vperm.xlu0 %7610, %v7606
  %v7612 = vpop.permute.xlu0 %7611
  %v7613 = vperm.slane %v7384, 7
  %v7614 = vlaneseq
  %v7615 = vshrl.u32 %v7614, 7
  %7617 = vset.pattern.permute.xlu0 %v7615
  %7618 = vperm.xlu0 %7617, %v7613
  %v7619 = vpop.permute.xlu0 %7618
  %v7620 = vperm.slane %v7385, 0
  %v7621 = vlaneseq
  %v7622 = vshrl.u32 %v7621, 7
  %7624 = vset.pattern.permute.xlu0 %v7622
  %7625 = vperm.xlu0 %7624, %v7620
  %v7626 = vpop.permute.xlu0 %7625
  %v7627 = vperm.slane %v7385, 1
  %v7628 = vlaneseq
  %v7629 = vshrl.u32 %v7628, 7
  %7631 = vset.pattern.permute.xlu0 %v7629
  %7632 = vperm.xlu0 %7631, %v7627
  %v7633 = vpop.permute.xlu0 %7632
  %v7634 = vperm.slane %v7385, 2
  %v7635 = vlaneseq
  %v7636 = vshrl.u32 %v7635, 7
  %7638 = vset.pattern.permute.xlu0 %v7636
  %7639 = vperm.xlu0 %7638, %v7634
  %v7640 = vpop.permute.xlu0 %7639
  %v7641 = vperm.slane %v7385, 3
  %v7642 = vlaneseq
  %v7643 = vshrl.u32 %v7642, 7
  %7645 = vset.pattern.permute.xlu0 %v7643
  %7646 = vperm.xlu0 %7645, %v7641
  %v7647 = vpop.permute.xlu0 %7646
  %v7648 = vperm.slane %v7385, 4
  %v7649 = vlaneseq
  %v7650 = vshrl.u32 %v7649, 7
  %7652 = vset.pattern.permute.xlu0 %v7650
  %7653 = vperm.xlu0 %7652, %v7648
  %v7654 = vpop.permute.xlu0 %7653
  %v7655 = vperm.slane %v7385, 5
  %v7656 = vlaneseq
  %v7657 = vshrl.u32 %v7656, 7
  %7659 = vset.pattern.permute.xlu0 %v7657
  %7660 = vperm.xlu0 %7659, %v7655
  %v7661 = vpop.permute.xlu0 %7660
  %v7662 = vperm.slane %v7385, 6
  %v7663 = vlaneseq
  %v7664 = vshrl.u32 %v7663, 7
  %7666 = vset.pattern.permute.xlu0 %v7664
  %7667 = vperm.xlu0 %7666, %v7662
  %v7668 = vpop.permute.xlu0 %7667
  %v7669 = vperm.slane %v7385, 7
  %v7670 = vlaneseq
  %v7671 = vshrl.u32 %v7670, 7
  %7673 = vset.pattern.permute.xlu0 %v7671
  %7674 = vperm.xlu0 %7673, %v7669
  %v7675 = vpop.permute.xlu0 %7674
  %v7676 = vmul.f32 %v7402, %v373
  %v7677 = vmul.f32 %v7409, %v373
  %v7678 = vmul.f32 %v7416, %v373
  %v7679 = vmul.f32 %v7423, %v373
  %v7680 = vmul.f32 %v7430, %v373
  %v7681 = vmul.f32 %v7437, %v373
  %v7682 = vmul.f32 %v7444, %v373
  %v7683 = vmul.f32 %v7451, %v373
  %v7684 = vmul.f32 %v7458, %v373
  %v7685 = vmul.f32 %v7465, %v373
  %v7686 = vmul.f32 %v7472, %v373
  %v7687 = vmul.f32 %v7479, %v373
  %v7688 = vmul.f32 %v7486, %v373
  %v7689 = vmul.f32 %v7493, %v373
  %v7690 = vmul.f32 %v7500, %v373
  %v7691 = vmul.f32 %v7507, %v373
  %v7692 = vmul.f32 %v7514, %v373
  %v7693 = vmul.f32 %v7521, %v373
  %v7694 = vmul.f32 %v7528, %v373
  %v7695 = vmul.f32 %v7535, %v373
  %v7696 = vmul.f32 %v7542, %v373
  %v7697 = vmul.f32 %v7549, %v373
  %v7698 = vmul.f32 %v7556, %v373
  %v7699 = vmul.f32 %v7563, %v373
  %v7700 = vmul.f32 %v7570, %v373
  %v7701 = vmul.f32 %v7577, %v373
  %v7702 = vmul.f32 %v7584, %v373
  %v7703 = vmul.f32 %v7591, %v373
  %v7704 = vmul.f32 %v7598, %v373
  %v7705 = vmul.f32 %v7605, %v373
  %v7706 = vmul.f32 %v7612, %v373
  %v7707 = vmul.f32 %v7619, %v373
  %v7708 = vmul.f32 %v7626, %v373
  %v7709 = vmul.f32 %v7633, %v373
  %v7710 = vmul.f32 %v7640, %v373
  %v7711 = vmul.f32 %v7647, %v373
  %v7712 = vmul.f32 %v7654, %v373
  %v7713 = vmul.f32 %v7661, %v373
  %v7714 = vmul.f32 %v7668, %v373
  %v7715 = vmul.f32 %v7675, %v373
  %v7716 = vperm.slane %v7391, 0
  %v7717 = vlaneseq
  %v7718 = vshrl.u32 %v7717, 7
  %7720 = vset.pattern.permute.xlu0 %v7718
  %7721 = vperm.xlu0 %7720, %v7716
  %v7722 = vpop.permute.xlu0 %7721
  %v7723 = vperm.slane %v7391, 1
  %v7724 = vlaneseq
  %v7725 = vshrl.u32 %v7724, 7
  %7727 = vset.pattern.permute.xlu0 %v7725
  %7728 = vperm.xlu0 %7727, %v7723
  %v7729 = vpop.permute.xlu0 %7728
  %v7730 = vperm.slane %v7391, 2
  %v7731 = vlaneseq
  %v7732 = vshrl.u32 %v7731, 7
  %7734 = vset.pattern.permute.xlu0 %v7732
  %7735 = vperm.xlu0 %7734, %v7730
  %v7736 = vpop.permute.xlu0 %7735
  %v7737 = vperm.slane %v7391, 3
  %v7738 = vlaneseq
  %v7739 = vshrl.u32 %v7738, 7
  %7741 = vset.pattern.permute.xlu0 %v7739
  %7742 = vperm.xlu0 %7741, %v7737
  %v7743 = vpop.permute.xlu0 %7742
  %v7744 = vperm.slane %v7391, 4
  %v7745 = vlaneseq
  %v7746 = vshrl.u32 %v7745, 7
  %7748 = vset.pattern.permute.xlu0 %v7746
  %7749 = vperm.xlu0 %7748, %v7744
  %v7750 = vpop.permute.xlu0 %7749
  %v7751 = vperm.slane %v7391, 5
  %v7752 = vlaneseq
  %v7753 = vshrl.u32 %v7752, 7
  %7755 = vset.pattern.permute.xlu0 %v7753
  %7756 = vperm.xlu0 %7755, %v7751
  %v7757 = vpop.permute.xlu0 %7756
  %v7758 = vperm.slane %v7391, 6
  %v7759 = vlaneseq
  %v7760 = vshrl.u32 %v7759, 7
  %7762 = vset.pattern.permute.xlu0 %v7760
  %7763 = vperm.xlu0 %7762, %v7758
  %v7764 = vpop.permute.xlu0 %7763
  %v7765 = vperm.slane %v7391, 7
  %v7766 = vlaneseq
  %v7767 = vshrl.u32 %v7766, 7
  %7769 = vset.pattern.permute.xlu0 %v7767
  %7770 = vperm.xlu0 %7769, %v7765
  %v7771 = vpop.permute.xlu0 %7770
  %v7772 = vperm.slane %v7392, 0
  %v7773 = vlaneseq
  %v7774 = vshrl.u32 %v7773, 7
  %7776 = vset.pattern.permute.xlu0 %v7774
  %7777 = vperm.xlu0 %7776, %v7772
  %v7778 = vpop.permute.xlu0 %7777
  %v7779 = vperm.slane %v7392, 1
  %v7780 = vlaneseq
  %v7781 = vshrl.u32 %v7780, 7
  %7783 = vset.pattern.permute.xlu0 %v7781
  %7784 = vperm.xlu0 %7783, %v7779
  %v7785 = vpop.permute.xlu0 %7784
  %v7786 = vperm.slane %v7392, 2
  %v7787 = vlaneseq
  %v7788 = vshrl.u32 %v7787, 7
  %7790 = vset.pattern.permute.xlu0 %v7788
  %7791 = vperm.xlu0 %7790, %v7786
  %v7792 = vpop.permute.xlu0 %7791
  %v7793 = vperm.slane %v7392, 3
  %v7794 = vlaneseq
  %v7795 = vshrl.u32 %v7794, 7
  %7797 = vset.pattern.permute.xlu0 %v7795
  %7798 = vperm.xlu0 %7797, %v7793
  %v7799 = vpop.permute.xlu0 %7798
  %v7800 = vperm.slane %v7392, 4
  %v7801 = vlaneseq
  %v7802 = vshrl.u32 %v7801, 7
  %7804 = vset.pattern.permute.xlu0 %v7802
  %7805 = vperm.xlu0 %7804, %v7800
  %v7806 = vpop.permute.xlu0 %7805
  %v7807 = vperm.slane %v7392, 5
  %v7808 = vlaneseq
  %v7809 = vshrl.u32 %v7808, 7
  %7811 = vset.pattern.permute.xlu0 %v7809
  %7812 = vperm.xlu0 %7811, %v7807
  %v7813 = vpop.permute.xlu0 %7812
  %v7814 = vperm.slane %v7392, 6
  %v7815 = vlaneseq
  %v7816 = vshrl.u32 %v7815, 7
  %7818 = vset.pattern.permute.xlu0 %v7816
  %7819 = vperm.xlu0 %7818, %v7814
  %v7820 = vpop.permute.xlu0 %7819
  %v7821 = vperm.slane %v7392, 7
  %v7822 = vlaneseq
  %v7823 = vshrl.u32 %v7822, 7
  %7825 = vset.pattern.permute.xlu0 %v7823
  %7826 = vperm.xlu0 %7825, %v7821
  %v7827 = vpop.permute.xlu0 %7826
  %v7828 = vperm.slane %v7393, 0
  %v7829 = vlaneseq
  %v7830 = vshrl.u32 %v7829, 7
  %7832 = vset.pattern.permute.xlu0 %v7830
  %7833 = vperm.xlu0 %7832, %v7828
  %v7834 = vpop.permute.xlu0 %7833
  %v7835 = vperm.slane %v7393, 1
  %v7836 = vlaneseq
  %v7837 = vshrl.u32 %v7836, 7
  %7839 = vset.pattern.permute.xlu0 %v7837
  %7840 = vperm.xlu0 %7839, %v7835
  %v7841 = vpop.permute.xlu0 %7840
  %v7842 = vperm.slane %v7393, 2
  %v7843 = vlaneseq
  %v7844 = vshrl.u32 %v7843, 7
  %7846 = vset.pattern.permute.xlu0 %v7844
  %7847 = vperm.xlu0 %7846, %v7842
  %v7848 = vpop.permute.xlu0 %7847
  %v7849 = vperm.slane %v7393, 3
  %v7850 = vlaneseq
  %v7851 = vshrl.u32 %v7850, 7
  %7853 = vset.pattern.permute.xlu0 %v7851
  %7854 = vperm.xlu0 %7853, %v7849
  %v7855 = vpop.permute.xlu0 %7854
  %v7856 = vperm.slane %v7393, 4
  %v7857 = vlaneseq
  %v7858 = vshrl.u32 %v7857, 7
  %7860 = vset.pattern.permute.xlu0 %v7858
  %7861 = vperm.xlu0 %7860, %v7856
  %v7862 = vpop.permute.xlu0 %7861
  %v7863 = vperm.slane %v7393, 5
  %v7864 = vlaneseq
  %v7865 = vshrl.u32 %v7864, 7
  %7867 = vset.pattern.permute.xlu0 %v7865
  %7868 = vperm.xlu0 %7867, %v7863
  %v7869 = vpop.permute.xlu0 %7868
  %v7870 = vperm.slane %v7393, 6
  %v7871 = vlaneseq
  %v7872 = vshrl.u32 %v7871, 7
  %7874 = vset.pattern.permute.xlu0 %v7872
  %7875 = vperm.xlu0 %7874, %v7870
  %v7876 = vpop.permute.xlu0 %7875
  %v7877 = vperm.slane %v7393, 7
  %v7878 = vlaneseq
  %v7879 = vshrl.u32 %v7878, 7
  %7881 = vset.pattern.permute.xlu0 %v7879
  %7882 = vperm.xlu0 %7881, %v7877
  %v7883 = vpop.permute.xlu0 %7882
  %v7884 = vperm.slane %v7394, 0
  %v7885 = vlaneseq
  %v7886 = vshrl.u32 %v7885, 7
  %7888 = vset.pattern.permute.xlu0 %v7886
  %7889 = vperm.xlu0 %7888, %v7884
  %v7890 = vpop.permute.xlu0 %7889
  %v7891 = vperm.slane %v7394, 1
  %v7892 = vlaneseq
  %v7893 = vshrl.u32 %v7892, 7
  %7895 = vset.pattern.permute.xlu0 %v7893
  %7896 = vperm.xlu0 %7895, %v7891
  %v7897 = vpop.permute.xlu0 %7896
  %v7898 = vperm.slane %v7394, 2
  %v7899 = vlaneseq
  %v7900 = vshrl.u32 %v7899, 7
  %7902 = vset.pattern.permute.xlu0 %v7900
  %7903 = vperm.xlu0 %7902, %v7898
  %v7904 = vpop.permute.xlu0 %7903
  %v7905 = vperm.slane %v7394, 3
  %v7906 = vlaneseq
  %v7907 = vshrl.u32 %v7906, 7
  %7909 = vset.pattern.permute.xlu0 %v7907
  %7910 = vperm.xlu0 %7909, %v7905
  %v7911 = vpop.permute.xlu0 %7910
  %v7912 = vperm.slane %v7394, 4
  %v7913 = vlaneseq
  %v7914 = vshrl.u32 %v7913, 7
  %7916 = vset.pattern.permute.xlu0 %v7914
  %7917 = vperm.xlu0 %7916, %v7912
  %v7918 = vpop.permute.xlu0 %7917
  %v7919 = vperm.slane %v7394, 5
  %v7920 = vlaneseq
  %v7921 = vshrl.u32 %v7920, 7
  %7923 = vset.pattern.permute.xlu0 %v7921
  %7924 = vperm.xlu0 %7923, %v7919
  %v7925 = vpop.permute.xlu0 %7924
  %v7926 = vperm.slane %v7394, 6
  %v7927 = vlaneseq
  %v7928 = vshrl.u32 %v7927, 7
  %7930 = vset.pattern.permute.xlu0 %v7928
  %7931 = vperm.xlu0 %7930, %v7926
  %v7932 = vpop.permute.xlu0 %7931
  %v7933 = vperm.slane %v7394, 7
  %v7934 = vlaneseq
  %v7935 = vshrl.u32 %v7934, 7
  %7937 = vset.pattern.permute.xlu0 %v7935
  %7938 = vperm.xlu0 %7937, %v7933
  %v7939 = vpop.permute.xlu0 %7938
  %v7940 = vperm.slane %v7395, 0
  %v7941 = vlaneseq
  %v7942 = vshrl.u32 %v7941, 7
  %7944 = vset.pattern.permute.xlu0 %v7942
  %7945 = vperm.xlu0 %7944, %v7940
  %v7946 = vpop.permute.xlu0 %7945
  %v7947 = vperm.slane %v7395, 1
  %v7948 = vlaneseq
  %v7949 = vshrl.u32 %v7948, 7
  %7951 = vset.pattern.permute.xlu0 %v7949
  %7952 = vperm.xlu0 %7951, %v7947
  %v7953 = vpop.permute.xlu0 %7952
  %v7954 = vperm.slane %v7395, 2
  %v7955 = vlaneseq
  %v7956 = vshrl.u32 %v7955, 7
  %7958 = vset.pattern.permute.xlu0 %v7956
  %7959 = vperm.xlu0 %7958, %v7954
  %v7960 = vpop.permute.xlu0 %7959
  %v7961 = vperm.slane %v7395, 3
  %v7962 = vlaneseq
  %v7963 = vshrl.u32 %v7962, 7
  %7965 = vset.pattern.permute.xlu0 %v7963
  %7966 = vperm.xlu0 %7965, %v7961
  %v7967 = vpop.permute.xlu0 %7966
  %v7968 = vperm.slane %v7395, 4
  %v7969 = vlaneseq
  %v7970 = vshrl.u32 %v7969, 7
  %7972 = vset.pattern.permute.xlu0 %v7970
  %7973 = vperm.xlu0 %7972, %v7968
  %v7974 = vpop.permute.xlu0 %7973
  %v7975 = vperm.slane %v7395, 5
  %v7976 = vlaneseq
  %v7977 = vshrl.u32 %v7976, 7
  %7979 = vset.pattern.permute.xlu0 %v7977
  %7980 = vperm.xlu0 %7979, %v7975
  %v7981 = vpop.permute.xlu0 %7980
  %v7982 = vperm.slane %v7395, 6
  %v7983 = vlaneseq
  %v7984 = vshrl.u32 %v7983, 7
  %7986 = vset.pattern.permute.xlu0 %v7984
  %7987 = vperm.xlu0 %7986, %v7982
  %v7988 = vpop.permute.xlu0 %7987
  %v7989 = vperm.slane %v7395, 7
  %v7990 = vlaneseq
  %v7991 = vshrl.u32 %v7990, 7
  %7993 = vset.pattern.permute.xlu0 %v7991
  %7994 = vperm.xlu0 %7993, %v7989
  %v7995 = vpop.permute.xlu0 %7994
  %v7996 = vmul.f32 %v7722, %v694
  %v7997 = vmul.f32 %v7729, %v694
  %v7998 = vmul.f32 %v7736, %v694
  %v7999 = vmul.f32 %v7743, %v694
  %v8000 = vmul.f32 %v7750, %v694
  %v8001 = vmul.f32 %v7757, %v694
  %v8002 = vmul.f32 %v7764, %v694
  %v8003 = vmul.f32 %v7771, %v694
  %v8004 = vmul.f32 %v7778, %v694
  %v8005 = vmul.f32 %v7785, %v694
  %v8006 = vmul.f32 %v7792, %v694
  %v8007 = vmul.f32 %v7799, %v694
  %v8008 = vmul.f32 %v7806, %v694
  %v8009 = vmul.f32 %v7813, %v694
  %v8010 = vmul.f32 %v7820, %v694
  %v8011 = vmul.f32 %v7827, %v694
  %v8012 = vmul.f32 %v7834, %v694
  %v8013 = vmul.f32 %v7841, %v694
  %v8014 = vmul.f32 %v7848, %v694
  %v8015 = vmul.f32 %v7855, %v694
  %v8016 = vmul.f32 %v7862, %v694
  %v8017 = vmul.f32 %v7869, %v694
  %v8018 = vmul.f32 %v7876, %v694
  %v8019 = vmul.f32 %v7883, %v694
  %v8020 = vmul.f32 %v7890, %v694
  %v8021 = vmul.f32 %v7897, %v694
  %v8022 = vmul.f32 %v7904, %v694
  %v8023 = vmul.f32 %v7911, %v694
  %v8024 = vmul.f32 %v7918, %v694
  %v8025 = vmul.f32 %v7925, %v694
  %v8026 = vmul.f32 %v7932, %v694
  %v8027 = vmul.f32 %v7939, %v694
  %v8028 = vmul.f32 %v7946, %v694
  %v8029 = vmul.f32 %v7953, %v694
  %v8030 = vmul.f32 %v7960, %v694
  %v8031 = vmul.f32 %v7967, %v694
  %v8032 = vmul.f32 %v7974, %v694
  %v8033 = vmul.f32 %v7981, %v694
  %v8034 = vmul.f32 %v7988, %v694
  %v8035 = vmul.f32 %v7995, %v694
  %v8036 = vadd.f32 %v7676, %v7996
  %v8037 = vadd.f32 %v7677, %v7997
  %v8038 = vadd.f32 %v7678, %v7998
  %v8039 = vadd.f32 %v7679, %v7999
  %v8040 = vadd.f32 %v7680, %v8000
  %v8041 = vadd.f32 %v7681, %v8001
  %v8042 = vadd.f32 %v7682, %v8002
  %v8043 = vadd.f32 %v7683, %v8003
  %v8044 = vadd.f32 %v7684, %v8004
  %v8045 = vadd.f32 %v7685, %v8005
  %v8046 = vadd.f32 %v7686, %v8006
  %v8047 = vadd.f32 %v7687, %v8007
  %v8048 = vadd.f32 %v7688, %v8008
  %v8049 = vadd.f32 %v7689, %v8009
  %v8050 = vadd.f32 %v7690, %v8010
  %v8051 = vadd.f32 %v7691, %v8011
  %v8052 = vadd.f32 %v7692, %v8012
  %v8053 = vadd.f32 %v7693, %v8013
  %v8054 = vadd.f32 %v7694, %v8014
  %v8055 = vadd.f32 %v7695, %v8015
  %v8056 = vadd.f32 %v7696, %v8016
  %v8057 = vadd.f32 %v7697, %v8017
  %v8058 = vadd.f32 %v7698, %v8018
  %v8059 = vadd.f32 %v7699, %v8019
  %v8060 = vadd.f32 %v7700, %v8020
  %v8061 = vadd.f32 %v7701, %v8021
  %v8062 = vadd.f32 %v7702, %v8022
  %v8063 = vadd.f32 %v7703, %v8023
  %v8064 = vadd.f32 %v7704, %v8024
  %v8065 = vadd.f32 %v7705, %v8025
  %v8066 = vadd.f32 %v7706, %v8026
  %v8067 = vadd.f32 %v7707, %v8027
  %v8068 = vadd.f32 %v7708, %v8028
  %v8069 = vadd.f32 %v7709, %v8029
  %v8070 = vadd.f32 %v7710, %v8030
  %v8071 = vadd.f32 %v7711, %v8031
  %v8072 = vadd.f32 %v7712, %v8032
  %v8073 = vadd.f32 %v7713, %v8033
  %v8074 = vadd.f32 %v7714, %v8034
  %v8075 = vadd.f32 %v7715, %v8035
  %v8076 = vadd.f32 %v8036, %v776
  %v8077 = vadd.f32 %v8037, %v776
  %v8078 = vadd.f32 %v8038, %v776
  %v8079 = vadd.f32 %v8039, %v776
  %v8080 = vadd.f32 %v8040, %v776
  %v8081 = vadd.f32 %v8041, %v776
  %v8082 = vadd.f32 %v8042, %v776
  %v8083 = vadd.f32 %v8043, %v776
  %v8084 = vadd.f32 %v8044, %v776
  %v8085 = vadd.f32 %v8045, %v776
  %v8086 = vadd.f32 %v8046, %v776
  %v8087 = vadd.f32 %v8047, %v776
  %v8088 = vadd.f32 %v8048, %v776
  %v8089 = vadd.f32 %v8049, %v776
  %v8090 = vadd.f32 %v8050, %v776
  %v8091 = vadd.f32 %v8051, %v776
  %v8092 = vadd.f32 %v8052, %v776
  %v8093 = vadd.f32 %v8053, %v776
  %v8094 = vadd.f32 %v8054, %v776
  %v8095 = vadd.f32 %v8055, %v776
  %v8096 = vadd.f32 %v8056, %v776
  %v8097 = vadd.f32 %v8057, %v776
  %v8098 = vadd.f32 %v8058, %v776
  %v8099 = vadd.f32 %v8059, %v776
  %v8100 = vadd.f32 %v8060, %v776
  %v8101 = vadd.f32 %v8061, %v776
  %v8102 = vadd.f32 %v8062, %v776
  %v8103 = vadd.f32 %v8063, %v776
  %v8104 = vadd.f32 %v8064, %v776
  %v8105 = vadd.f32 %v8065, %v776
  %v8106 = vadd.f32 %v8066, %v776
  %v8107 = vadd.f32 %v8067, %v776
  %v8108 = vadd.f32 %v8068, %v776
  %v8109 = vadd.f32 %v8069, %v776
  %v8110 = vadd.f32 %v8070, %v776
  %v8111 = vadd.f32 %v8071, %v776
  %v8112 = vadd.f32 %v8072, %v776
  %v8113 = vadd.f32 %v8073, %v776
  %v8114 = vadd.f32 %v8074, %v776
  %v8115 = vadd.f32 %v8075, %v776
  %s8116 = scalar_lea.vmem [#allocation2], 2880
  %8117 = vst [vmem:[%s8116] sm:$0xff] %v8076
  %8118 = vst [vmem:[%s8116 + $0x8] sm:$0xff] %v8077
  %8119 = vst [vmem:[%s8116 + $0x10] sm:$0xff] %v8078
  %8120 = vst [vmem:[%s8116 + $0x18] sm:$0xff] %v8079
  %8121 = vst [vmem:[%s8116 + $0x20] sm:$0xff] %v8080
  %8122 = vst [vmem:[%s8116 + $0x28] sm:$0xff] %v8081
  %8123 = vst [vmem:[%s8116 + $0x30] sm:$0xff] %v8082
  %8124 = vst [vmem:[%s8116 + $0x38] sm:$0xff] %v8083
  %8125 = vst [vmem:[%s8116 + $0x40] sm:$0xff] %v8084
  %8126 = vst [vmem:[%s8116 + $0x48] sm:$0xff] %v8085
  %8127 = vst [vmem:[%s8116 + $0x50] sm:$0xff] %v8086
  %8128 = vst [vmem:[%s8116 + $0x58] sm:$0xff] %v8087
  %8129 = vst [vmem:[%s8116 + $0x60] sm:$0xff] %v8088
  %8130 = vst [vmem:[%s8116 + $0x68] sm:$0xff] %v8089
  %8131 = vst [vmem:[%s8116 + $0x70] sm:$0xff] %v8090
  %8132 = vst [vmem:[%s8116 + $0x78] sm:$0xff] %v8091
  %8133 = vst [vmem:[%s8116 + $0x80] sm:$0xff] %v8092
  %8134 = vst [vmem:[%s8116 + $0x88] sm:$0xff] %v8093
  %8135 = vst [vmem:[%s8116 + $0x90] sm:$0xff] %v8094
  %8136 = vst [vmem:[%s8116 + $0x98] sm:$0xff] %v8095
  %8137 = vst [vmem:[%s8116 + $0xa0] sm:$0xff] %v8096
  %8138 = vst [vmem:[%s8116 + $0xa8] sm:$0xff] %v8097
  %8139 = vst [vmem:[%s8116 + $0xb0] sm:$0xff] %v8098
  %8140 = vst [vmem:[%s8116 + $0xb8] sm:$0xff] %v8099
  %8141 = vst [vmem:[%s8116 + $0xc0] sm:$0xff] %v8100
  %8142 = vst [vmem:[%s8116 + $0xc8] sm:$0xff] %v8101
  %8143 = vst [vmem:[%s8116 + $0xd0] sm:$0xff] %v8102
  %8144 = vst [vmem:[%s8116 + $0xd8] sm:$0xff] %v8103
  %8145 = vst [vmem:[%s8116 + $0xe0] sm:$0xff] %v8104
  %8146 = vst [vmem:[%s8116 + $0xe8] sm:$0xff] %v8105
  %8147 = vst [vmem:[%s8116 + $0xf0] sm:$0xff] %v8106
  %8148 = vst [vmem:[%s8116 + $0xf8] sm:$0xff] %v8107
  %8149 = vst [vmem:[%s8116 + $0x100] sm:$0xff] %v8108
  %8150 = vst [vmem:[%s8116 + $0x108] sm:$0xff] %v8109
  %8151 = vst [vmem:[%s8116 + $0x110] sm:$0xff] %v8110
  %8152 = vst [vmem:[%s8116 + $0x118] sm:$0xff] %v8111
  %8153 = vst [vmem:[%s8116 + $0x120] sm:$0xff] %v8112
  %8154 = vst [vmem:[%s8116 + $0x128] sm:$0xff] %v8113
  %8155 = vst [vmem:[%s8116 + $0x130] sm:$0xff] %v8114
  %8156 = vst [vmem:[%s8116 + $0x138] sm:$0xff] %v8115
  %v8157 = vld [vmem:[%s3] sm:$0xff]
  %v8158 = vld [vmem:[%s3 + $0x8] sm:$0xff]
  %v8159 = vld [vmem:[%s3 + $0x10] sm:$0xff]
  %v8160 = vld [vmem:[%s3 + $0x18] sm:$0xff]
  loop: start=0, step=1, limit=100
  $region38: #{tpu_custom_call.1} parent=0 // loop_pre_header
    _
  $region39: #{tpu_custom_call.1} parent=0 // loop_header
    %s8162 = sphi 0, %s8166
    %p8163 = scmp.ge.s32.totalorder %s8162, 100
    %v8167 = vphi 0.0, %v8369
    %v8168 = vphi 0.0, %v8363
  $region40: #{tpu_custom_call.1} parent=0 // loop_header_branch
    %8165 = sbr.rel (%p8163) target = $region44
  $region41: #{tpu_custom_call.1} parent=0 // loop_body
    %s8169 = smul.u32 %s8162, 4
    %s8170 = smul.u32 %s8169, 8
    %s8171 = scalar_lea.vmem [#allocation2], %s8170
    %v8172 = vld [vmem:[%s8171] sm:$0xff]
    %8174 = vrot.lane.b32.xlu0 %v8167, 64
    %v8175 = vpop.permute.xlu0 %8174
    %vm8176 = vcmask 261120
    %v8177 = vsel %vm8176, %v8175, 0
    %8179 = vmatpush.msra.mxu0 0.0
    %8180 = vmatpush.msra.mxu0 0.0
    %8181 = vmatpush.msra.mxu0 0.0
    %8182 = vmatpush.msra.mxu0 0.0
    %8183 = vmatpush.msra.mxu0 0.0
    %8184 = vmatpush.msra.mxu0 0.0
    %8185 = vmatpush.msra.mxu0 0.0
    %8186 = vmatpush.msra.mxu0 0.0
    %8187 = vmatpush.msra.mxu0 0.0
    %8188 = vmatpush.msra.mxu0 0.0
    %8189 = vmatpush.msra.mxu0 0.0
    %8190 = vmatpush.msra.mxu0 0.0
    %8191 = vmatpush.msra.mxu0 %v8160
    %8192 = vmatpush.msra.mxu0 %v8159
    %8193 = vmatpush.msra.mxu0 %v8158
    %8194 = vmatpush.msra.mxu0 %v8157
    %8195 = vmatmul.f32.gmra.mxu0 %v8177
    %v8196 = vpop.f32.mrf.mxu0
    %v8197 = vadd.f32 0.0, %v8196
    %8198 = vdwg.mxu0
    %v8199 = vadd.f32 %v8172, %v8197
    %v8200 = vtanh.pop %v8199
    %v8201 = vmul.f32 %v8200, 0.5
    %v8202 = vadd.f32 %v8201, 0.5
    %v8203 = vmul.f32 %v8202, %v8168
    %8205 = vrot.lane.b32.xlu0 %v8200, 32
    %v8206 = vpop.permute.xlu0 %8205
    %v8208 = vmul.f32 %v8202, %v8206
    %8210 = vrot.lane.b32.xlu0 %v8208, 32
    %v8211 = vpop.permute.xlu0 %8210
    %v8213 = vadd.f32 %v8203, %v8211
    %v8214 = vtanh.pop %v8213
    %8216 = vrot.lane.b32.xlu0 %v8214, 32
    %v8217 = vpop.permute.xlu0 %8216
    %v8219 = vmul.f32 %v8202, %v8217
    %s8220 = sadd.s32 %s8169, 1
    %s8221 = smul.u32 %s8220, 8
    %s8222 = scalar_lea.vmem [#allocation2], %s8221
    %v8223 = vld [vmem:[%s8222] sm:$0xff]
    %8225 = vrot.lane.b32.xlu0 %v8219, 64
    %v8226 = vpop.permute.xlu0 %8225
    %v8227 = vsel %vm8176, %v8226, 0
    %8229 = vmatpush.msra.mxu0 0.0
    %8230 = vmatpush.msra.mxu0 0.0
    %8231 = vmatpush.msra.mxu0 0.0
    %8232 = vmatpush.msra.mxu0 0.0
    %8233 = vmatpush.msra.mxu0 0.0
    %8234 = vmatpush.msra.mxu0 0.0
    %8235 = vmatpush.msra.mxu0 0.0
    %8236 = vmatpush.msra.mxu0 0.0
    %8237 = vmatpush.msra.mxu0 0.0
    %8238 = vmatpush.msra.mxu0 0.0
    %8239 = vmatpush.msra.mxu0 0.0
    %8240 = vmatpush.msra.mxu0 0.0
    %8241 = vmatpush.msra.mxu0 %v8160
    %8242 = vmatpush.msra.mxu0 %v8159
    %8243 = vmatpush.msra.mxu0 %v8158
    %8244 = vmatpush.msra.mxu0 %v8157
    %8245 = vmatmul.f32.gmra.mxu0 %v8227
    %v8246 = vpop.f32.mrf.mxu0
    %v8247 = vadd.f32 0.0, %v8246
    %8248 = vdwg.mxu0
    %v8249 = vadd.f32 %v8223, %v8247
    %v8250 = vtanh.pop %v8249
    %v8251 = vmul.f32 %v8250, 0.5
    %v8252 = vadd.f32 %v8251, 0.5
    %v8253 = vmul.f32 %v8252, %v8213
    %8255 = vrot.lane.b32.xlu0 %v8250, 32
    %v8256 = vpop.permute.xlu0 %8255
    %v8258 = vmul.f32 %v8252, %v8256
    %8260 = vrot.lane.b32.xlu0 %v8258, 32
    %v8261 = vpop.permute.xlu0 %8260
    %v8263 = vadd.f32 %v8253, %v8261
    %v8264 = vtanh.pop %v8263
    %8266 = vrot.lane.b32.xlu0 %v8264, 32
    %v8267 = vpop.permute.xlu0 %8266
    %v8269 = vmul.f32 %v8252, %v8267
    %s8270 = sadd.s32 %s8169, 2
    %s8271 = smul.u32 %s8270, 8
    %s8272 = scalar_lea.vmem [#allocation2], %s8271
    %v8273 = vld [vmem:[%s8272] sm:$0xff]
    %8275 = vrot.lane.b32.xlu0 %v8269, 64
    %v8276 = vpop.permute.xlu0 %8275
    %v8277 = vsel %vm8176, %v8276, 0
    %8279 = vmatpush.msra.mxu0 0.0
    %8280 = vmatpush.msra.mxu0 0.0
    %8281 = vmatpush.msra.mxu0 0.0
    %8282 = vmatpush.msra.mxu0 0.0
    %8283 = vmatpush.msra.mxu0 0.0
    %8284 = vmatpush.msra.mxu0 0.0
    %8285 = vmatpush.msra.mxu0 0.0
    %8286 = vmatpush.msra.mxu0 0.0
    %8287 = vmatpush.msra.mxu0 0.0
    %8288 = vmatpush.msra.mxu0 0.0
    %8289 = vmatpush.msra.mxu0 0.0
    %8290 = vmatpush.msra.mxu0 0.0
    %8291 = vmatpush.msra.mxu0 %v8160
    %8292 = vmatpush.msra.mxu0 %v8159
    %8293 = vmatpush.msra.mxu0 %v8158
    %8294 = vmatpush.msra.mxu0 %v8157
    %8295 = vmatmul.f32.gmra.mxu0 %v8277
    %v8296 = vpop.f32.mrf.mxu0
    %v8297 = vadd.f32 0.0, %v8296
    %8298 = vdwg.mxu0
    %v8299 = vadd.f32 %v8273, %v8297
    %v8300 = vtanh.pop %v8299
    %v8301 = vmul.f32 %v8300, 0.5
    %v8302 = vadd.f32 %v8301, 0.5
    %v8303 = vmul.f32 %v8302, %v8263
    %8305 = vrot.lane.b32.xlu0 %v8300, 32
    %v8306 = vpop.permute.xlu0 %8305
    %v8308 = vmul.f32 %v8302, %v8306
    %8310 = vrot.lane.b32.xlu0 %v8308, 32
    %v8311 = vpop.permute.xlu0 %8310
    %v8313 = vadd.f32 %v8303, %v8311
    %v8314 = vtanh.pop %v8313
    %8316 = vrot.lane.b32.xlu0 %v8314, 32
    %v8317 = vpop.permute.xlu0 %8316
    %v8319 = vmul.f32 %v8302, %v8317
    %s8320 = sadd.s32 %s8169, 3
    %s8321 = smul.u32 %s8320, 8
    %s8322 = scalar_lea.vmem [#allocation2], %s8321
    %v8323 = vld [vmem:[%s8322] sm:$0xff]
    %8325 = vrot.lane.b32.xlu0 %v8319, 64
    %v8326 = vpop.permute.xlu0 %8325
    %v8327 = vsel %vm8176, %v8326, 0
    %8329 = vmatpush.msra.mxu0 0.0
    %8330 = vmatpush.msra.mxu0 0.0
    %8331 = vmatpush.msra.mxu0 0.0
    %8332 = vmatpush.msra.mxu0 0.0
    %8333 = vmatpush.msra.mxu0 0.0
    %8334 = vmatpush.msra.mxu0 0.0
    %8335 = vmatpush.msra.mxu0 0.0
    %8336 = vmatpush.msra.mxu0 0.0
    %8337 = vmatpush.msra.mxu0 0.0
    %8338 = vmatpush.msra.mxu0 0.0
    %8339 = vmatpush.msra.mxu0 0.0
    %8340 = vmatpush.msra.mxu0 0.0
    %8341 = vmatpush.msra.mxu0 %v8160
    %8342 = vmatpush.msra.mxu0 %v8159
    %8343 = vmatpush.msra.mxu0 %v8158
    %8344 = vmatpush.msra.mxu0 %v8157
    %8345 = vmatmul.f32.gmra.mxu0 %v8327
    %v8346 = vpop.f32.mrf.mxu0
    %v8347 = vadd.f32 0.0, %v8346
    %8348 = vdwg.mxu0
    %v8349 = vadd.f32 %v8323, %v8347
    %v8350 = vtanh.pop %v8349
    %v8351 = vmul.f32 %v8350, 0.5
    %v8352 = vadd.f32 %v8351, 0.5
    %v8353 = vmul.f32 %v8352, %v8313
    %8355 = vrot.lane.b32.xlu0 %v8350, 32
    %v8356 = vpop.permute.xlu0 %8355
    %v8358 = vmul.f32 %v8352, %v8356
    %8360 = vrot.lane.b32.xlu0 %v8358, 32
    %v8361 = vpop.permute.xlu0 %8360
    %v8363 = vadd.f32 %v8353, %v8361
    %v8364 = vtanh.pop %v8363
    %8366 = vrot.lane.b32.xlu0 %v8364, 32
    %v8367 = vpop.permute.xlu0 %8366
    %v8369 = vmul.f32 %v8352, %v8367
  $region42: #{tpu_custom_call.1} parent=0 // loop_footer
    %s8166 = sadd.s32 1, %s8162
  $region43: #{tpu_custom_call.1} parent=0 // loop_footer_branch
    %8161 = sbr.rel target = $region39
  $region44: #{tpu_custom_call.1} parent=0 // loop_exit
    _
  %v8370 = vld [vmem:[%s5] sm:$0xff]
  %v8371 = vld [vmem:[%s5 + $0x8] sm:$0xff]
  %v8372 = vld [vmem:[%s5 + $0x10] sm:$0xff]
  %v8373 = vld [vmem:[%s5 + $0x18] sm:$0xff]
  %8375 = vrot.lane.b32.xlu0 %v8167, 64
  %v8376 = vpop.permute.xlu0 %8375
  %vm8377 = vcmask 261120
  %v8378 = vsel %vm8377, %v8376, 0
  %8380 = vmatpush.msra.mxu0 0.0
  %8381 = vmatpush.msra.mxu0 0.0
  %8382 = vmatpush.msra.mxu0 0.0
  %8383 = vmatpush.msra.mxu0 0.0
  %8384 = vmatpush.msra.mxu0 0.0
  %8385 = vmatpush.msra.mxu0 0.0
  %8386 = vmatpush.msra.mxu0 0.0
  %8387 = vmatpush.msra.mxu0 0.0
  %8388 = vmatpush.msra.mxu0 0.0
  %8389 = vmatpush.msra.mxu0 0.0
  %8390 = vmatpush.msra.mxu0 0.0
  %8391 = vmatpush.msra.mxu0 0.0
  %8392 = vmatpush.msra.mxu0 %v8373
  %8393 = vmatpush.msra.mxu0 %v8372
  %8394 = vmatpush.msra.mxu0 %v8371
  %8395 = vmatpush.msra.mxu0 %v8370
  %8396 = vmatmul.f32.gmra.mxu0 %v8378
  %v8397 = vpop.f32.mrf.mxu0
  %v8398 = vadd.f32 0.0, %v8397
  %8399 = vdwg.mxu0
  %v8400 = vld [vmem:[#allocation3] sm:$0x1]
  %vm8401 = vcmp.ge.f32.partialorder %v8398, 0.0
  %v8403 = vperm.slane %v8400, 0
  %8404 = vset.pattern.permute.xlu0 0
  %8405 = vperm.xlu0 %8404, %v8403
  %v8406 = vpop.permute.xlu0 %8405
  %v8408 = vmul.f32 %v8406, %v8398
  %v8409 = vsel %vm8401, %v8398, %v8408
  %v8410 = vld [vmem:[%s7] sm:$0x1]
  %v8412 = vperm.slane %v8410, 0
  %v8414 = vmul.f32 %v8409, %v8412
  %vm8415 = vcmask 130048
  %v8416 = vsel %vm8415, %v8414, 0.0
  %8417 = vadd.xlane.f32.xlu0 %v8416
  %v8418 = vpop.xlane.xlu0 %8417
  %v8419 = vld [vmem:[#allocation4] sm:$0x1]
  %v8421 = vperm.slane %v8419, 0
  %v8423 = vadd.f32 %v8418, %v8421
  %vm8424 = vcmp.gt.f32.partialorder %v8423, 0.0
  %v8425 = vmin.f32 %v8423, 0.0
  %v8426 = vmul.f32 %v8425, 1.442695
  %v8427 = vpow.pop %v8426
  %v8428 = vsub.f32 %v8427, 1.0
  %v8429 = vsel %vm8424, %v8423, %v8428
  %vm8430 = vcmask 7168
  %8431 = vst.msk [vmem:[%s9] sm:$0xff] %vm8430, %v8429
  // Predicated region
  $region45: #{tpu_custom_call.1} parent=0 // pred_check
    _
  $region46: #{tpu_custom_call.1} parent=0 // pred_check_branch
    %8433 = sbr.rel (0) target = $region48
  $region47: #{tpu_custom_call.1} parent=0 // pred_region
    _
  $region48: #{tpu_custom_call.1} parent=0 // pred_fallthru
    _
  // Predicated region
  $region49: #{tpu_custom_call.1} parent=0 // pred_check
    _
  $region50: #{tpu_custom_call.1} parent=0 // pred_check_branch
    %8435 = sbr.rel (0) target = $region52
  $region51: #{tpu_custom_call.1} parent=0 // pred_region
    _
  $region52: #{tpu_custom_call.1} parent=0 // pred_fallthru
    _

</llo_original>
